<compile_context>
chip_gen: v5e
topology: v5e:2x2
jax: 0.10.0
libtpu: 0.0.40
codegen_flags: <defaults>
</compile_context>

<pallas_src>
import functools

import jax
import jax.numpy as jnp
from jax.experimental import pallas as pl
from jax.experimental.pallas import tpu as pltpu


# ---------------- chip-adaptive limits ----------------

@functools.lru_cache(maxsize=1)
def _vmem_limit_bytes():
    # half of physical VMEM, clamped: ~32 MiB on v7x (64 MiB/TC), 64 MiB on v5e/v6e (128 MiB)
    try:
        cap = int(pltpu.get_tpu_info().vmem_capacity_bytes)
    except Exception:
        cap = 64 * 1024 * 1024
    return int(min(max(cap // 2, 32 * 1024 * 1024), 96 * 1024 * 1024))


def _row_cap():
    return 8192 if _vmem_limit_bytes() >= 64 * 1024 * 1024 else 4096


def _cparams():
    return pltpu.CompilerParams(dimension_semantics=("parallel",),
                                vmem_limit_bytes=_vmem_limit_bytes())


def _pick_tile_th(n_images, H, W, row_cap):
    """Image rows per tile: TH | H, TH*W <= row_cap, TH*W % 8 == 0, >= 4 grid steps."""
    divs = [d for d in range(1, H + 1) if H % d == 0 and (d * W) % 8 == 0]
    if not divs:
        # TODO(synk): H*W not a multiple of 8 is not supported by this row tiling.
        return H
    fitting = [d for d in divs if d * W <= row_cap]
    th = max(fitting) if fitting else min(divs)
    while n_images * (H // th) < 4:
        smaller = [d for d in divs if d < th and d * W <= row_cap]
        if not smaller:
            break
        th = max(smaller)
    return th


# ---------------- Pallas kernels (hot path) ----------------

def _layer_kernel(yp_ref, hz_ref, zt_ref, zb_ref, ml_ref, mr_ref,
                  wy_ref, wz_ref, b_ref, sc_ref, sh_ref,
                  h_ref, st_ref, ez_ref, *, apply_relu):
    """Fused [prev BN(+ReLU)] -> cat(y, z) -> SpectralNorm conv3x3, two-phase BN stats."""
    THW, C = hz_ref.shape
    W = zt_ref.shape[1]

    # ---- fused previous-layer BatchNorm (+ReLU) on the resident activation tile
    a = hz_ref[...].astype(jnp.float32) * sc_ref[...] + sh_ref[...]
    if apply_relu:
        a = jnp.maximum(a, 0.0)
    a = a.astype(jnp.bfloat16)

    # ---- haloed activation slab in VMEM:
    #      [dummy row | top halo row | TH interior rows | bottom halo row | dummy row]
    zrow = jnp.zeros((W, C), jnp.bfloat16)
    ez_ref[pl.ds(0, W), :] = zrow                    # dummy, only ever read masked
    ez_ref[pl.ds(W, W), :] = zt_ref[0]
    ez_ref[pl.ds(2 * W, THW), :] = a
    ez_ref[pl.ds(2 * W + THW, W), :] = zb_ref[0]
    ez_ref[pl.ds(3 * W + THW, W), :] = zrow          # dummy, only ever read masked

    # ---- message taps: single MXU matmul against the precomputed 3x3 y-patches
    acc = jnp.dot(yp_ref[...], wy_ref[...], preferred_element_type=jnp.float32)

    # ---- z taps: 3x3 conv as 9 shifted accumulating MXU matmuls over the slab
    for dy in range(3):
        for dx in range(3):
            off = (dy + 1) * W + dx - 1
            lhs = ez_ref[pl.ds(off, THW), :]
            if dx == 0:                              # left neighbour: kill wrapped col W-1
                lhs = lhs * ml_ref[pl.ds(off, THW), :]
            elif dx == 2:                            # right neighbour: kill wrapped col 0
                lhs = lhs * mr_ref[pl.ds(off, THW), :]
            acc = acc + jnp.dot(lhs, wz_ref[dy * 3 + dx],
                                preferred_element_type=jnp.float32)

    h = acc + b_ref[...]
    h_ref[...] = h.astype(h_ref.dtype)               # bf16 pre-BN activation
    # per-tile [sum, sum of squares] so batch statistics stay exact under tiling
    st_ref[0, 0:1, :] = jnp.sum(h, axis=0, keepdims=True)
    st_ref[0, 1:2, :] = jnp.sum(h * h, axis=0, keepdims=True)


def _final_kernel(h_ref, sc_ref, sh_ref, w_ref, b_ref, x_ref, s_ref, o_ref):
    # fused: layer-5 BN+ReLU -> conv6 (1x1) -> * S_factor + x
    a = jnp.maximum(h_ref[...].astype(jnp.float32) * sc_ref[...] + sh_ref[...], 0.0)
    out = jnp.dot(a.astype(jnp.bfloat16), w_ref[...],
                  preferred_element_type=jnp.float32) + b_ref[...]
    o_ref[...] = out * s_ref[0] + x_ref[...]


# ---------------- pallas_call wrappers ----------------

def conv3x3_bn_fused_layer(y_patches, h_prev, z_top, z_bot, mask_l, mask_r,
                           wy, wz, b, scale, shift, *, apply_relu, tile_rows):
    R, KY = y_patches.shape
    C = h_prev.shape[1]
    W = z_top.shape[1]
    cout = wz.shape[2]
    num_tiles = R // tile_rows
    ext_len = mask_l.shape[0]

    kernel = functools.partial(_layer_kernel, apply_relu=apply_relu)
    flops = 2 * R * (KY + 9 * C) * cout + 8 * R * cout
    bytes_accessed = (R * (KY + C) * 2 + R * cout * 2 + 2 * num_tiles * W * C * 2
                      + (KY + 9 * C) * cout * 2 + 2 * ext_len * 2
                      + num_tiles * 2 * cout * 4 + 3 * cout * 4)
    return pl.pallas_call(
        kernel,
        grid=(num_tiles,),
        in_specs=[
            pl.BlockSpec((tile_rows, KY), lambda i: (i, 0)),      # y 3x3 patches
            pl.BlockSpec((tile_rows, C), lambda i: (i, 0)),       # prev pre-BN activation
            pl.BlockSpec((1, W, C), lambda i: (i, 0, 0)),         # top halo row (activated)
            pl.BlockSpec((1, W, C), lambda i: (i, 0, 0)),         # bottom halo row
            pl.BlockSpec((ext_len, 1), lambda i: (0, 0)),         # left-tap column mask
            pl.BlockSpec((ext_len, 1), lambda i: (0, 0)),         # right-tap column mask
            pl.BlockSpec((KY, cout), lambda i: (0, 0)),           # y-tap weights
            pl.BlockSpec((9, C, cout), lambda i: (0, 0, 0)),      # z-tap weights (per tap)
            pl.BlockSpec((1, cout), lambda i: (0, 0)),            # conv bias
            pl.BlockSpec((1, C), lambda i: (0, 0)),               # prev BN scale
            pl.BlockSpec((1, C), lambda i: (0, 0)),               # prev BN shift
        ],
        out_specs=[
            pl.BlockSpec((tile_rows, cout), lambda i: (i, 0)),
            pl.BlockSpec((1, 2, cout), lambda i: (i, 0, 0)),
        ],
        out_shape=(jax.ShapeDtypeStruct((R, cout), jnp.bfloat16),
                   jax.ShapeDtypeStruct((num_tiles, 2, cout), jnp.float32)),
        scratch_shapes=[pltpu.VMEM((ext_len, C), jnp.bfloat16)],
        compiler_params=_cparams(),
        cost_estimate=pl.CostEstimate(flops=flops, transcendentals=0,
                                      bytes_accessed=bytes_accessed),
    )(y_patches, h_prev, z_top, z_bot, mask_l, mask_r,
      wy, wz, b.reshape(1, cout), scale.reshape(1, C), shift.reshape(1, C))


def conv6_residual(h, scale, shift, w6, b6, x_flat, s_factor, *, tile_rows):
    R, C = h.shape
    cout = w6.shape[1]
    num_tiles = R // tile_rows
    # TODO(synk): the x load / output store stay (rows, Cin) with Cin<128 (lane-sparse);
    # a lane-dense (N*H, W*Cin) presentation needs an in-kernel relayout not done here.
    cost = pl.CostEstimate(
        flops=2 * R * C * cout + 4 * R * (C + cout),
        transcendentals=0,
        bytes_accessed=R * C * 2 + 2 * R * cout * 4 + C * cout * 2 + 3 * C * 4)
    return pl.pallas_call(
        _final_kernel,
        grid=(num_tiles,),
        in_specs=[
            pl.BlockSpec((tile_rows, C), lambda i: (i, 0)),
            pl.BlockSpec((1, C), lambda i: (0, 0)),
            pl.BlockSpec((1, C), lambda i: (0, 0)),
            pl.BlockSpec((C, cout), lambda i: (0, 0)),
            pl.BlockSpec((1, cout), lambda i: (0, 0)),
            pl.BlockSpec((tile_rows, cout), lambda i: (i, 0)),
            pl.BlockSpec(memory_space=pltpu.MemorySpace.SMEM),
        ],
        out_specs=pl.BlockSpec((tile_rows, cout), lambda i: (i, 0)),
        out_shape=jax.ShapeDtypeStruct((R, cout), jnp.float32),
        compiler_params=_cparams(),
        cost_estimate=cost,
    )(h, scale.reshape(1, C), shift.reshape(1, C), w6, b6.reshape(1, cout),
      x_flat, s_factor.reshape(1))


# ---------------- plain-JAX glue ----------------

def im2col_3x3(x_nhwc):
    """3x3 / stride 1 / pad 1 patches -> [N*H*W, 9*C], (ky, kx) major, channel minor."""
    N, H, W, C = x_nhwc.shape
    xp = jnp.pad(x_nhwc, ((0, 0), (1, 1), (1, 1), (0, 0)))
    cols = [xp[:, dy:dy + H, dx:dx + W, :] for dy in range(3) for dx in range(3)]
    return jnp.concatenate(cols, axis=-1).reshape(N * H * W, 9 * C)


def _halo_rows(a4, TH, nt, act):
    """+-1 image rows each H-tile needs (zeros at the image border), activated XLA-side.
    a4: (N, H, W, C) pre-BN -> (N*nt, W, C) top / bottom halo rows (bf16)."""
    N, H, W, C = a4.shape
    if nt == 1:
        z = jnp.zeros((N * nt, W, C), jnp.bfloat16)
        return z, z
    zero = jnp.zeros((N, 1, W, C), jnp.bfloat16)
    t = act(a4[:, TH - 1:(nt - 1) * TH:TH]).astype(jnp.bfloat16)   # rows above tiles 1..nt-1
    b = act(a4[:, TH:H:TH]).astype(jnp.bfloat16)                   # rows below tiles 0..nt-2
    top = jnp.concatenate([zero, t], axis=1).reshape(N * nt, W, C)
    bot = jnp.concatenate([b, zero], axis=1).reshape(N * nt, W, C)
    return top, bot


def spectral_normalize(w, n_iter=5):
    """Deterministic power-iteration spectral normalization (torch SpectralNorm analogue)."""
    # TODO(synk): torch's SpectralNorm keeps a persistent `u` buffer updated one step per
    # forward; here we run a fixed number of deterministic iterations at init.
    cout = w.shape[0]
    wm = w.reshape(cout, -1)
    u = jax.random.normal(jax.random.PRNGKey(123), (cout,), jnp.float32)
    u = u / (jnp.linalg.norm(u) + 1e-12)
    v = None
    for _ in range(n_iter):
        v = wm.T @ u
        v = v / (jnp.linalg.norm(v) + 1e-12)
        u = wm @ v
        u = u / (jnp.linalg.norm(u) + 1e-12)
    sigma = u @ (wm @ v)
    return w / sigma


def init_params(key, in_channels, message_length):
    L = message_length
    keys = jax.random.split(key, 16)
    params = {}

    # conv0: 1x1, in_channels -> 64 (with bias), applied as an XLA einsum
    params["w0"] = (jax.random.normal(keys[0], (in_channels, 64), jnp.float32)
                    / jnp.sqrt(float(in_channels)))
    params["b0"] = jax.random.normal(keys[1], (64,), jnp.float32) * 0.01

    # conv1..conv5: SpectralNorm(Conv 3x3 (64+L)->64) + BN + ReLU
    cin = 64 + L
    for i in range(1, 6):
        kw = jax.random.normal(keys[2 * i], (64, cin, 3, 3), jnp.float32) / jnp.sqrt(9.0 * cin)
        kw = spectral_normalize(kw)
        # channel order after torch.cat((y, z), dim=1): [y (L) ; z (64)]
        kw_y = kw[:, :L, :, :]
        kw_z = kw[:, L:, :, :]
        # [Cout, Cin, ky, kx] -> [ky, kx, Cin, Cout]
        params[f"wy{i}"] = jnp.transpose(kw_y, (2, 3, 1, 0)).reshape(9 * L, 64).astype(jnp.bfloat16)
        params[f"wz{i}"] = jnp.transpose(kw_z, (2, 3, 1, 0)).reshape(9, 64, 64).astype(jnp.bfloat16)
        params[f"b{i}"] = jax.random.normal(keys[2 * i + 1], (64,), jnp.float32) * 0.01
        params[f"g{i}"] = jnp.ones((64,), jnp.float32)    # BN gamma (torch default)
        params[f"be{i}"] = jnp.zeros((64,), jnp.float32)  # BN beta  (torch default)

    # conv6: 1x1, 64 -> in_channels (with bias)
    params["w6"] = (jax.random.normal(keys[12], (64, in_channels), jnp.float32)
                    / jnp.sqrt(64.0)).astype(jnp.bfloat16)
    params["b6"] = jax.random.normal(keys[13], (in_channels,), jnp.float32) * 0.01
    return params


def encoder_forward(params, x_nchw, y_nchw, s_factor):
    """Pallas Encoder.forward(x, y, S_factor). Inputs NCHW; training-mode BatchNorm."""
    N, Cin, H, W = x_nchw.shape
    L = y_nchw.shape[1]
    R = N * H * W
    TH = _pick_tile_th(N, H, W, _row_cap())
    nt = H // TH
    tile_rows = TH * W

    x_nhwc = jnp.transpose(x_nchw, (0, 2, 3, 1)).astype(jnp.float32)   # NHWC
    y_nhwc = jnp.transpose(y_nchw, (0, 2, 3, 1)).astype(jnp.float32)
    x_flat = x_nhwc.reshape(R, Cin)

    # conv0: 1x1 with K = Cin <= 4 -> plain XLA einsum (MXU would be mostly idle)
    z0 = jnp.einsum("nhwc,ck->nhwk", x_nhwc, params["w0"]) + params["b0"]
    h = z0.reshape(R, 64).astype(jnp.bfloat16)

    # 3x3 patches of the (small, constant) message tensor: built once for all 5 layers
    y_patches = im2col_3x3(y_nhwc).astype(jnp.bfloat16)                # [R, 9L]

    # horizontal zero-padding masks for the in-kernel shifted-slab 3x3 gather
    ext_len = tile_rows + 4 * W
    col = jnp.arange(ext_len, dtype=jnp.int32) % W
    mask_l = (col != (W - 1)).astype(jnp.bfloat16).reshape(ext_len, 1)
    mask_r = (col != 0).astype(jnp.bfloat16).reshape(ext_len, 1)

    scale = jnp.ones((64,), jnp.float32)      # identity "BN" for conv0's output
    shift = jnp.zeros((64,), jnp.float32)
    apply_relu = False
    for i in range(1, 6):
        def act(v, s=scale, b=shift, r=apply_relu):
            v = v.astype(jnp.float32) * s + b
            return jnp.maximum(v, 0.0) if r else v
        z_top, z_bot = _halo_rows(h.reshape(N, H, W, 64), TH, nt, act)
        h, stats = conv3x3_bn_fused_layer(
            y_patches, h, z_top, z_bot, mask_l, mask_r,
            params[f"wy{i}"], params[f"wz{i}"], params[f"b{i}"],
            scale, shift, apply_relu=apply_relu, tile_rows=tile_rows)
        # exact training-mode batch statistics from the per-tile moments
        s = jnp.sum(stats, axis=0)
        mean = s[0] / R
        var = jnp.maximum(s[1] / R - mean * mean, 0.0)     # biased var (torch BN)
        scale = params[f"g{i}"] * jax.lax.rsqrt(var + 1e-5)
        shift = params[f"be{i}"] - mean * scale
        apply_relu = True

    # conv6 (1x1) + residual "* S_factor + x", with layer-5 BN+ReLU fused in
    out_flat = conv6_residual(h, scale, shift, params["w6"], params["b6"],
                              x_flat, jnp.asarray(s_factor, jnp.float32),
                              tile_rows=tile_rows)
    return jnp.transpose(out_flat.reshape(N, H, W, Cin), (0, 3, 1, 2))


if __name__ == "__main__":
    key = jax.random.PRNGKey(0)
    kx, kyy, kp = jax.random.split(key, 3)

    N, C, H, W = 2, 4, 16, 16
    message_length = 8

    x = jax.random.normal(kx, (N, C, H, W), jnp.float32)
    y = jax.random.normal(kyy, (N, message_length, H, W), jnp.float32)
    s_factor = jnp.float32(0.5)

    params = init_params(kp, C, message_length)

    out = jax.jit(encoder_forward)(params, x, y, s_factor)
    out = jax.block_until_ready(out)
    assert out.shape == (N, C, H, W) and out.dtype == jnp.float32
    print("KERNEL_OK")
</pallas_src>

<mosaic_0001>
module attributes {stable_mosaic.version = 11 : i64} {
  func.func @_final_kernel(%arg0: i32, %arg1: memref<128x64xbf16, #tpu.memory_space<vmem>>, %arg2: memref<1x64xf32, #tpu.memory_space<vmem>>, %arg3: memref<1x64xf32, #tpu.memory_space<vmem>>, %arg4: memref<64x4xbf16, #tpu.memory_space<vmem>>, %arg5: memref<1x4xf32, #tpu.memory_space<vmem>>, %arg6: memref<128x4xf32, #tpu.memory_space<vmem>>, %arg7: memref<1xf32, #tpu.memory_space<smem>>, %arg8: memref<128x4xf32, #tpu.memory_space<vmem>>) attributes {dimension_semantics = [#tpu.dimension_semantics<parallel>], iteration_bounds = array<i64: 4>, scalar_prefetch = 0 : i64, scratch_operands = 0 : i64, tpu.core_type = #tpu.core_type<tc>, window_params = [{transform_indices = @transform_0, window_bounds = array<i64: 128, 64>}, {pipeline_mode = #tpu.pipeline_mode<synchronous>, transform_indices = @transform_1, window_bounds = array<i64: 1, 64>}, {pipeline_mode = #tpu.pipeline_mode<synchronous>, transform_indices = @transform_2, window_bounds = array<i64: 1, 64>}, {pipeline_mode = #tpu.pipeline_mode<synchronous>, transform_indices = @transform_3, window_bounds = array<i64: 64, 4>}, {pipeline_mode = #tpu.pipeline_mode<synchronous>, transform_indices = @transform_4, window_bounds = array<i64: 1, 4>}, {transform_indices = @transform_5, window_bounds = array<i64: 128, 4>}, {transform_indices = @transform_6, window_bounds = array<i64: 1>}, {transform_indices = @transform_7, window_bounds = array<i64: 128, 4>}]} {
    %c0 = arith.constant 0 : index
    %c0_0 = arith.constant 0 : index
    %0 = vector.load %arg1[%c0, %c0_0] : memref<128x64xbf16, #tpu.memory_space<vmem>>, vector<128x64xbf16>
    %1 = arith.extf %0 : vector<128x64xbf16> to vector<128x64xf32>
    %c0_1 = arith.constant 0 : index
    %c0_2 = arith.constant 0 : index
    %2 = vector.load %arg2[%c0_1, %c0_2] : memref<1x64xf32, #tpu.memory_space<vmem>>, vector<1x64xf32>
    %3 = vector.broadcast %2 : vector<1x64xf32> to vector<128x64xf32>
    %4 = arith.mulf %1, %3 : vector<128x64xf32>
    %c0_3 = arith.constant 0 : index
    %c0_4 = arith.constant 0 : index
    %5 = vector.load %arg3[%c0_3, %c0_4] : memref<1x64xf32, #tpu.memory_space<vmem>>, vector<1x64xf32>
    %6 = vector.broadcast %5 : vector<1x64xf32> to vector<128x64xf32>
    %7 = arith.addf %4, %6 : vector<128x64xf32>
    %cst = arith.constant 0.000000e+00 : f32
    %8 = vector.broadcast %cst : f32 to vector<128x64xf32>
    %9 = arith.maximumf %7, %8 : vector<128x64xf32>
    %10 = arith.truncf %9 : vector<128x64xf32> to vector<128x64xbf16>
    %c0_5 = arith.constant 0 : index
    %c0_6 = arith.constant 0 : index
    %11 = vector.load %arg4[%c0_5, %c0_6] : memref<64x4xbf16, #tpu.memory_space<vmem>>, vector<64x4xbf16>
    %cst_7 = arith.constant dense<0.000000e+00> : vector<128x4xf32>
    %12 = tpu.matmul %10, %11, %cst_7 {dimension_numbers = #tpu.dot_dimension_numbers<[1], [0], [0], [1], [0, 0, 1, 1], [], []>} : vector<128x64xbf16>, vector<64x4xbf16>, vector<128x4xf32> -> vector<128x4xf32>
    %c0_8 = arith.constant 0 : index
    %c0_9 = arith.constant 0 : index
    %13 = vector.load %arg5[%c0_8, %c0_9] : memref<1x4xf32, #tpu.memory_space<vmem>>, vector<1x4xf32>
    %14 = vector.broadcast %13 : vector<1x4xf32> to vector<128x4xf32>
    %15 = arith.addf %12, %14 : vector<128x4xf32>
    %c0_10 = arith.constant 0 : index
    %16 = memref.load %arg7[%c0_10] : memref<1xf32, #tpu.memory_space<smem>>
    %17 = vector.broadcast %16 : f32 to vector<128x4xf32>
    %18 = arith.mulf %15, %17 : vector<128x4xf32>
    %c0_11 = arith.constant 0 : index
    %c0_12 = arith.constant 0 : index
    %19 = vector.load %arg6[%c0_11, %c0_12] : memref<128x4xf32, #tpu.memory_space<vmem>>, vector<128x4xf32>
    %20 = arith.addf %18, %19 : vector<128x4xf32>
    %c0_13 = arith.constant 0 : index
    %c0_14 = arith.constant 0 : index
    %21 = vector.load %arg8[%c0_13, %c0_14] : memref<128x4xf32, #tpu.memory_space<vmem>>, vector<128x4xf32>
    tpu.vector_store %arg8[%c0_13, %c0_14], %20 {strides = array<i32>} : memref<128x4xf32, #tpu.memory_space<vmem>>, vector<128x4xf32>,
    return
  }
  func.func @transform_0(%arg0: i32) -> (i32, i32) {
    %c0_i32 = arith.constant 0 : i32
    %c0_i32_0 = arith.constant 0 : i32
    return %arg0, %c0_i32 : i32, i32
  }
  func.func @transform_1(%arg0: i32) -> (i32, i32) {
    %c0_i32 = arith.constant 0 : i32
    %c0_i32_0 = arith.constant 0 : i32
    %c0_i32_1 = arith.constant 0 : i32
    return %c0_i32, %c0_i32_0 : i32, i32
  }
  func.func @transform_2(%arg0: i32) -> (i32, i32) {
    %c0_i32 = arith.constant 0 : i32
    %c0_i32_0 = arith.constant 0 : i32
    %c0_i32_1 = arith.constant 0 : i32
    return %c0_i32, %c0_i32_0 : i32, i32
  }
  func.func @transform_3(%arg0: i32) -> (i32, i32) {
    %c0_i32 = arith.constant 0 : i32
    %c0_i32_0 = arith.constant 0 : i32
    %c0_i32_1 = arith.constant 0 : i32
    return %c0_i32, %c0_i32_0 : i32, i32
  }
  func.func @transform_4(%arg0: i32) -> (i32, i32) {
    %c0_i32 = arith.constant 0 : i32
    %c0_i32_0 = arith.constant 0 : i32
    %c0_i32_1 = arith.constant 0 : i32
    return %c0_i32, %c0_i32_0 : i32, i32
  }
  func.func @transform_5(%arg0: i32) -> (i32, i32) {
    %c0_i32 = arith.constant 0 : i32
    %c0_i32_0 = arith.constant 0 : i32
    return %arg0, %c0_i32 : i32, i32
  }
  func.func @transform_6(%arg0: i32) -> i32 {
    %c0_i32 = arith.constant 0 : i32
    %c0_i32_0 = arith.constant 0 : i32
    return %c0_i32 : i32
  }
  func.func @transform_7(%arg0: i32) -> (i32, i32) {
    %c0_i32 = arith.constant 0 : i32
    %c0_i32_0 = arith.constant 0 : i32
    return %arg0, %c0_i32 : i32, i32
  }
}

module attributes {stable_mosaic.version = 11 : i64} {
  func.func @_layer_kernel(%arg0: i32, %arg1: memref<128x72xbf16, #tpu.memory_space<vmem>>, %arg2: memref<128x64xbf16, #tpu.memory_space<vmem>>, %arg3: memref<1x16x64xbf16, #tpu.memory_space<vmem>>, %arg4: memref<1x16x64xbf16, #tpu.memory_space<vmem>>, %arg5: memref<192x1xbf16, #tpu.memory_space<vmem>>, %arg6: memref<192x1xbf16, #tpu.memory_space<vmem>>, %arg7: memref<72x64xbf16, #tpu.memory_space<vmem>>, %arg8: memref<9x64x64xbf16, #tpu.memory_space<vmem>>, %arg9: memref<1x64xf32, #tpu.memory_space<vmem>>, %arg10: memref<1x64xf32, #tpu.memory_space<vmem>>, %arg11: memref<1x64xf32, #tpu.memory_space<vmem>>, %arg12: memref<128x64xbf16, #tpu.memory_space<vmem>>, %arg13: memref<1x2x64xf32, #tpu.memory_space<vmem>>, %arg14: memref<192x64xbf16, #tpu.memory_space<vmem>>) attributes {dimension_semantics = [#tpu.dimension_semantics<parallel>], iteration_bounds = array<i64: 4>, scalar_prefetch = 0 : i64, scratch_operands = 1 : i64, tpu.core_type = #tpu.core_type<tc>, window_params = [{transform_indices = @transform_0, window_bounds = array<i64: 128, 72>}, {transform_indices = @transform_1, window_bounds = array<i64: 128, 64>}, {transform_indices = @transform_2, window_bounds = array<i64: 1, 16, 64>}, {transform_indices = @transform_3, window_bounds = array<i64: 1, 16, 64>}, {pipeline_mode = #tpu.pipeline_mode<synchronous>, transform_indices = @transform_4, window_bounds = array<i64: 192, 1>}, {pipeline_mode = #tpu.pipeline_mode<synchronous>, transform_indices = @transform_5, window_bounds = array<i64: 192, 1>}, {pipeline_mode = #tpu.pipeline_mode<synchronous>, transform_indices = @transform_6, window_bounds = array<i64: 72, 64>}, {pipeline_mode = #tpu.pipeline_mode<synchronous>, transform_indices = @transform_7, window_bounds = array<i64: 9, 64, 64>}, {pipeline_mode = #tpu.pipeline_mode<synchronous>, transform_indices = @transform_8, window_bounds = array<i64: 1, 64>}, {pipeline_mode = #tpu.pipeline_mode<synchronous>, transform_indices = @transform_9, window_bounds = array<i64: 1, 64>}, {pipeline_mode = #tpu.pipeline_mode<synchronous>, transform_indices = @transform_10, window_bounds = array<i64: 1, 64>}, {transform_indices = @transform_11, window_bounds = array<i64: 128, 64>}, {transform_indices = @transform_12, window_bounds = array<i64: 1, 2, 64>}]} {
    %c0 = arith.constant 0 : index
    %c0_0 = arith.constant 0 : index
    %0 = vector.load %arg2[%c0, %c0_0] : memref<128x64xbf16, #tpu.memory_space<vmem>>, vector<128x64xbf16>
    %1 = arith.extf %0 : vector<128x64xbf16> to vector<128x64xf32>
    %c0_1 = arith.constant 0 : index
    %c0_2 = arith.constant 0 : index
    %2 = vector.load %arg10[%c0_1, %c0_2] : memref<1x64xf32, #tpu.memory_space<vmem>>, vector<1x64xf32>
    %3 = vector.broadcast %2 : vector<1x64xf32> to vector<128x64xf32>
    %4 = arith.mulf %1, %3 : vector<128x64xf32>
    %c0_3 = arith.constant 0 : index
    %c0_4 = arith.constant 0 : index
    %5 = vector.load %arg11[%c0_3, %c0_4] : memref<1x64xf32, #tpu.memory_space<vmem>>, vector<1x64xf32>
    %6 = vector.broadcast %5 : vector<1x64xf32> to vector<128x64xf32>
    %7 = arith.addf %4, %6 : vector<128x64xf32>
    %cst = arith.constant 0.000000e+00 : f32
    %8 = vector.broadcast %cst : f32 to vector<128x64xf32>
    %9 = arith.maximumf %7, %8 : vector<128x64xf32>
    %10 = arith.truncf %9 : vector<128x64xf32> to vector<128x64xbf16>
    %cst_5 = arith.constant 0.000000e+00 : bf16
    %11 = vector.broadcast %cst_5 : bf16 to vector<16x64xbf16>
    %c0_6 = arith.constant 0 : index
    %c0_7 = arith.constant 0 : index
    %12 = vector.load %arg14[%c0_6, %c0_7] : memref<192x64xbf16, #tpu.memory_space<vmem>>, vector<16x64xbf16>
    tpu.vector_store %arg14[%c0_6, %c0_7], %11 {strides = array<i32>} : memref<192x64xbf16, #tpu.memory_space<vmem>>, vector<16x64xbf16>,
    %c0_8 = arith.constant 0 : index
    %c0_9 = arith.constant 0 : index
    %c0_10 = arith.constant 0 : index
    %13 = vector.load %arg3[%c0_8, %c0_9, %c0_10] : memref<1x16x64xbf16, #tpu.memory_space<vmem>>, vector<1x16x64xbf16>
    %14 = vector.shape_cast %13 : vector<1x16x64xbf16> to vector<16x64xbf16>
    %c16 = arith.constant 16 : index
    %c0_11 = arith.constant 0 : index
    %15 = vector.load %arg14[%c16, %c0_11] : memref<192x64xbf16, #tpu.memory_space<vmem>>, vector<16x64xbf16>
    tpu.vector_store %arg14[%c16, %c0_11], %14 {strides = array<i32>} : memref<192x64xbf16, #tpu.memory_space<vmem>>, vector<16x64xbf16>,
    %c32 = arith.constant 32 : index
    %c0_12 = arith.constant 0 : index
    %16 = vector.load %arg14[%c32, %c0_12] : memref<192x64xbf16, #tpu.memory_space<vmem>>, vector<128x64xbf16>
    tpu.vector_store %arg14[%c32, %c0_12], %10 {strides = array<i32>} : memref<192x64xbf16, #tpu.memory_space<vmem>>, vector<128x64xbf16>,
    %c0_13 = arith.constant 0 : index
    %c0_14 = arith.constant 0 : index
    %c0_15 = arith.constant 0 : index
    %17 = vector.load %arg4[%c0_13, %c0_14, %c0_15] : memref<1x16x64xbf16, #tpu.memory_space<vmem>>, vector<1x16x64xbf16>
    %18 = vector.shape_cast %17 : vector<1x16x64xbf16> to vector<16x64xbf16>
    %c160 = arith.constant 160 : index
    %c0_16 = arith.constant 0 : index
    %19 = vector.load %arg14[%c160, %c0_16] : memref<192x64xbf16, #tpu.memory_space<vmem>>, vector<16x64xbf16>
    tpu.vector_store %arg14[%c160, %c0_16], %18 {strides = array<i32>} : memref<192x64xbf16, #tpu.memory_space<vmem>>, vector<16x64xbf16>,
    %c176 = arith.constant 176 : index
    %c0_17 = arith.constant 0 : index
    %20 = vector.load %arg14[%c176, %c0_17] : memref<192x64xbf16, #tpu.memory_space<vmem>>, vector<16x64xbf16>
    tpu.vector_store %arg14[%c176, %c0_17], %11 {strides = array<i32>} : memref<192x64xbf16, #tpu.memory_space<vmem>>, vector<16x64xbf16>,
    %c0_18 = arith.constant 0 : index
    %c0_19 = arith.constant 0 : index
    %21 = vector.load %arg1[%c0_18, %c0_19] : memref<128x72xbf16, #tpu.memory_space<vmem>>, vector<128x72xbf16>
    %c0_20 = arith.constant 0 : index
    %c0_21 = arith.constant 0 : index
    %22 = vector.load %arg7[%c0_20, %c0_21] : memref<72x64xbf16, #tpu.memory_space<vmem>>, vector<72x64xbf16>
    %cst_22 = arith.constant dense<0.000000e+00> : vector<128x64xf32>
    %23 = tpu.matmul %21, %22, %cst_22 {dimension_numbers = #tpu.dot_dimension_numbers<[1], [0], [0], [1], [0, 0, 1, 1], [], []>} : vector<128x72xbf16>, vector<72x64xbf16>, vector<128x64xf32> -> vector<128x64xf32>
    %c15 = arith.constant 15 : index
    %c0_23 = arith.constant 0 : index
    %24 = vector.load %arg14[%c15, %c0_23] : memref<192x64xbf16, #tpu.memory_space<vmem>>, vector<128x64xbf16>
    %c15_24 = arith.constant 15 : index
    %c0_25 = arith.constant 0 : index
    %25 = vector.load %arg5[%c15_24, %c0_25] : memref<192x1xbf16, #tpu.memory_space<vmem>>, vector<128x1xbf16>
    %26 = vector.broadcast %25 : vector<128x1xbf16> to vector<128x64xbf16>
    %27 = arith.mulf %24, %26 : vector<128x64xbf16>
    %c0_26 = arith.constant 0 : index
    %c0_27 = arith.constant 0 : index
    %c0_28 = arith.constant 0 : index
    %28 = vector.load %arg8[%c0_26, %c0_27, %c0_28] : memref<9x64x64xbf16, #tpu.memory_space<vmem>>, vector<1x64x64xbf16>
    %29 = vector.shape_cast %28 : vector<1x64x64xbf16> to vector<64x64xbf16>
    %cst_29 = arith.constant dense<0.000000e+00> : vector<128x64xf32>
    %30 = tpu.matmul %27, %29, %cst_29 {dimension_numbers = #tpu.dot_dimension_numbers<[1], [0], [0], [1], [0, 0, 1, 1], [], []>} : vector<128x64xbf16>, vector<64x64xbf16>, vector<128x64xf32> -> vector<128x64xf32>
    %31 = arith.addf %23, %30 : vector<128x64xf32>
    %c16_30 = arith.constant 16 : index
    %c0_31 = arith.constant 0 : index
    %32 = vector.load %arg14[%c16_30, %c0_31] : memref<192x64xbf16, #tpu.memory_space<vmem>>, vector<128x64xbf16>
    %c1 = arith.constant 1 : index
    %c0_32 = arith.constant 0 : index
    %c0_33 = arith.constant 0 : index
    %33 = vector.load %arg8[%c1, %c0_32, %c0_33] : memref<9x64x64xbf16, #tpu.memory_space<vmem>>, vector<1x64x64xbf16>
    %34 = vector.shape_cast %33 : vector<1x64x64xbf16> to vector<64x64xbf16>
    %cst_34 = arith.constant dense<0.000000e+00> : vector<128x64xf32>
    %35 = tpu.matmul %32, %34, %cst_34 {dimension_numbers = #tpu.dot_dimension_numbers<[1], [0], [0], [1], [0, 0, 1, 1], [], []>} : vector<128x64xbf16>, vector<64x64xbf16>, vector<128x64xf32> -> vector<128x64xf32>
    %36 = arith.addf %31, %35 : vector<128x64xf32>
    %c17 = arith.constant 17 : index
    %c0_35 = arith.constant 0 : index
    %37 = vector.load %arg14[%c17, %c0_35] : memref<192x64xbf16, #tpu.memory_space<vmem>>, vector<128x64xbf16>
    %c17_36 = arith.constant 17 : index
    %c0_37 = arith.constant 0 : index
    %38 = vector.load %arg6[%c17_36, %c0_37] : memref<192x1xbf16, #tpu.memory_space<vmem>>, vector<128x1xbf16>
    %39 = vector.broadcast %38 : vector<128x1xbf16> to vector<128x64xbf16>
    %40 = arith.mulf %37, %39 : vector<128x64xbf16>
    %c2 = arith.constant 2 : index
    %c0_38 = arith.constant 0 : index
    %c0_39 = arith.constant 0 : index
    %41 = vector.load %arg8[%c2, %c0_38, %c0_39] : memref<9x64x64xbf16, #tpu.memory_space<vmem>>, vector<1x64x64xbf16>
    %42 = vector.shape_cast %41 : vector<1x64x64xbf16> to vector<64x64xbf16>
    %cst_40 = arith.constant dense<0.000000e+00> : vector<128x64xf32>
    %43 = tpu.matmul %40, %42, %cst_40 {dimension_numbers = #tpu.dot_dimension_numbers<[1], [0], [0], [1], [0, 0, 1, 1], [], []>} : vector<128x64xbf16>, vector<64x64xbf16>, vector<128x64xf32> -> vector<128x64xf32>
    %44 = arith.addf %36, %43 : vector<128x64xf32>
    %c31 = arith.constant 31 : index
    %c0_41 = arith.constant 0 : index
    %45 = vector.load %arg14[%c31, %c0_41] : memref<192x64xbf16, #tpu.memory_space<vmem>>, vector<128x64xbf16>
    %c31_42 = arith.constant 31 : index
    %c0_43 = arith.constant 0 : index
    %46 = vector.load %arg5[%c31_42, %c0_43] : memref<192x1xbf16, #tpu.memory_space<vmem>>, vector<128x1xbf16>
    %47 = vector.broadcast %46 : vector<128x1xbf16> to vector<128x64xbf16>
    %48 = arith.mulf %45, %47 : vector<128x64xbf16>
    %c3 = arith.constant 3 : index
    %c0_44 = arith.constant 0 : index
    %c0_45 = arith.constant 0 : index
    %49 = vector.load %arg8[%c3, %c0_44, %c0_45] : memref<9x64x64xbf16, #tpu.memory_space<vmem>>, vector<1x64x64xbf16>
    %50 = vector.shape_cast %49 : vector<1x64x64xbf16> to vector<64x64xbf16>
    %cst_46 = arith.constant dense<0.000000e+00> : vector<128x64xf32>
    %51 = tpu.matmul %48, %50, %cst_46 {dimension_numbers = #tpu.dot_dimension_numbers<[1], [0], [0], [1], [0, 0, 1, 1], [], []>} : vector<128x64xbf16>, vector<64x64xbf16>, vector<128x64xf32> -> vector<128x64xf32>
    %52 = arith.addf %44, %51 : vector<128x64xf32>
    %c32_47 = arith.constant 32 : index
    %c0_48 = arith.constant 0 : index
    %53 = vector.load %arg14[%c32_47, %c0_48] : memref<192x64xbf16, #tpu.memory_space<vmem>>, vector<128x64xbf16>
    %c4 = arith.constant 4 : index
    %c0_49 = arith.constant 0 : index
    %c0_50 = arith.constant 0 : index
    %54 = vector.load %arg8[%c4, %c0_49, %c0_50] : memref<9x64x64xbf16, #tpu.memory_space<vmem>>, vector<1x64x64xbf16>
    %55 = vector.shape_cast %54 : vector<1x64x64xbf16> to vector<64x64xbf16>
    %cst_51 = arith.constant dense<0.000000e+00> : vector<128x64xf32>
    %56 = tpu.matmul %53, %55, %cst_51 {dimension_numbers = #tpu.dot_dimension_numbers<[1], [0], [0], [1], [0, 0, 1, 1], [], []>} : vector<128x64xbf16>, vector<64x64xbf16>, vector<128x64xf32> -> vector<128x64xf32>
    %57 = arith.addf %52, %56 : vector<128x64xf32>
    %c33 = arith.constant 33 : index
    %c0_52 = arith.constant 0 : index
    %58 = vector.load %arg14[%c33, %c0_52] : memref<192x64xbf16, #tpu.memory_space<vmem>>, vector<128x64xbf16>
    %c33_53 = arith.constant 33 : index
    %c0_54 = arith.constant 0 : index
    %59 = vector.load %arg6[%c33_53, %c0_54] : memref<192x1xbf16, #tpu.memory_space<vmem>>, vector<128x1xbf16>
    %60 = vector.broadcast %59 : vector<128x1xbf16> to vector<128x64xbf16>
    %61 = arith.mulf %58, %60 : vector<128x64xbf16>
    %c5 = arith.constant 5 : index
    %c0_55 = arith.constant 0 : index
    %c0_56 = arith.constant 0 : index
    %62 = vector.load %arg8[%c5, %c0_55, %c0_56] : memref<9x64x64xbf16, #tpu.memory_space<vmem>>, vector<1x64x64xbf16>
    %63 = vector.shape_cast %62 : vector<1x64x64xbf16> to vector<64x64xbf16>
    %cst_57 = arith.constant dense<0.000000e+00> : vector<128x64xf32>
    %64 = tpu.matmul %61, %63, %cst_57 {dimension_numbers = #tpu.dot_dimension_numbers<[1], [0], [0], [1], [0, 0, 1, 1], [], []>} : vector<128x64xbf16>, vector<64x64xbf16>, vector<128x64xf32> -> vector<128x64xf32>
    %65 = arith.addf %57, %64 : vector<128x64xf32>
    %c47 = arith.constant 47 : index
    %c0_58 = arith.constant 0 : index
    %66 = vector.load %arg14[%c47, %c0_58] : memref<192x64xbf16, #tpu.memory_space<vmem>>, vector<128x64xbf16>
    %c47_59 = arith.constant 47 : index
    %c0_60 = arith.constant 0 : index
    %67 = vector.load %arg5[%c47_59, %c0_60] : memref<192x1xbf16, #tpu.memory_space<vmem>>, vector<128x1xbf16>
    %68 = vector.broadcast %67 : vector<128x1xbf16> to vector<128x64xbf16>
    %69 = arith.mulf %66, %68 : vector<128x64xbf16>
    %c6 = arith.constant 6 : index
    %c0_61 = arith.constant 0 : index
    %c0_62 = arith.constant 0 : index
    %70 = vector.load %arg8[%c6, %c0_61, %c0_62] : memref<9x64x64xbf16, #tpu.memory_space<vmem>>, vector<1x64x64xbf16>
    %71 = vector.shape_cast %70 : vector<1x64x64xbf16> to vector<64x64xbf16>
    %cst_63 = arith.constant dense<0.000000e+00> : vector<128x64xf32>
    %72 = tpu.matmul %69, %71, %cst_63 {dimension_numbers = #tpu.dot_dimension_numbers<[1], [0], [0], [1], [0, 0, 1, 1], [], []>} : vector<128x64xbf16>, vector<64x64xbf16>, vector<128x64xf32> -> vector<128x64xf32>
    %73 = arith.addf %65, %72 : vector<128x64xf32>
    %c48 = arith.constant 48 : index
    %c0_64 = arith.constant 0 : index
    %74 = vector.load %arg14[%c48, %c0_64] : memref<192x64xbf16, #tpu.memory_space<vmem>>, vector<128x64xbf16>
    %c7 = arith.constant 7 : index
    %c0_65 = arith.constant 0 : index
    %c0_66 = arith.constant 0 : index
    %75 = vector.load %arg8[%c7, %c0_65, %c0_66] : memref<9x64x64xbf16, #tpu.memory_space<vmem>>, vector<1x64x64xbf16>
    %76 = vector.shape_cast %75 : vector<1x64x64xbf16> to vector<64x64xbf16>
    %cst_67 = arith.constant dense<0.000000e+00> : vector<128x64xf32>
    %77 = tpu.matmul %74, %76, %cst_67 {dimension_numbers = #tpu.dot_dimension_numbers<[1], [0], [0], [1], [0, 0, 1, 1], [], []>} : vector<128x64xbf16>, vector<64x64xbf16>, vector<128x64xf32> -> vector<128x64xf32>
    %78 = arith.addf %73, %77 : vector<128x64xf32>
    %c49 = arith.constant 49 : index
    %c0_68 = arith.constant 0 : index
    %79 = vector.load %arg14[%c49, %c0_68] : memref<192x64xbf16, #tpu.memory_space<vmem>>, vector<128x64xbf16>
    %c49_69 = arith.constant 49 : index
    %c0_70 = arith.constant 0 : index
    %80 = vector.load %arg6[%c49_69, %c0_70] : memref<192x1xbf16, #tpu.memory_space<vmem>>, vector<128x1xbf16>
    %81 = vector.broadcast %80 : vector<128x1xbf16> to vector<128x64xbf16>
    %82 = arith.mulf %79, %81 : vector<128x64xbf16>
    %c8 = arith.constant 8 : index
    %c0_71 = arith.constant 0 : index
    %c0_72 = arith.constant 0 : index
    %83 = vector.load %arg8[%c8, %c0_71, %c0_72] : memref<9x64x64xbf16, #tpu.memory_space<vmem>>, vector<1x64x64xbf16>
    %84 = vector.shape_cast %83 : vector<1x64x64xbf16> to vector<64x64xbf16>
    %cst_73 = arith.constant dense<0.000000e+00> : vector<128x64xf32>
    %85 = tpu.matmul %82, %84, %cst_73 {dimension_numbers = #tpu.dot_dimension_numbers<[1], [0], [0], [1], [0, 0, 1, 1], [], []>} : vector<128x64xbf16>, vector<64x64xbf16>, vector<128x64xf32> -> vector<128x64xf32>
    %86 = arith.addf %78, %85 : vector<128x64xf32>
    %c0_74 = arith.constant 0 : index
    %c0_75 = arith.constant 0 : index
    %87 = vector.load %arg9[%c0_74, %c0_75] : memref<1x64xf32, #tpu.memory_space<vmem>>, vector<1x64xf32>
    %88 = vector.broadcast %87 : vector<1x64xf32> to vector<128x64xf32>
    %89 = arith.addf %86, %88 : vector<128x64xf32>
    %90 = arith.truncf %89 : vector<128x64xf32> to vector<128x64xbf16>
    %c0_76 = arith.constant 0 : index
    %c0_77 = arith.constant 0 : index
    %91 = vector.load %arg12[%c0_76, %c0_77] : memref<128x64xbf16, #tpu.memory_space<vmem>>, vector<128x64xbf16>
    tpu.vector_store %arg12[%c0_76, %c0_77], %90 {strides = array<i32>} : memref<128x64xbf16, #tpu.memory_space<vmem>>, vector<128x64xbf16>,
    %cst_78 = arith.constant dense<0.000000e+00> : vector<64xf32>
    %92 = vector.multi_reduction <add>, %89, %cst_78 [0] : vector<128x64xf32> to vector<64xf32>
    %93 = vector.shape_cast %92 : vector<64xf32> to vector<1x64xf32>
    %c0_79 = arith.constant 0 : index
    %c0_80 = arith.constant 0 : index
    %c0_81 = arith.constant 0 : index
    %94 = vector.load %arg13[%c0_79, %c0_80, %c0_81] : memref<1x2x64xf32, #tpu.memory_space<vmem>>, vector<1x1x64xf32>
    %95 = vector.shape_cast %94 : vector<1x1x64xf32> to vector<1x64xf32>
    %96 = vector.shape_cast %93 : vector<1x64xf32> to vector<1x1x64xf32>
    tpu.vector_store %arg13[%c0_79, %c0_80, %c0_81], %96 {strides = array<i32>} : memref<1x2x64xf32, #tpu.memory_space<vmem>>, vector<1x1x64xf32>,
    %97 = arith.mulf %89, %89 : vector<128x64xf32>
    %cst_82 = arith.constant dense<0.000000e+00> : vector<64xf32>
    %98 = vector.multi_reduction <add>, %97, %cst_82 [0] : vector<128x64xf32> to vector<64xf32>
    %99 = vector.shape_cast %98 : vector<64xf32> to vector<1x64xf32>
    %c0_83 = arith.constant 0 : index
    %c1_84 = arith.constant 1 : index
    %c0_85 = arith.constant 0 : index
    %100 = vector.load %arg13[%c0_83, %c1_84, %c0_85] : memref<1x2x64xf32, #tpu.memory_space<vmem>>, vector<1x1x64xf32>
    %101 = vector.shape_cast %100 : vector<1x1x64xf32> to vector<1x64xf32>
    %102 = vector.shape_cast %99 : vector<1x64xf32> to vector<1x1x64xf32>
    tpu.vector_store %arg13[%c0_83, %c1_84, %c0_85], %102 {strides = array<i32>} : memref<1x2x64xf32, #tpu.memory_space<vmem>>, vector<1x1x64xf32>,
    return
  }
  func.func @transform_0(%arg0: i32) -> (i32, i32) {
    %c0_i32 = arith.constant 0 : i32
    %c0_i32_0 = arith.constant 0 : i32
    return %arg0, %c0_i32 : i32, i32
  }
  func.func @transform_1(%arg0: i32) -> (i32, i32) {
    %c0_i32 = arith.constant 0 : i32
    %c0_i32_0 = arith.constant 0 : i32
    return %arg0, %c0_i32 : i32, i32
  }
  func.func @transform_2(%arg0: i32) -> (i32, i32, i32) {
    %c0_i32 = arith.constant 0 : i32
    %c0_i32_0 = arith.constant 0 : i32
    %c0_i32_1 = arith.constant 0 : i32
    return %arg0, %c0_i32, %c0_i32_0 : i32, i32, i32
  }
  func.func @transform_3(%arg0: i32) -> (i32, i32, i32) {
    %c0_i32 = arith.constant 0 : i32
    %c0_i32_0 = arith.constant 0 : i32
    %c0_i32_1 = arith.constant 0 : i32
    return %arg0, %c0_i32, %c0_i32_0 : i32, i32, i32
  }
  func.func @transform_4(%arg0: i32) -> (i32, i32) {
    %c0_i32 = arith.constant 0 : i32
    %c0_i32_0 = arith.constant 0 : i32
    %c0_i32_1 = arith.constant 0 : i32
    return %c0_i32, %c0_i32_0 : i32, i32
  }
  func.func @transform_5(%arg0: i32) -> (i32, i32) {
    %c0_i32 = arith.constant 0 : i32
    %c0_i32_0 = arith.constant 0 : i32
    %c0_i32_1 = arith.constant 0 : i32
    return %c0_i32, %c0_i32_0 : i32, i32
  }
  func.func @transform_6(%arg0: i32) -> (i32, i32) {
    %c0_i32 = arith.constant 0 : i32
    %c0_i32_0 = arith.constant 0 : i32
    %c0_i32_1 = arith.constant 0 : i32
    return %c0_i32, %c0_i32_0 : i32, i32
  }
  func.func @transform_7(%arg0: i32) -> (i32, i32, i32) {
    %c0_i32 = arith.constant 0 : i32
    %c0_i32_0 = arith.constant 0 : i32
    %c0_i32_1 = arith.constant 0 : i32
    %c0_i32_2 = arith.constant 0 : i32
    return %c0_i32, %c0_i32_0, %c0_i32_1 : i32, i32, i32
  }
  func.func @transform_8(%arg0: i32) -> (i32, i32) {
    %c0_i32 = arith.constant 0 : i32
    %c0_i32_0 = arith.constant 0 : i32
    %c0_i32_1 = arith.constant 0 : i32
    return %c0_i32, %c0_i32_0 : i32, i32
  }
  func.func @transform_9(%arg0: i32) -> (i32, i32) {
    %c0_i32 = arith.constant 0 : i32
    %c0_i32_0 = arith.constant 0 : i32
    %c0_i32_1 = arith.constant 0 : i32
    return %c0_i32, %c0_i32_0 : i32, i32
  }
  func.func @transform_10(%arg0: i32) -> (i32, i32) {
    %c0_i32 = arith.constant 0 : i32
    %c0_i32_0 = arith.constant 0 : i32
    %c0_i32_1 = arith.constant 0 : i32
    return %c0_i32, %c0_i32_0 : i32, i32
  }
  func.func @transform_11(%arg0: i32) -> (i32, i32) {
    %c0_i32 = arith.constant 0 : i32
    %c0_i32_0 = arith.constant 0 : i32
    return %arg0, %c0_i32 : i32, i32
  }
  func.func @transform_12(%arg0: i32) -> (i32, i32, i32) {
    %c0_i32 = arith.constant 0 : i32
    %c0_i32_0 = arith.constant 0 : i32
    %c0_i32_1 = arith.constant 0 : i32
    return %arg0, %c0_i32, %c0_i32_0 : i32, i32, i32
  }
}

module attributes {stable_mosaic.version = 11 : i64} {
  func.func @_layer_kernel(%arg0: i32, %arg1: memref<128x72xbf16, #tpu.memory_space<vmem>>, %arg2: memref<128x64xbf16, #tpu.memory_space<vmem>>, %arg3: memref<1x16x64xbf16, #tpu.memory_space<vmem>>, %arg4: memref<1x16x64xbf16, #tpu.memory_space<vmem>>, %arg5: memref<192x1xbf16, #tpu.memory_space<vmem>>, %arg6: memref<192x1xbf16, #tpu.memory_space<vmem>>, %arg7: memref<72x64xbf16, #tpu.memory_space<vmem>>, %arg8: memref<9x64x64xbf16, #tpu.memory_space<vmem>>, %arg9: memref<1x64xf32, #tpu.memory_space<vmem>>, %arg10: memref<1x64xf32, #tpu.memory_space<vmem>>, %arg11: memref<1x64xf32, #tpu.memory_space<vmem>>, %arg12: memref<128x64xbf16, #tpu.memory_space<vmem>>, %arg13: memref<1x2x64xf32, #tpu.memory_space<vmem>>, %arg14: memref<192x64xbf16, #tpu.memory_space<vmem>>) attributes {dimension_semantics = [#tpu.dimension_semantics<parallel>], iteration_bounds = array<i64: 4>, scalar_prefetch = 0 : i64, scratch_operands = 1 : i64, tpu.core_type = #tpu.core_type<tc>, window_params = [{transform_indices = @transform_0, window_bounds = array<i64: 128, 72>}, {transform_indices = @transform_1, window_bounds = array<i64: 128, 64>}, {transform_indices = @transform_2, window_bounds = array<i64: 1, 16, 64>}, {transform_indices = @transform_3, window_bounds = array<i64: 1, 16, 64>}, {pipeline_mode = #tpu.pipeline_mode<synchronous>, transform_indices = @transform_4, window_bounds = array<i64: 192, 1>}, {pipeline_mode = #tpu.pipeline_mode<synchronous>, transform_indices = @transform_5, window_bounds = array<i64: 192, 1>}, {pipeline_mode = #tpu.pipeline_mode<synchronous>, transform_indices = @transform_6, window_bounds = array<i64: 72, 64>}, {pipeline_mode = #tpu.pipeline_mode<synchronous>, transform_indices = @transform_7, window_bounds = array<i64: 9, 64, 64>}, {pipeline_mode = #tpu.pipeline_mode<synchronous>, transform_indices = @transform_8, window_bounds = array<i64: 1, 64>}, {pipeline_mode = #tpu.pipeline_mode<synchronous>, transform_indices = @transform_9, window_bounds = array<i64: 1, 64>}, {pipeline_mode = #tpu.pipeline_mode<synchronous>, transform_indices = @transform_10, window_bounds = array<i64: 1, 64>}, {transform_indices = @transform_11, window_bounds = array<i64: 128, 64>}, {transform_indices = @transform_12, window_bounds = array<i64: 1, 2, 64>}]} {
    %c0 = arith.constant 0 : index
    %c0_0 = arith.constant 0 : index
    %0 = vector.load %arg2[%c0, %c0_0] : memref<128x64xbf16, #tpu.memory_space<vmem>>, vector<128x64xbf16>
    %1 = arith.extf %0 : vector<128x64xbf16> to vector<128x64xf32>
    %c0_1 = arith.constant 0 : index
    %c0_2 = arith.constant 0 : index
    %2 = vector.load %arg10[%c0_1, %c0_2] : memref<1x64xf32, #tpu.memory_space<vmem>>, vector<1x64xf32>
    %3 = vector.broadcast %2 : vector<1x64xf32> to vector<128x64xf32>
    %4 = arith.mulf %1, %3 : vector<128x64xf32>
    %c0_3 = arith.constant 0 : index
    %c0_4 = arith.constant 0 : index
    %5 = vector.load %arg11[%c0_3, %c0_4] : memref<1x64xf32, #tpu.memory_space<vmem>>, vector<1x64xf32>
    %6 = vector.broadcast %5 : vector<1x64xf32> to vector<128x64xf32>
    %7 = arith.addf %4, %6 : vector<128x64xf32>
    %8 = arith.truncf %7 : vector<128x64xf32> to vector<128x64xbf16>
    %cst = arith.constant 0.000000e+00 : bf16
    %9 = vector.broadcast %cst : bf16 to vector<16x64xbf16>
    %c0_5 = arith.constant 0 : index
    %c0_6 = arith.constant 0 : index
    %10 = vector.load %arg14[%c0_5, %c0_6] : memref<192x64xbf16, #tpu.memory_space<vmem>>, vector<16x64xbf16>
    tpu.vector_store %arg14[%c0_5, %c0_6], %9 {strides = array<i32>} : memref<192x64xbf16, #tpu.memory_space<vmem>>, vector<16x64xbf16>,
    %c0_7 = arith.constant 0 : index
    %c0_8 = arith.constant 0 : index
    %c0_9 = arith.constant 0 : index
    %11 = vector.load %arg3[%c0_7, %c0_8, %c0_9] : memref<1x16x64xbf16, #tpu.memory_space<vmem>>, vector<1x16x64xbf16>
    %12 = vector.shape_cast %11 : vector<1x16x64xbf16> to vector<16x64xbf16>
    %c16 = arith.constant 16 : index
    %c0_10 = arith.constant 0 : index
    %13 = vector.load %arg14[%c16, %c0_10] : memref<192x64xbf16, #tpu.memory_space<vmem>>, vector<16x64xbf16>
    tpu.vector_store %arg14[%c16, %c0_10], %12 {strides = array<i32>} : memref<192x64xbf16, #tpu.memory_space<vmem>>, vector<16x64xbf16>,
    %c32 = arith.constant 32 : index
    %c0_11 = arith.constant 0 : index
    %14 = vector.load %arg14[%c32, %c0_11] : memref<192x64xbf16, #tpu.memory_space<vmem>>, vector<128x64xbf16>
    tpu.vector_store %arg14[%c32, %c0_11], %8 {strides = array<i32>} : memref<192x64xbf16, #tpu.memory_space<vmem>>, vector<128x64xbf16>,
    %c0_12 = arith.constant 0 : index
    %c0_13 = arith.constant 0 : index
    %c0_14 = arith.constant 0 : index
    %15 = vector.load %arg4[%c0_12, %c0_13, %c0_14] : memref<1x16x64xbf16, #tpu.memory_space<vmem>>, vector<1x16x64xbf16>
    %16 = vector.shape_cast %15 : vector<1x16x64xbf16> to vector<16x64xbf16>
    %c160 = arith.constant 160 : index
    %c0_15 = arith.constant 0 : index
    %17 = vector.load %arg14[%c160, %c0_15] : memref<192x64xbf16, #tpu.memory_space<vmem>>, vector<16x64xbf16>
    tpu.vector_store %arg14[%c160, %c0_15], %16 {strides = array<i32>} : memref<192x64xbf16, #tpu.memory_space<vmem>>, vector<16x64xbf16>,
    %c176 = arith.constant 176 : index
    %c0_16 = arith.constant 0 : index
    %18 = vector.load %arg14[%c176, %c0_16] : memref<192x64xbf16, #tpu.memory_space<vmem>>, vector<16x64xbf16>
    tpu.vector_store %arg14[%c176, %c0_16], %9 {strides = array<i32>} : memref<192x64xbf16, #tpu.memory_space<vmem>>, vector<16x64xbf16>,
    %c0_17 = arith.constant 0 : index
    %c0_18 = arith.constant 0 : index
    %19 = vector.load %arg1[%c0_17, %c0_18] : memref<128x72xbf16, #tpu.memory_space<vmem>>, vector<128x72xbf16>
    %c0_19 = arith.constant 0 : index
    %c0_20 = arith.constant 0 : index
    %20 = vector.load %arg7[%c0_19, %c0_20] : memref<72x64xbf16, #tpu.memory_space<vmem>>, vector<72x64xbf16>
    %cst_21 = arith.constant dense<0.000000e+00> : vector<128x64xf32>
    %21 = tpu.matmul %19, %20, %cst_21 {dimension_numbers = #tpu.dot_dimension_numbers<[1], [0], [0], [1], [0, 0, 1, 1], [], []>} : vector<128x72xbf16>, vector<72x64xbf16>, vector<128x64xf32> -> vector<128x64xf32>
    %c15 = arith.constant 15 : index
    %c0_22 = arith.constant 0 : index
    %22 = vector.load %arg14[%c15, %c0_22] : memref<192x64xbf16, #tpu.memory_space<vmem>>, vector<128x64xbf16>
    %c15_23 = arith.constant 15 : index
    %c0_24 = arith.constant 0 : index
    %23 = vector.load %arg5[%c15_23, %c0_24] : memref<192x1xbf16, #tpu.memory_space<vmem>>, vector<128x1xbf16>
    %24 = vector.broadcast %23 : vector<128x1xbf16> to vector<128x64xbf16>
    %25 = arith.mulf %22, %24 : vector<128x64xbf16>
    %c0_25 = arith.constant 0 : index
    %c0_26 = arith.constant 0 : index
    %c0_27 = arith.constant 0 : index
    %26 = vector.load %arg8[%c0_25, %c0_26, %c0_27] : memref<9x64x64xbf16, #tpu.memory_space<vmem>>, vector<1x64x64xbf16>
    %27 = vector.shape_cast %26 : vector<1x64x64xbf16> to vector<64x64xbf16>
    %cst_28 = arith.constant dense<0.000000e+00> : vector<128x64xf32>
    %28 = tpu.matmul %25, %27, %cst_28 {dimension_numbers = #tpu.dot_dimension_numbers<[1], [0], [0], [1], [0, 0, 1, 1], [], []>} : vector<128x64xbf16>, vector<64x64xbf16>, vector<128x64xf32> -> vector<128x64xf32>
    %29 = arith.addf %21, %28 : vector<128x64xf32>
    %c16_29 = arith.constant 16 : index
    %c0_30 = arith.constant 0 : index
    %30 = vector.load %arg14[%c16_29, %c0_30] : memref<192x64xbf16, #tpu.memory_space<vmem>>, vector<128x64xbf16>
    %c1 = arith.constant 1 : index
    %c0_31 = arith.constant 0 : index
    %c0_32 = arith.constant 0 : index
    %31 = vector.load %arg8[%c1, %c0_31, %c0_32] : memref<9x64x64xbf16, #tpu.memory_space<vmem>>, vector<1x64x64xbf16>
    %32 = vector.shape_cast %31 : vector<1x64x64xbf16> to vector<64x64xbf16>
    %cst_33 = arith.constant dense<0.000000e+00> : vector<128x64xf32>
    %33 = tpu.matmul %30, %32, %cst_33 {dimension_numbers = #tpu.dot_dimension_numbers<[1], [0], [0], [1], [0, 0, 1, 1], [], []>} : vector<128x64xbf16>, vector<64x64xbf16>, vector<128x64xf32> -> vector<128x64xf32>
    %34 = arith.addf %29, %33 : vector<128x64xf32>
    %c17 = arith.constant 17 : index
    %c0_34 = arith.constant 0 : index
    %35 = vector.load %arg14[%c17, %c0_34] : memref<192x64xbf16, #tpu.memory_space<vmem>>, vector<128x64xbf16>
    %c17_35 = arith.constant 17 : index
    %c0_36 = arith.constant 0 : index
    %36 = vector.load %arg6[%c17_35, %c0_36] : memref<192x1xbf16, #tpu.memory_space<vmem>>, vector<128x1xbf16>
    %37 = vector.broadcast %36 : vector<128x1xbf16> to vector<128x64xbf16>
    %38 = arith.mulf %35, %37 : vector<128x64xbf16>
    %c2 = arith.constant 2 : index
    %c0_37 = arith.constant 0 : index
    %c0_38 = arith.constant 0 : index
    %39 = vector.load %arg8[%c2, %c0_37, %c0_38] : memref<9x64x64xbf16, #tpu.memory_space<vmem>>, vector<1x64x64xbf16>
    %40 = vector.shape_cast %39 : vector<1x64x64xbf16> to vector<64x64xbf16>
    %cst_39 = arith.constant dense<0.000000e+00> : vector<128x64xf32>
    %41 = tpu.matmul %38, %40, %cst_39 {dimension_numbers = #tpu.dot_dimension_numbers<[1], [0], [0], [1], [0, 0, 1, 1], [], []>} : vector<128x64xbf16>, vector<64x64xbf16>, vector<128x64xf32> -> vector<128x64xf32>
    %42 = arith.addf %34, %41 : vector<128x64xf32>
    %c31 = arith.constant 31 : index
    %c0_40 = arith.constant 0 : index
    %43 = vector.load %arg14[%c31, %c0_40] : memref<192x64xbf16, #tpu.memory_space<vmem>>, vector<128x64xbf16>
    %c31_41 = arith.constant 31 : index
    %c0_42 = arith.constant 0 : index
    %44 = vector.load %arg5[%c31_41, %c0_42] : memref<192x1xbf16, #tpu.memory_space<vmem>>, vector<128x1xbf16>
    %45 = vector.broadcast %44 : vector<128x1xbf16> to vector<128x64xbf16>
    %46 = arith.mulf %43, %45 : vector<128x64xbf16>
    %c3 = arith.constant 3 : index
    %c0_43 = arith.constant 0 : index
    %c0_44 = arith.constant 0 : index
    %47 = vector.load %arg8[%c3, %c0_43, %c0_44] : memref<9x64x64xbf16, #tpu.memory_space<vmem>>, vector<1x64x64xbf16>
    %48 = vector.shape_cast %47 : vector<1x64x64xbf16> to vector<64x64xbf16>
    %cst_45 = arith.constant dense<0.000000e+00> : vector<128x64xf32>
    %49 = tpu.matmul %46, %48, %cst_45 {dimension_numbers = #tpu.dot_dimension_numbers<[1], [0], [0], [1], [0, 0, 1, 1], [], []>} : vector<128x64xbf16>, vector<64x64xbf16>, vector<128x64xf32> -> vector<128x64xf32>
    %50 = arith.addf %42, %49 : vector<128x64xf32>
    %c32_46 = arith.constant 32 : index
    %c0_47 = arith.constant 0 : index
    %51 = vector.load %arg14[%c32_46, %c0_47] : memref<192x64xbf16, #tpu.memory_space<vmem>>, vector<128x64xbf16>
    %c4 = arith.constant 4 : index
    %c0_48 = arith.constant 0 : index
    %c0_49 = arith.constant 0 : index
    %52 = vector.load %arg8[%c4, %c0_48, %c0_49] : memref<9x64x64xbf16, #tpu.memory_space<vmem>>, vector<1x64x64xbf16>
    %53 = vector.shape_cast %52 : vector<1x64x64xbf16> to vector<64x64xbf16>
    %cst_50 = arith.constant dense<0.000000e+00> : vector<128x64xf32>
    %54 = tpu.matmul %51, %53, %cst_50 {dimension_numbers = #tpu.dot_dimension_numbers<[1], [0], [0], [1], [0, 0, 1, 1], [], []>} : vector<128x64xbf16>, vector<64x64xbf16>, vector<128x64xf32> -> vector<128x64xf32>
    %55 = arith.addf %50, %54 : vector<128x64xf32>
    %c33 = arith.constant 33 : index
    %c0_51 = arith.constant 0 : index
    %56 = vector.load %arg14[%c33, %c0_51] : memref<192x64xbf16, #tpu.memory_space<vmem>>, vector<128x64xbf16>
    %c33_52 = arith.constant 33 : index
    %c0_53 = arith.constant 0 : index
    %57 = vector.load %arg6[%c33_52, %c0_53] : memref<192x1xbf16, #tpu.memory_space<vmem>>, vector<128x1xbf16>
    %58 = vector.broadcast %57 : vector<128x1xbf16> to vector<128x64xbf16>
    %59 = arith.mulf %56, %58 : vector<128x64xbf16>
    %c5 = arith.constant 5 : index
    %c0_54 = arith.constant 0 : index
    %c0_55 = arith.constant 0 : index
    %60 = vector.load %arg8[%c5, %c0_54, %c0_55] : memref<9x64x64xbf16, #tpu.memory_space<vmem>>, vector<1x64x64xbf16>
    %61 = vector.shape_cast %60 : vector<1x64x64xbf16> to vector<64x64xbf16>
    %cst_56 = arith.constant dense<0.000000e+00> : vector<128x64xf32>
    %62 = tpu.matmul %59, %61, %cst_56 {dimension_numbers = #tpu.dot_dimension_numbers<[1], [0], [0], [1], [0, 0, 1, 1], [], []>} : vector<128x64xbf16>, vector<64x64xbf16>, vector<128x64xf32> -> vector<128x64xf32>
    %63 = arith.addf %55, %62 : vector<128x64xf32>
    %c47 = arith.constant 47 : index
    %c0_57 = arith.constant 0 : index
    %64 = vector.load %arg14[%c47, %c0_57] : memref<192x64xbf16, #tpu.memory_space<vmem>>, vector<128x64xbf16>
    %c47_58 = arith.constant 47 : index
    %c0_59 = arith.constant 0 : index
    %65 = vector.load %arg5[%c47_58, %c0_59] : memref<192x1xbf16, #tpu.memory_space<vmem>>, vector<128x1xbf16>
    %66 = vector.broadcast %65 : vector<128x1xbf16> to vector<128x64xbf16>
    %67 = arith.mulf %64, %66 : vector<128x64xbf16>
    %c6 = arith.constant 6 : index
    %c0_60 = arith.constant 0 : index
    %c0_61 = arith.constant 0 : index
    %68 = vector.load %arg8[%c6, %c0_60, %c0_61] : memref<9x64x64xbf16, #tpu.memory_space<vmem>>, vector<1x64x64xbf16>
    %69 = vector.shape_cast %68 : vector<1x64x64xbf16> to vector<64x64xbf16>
    %cst_62 = arith.constant dense<0.000000e+00> : vector<128x64xf32>
    %70 = tpu.matmul %67, %69, %cst_62 {dimension_numbers = #tpu.dot_dimension_numbers<[1], [0], [0], [1], [0, 0, 1, 1], [], []>} : vector<128x64xbf16>, vector<64x64xbf16>, vector<128x64xf32> -> vector<128x64xf32>
    %71 = arith.addf %63, %70 : vector<128x64xf32>
    %c48 = arith.constant 48 : index
    %c0_63 = arith.constant 0 : index
    %72 = vector.load %arg14[%c48, %c0_63] : memref<192x64xbf16, #tpu.memory_space<vmem>>, vector<128x64xbf16>
    %c7 = arith.constant 7 : index
    %c0_64 = arith.constant 0 : index
    %c0_65 = arith.constant 0 : index
    %73 = vector.load %arg8[%c7, %c0_64, %c0_65] : memref<9x64x64xbf16, #tpu.memory_space<vmem>>, vector<1x64x64xbf16>
    %74 = vector.shape_cast %73 : vector<1x64x64xbf16> to vector<64x64xbf16>
    %cst_66 = arith.constant dense<0.000000e+00> : vector<128x64xf32>
    %75 = tpu.matmul %72, %74, %cst_66 {dimension_numbers = #tpu.dot_dimension_numbers<[1], [0], [0], [1], [0, 0, 1, 1], [], []>} : vector<128x64xbf16>, vector<64x64xbf16>, vector<128x64xf32> -> vector<128x64xf32>
    %76 = arith.addf %71, %75 : vector<128x64xf32>
    %c49 = arith.constant 49 : index
    %c0_67 = arith.constant 0 : index
    %77 = vector.load %arg14[%c49, %c0_67] : memref<192x64xbf16, #tpu.memory_space<vmem>>, vector<128x64xbf16>
    %c49_68 = arith.constant 49 : index
    %c0_69 = arith.constant 0 : index
    %78 = vector.load %arg6[%c49_68, %c0_69] : memref<192x1xbf16, #tpu.memory_space<vmem>>, vector<128x1xbf16>
    %79 = vector.broadcast %78 : vector<128x1xbf16> to vector<128x64xbf16>
    %80 = arith.mulf %77, %79 : vector<128x64xbf16>
    %c8 = arith.constant 8 : index
    %c0_70 = arith.constant 0 : index
    %c0_71 = arith.constant 0 : index
    %81 = vector.load %arg8[%c8, %c0_70, %c0_71] : memref<9x64x64xbf16, #tpu.memory_space<vmem>>, vector<1x64x64xbf16>
    %82 = vector.shape_cast %81 : vector<1x64x64xbf16> to vector<64x64xbf16>
    %cst_72 = arith.constant dense<0.000000e+00> : vector<128x64xf32>
    %83 = tpu.matmul %80, %82, %cst_72 {dimension_numbers = #tpu.dot_dimension_numbers<[1], [0], [0], [1], [0, 0, 1, 1], [], []>} : vector<128x64xbf16>, vector<64x64xbf16>, vector<128x64xf32> -> vector<128x64xf32>
    %84 = arith.addf %76, %83 : vector<128x64xf32>
    %c0_73 = arith.constant 0 : index
    %c0_74 = arith.constant 0 : index
    %85 = vector.load %arg9[%c0_73, %c0_74] : memref<1x64xf32, #tpu.memory_space<vmem>>, vector<1x64xf32>
    %86 = vector.broadcast %85 : vector<1x64xf32> to vector<128x64xf32>
    %87 = arith.addf %84, %86 : vector<128x64xf32>
    %88 = arith.truncf %87 : vector<128x64xf32> to vector<128x64xbf16>
    %c0_75 = arith.constant 0 : index
    %c0_76 = arith.constant 0 : index
    %89 = vector.load %arg12[%c0_75, %c0_76] : memref<128x64xbf16, #tpu.memory_space<vmem>>, vector<128x64xbf16>
    tpu.vector_store %arg12[%c0_75, %c0_76], %88 {strides = array<i32>} : memref<128x64xbf16, #tpu.memory_space<vmem>>, vector<128x64xbf16>,
    %cst_77 = arith.constant dense<0.000000e+00> : vector<64xf32>
    %90 = vector.multi_reduction <add>, %87, %cst_77 [0] : vector<128x64xf32> to vector<64xf32>
    %91 = vector.shape_cast %90 : vector<64xf32> to vector<1x64xf32>
    %c0_78 = arith.constant 0 : index
    %c0_79 = arith.constant 0 : index
    %c0_80 = arith.constant 0 : index
    %92 = vector.load %arg13[%c0_78, %c0_79, %c0_80] : memref<1x2x64xf32, #tpu.memory_space<vmem>>, vector<1x1x64xf32>
    %93 = vector.shape_cast %92 : vector<1x1x64xf32> to vector<1x64xf32>
    %94 = vector.shape_cast %91 : vector<1x64xf32> to vector<1x1x64xf32>
    tpu.vector_store %arg13[%c0_78, %c0_79, %c0_80], %94 {strides = array<i32>} : memref<1x2x64xf32, #tpu.memory_space<vmem>>, vector<1x1x64xf32>,
    %95 = arith.mulf %87, %87 : vector<128x64xf32>
    %cst_81 = arith.constant dense<0.000000e+00> : vector<64xf32>
    %96 = vector.multi_reduction <add>, %95, %cst_81 [0] : vector<128x64xf32> to vector<64xf32>
    %97 = vector.shape_cast %96 : vector<64xf32> to vector<1x64xf32>
    %c0_82 = arith.constant 0 : index
    %c1_83 = arith.constant 1 : index
    %c0_84 = arith.constant 0 : index
    %98 = vector.load %arg13[%c0_82, %c1_83, %c0_84] : memref<1x2x64xf32, #tpu.memory_space<vmem>>, vector<1x1x64xf32>
    %99 = vector.shape_cast %98 : vector<1x1x64xf32> to vector<1x64xf32>
    %100 = vector.shape_cast %97 : vector<1x64xf32> to vector<1x1x64xf32>
    tpu.vector_store %arg13[%c0_82, %c1_83, %c0_84], %100 {strides = array<i32>} : memref<1x2x64xf32, #tpu.memory_space<vmem>>, vector<1x1x64xf32>,
    return
  }
  func.func @transform_0(%arg0: i32) -> (i32, i32) {
    %c0_i32 = arith.constant 0 : i32
    %c0_i32_0 = arith.constant 0 : i32
    return %arg0, %c0_i32 : i32, i32
  }
  func.func @transform_1(%arg0: i32) -> (i32, i32) {
    %c0_i32 = arith.constant 0 : i32
    %c0_i32_0 = arith.constant 0 : i32
    return %arg0, %c0_i32 : i32, i32
  }
  func.func @transform_2(%arg0: i32) -> (i32, i32, i32) {
    %c0_i32 = arith.constant 0 : i32
    %c0_i32_0 = arith.constant 0 : i32
    %c0_i32_1 = arith.constant 0 : i32
    return %arg0, %c0_i32, %c0_i32_0 : i32, i32, i32
  }
  func.func @transform_3(%arg0: i32) -> (i32, i32, i32) {
    %c0_i32 = arith.constant 0 : i32
    %c0_i32_0 = arith.constant 0 : i32
    %c0_i32_1 = arith.constant 0 : i32
    return %arg0, %c0_i32, %c0_i32_0 : i32, i32, i32
  }
  func.func @transform_4(%arg0: i32) -> (i32, i32) {
    %c0_i32 = arith.constant 0 : i32
    %c0_i32_0 = arith.constant 0 : i32
    %c0_i32_1 = arith.constant 0 : i32
    return %c0_i32, %c0_i32_0 : i32, i32
  }
  func.func @transform_5(%arg0: i32) -> (i32, i32) {
    %c0_i32 = arith.constant 0 : i32
    %c0_i32_0 = arith.constant 0 : i32
    %c0_i32_1 = arith.constant 0 : i32
    return %c0_i32, %c0_i32_0 : i32, i32
  }
  func.func @transform_6(%arg0: i32) -> (i32, i32) {
    %c0_i32 = arith.constant 0 : i32
    %c0_i32_0 = arith.constant 0 : i32
    %c0_i32_1 = arith.constant 0 : i32
    return %c0_i32, %c0_i32_0 : i32, i32
  }
  func.func @transform_7(%arg0: i32) -> (i32, i32, i32) {
    %c0_i32 = arith.constant 0 : i32
    %c0_i32_0 = arith.constant 0 : i32
    %c0_i32_1 = arith.constant 0 : i32
    %c0_i32_2 = arith.constant 0 : i32
    return %c0_i32, %c0_i32_0, %c0_i32_1 : i32, i32, i32
  }
  func.func @transform_8(%arg0: i32) -> (i32, i32) {
    %c0_i32 = arith.constant 0 : i32
    %c0_i32_0 = arith.constant 0 : i32
    %c0_i32_1 = arith.constant 0 : i32
    return %c0_i32, %c0_i32_0 : i32, i32
  }
  func.func @transform_9(%arg0: i32) -> (i32, i32) {
    %c0_i32 = arith.constant 0 : i32
    %c0_i32_0 = arith.constant 0 : i32
    %c0_i32_1 = arith.constant 0 : i32
    return %c0_i32, %c0_i32_0 : i32, i32
  }
  func.func @transform_10(%arg0: i32) -> (i32, i32) {
    %c0_i32 = arith.constant 0 : i32
    %c0_i32_0 = arith.constant 0 : i32
    %c0_i32_1 = arith.constant 0 : i32
    return %c0_i32, %c0_i32_0 : i32, i32
  }
  func.func @transform_11(%arg0: i32) -> (i32, i32) {
    %c0_i32 = arith.constant 0 : i32
    %c0_i32_0 = arith.constant 0 : i32
    return %arg0, %c0_i32 : i32, i32
  }
  func.func @transform_12(%arg0: i32) -> (i32, i32, i32) {
    %c0_i32 = arith.constant 0 : i32
    %c0_i32_0 = arith.constant 0 : i32
    %c0_i32_1 = arith.constant 0 : i32
    return %arg0, %c0_i32, %c0_i32_0 : i32, i32, i32
  }
}

</mosaic_0001>

<llo_original>
// kernel: encoder_forward.11
$region0: #{encoder_forward.11}
  #allocation0 [shape = 'u32[]', space=smem, size = 0x4, offset = 0x4, fixed_abs, tag = 'smem constant byte address 0x4 - core index']
  #allocation1 [shape = 'u32[72,128]{1,0:T(1,128)}', space=vmem, size = 0x9000, scoped, tag = 'internal scratch']
  #allocation2 [shape = 'f32[1]{0:T(128)S(6)}', space=smem, size = 0x200, scoped, tag = 'scoped memory for encoder_forward.11']
  %s0 = inlined_call_operand.vmem [shape: bf16[512,64], index: 0, kind: input, shape index: {}]
  %s1 = inlined_call_operand.vmem [shape: f32[1,64], index: 1, kind: input, shape index: {}]
  %s2 = inlined_call_operand.vmem [shape: f32[1,64], index: 2, kind: input, shape index: {}]
  %s3 = inlined_call_operand.vmem [shape: bf16[64,4], index: 3, kind: input, shape index: {}]
  %s4 = inlined_call_operand.vmem [shape: f32[1,4], index: 4, kind: input, shape index: {}]
  %s5 = inlined_call_operand.vmem [shape: f32[512,4], index: 5, kind: input, shape index: {}]
  %s6 = inlined_call_operand.<no memory space> [shape: f32[1], index: 6, kind: input, shape index: {}]
  %s7 = inlined_call_operand.vmem [shape: f32[512,4], index: 7, kind: output, shape index: {}]
  %s8 = sld [smem:[#allocation0]]
  $region61: #{encoder_forward.11} parent=0
    _
  %s10 = ssub.s32 1, %s8
  %s11 = scalar_select 0, %s10, %s8
  %12 = sst [smem:[#allocation2]] %s6
  loop: start=0, step=1, limit=6
  $region2: #{encoder_forward.11} parent=0 // loop_pre_header
    _
  $region3: #{encoder_forward.11} parent=0 // loop_header
    %s14 = sphi 0, %s18
    %p15 = scmp.ge.s32.totalorder %s14, 6
    %s24 = sphi 0, %s26
    %s27 = sphi 0, %s24
    %s28 = sphi 0, %s27
    %s44 = sphi 0, %s28
    %s48 = sphi 0, %s48
    %s50 = sphi 0, %s48
    %s51 = sphi 0, %s50
    %s65 = sphi 0, %s51
    %s69 = sphi 0, %s69
    %s71 = sphi 0, %s69
    %s72 = sphi 0, %s71
    %s86 = sphi 0, %s72
    %s90 = sphi 0, %s90
    %s92 = sphi 0, %s90
    %s93 = sphi 0, %s92
    %s107 = sphi 0, %s93
    %s111 = sphi 0, %s111
    %s113 = sphi 0, %s111
    %s114 = sphi 0, %s113
    %s128 = sphi 0, %s114
    %s134 = sphi 0, %s136
    %s137 = sphi 0, %s134
    %s138 = sphi 0, %s137
    %s154 = sphi 0, %s138
    %s158 = sphi 0, %s158
    %s160 = sphi 0, %s158
    %s161 = sphi 0, %s160
    %s175 = sphi 0, %s161
    %s181 = sphi 0, %s183
    %s184 = sphi 0, %s181
    %s185 = sphi 0, %s184
    %s201 = sphi 0, %s185
  $region4: #{encoder_forward.11} parent=0 // loop_header_branch
    %17 = sbr.rel (%p15) target = $region8
  $region5: #{encoder_forward.11} parent=0 // loop_body
    %s19 = ssub.s32 %s14, 1
    %s20 = ssub.s32 %s14, 2
    %s21 = sadd.s32 %s14, 1
    %s22 = ssub.s32 %s14, %s21
    %p23 = scmp.eq.s32.totalorder %s22, 0
    %s25 = sadd.s32 %s24, 1
    %s26 = scalar_select %p23, %s24, %s25
    %p29 = pneg %p23
    %p30 = scmp.eq.s32.totalorder %s14, 3
    %p31 = por %p29, %p30
    %p32 = scmp.ne.s32.totalorder %s24, %s27
    %p33 = scmp.eq.s32.totalorder %s14, 0
    %p34 = por %p32, %p33
    %p35 = scmp.ne.s32.totalorder %s24, %s27
    %p36 = scmp.eq.s32.totalorder %s19, 3
    %p37 = por %p35, %p36
    %p38 = scmp.ne.s32.totalorder %s27, %s28
    %p39 = scmp.eq.s32.totalorder %s19, 0
    %p40 = por %p38, %p39
    %p41 = scmp.ne.s32.totalorder %s27, %s28
    %p42 = scmp.eq.s32.totalorder %s20, 3
    %p43 = por %p41, %p42
    %p45 = scmp.ne.s32.totalorder %s28, %s44
    %p46 = scmp.eq.s32.totalorder %s20, 0
    %p47 = por %p45, %p46
    %s49 = sadd.s32 %s48, 1
    %p52 = scmp.eq.s32.totalorder %s14, 3
    %p53 = scmp.ne.s32.totalorder %s48, %s50
    %p54 = scmp.eq.s32.totalorder %s14, 0
    %p55 = por %p53, %p54
    %p56 = scmp.ne.s32.totalorder %s48, %s50
    %p57 = scmp.eq.s32.totalorder %s19, 3
    %p58 = por %p56, %p57
    %p59 = scmp.ne.s32.totalorder %s50, %s51
    %p60 = scmp.eq.s32.totalorder %s19, 0
    %p61 = por %p59, %p60
    %p62 = scmp.ne.s32.totalorder %s50, %s51
    %p63 = scmp.eq.s32.totalorder %s20, 3
    %p64 = por %p62, %p63
    %p66 = scmp.ne.s32.totalorder %s51, %s65
    %p67 = scmp.eq.s32.totalorder %s20, 0
    %p68 = por %p66, %p67
    %s70 = sadd.s32 %s69, 1
    %p73 = scmp.eq.s32.totalorder %s14, 3
    %p74 = scmp.ne.s32.totalorder %s69, %s71
    %p75 = scmp.eq.s32.totalorder %s14, 0
    %p76 = por %p74, %p75
    %p77 = scmp.ne.s32.totalorder %s69, %s71
    %p78 = scmp.eq.s32.totalorder %s19, 3
    %p79 = por %p77, %p78
    %p80 = scmp.ne.s32.totalorder %s71, %s72
    %p81 = scmp.eq.s32.totalorder %s19, 0
    %p82 = por %p80, %p81
    %p83 = scmp.ne.s32.totalorder %s71, %s72
    %p84 = scmp.eq.s32.totalorder %s20, 3
    %p85 = por %p83, %p84
    %p87 = scmp.ne.s32.totalorder %s72, %s86
    %p88 = scmp.eq.s32.totalorder %s20, 0
    %p89 = por %p87, %p88
    %s91 = sadd.s32 %s90, 1
    %p94 = scmp.eq.s32.totalorder %s14, 3
    %p95 = scmp.ne.s32.totalorder %s90, %s92
    %p96 = scmp.eq.s32.totalorder %s14, 0
    %p97 = por %p95, %p96
    %p98 = scmp.ne.s32.totalorder %s90, %s92
    %p99 = scmp.eq.s32.totalorder %s19, 3
    %p100 = por %p98, %p99
    %p101 = scmp.ne.s32.totalorder %s92, %s93
    %p102 = scmp.eq.s32.totalorder %s19, 0
    %p103 = por %p101, %p102
    %p104 = scmp.ne.s32.totalorder %s92, %s93
    %p105 = scmp.eq.s32.totalorder %s20, 3
    %p106 = por %p104, %p105
    %p108 = scmp.ne.s32.totalorder %s93, %s107
    %p109 = scmp.eq.s32.totalorder %s20, 0
    %p110 = por %p108, %p109
    %s112 = sadd.s32 %s111, 1
    %p115 = scmp.eq.s32.totalorder %s14, 3
    %p116 = scmp.ne.s32.totalorder %s111, %s113
    %p117 = scmp.eq.s32.totalorder %s14, 0
    %p118 = por %p116, %p117
    %p119 = scmp.ne.s32.totalorder %s111, %s113
    %p120 = scmp.eq.s32.totalorder %s19, 3
    %p121 = por %p119, %p120
    %p122 = scmp.ne.s32.totalorder %s113, %s114
    %p123 = scmp.eq.s32.totalorder %s19, 0
    %p124 = por %p122, %p123
    %p125 = scmp.ne.s32.totalorder %s113, %s114
    %p126 = scmp.eq.s32.totalorder %s20, 3
    %p127 = por %p125, %p126
    %p129 = scmp.ne.s32.totalorder %s114, %s128
    %p130 = scmp.eq.s32.totalorder %s20, 0
    %p131 = por %p129, %p130
    %s132 = ssub.s32 %s14, %s21
    %p133 = scmp.eq.s32.totalorder %s132, 0
    %s135 = sadd.s32 %s134, 1
    %s136 = scalar_select %p133, %s134, %s135
    %p139 = pneg %p133
    %p140 = scmp.eq.s32.totalorder %s14, 3
    %p141 = por %p139, %p140
    %p142 = scmp.ne.s32.totalorder %s134, %s137
    %p143 = scmp.eq.s32.totalorder %s14, 0
    %p144 = por %p142, %p143
    %p145 = scmp.ne.s32.totalorder %s134, %s137
    %p146 = scmp.eq.s32.totalorder %s19, 3
    %p147 = por %p145, %p146
    %p148 = scmp.ne.s32.totalorder %s137, %s138
    %p149 = scmp.eq.s32.totalorder %s19, 0
    %p150 = por %p148, %p149
    %p151 = scmp.ne.s32.totalorder %s137, %s138
    %p152 = scmp.eq.s32.totalorder %s20, 3
    %p153 = por %p151, %p152
    %p155 = scmp.ne.s32.totalorder %s138, %s154
    %p156 = scmp.eq.s32.totalorder %s20, 0
    %p157 = por %p155, %p156
    %s159 = sadd.s32 %s158, 1
    %p162 = scmp.eq.s32.totalorder %s14, 3
    %p163 = scmp.ne.s32.totalorder %s158, %s160
    %p164 = scmp.eq.s32.totalorder %s14, 0
    %p165 = por %p163, %p164
    %p166 = scmp.ne.s32.totalorder %s158, %s160
    %p167 = scmp.eq.s32.totalorder %s19, 3
    %p168 = por %p166, %p167
    %p169 = scmp.ne.s32.totalorder %s160, %s161
    %p170 = scmp.eq.s32.totalorder %s19, 0
    %p171 = por %p169, %p170
    %p172 = scmp.ne.s32.totalorder %s160, %s161
    %p173 = scmp.eq.s32.totalorder %s20, 3
    %p174 = por %p172, %p173
    %p176 = scmp.ne.s32.totalorder %s161, %s175
    %p177 = scmp.eq.s32.totalorder %s20, 0
    %p178 = por %p176, %p177
    %s179 = ssub.s32 %s14, %s21
    %p180 = scmp.eq.s32.totalorder %s179, 0
    %s182 = sadd.s32 %s181, 1
    %s183 = scalar_select %p180, %s181, %s182
    %p186 = pneg %p180
    %p187 = scmp.eq.s32.totalorder %s14, 3
    %p188 = por %p186, %p187
    %p189 = scmp.ne.s32.totalorder %s181, %s184
    %p190 = scmp.eq.s32.totalorder %s14, 0
    %p191 = por %p189, %p190
    %p192 = scmp.ne.s32.totalorder %s181, %s184
    %p193 = scmp.eq.s32.totalorder %s19, 3
    %p194 = por %p192, %p193
    %p195 = scmp.ne.s32.totalorder %s184, %s185
    %p196 = scmp.eq.s32.totalorder %s19, 0
    %p197 = por %p195, %p196
    %p198 = scmp.ne.s32.totalorder %s184, %s185
    %p199 = scmp.eq.s32.totalorder %s20, 3
    %p200 = por %p198, %p199
    %p202 = scmp.ne.s32.totalorder %s185, %s201
    %p203 = scmp.eq.s32.totalorder %s20, 0
    %p204 = por %p202, %p203
    %p205 = scmp.le.s32.totalorder 1, %s14
    %p206 = scmp.lt.s32.totalorder %s14, 5
    %p207 = pnand %p205, %p206
    %p208 = pneg %p207
    // Predicated region
    $region9: #{encoder_forward.11} parent=5 // pred_check
      _
    $region10: #{encoder_forward.11} parent=5 // pred_check_branch
      %210 = sbr.rel (%p207) target = $region12
    $region11: #{encoder_forward.11} parent=5 // pred_region
      %s211 = ssub.s32 %s14, 1
      // Predicated region
      $region13: #{encoder_forward.11} parent=11 // pred_check
        %p212 = pneg %p61
      $region14: #{encoder_forward.11} parent=11 // pred_check_branch
        %214 = sbr.rel (%p212) target = $region16
      $region15: #{encoder_forward.11} parent=11 // pred_region
        _
      $region16: #{encoder_forward.11} parent=11 // pred_fallthru
        _
      // Predicated region
      $region17: #{encoder_forward.11} parent=11 // pred_check
        %p215 = pneg %p82
      $region18: #{encoder_forward.11} parent=11 // pred_check_branch
        %217 = sbr.rel (%p215) target = $region20
      $region19: #{encoder_forward.11} parent=11 // pred_region
        _
      $region20: #{encoder_forward.11} parent=11 // pred_fallthru
        _
      // Predicated region
      $region21: #{encoder_forward.11} parent=11 // pred_check
        %p218 = pneg %p103
      $region22: #{encoder_forward.11} parent=11 // pred_check_branch
        %220 = sbr.rel (%p218) target = $region24
      $region23: #{encoder_forward.11} parent=11 // pred_region
        _
      $region24: #{encoder_forward.11} parent=11 // pred_fallthru
        _
      // Predicated region
      $region25: #{encoder_forward.11} parent=11 // pred_check
        %p221 = pneg %p124
      $region26: #{encoder_forward.11} parent=11 // pred_check_branch
        %223 = sbr.rel (%p221) target = $region28
      $region27: #{encoder_forward.11} parent=11 // pred_region
        _
      $region28: #{encoder_forward.11} parent=11 // pred_fallthru
        _
      // Predicated region
      $region29: #{encoder_forward.11} parent=11 // pred_check
        %p224 = pneg %p171
      $region30: #{encoder_forward.11} parent=11 // pred_check_branch
        %226 = sbr.rel (%p224) target = $region32
      $region31: #{encoder_forward.11} parent=11 // pred_region
        _
      $region32: #{encoder_forward.11} parent=11 // pred_fallthru
        _
    $region12: #{encoder_forward.11} parent=5 // pred_fallthru
      _
    %p227 = scmp.lt.s32.totalorder %s14, 4
    // Predicated region
    $region33: #{encoder_forward.11} parent=5 // pred_check
      %p228 = pneg %p227
    $region34: #{encoder_forward.11} parent=5 // pred_check_branch
      %230 = sbr.rel (%p228) target = $region36
    $region35: #{encoder_forward.11} parent=5 // pred_region
      // Predicated region
      $region37: #{encoder_forward.11} parent=35 // pred_check
        %p231 = pneg %p34
      $region38: #{encoder_forward.11} parent=35 // pred_check_branch
        %233 = sbr.rel (%p231) target = $region40
      $region39: #{encoder_forward.11} parent=35 // pred_region
        %s234 = smul.u32 16, %s14
        %p235 = scmp.lt.s32.totalorder %s234, 63
        %s236 = scalar_select %p235, %s234, 63
        %s237 = smul.addr %s236, 4
        %s238 = scalar_lea.vmem %s0, %s237
        %s239 = smul.u32 16, %s14
      $region40: #{encoder_forward.11} parent=35 // pred_fallthru
        _
      // Predicated region
      $region41: #{encoder_forward.11} parent=35 // pred_check
        %p240 = pneg %p144
      $region42: #{encoder_forward.11} parent=35 // pred_check_branch
        %242 = sbr.rel (%p240) target = $region44
      $region43: #{encoder_forward.11} parent=35 // pred_region
        %s243 = smul.u32 16, %s14
        %p244 = scmp.lt.s32.totalorder %s243, 63
        %s245 = scalar_select %p244, %s243, 63
        %s246 = smul.addr %s245, 8
        %s247 = scalar_lea.vmem %s5, %s246
        %s248 = smul.u32 16, %s14
      $region44: #{encoder_forward.11} parent=35 // pred_fallthru
        _
    $region36: #{encoder_forward.11} parent=5 // pred_fallthru
      _
    %p249 = scmp.le.s32.totalorder 1, %s14
    %p250 = scmp.lt.s32.totalorder %s14, 5
    %p251 = pnand %p249, %p250
    %p252 = pneg %p251
    // Predicated region
    $region45: #{encoder_forward.11} parent=5 // pred_check
      _
    $region46: #{encoder_forward.11} parent=5 // pred_check_branch
      %254 = sbr.rel (%p251) target = $region48
    $region47: #{encoder_forward.11} parent=5 // pred_region
      %s255 = ssub.s32 %s14, 1
      %s256 = smul.u32 16, %s19
      %p257 = scmp.lt.s32.totalorder %s256, 63
      %s258 = scalar_select %p257, %s256, 63
      %s259 = smul.addr %s258, 4
      %s260 = scalar_lea.vmem %s0, %s259
      %p261 = pneg %p40
      %p262 = pneg %p37
      %p263 = pneg %p61
      %p264 = pneg %p58
      %p265 = pneg %p82
      %p266 = pneg %p79
      %p267 = pneg %p103
      %p268 = pneg %p100
      %p269 = pneg %p124
      %p270 = pneg %p121
      %s271 = smul.u32 16, %s19
      %p272 = scmp.lt.s32.totalorder %s271, 63
      %s273 = scalar_select %p272, %s271, 63
      %s274 = smul.addr %s273, 8
      %s275 = scalar_lea.vmem %s5, %s274
      %p276 = pneg %p150
      %p277 = pneg %p147
      %p278 = pneg %p171
      %p279 = pneg %p168
      %p280 = pneg %p197
      %p281 = pneg %p194
      %s282 = smul.u32 16, %s19
      %p283 = scmp.lt.s32.totalorder %s282, 63
      %s284 = scalar_select %p283, %s282, 63
      %s285 = smul.addr %s284, 8
      %s286 = scalar_lea.vmem %s7, %s285
      %s287 = smul.u32 16, %s19
      %p288 = scmp.lt.s32.totalorder %s287, 63
      %s289 = scalar_select %p288, %s287, 63
      %s290 = smul.addr %s289, 4
      %s291 = scalar_lea.vmem %s0, %s290
      %s292 = smul.u32 16, %s19
      %s293 = smul.u32 16, %s19
      %p294 = scmp.lt.s32.totalorder %s293, 63
      %s295 = scalar_select %p294, %s293, 63
      %s296 = smul.addr %s295, 8
      %s297 = scalar_lea.vmem %s5, %s296
      %s298 = smul.u32 16, %s19
      %s299 = smul.u32 16, %s19
      %p300 = scmp.lt.s32.totalorder %s299, 63
      %s301 = scalar_select %p300, %s299, 63
      %s302 = smul.addr %s301, 8
      %s303 = scalar_lea.vmem %s7, %s302
      %s304 = smul.u32 16, %s19
      %v306 = vld [vmem:[%s291] sm:$0xf]
      %v307 = vld [vmem:[%s291 + $0x4] sm:$0xf]
      %v308 = vld [vmem:[%s291 + $0x8] sm:$0xf]
      %v309 = vld [vmem:[%s291 + $0xc] sm:$0xf]
      %v310 = vld [vmem:[%s291 + $0x10] sm:$0xf]
      %v311 = vld [vmem:[%s291 + $0x14] sm:$0xf]
      %v312 = vld [vmem:[%s291 + $0x18] sm:$0xf]
      %v313 = vld [vmem:[%s291 + $0x1c] sm:$0xf]
      %v314 = vld [vmem:[%s291 + $0x20] sm:$0xf]
      %v315 = vld [vmem:[%s291 + $0x24] sm:$0xf]
      %v316 = vld [vmem:[%s291 + $0x28] sm:$0xf]
      %v317 = vld [vmem:[%s291 + $0x2c] sm:$0xf]
      %v318 = vld [vmem:[%s291 + $0x30] sm:$0xf]
      %v319 = vld [vmem:[%s291 + $0x34] sm:$0xf]
      %v320 = vld [vmem:[%s291 + $0x38] sm:$0xf]
      %v321 = vld [vmem:[%s291 + $0x3c] sm:$0xf]
      %v322 = vunpack.c.l.bf16 %v306
      %v323 = vunpack.c.l.bf16 %v307
      %v324 = vunpack.c.l.bf16 %v308
      %v325 = vunpack.c.l.bf16 %v309
      %v326 = vunpack.c.l.bf16 %v310
      %v327 = vunpack.c.l.bf16 %v311
      %v328 = vunpack.c.l.bf16 %v312
      %v329 = vunpack.c.l.bf16 %v313
      %v330 = vunpack.c.l.bf16 %v314
      %v331 = vunpack.c.l.bf16 %v315
      %v332 = vunpack.c.l.bf16 %v316
      %v333 = vunpack.c.l.bf16 %v317
      %v334 = vunpack.c.l.bf16 %v318
      %v335 = vunpack.c.l.bf16 %v319
      %v336 = vunpack.c.l.bf16 %v320
      %v337 = vunpack.c.l.bf16 %v321
      %v338 = vld [vmem:[%s1] sm:$0x1]
      %v340 = vperm.slane %v338, 0
      %v342 = vmul.f32 %v322, %v340
      %v343 = vmul.f32 %v323, %v340
      %v344 = vmul.f32 %v324, %v340
      %v345 = vmul.f32 %v325, %v340
      %v346 = vmul.f32 %v326, %v340
      %v347 = vmul.f32 %v327, %v340
      %v348 = vmul.f32 %v328, %v340
      %v349 = vmul.f32 %v329, %v340
      %v350 = vmul.f32 %v330, %v340
      %v351 = vmul.f32 %v331, %v340
      %v352 = vmul.f32 %v332, %v340
      %v353 = vmul.f32 %v333, %v340
      %v354 = vmul.f32 %v334, %v340
      %v355 = vmul.f32 %v335, %v340
      %v356 = vmul.f32 %v336, %v340
      %v357 = vmul.f32 %v337, %v340
      %v358 = vld [vmem:[%s2] sm:$0x1]
      %v360 = vperm.slane %v358, 0
      %v362 = vadd.f32 %v342, %v360
      %v363 = vadd.f32 %v343, %v360
      %v364 = vadd.f32 %v344, %v360
      %v365 = vadd.f32 %v345, %v360
      %v366 = vadd.f32 %v346, %v360
      %v367 = vadd.f32 %v347, %v360
      %v368 = vadd.f32 %v348, %v360
      %v369 = vadd.f32 %v349, %v360
      %v370 = vadd.f32 %v350, %v360
      %v371 = vadd.f32 %v351, %v360
      %v372 = vadd.f32 %v352, %v360
      %v373 = vadd.f32 %v353, %v360
      %v374 = vadd.f32 %v354, %v360
      %v375 = vadd.f32 %v355, %v360
      %v376 = vadd.f32 %v356, %v360
      %v377 = vadd.f32 %v357, %v360
      %v378 = vmax.f32 %v362, 0.0
      %v379 = vmax.f32 %v363, 0.0
      %v380 = vmax.f32 %v364, 0.0
      %v381 = vmax.f32 %v365, 0.0
      %v382 = vmax.f32 %v366, 0.0
      %v383 = vmax.f32 %v367, 0.0
      %v384 = vmax.f32 %v368, 0.0
      %v385 = vmax.f32 %v369, 0.0
      %v386 = vmax.f32 %v370, 0.0
      %v387 = vmax.f32 %v371, 0.0
      %v388 = vmax.f32 %v372, 0.0
      %v389 = vmax.f32 %v373, 0.0
      %v390 = vmax.f32 %v374, 0.0
      %v391 = vmax.f32 %v375, 0.0
      %v392 = vmax.f32 %v376, 0.0
      %v393 = vmax.f32 %v377, 0.0
      %v394 = vpack.c.bf16 %v379, %v378
      %v395 = vpack.c.bf16 %v381, %v380
      %v396 = vpack.c.bf16 %v383, %v382
      %v397 = vpack.c.bf16 %v385, %v384
      %v398 = vpack.c.bf16 %v387, %v386
      %v399 = vpack.c.bf16 %v389, %v388
      %v400 = vpack.c.bf16 %v391, %v390
      %v401 = vpack.c.bf16 %v393, %v392
      %v402 = vld [vmem:[%s3] sm:$0xf]
      %v403 = vld [vmem:[%s3 + $0x4] sm:$0xf]
      %v404 = vld [vmem:[%s3 + $0x8] sm:$0xf]
      %v405 = vld [vmem:[%s3 + $0xc] sm:$0xf]
      %v406 = vld [vmem:[%s3 + $0x10] sm:$0xf]
      %v407 = vld [vmem:[%s3 + $0x14] sm:$0xf]
      %v408 = vld [vmem:[%s3 + $0x18] sm:$0xf]
      %v409 = vld [vmem:[%s3 + $0x1c] sm:$0xf]
      %v410 = vld [vmem:[%s4] sm:$0x1]
      %v412 = vperm.slane %v410, 0
      %v422 = vunpack.c.l.b16 %v402
      %v423 = vunpack.c.l.b16 %v403
      %v424 = vunpack.c.l.b16 %v404
      %v425 = vunpack.c.l.b16 %v405
      %v426 = vunpack.c.l.b16 %v406
      %v427 = vunpack.c.l.b16 %v407
      %v428 = vunpack.c.l.b16 %v408
      %v429 = vunpack.c.l.b16 %v409
      %v430 = vpack.c.b16 %v423, %v422
      %v431 = vpack.c.b16 %v425, %v424
      %v432 = vpack.c.b16 %v427, %v426
      %v433 = vpack.c.b16 %v429, %v428
      %vm438 = vcmask 523264
      %v440 = vsel %vm438, %v394, 0
      %v443 = vsel %vm438, %v395, 0
      %v446 = vsel %vm438, %v396, 0
      %v449 = vsel %vm438, %v397, 0
      %v452 = vsel %vm438, %v398, 0
      %v455 = vsel %vm438, %v399, 0
      %v458 = vsel %vm438, %v400, 0
      %v461 = vsel %vm438, %v401, 0
      %463 = vmatpush.bf16.msra.mxu0 0
      %464 = vmatpush.bf16.msra.mxu0 0
      %465 = vmatpush.bf16.msra.mxu0 0
      %466 = vmatpush.bf16.msra.mxu0 0
      %467 = vmatpush.bf16.msra.mxu0 %v433
      %468 = vmatpush.bf16.msra.mxu0 %v432
      %469 = vmatpush.bf16.msra.mxu0 %v431
      %470 = vmatpush.bf16.msra.mxu0 %v430
      %471 = vmatmul.bf16.gmra.mxu0 %v440
      %v472 = vpop.f32.mrf.mxu0
      %v473 = vadd.f32 %v412, %v472
      %v474 = vpop.f32.mrf.mxu0
      %v475 = vadd.f32 %v412, %v474
      %476 = vmatmul.bf16.gmra.mxu0 %v443
      %v477 = vpop.f32.mrf.mxu0
      %v478 = vadd.f32 %v412, %v477
      %v479 = vpop.f32.mrf.mxu0
      %v480 = vadd.f32 %v412, %v479
      %481 = vmatmul.bf16.gmra.mxu0 %v446
      %v482 = vpop.f32.mrf.mxu0
      %v483 = vadd.f32 %v412, %v482
      %v484 = vpop.f32.mrf.mxu0
      %v485 = vadd.f32 %v412, %v484
      %486 = vmatmul.bf16.gmra.mxu0 %v449
      %v487 = vpop.f32.mrf.mxu0
      %v488 = vadd.f32 %v412, %v487
      %v489 = vpop.f32.mrf.mxu0
      %v490 = vadd.f32 %v412, %v489
      %491 = vmatmul.bf16.gmra.mxu0 %v452
      %v492 = vpop.f32.mrf.mxu0
      %v493 = vadd.f32 %v412, %v492
      %v494 = vpop.f32.mrf.mxu0
      %v495 = vadd.f32 %v412, %v494
      %496 = vmatmul.bf16.gmra.mxu0 %v455
      %v497 = vpop.f32.mrf.mxu0
      %v498 = vadd.f32 %v412, %v497
      %v499 = vpop.f32.mrf.mxu0
      %v500 = vadd.f32 %v412, %v499
      %501 = vmatmul.bf16.gmra.mxu0 %v458
      %v502 = vpop.f32.mrf.mxu0
      %v503 = vadd.f32 %v412, %v502
      %v504 = vpop.f32.mrf.mxu0
      %v505 = vadd.f32 %v412, %v504
      %506 = vmatmul.bf16.gmra.mxu0 %v461
      %v507 = vpop.f32.mrf.mxu0
      %v508 = vadd.f32 %v412, %v507
      %v509 = vpop.f32.mrf.mxu0
      %v510 = vadd.f32 %v412, %v509
      %511 = vdwg.mxu0
      %s512 = sld [smem:[#allocation2]]
      %v513 = vstv %s512
      %v514 = vmul.f32 %v473, %v513
      %v515 = vmul.f32 %v475, %v513
      %v516 = vmul.f32 %v478, %v513
      %v517 = vmul.f32 %v480, %v513
      %v518 = vmul.f32 %v483, %v513
      %v519 = vmul.f32 %v485, %v513
      %v520 = vmul.f32 %v488, %v513
      %v521 = vmul.f32 %v490, %v513
      %v522 = vmul.f32 %v493, %v513
      %v523 = vmul.f32 %v495, %v513
      %v524 = vmul.f32 %v498, %v513
      %v525 = vmul.f32 %v500, %v513
      %v526 = vmul.f32 %v503, %v513
      %v527 = vmul.f32 %v505, %v513
      %v528 = vmul.f32 %v508, %v513
      %v529 = vmul.f32 %v510, %v513
      %v530 = vld [vmem:[%s297] sm:$0xff]
      %v531 = vld [vmem:[%s297 + $0x8] sm:$0xff]
      %v532 = vld [vmem:[%s297 + $0x10] sm:$0xff]
      %v533 = vld [vmem:[%s297 + $0x18] sm:$0xff]
      %v534 = vld [vmem:[%s297 + $0x20] sm:$0xff]
      %v535 = vld [vmem:[%s297 + $0x28] sm:$0xff]
      %v536 = vld [vmem:[%s297 + $0x30] sm:$0xff]
      %v537 = vld [vmem:[%s297 + $0x38] sm:$0xff]
      %v538 = vld [vmem:[%s297 + $0x40] sm:$0xff]
      %v539 = vld [vmem:[%s297 + $0x48] sm:$0xff]
      %v540 = vld [vmem:[%s297 + $0x50] sm:$0xff]
      %v541 = vld [vmem:[%s297 + $0x58] sm:$0xff]
      %v542 = vld [vmem:[%s297 + $0x60] sm:$0xff]
      %v543 = vld [vmem:[%s297 + $0x68] sm:$0xff]
      %v544 = vld [vmem:[%s297 + $0x70] sm:$0xff]
      %v545 = vld [vmem:[%s297 + $0x78] sm:$0xff]
      %v546 = vadd.f32 %v514, %v530
      %v547 = vadd.f32 %v515, %v531
      %v548 = vadd.f32 %v516, %v532
      %v549 = vadd.f32 %v517, %v533
      %v550 = vadd.f32 %v518, %v534
      %v551 = vadd.f32 %v519, %v535
      %v552 = vadd.f32 %v520, %v536
      %v553 = vadd.f32 %v521, %v537
      %v554 = vadd.f32 %v522, %v538
      %v555 = vadd.f32 %v523, %v539
      %v556 = vadd.f32 %v524, %v540
      %v557 = vadd.f32 %v525, %v541
      %v558 = vadd.f32 %v526, %v542
      %v559 = vadd.f32 %v527, %v543
      %v560 = vadd.f32 %v528, %v544
      %v561 = vadd.f32 %v529, %v545
      %vm562 = vcmask 31744
      %563 = vst.msk [vmem:[%s303] sm:$0xff] %vm562, %v546
      %564 = vst.msk [vmem:[%s303 + $0x8] sm:$0xff] %vm562, %v547
      %565 = vst.msk [vmem:[%s303 + $0x10] sm:$0xff] %vm562, %v548
      %566 = vst.msk [vmem:[%s303 + $0x18] sm:$0xff] %vm562, %v549
      %567 = vst.msk [vmem:[%s303 + $0x20] sm:$0xff] %vm562, %v550
      %568 = vst.msk [vmem:[%s303 + $0x28] sm:$0xff] %vm562, %v551
      %569 = vst.msk [vmem:[%s303 + $0x30] sm:$0xff] %vm562, %v552
      %570 = vst.msk [vmem:[%s303 + $0x38] sm:$0xff] %vm562, %v553
      %571 = vst.msk [vmem:[%s303 + $0x40] sm:$0xff] %vm562, %v554
      %572 = vst.msk [vmem:[%s303 + $0x48] sm:$0xff] %vm562, %v555
      %573 = vst.msk [vmem:[%s303 + $0x50] sm:$0xff] %vm562, %v556
      %574 = vst.msk [vmem:[%s303 + $0x58] sm:$0xff] %vm562, %v557
      %575 = vst.msk [vmem:[%s303 + $0x60] sm:$0xff] %vm562, %v558
      %576 = vst.msk [vmem:[%s303 + $0x68] sm:$0xff] %vm562, %v559
      %577 = vst.msk [vmem:[%s303 + $0x70] sm:$0xff] %vm562, %v560
      %578 = vst.msk [vmem:[%s303 + $0x78] sm:$0xff] %vm562, %v561
      %s579 = smul.u32 16, %s19
      %p580 = scmp.lt.s32.totalorder %s579, 63
      %s581 = scalar_select %p580, %s579, 63
      %s582 = smul.addr %s581, 8
      %s583 = scalar_lea.vmem %s7, %s582
      // Predicated region
      $region49: #{encoder_forward.11} parent=47 // pred_check
        %p584 = pneg %p194
      $region50: #{encoder_forward.11} parent=47 // pred_check_branch
        %586 = sbr.rel (%p584) target = $region52
      $region51: #{encoder_forward.11} parent=47 // pred_region
        %s587 = smul.u32 16, %s19
      $region52: #{encoder_forward.11} parent=47 // pred_fallthru
        _
    $region48: #{encoder_forward.11} parent=5 // pred_fallthru
      _
    %p588 = scmp.le.s32.totalorder 2, %s14
    // Predicated region
    $region53: #{encoder_forward.11} parent=5 // pred_check
      %p589 = pneg %p588
    $region54: #{encoder_forward.11} parent=5 // pred_check_branch
      %591 = sbr.rel (%p589) target = $region56
    $region55: #{encoder_forward.11} parent=5 // pred_region
      %s592 = ssub.s32 %s14, 2
      // Predicated region
      $region57: #{encoder_forward.11} parent=55 // pred_check
        %p593 = pneg %p200
      $region58: #{encoder_forward.11} parent=55 // pred_check_branch
        %595 = sbr.rel (%p593) target = $region60
      $region59: #{encoder_forward.11} parent=55 // pred_region
        %s596 = smul.u32 16, %s20
        %p597 = scmp.lt.s32.totalorder %s596, 63
        %s598 = scalar_select %p597, %s596, 63
        %s599 = smul.addr %s598, 8
        %s600 = scalar_lea.vmem %s7, %s599
      $region60: #{encoder_forward.11} parent=55 // pred_fallthru
        _
    $region56: #{encoder_forward.11} parent=5 // pred_fallthru
      _
  $region6: #{encoder_forward.11} parent=0 // loop_footer
    %s18 = sadd.s32 1, %s14
  $region7: #{encoder_forward.11} parent=0 // loop_footer_branch
    %13 = sbr.rel target = $region3
  $region8: #{encoder_forward.11} parent=0 // loop_exit
    _

// kernel: encoder_forward.7
$region0: #{encoder_forward.7}
  #allocation0 [shape = 'u32[]', space=smem, size = 0x4, offset = 0x4, fixed_abs, tag = 'smem constant byte address 0x4 - core index']
  #allocation1 [shape = 'u32[72,128]{1,0:T(1,128)}', space=vmem, size = 0x9000, scoped, tag = 'internal scratch']
  #allocation2 [shape = 'bf16[192,64]{1,0:T(8,128)(2,1)}', space=vmem, size = 0xc000, scoped, tag = 'scratch operand']
  %s0 = inlined_call_operand.vmem [shape: bf16[512,72], index: 0, kind: input, shape index: {}]
  %s1 = inlined_call_operand.vmem [shape: bf16[512,64], index: 1, kind: input, shape index: {}]
  %s2 = inlined_call_operand.vmem [shape: bf16[4,16,64], index: 2, kind: input, shape index: {}]
  %s3 = inlined_call_operand.vmem [shape: bf16[4,16,64], index: 3, kind: input, shape index: {}]
  %s4 = inlined_call_operand.vmem [shape: bf16[192,1], index: 4, kind: input, shape index: {}]
  %s5 = inlined_call_operand.vmem [shape: bf16[192,1], index: 5, kind: input, shape index: {}]
  %s6 = inlined_call_operand.vmem [shape: bf16[72,64], index: 6, kind: input, shape index: {}]
  %s7 = inlined_call_operand.vmem [shape: bf16[9,64,64], index: 7, kind: input, shape index: {}]
  %s8 = inlined_call_operand.vmem [shape: f32[1,64], index: 8, kind: input, shape index: {}]
  %s9 = inlined_call_operand.vmem [shape: f32[1,64], index: 9, kind: input, shape index: {}]
  %s10 = inlined_call_operand.vmem [shape: f32[1,64], index: 10, kind: input, shape index: {}]
  %s11 = inlined_call_operand.vmem [shape: bf16[512,64], index: 11, kind: output, shape index: {0}]
  %s12 = inlined_call_operand.vmem [shape: f32[4,2,64], index: 12, kind: output, shape index: {1}]
  %13 = xla_tuple %s11, %s12
  %s14 = sld [smem:[#allocation0]]
  $region85: #{encoder_forward.7} parent=0
    _
  %s16 = ssub.s32 1, %s14
  %s17 = scalar_select 0, %s16, %s14
  loop: start=0, step=1, limit=6
  $region2: #{encoder_forward.7} parent=0 // loop_pre_header
    _
  $region3: #{encoder_forward.7} parent=0 // loop_header
    %s19 = sphi 0, %s23
    %p20 = scmp.ge.s32.totalorder %s19, 6
    %s29 = sphi 0, %s31
    %s32 = sphi 0, %s29
    %s33 = sphi 0, %s32
    %s49 = sphi 0, %s33
    %s55 = sphi 0, %s57
    %s58 = sphi 0, %s55
    %s59 = sphi 0, %s58
    %s75 = sphi 0, %s59
    %s81 = sphi 0, %s83
    %s84 = sphi 0, %s81
    %s85 = sphi 0, %s84
    %s101 = sphi 0, %s85
    %s107 = sphi 0, %s109
    %s110 = sphi 0, %s107
    %s111 = sphi 0, %s110
    %s127 = sphi 0, %s111
    %s131 = sphi 0, %s131
    %s133 = sphi 0, %s131
    %s134 = sphi 0, %s133
    %s148 = sphi 0, %s134
    %s152 = sphi 0, %s152
    %s154 = sphi 0, %s152
    %s155 = sphi 0, %s154
    %s169 = sphi 0, %s155
    %s173 = sphi 0, %s173
    %s175 = sphi 0, %s173
    %s176 = sphi 0, %s175
    %s190 = sphi 0, %s176
    %s194 = sphi 0, %s194
    %s196 = sphi 0, %s194
    %s197 = sphi 0, %s196
    %s211 = sphi 0, %s197
    %s215 = sphi 0, %s215
    %s217 = sphi 0, %s215
    %s218 = sphi 0, %s217
    %s232 = sphi 0, %s218
    %s236 = sphi 0, %s236
    %s238 = sphi 0, %s236
    %s239 = sphi 0, %s238
    %s253 = sphi 0, %s239
    %s257 = sphi 0, %s257
    %s259 = sphi 0, %s257
    %s260 = sphi 0, %s259
    %s274 = sphi 0, %s260
    %s280 = sphi 0, %s282
    %s283 = sphi 0, %s280
    %s284 = sphi 0, %s283
    %s300 = sphi 0, %s284
    %s306 = sphi 0, %s308
    %s309 = sphi 0, %s306
    %s310 = sphi 0, %s309
    %s326 = sphi 0, %s310
  $region4: #{encoder_forward.7} parent=0 // loop_header_branch
    %22 = sbr.rel (%p20) target = $region8
  $region5: #{encoder_forward.7} parent=0 // loop_body
    %s24 = ssub.s32 %s19, 1
    %s25 = ssub.s32 %s19, 2
    %s26 = sadd.s32 %s19, 1
    %s27 = ssub.s32 %s19, %s26
    %p28 = scmp.eq.s32.totalorder %s27, 0
    %s30 = sadd.s32 %s29, 1
    %s31 = scalar_select %p28, %s29, %s30
    %p34 = pneg %p28
    %p35 = scmp.eq.s32.totalorder %s19, 3
    %p36 = por %p34, %p35
    %p37 = scmp.ne.s32.totalorder %s29, %s32
    %p38 = scmp.eq.s32.totalorder %s19, 0
    %p39 = por %p37, %p38
    %p40 = scmp.ne.s32.totalorder %s29, %s32
    %p41 = scmp.eq.s32.totalorder %s24, 3
    %p42 = por %p40, %p41
    %p43 = scmp.ne.s32.totalorder %s32, %s33
    %p44 = scmp.eq.s32.totalorder %s24, 0
    %p45 = por %p43, %p44
    %p46 = scmp.ne.s32.totalorder %s32, %s33
    %p47 = scmp.eq.s32.totalorder %s25, 3
    %p48 = por %p46, %p47
    %p50 = scmp.ne.s32.totalorder %s33, %s49
    %p51 = scmp.eq.s32.totalorder %s25, 0
    %p52 = por %p50, %p51
    %s53 = ssub.s32 %s19, %s26
    %p54 = scmp.eq.s32.totalorder %s53, 0
    %s56 = sadd.s32 %s55, 1
    %s57 = scalar_select %p54, %s55, %s56
    %p60 = pneg %p54
    %p61 = scmp.eq.s32.totalorder %s19, 3
    %p62 = por %p60, %p61
    %p63 = scmp.ne.s32.totalorder %s55, %s58
    %p64 = scmp.eq.s32.totalorder %s19, 0
    %p65 = por %p63, %p64
    %p66 = scmp.ne.s32.totalorder %s55, %s58
    %p67 = scmp.eq.s32.totalorder %s24, 3
    %p68 = por %p66, %p67
    %p69 = scmp.ne.s32.totalorder %s58, %s59
    %p70 = scmp.eq.s32.totalorder %s24, 0
    %p71 = por %p69, %p70
    %p72 = scmp.ne.s32.totalorder %s58, %s59
    %p73 = scmp.eq.s32.totalorder %s25, 3
    %p74 = por %p72, %p73
    %p76 = scmp.ne.s32.totalorder %s59, %s75
    %p77 = scmp.eq.s32.totalorder %s25, 0
    %p78 = por %p76, %p77
    %s79 = ssub.s32 %s19, %s26
    %p80 = scmp.eq.s32.totalorder %s79, 0
    %s82 = sadd.s32 %s81, 1
    %s83 = scalar_select %p80, %s81, %s82
    %p86 = pneg %p80
    %p87 = scmp.eq.s32.totalorder %s19, 3
    %p88 = por %p86, %p87
    %p89 = scmp.ne.s32.totalorder %s81, %s84
    %p90 = scmp.eq.s32.totalorder %s19, 0
    %p91 = por %p89, %p90
    %p92 = scmp.ne.s32.totalorder %s81, %s84
    %p93 = scmp.eq.s32.totalorder %s24, 3
    %p94 = por %p92, %p93
    %p95 = scmp.ne.s32.totalorder %s84, %s85
    %p96 = scmp.eq.s32.totalorder %s24, 0
    %p97 = por %p95, %p96
    %p98 = scmp.ne.s32.totalorder %s84, %s85
    %p99 = scmp.eq.s32.totalorder %s25, 3
    %p100 = por %p98, %p99
    %p102 = scmp.ne.s32.totalorder %s85, %s101
    %p103 = scmp.eq.s32.totalorder %s25, 0
    %p104 = por %p102, %p103
    %s105 = ssub.s32 %s19, %s26
    %p106 = scmp.eq.s32.totalorder %s105, 0
    %s108 = sadd.s32 %s107, 1
    %s109 = scalar_select %p106, %s107, %s108
    %p112 = pneg %p106
    %p113 = scmp.eq.s32.totalorder %s19, 3
    %p114 = por %p112, %p113
    %p115 = scmp.ne.s32.totalorder %s107, %s110
    %p116 = scmp.eq.s32.totalorder %s19, 0
    %p117 = por %p115, %p116
    %p118 = scmp.ne.s32.totalorder %s107, %s110
    %p119 = scmp.eq.s32.totalorder %s24, 3
    %p120 = por %p118, %p119
    %p121 = scmp.ne.s32.totalorder %s110, %s111
    %p122 = scmp.eq.s32.totalorder %s24, 0
    %p123 = por %p121, %p122
    %p124 = scmp.ne.s32.totalorder %s110, %s111
    %p125 = scmp.eq.s32.totalorder %s25, 3
    %p126 = por %p124, %p125
    %p128 = scmp.ne.s32.totalorder %s111, %s127
    %p129 = scmp.eq.s32.totalorder %s25, 0
    %p130 = por %p128, %p129
    %s132 = sadd.s32 %s131, 1
    %p135 = scmp.eq.s32.totalorder %s19, 3
    %p136 = scmp.ne.s32.totalorder %s131, %s133
    %p137 = scmp.eq.s32.totalorder %s19, 0
    %p138 = por %p136, %p137
    %p139 = scmp.ne.s32.totalorder %s131, %s133
    %p140 = scmp.eq.s32.totalorder %s24, 3
    %p141 = por %p139, %p140
    %p142 = scmp.ne.s32.totalorder %s133, %s134
    %p143 = scmp.eq.s32.totalorder %s24, 0
    %p144 = por %p142, %p143
    %p145 = scmp.ne.s32.totalorder %s133, %s134
    %p146 = scmp.eq.s32.totalorder %s25, 3
    %p147 = por %p145, %p146
    %p149 = scmp.ne.s32.totalorder %s134, %s148
    %p150 = scmp.eq.s32.totalorder %s25, 0
    %p151 = por %p149, %p150
    %s153 = sadd.s32 %s152, 1
    %p156 = scmp.eq.s32.totalorder %s19, 3
    %p157 = scmp.ne.s32.totalorder %s152, %s154
    %p158 = scmp.eq.s32.totalorder %s19, 0
    %p159 = por %p157, %p158
    %p160 = scmp.ne.s32.totalorder %s152, %s154
    %p161 = scmp.eq.s32.totalorder %s24, 3
    %p162 = por %p160, %p161
    %p163 = scmp.ne.s32.totalorder %s154, %s155
    %p164 = scmp.eq.s32.totalorder %s24, 0
    %p165 = por %p163, %p164
    %p166 = scmp.ne.s32.totalorder %s154, %s155
    %p167 = scmp.eq.s32.totalorder %s25, 3
    %p168 = por %p166, %p167
    %p170 = scmp.ne.s32.totalorder %s155, %s169
    %p171 = scmp.eq.s32.totalorder %s25, 0
    %p172 = por %p170, %p171
    %s174 = sadd.s32 %s173, 1
    %p177 = scmp.eq.s32.totalorder %s19, 3
    %p178 = scmp.ne.s32.totalorder %s173, %s175
    %p179 = scmp.eq.s32.totalorder %s19, 0
    %p180 = por %p178, %p179
    %p181 = scmp.ne.s32.totalorder %s173, %s175
    %p182 = scmp.eq.s32.totalorder %s24, 3
    %p183 = por %p181, %p182
    %p184 = scmp.ne.s32.totalorder %s175, %s176
    %p185 = scmp.eq.s32.totalorder %s24, 0
    %p186 = por %p184, %p185
    %p187 = scmp.ne.s32.totalorder %s175, %s176
    %p188 = scmp.eq.s32.totalorder %s25, 3
    %p189 = por %p187, %p188
    %p191 = scmp.ne.s32.totalorder %s176, %s190
    %p192 = scmp.eq.s32.totalorder %s25, 0
    %p193 = por %p191, %p192
    %s195 = sadd.s32 %s194, 1
    %p198 = scmp.eq.s32.totalorder %s19, 3
    %p199 = scmp.ne.s32.totalorder %s194, %s196
    %p200 = scmp.eq.s32.totalorder %s19, 0
    %p201 = por %p199, %p200
    %p202 = scmp.ne.s32.totalorder %s194, %s196
    %p203 = scmp.eq.s32.totalorder %s24, 3
    %p204 = por %p202, %p203
    %p205 = scmp.ne.s32.totalorder %s196, %s197
    %p206 = scmp.eq.s32.totalorder %s24, 0
    %p207 = por %p205, %p206
    %p208 = scmp.ne.s32.totalorder %s196, %s197
    %p209 = scmp.eq.s32.totalorder %s25, 3
    %p210 = por %p208, %p209
    %p212 = scmp.ne.s32.totalorder %s197, %s211
    %p213 = scmp.eq.s32.totalorder %s25, 0
    %p214 = por %p212, %p213
    %s216 = sadd.s32 %s215, 1
    %p219 = scmp.eq.s32.totalorder %s19, 3
    %p220 = scmp.ne.s32.totalorder %s215, %s217
    %p221 = scmp.eq.s32.totalorder %s19, 0
    %p222 = por %p220, %p221
    %p223 = scmp.ne.s32.totalorder %s215, %s217
    %p224 = scmp.eq.s32.totalorder %s24, 3
    %p225 = por %p223, %p224
    %p226 = scmp.ne.s32.totalorder %s217, %s218
    %p227 = scmp.eq.s32.totalorder %s24, 0
    %p228 = por %p226, %p227
    %p229 = scmp.ne.s32.totalorder %s217, %s218
    %p230 = scmp.eq.s32.totalorder %s25, 3
    %p231 = por %p229, %p230
    %p233 = scmp.ne.s32.totalorder %s218, %s232
    %p234 = scmp.eq.s32.totalorder %s25, 0
    %p235 = por %p233, %p234
    %s237 = sadd.s32 %s236, 1
    %p240 = scmp.eq.s32.totalorder %s19, 3
    %p241 = scmp.ne.s32.totalorder %s236, %s238
    %p242 = scmp.eq.s32.totalorder %s19, 0
    %p243 = por %p241, %p242
    %p244 = scmp.ne.s32.totalorder %s236, %s238
    %p245 = scmp.eq.s32.totalorder %s24, 3
    %p246 = por %p244, %p245
    %p247 = scmp.ne.s32.totalorder %s238, %s239
    %p248 = scmp.eq.s32.totalorder %s24, 0
    %p249 = por %p247, %p248
    %p250 = scmp.ne.s32.totalorder %s238, %s239
    %p251 = scmp.eq.s32.totalorder %s25, 3
    %p252 = por %p250, %p251
    %p254 = scmp.ne.s32.totalorder %s239, %s253
    %p255 = scmp.eq.s32.totalorder %s25, 0
    %p256 = por %p254, %p255
    %s258 = sadd.s32 %s257, 1
    %p261 = scmp.eq.s32.totalorder %s19, 3
    %p262 = scmp.ne.s32.totalorder %s257, %s259
    %p263 = scmp.eq.s32.totalorder %s19, 0
    %p264 = por %p262, %p263
    %p265 = scmp.ne.s32.totalorder %s257, %s259
    %p266 = scmp.eq.s32.totalorder %s24, 3
    %p267 = por %p265, %p266
    %p268 = scmp.ne.s32.totalorder %s259, %s260
    %p269 = scmp.eq.s32.totalorder %s24, 0
    %p270 = por %p268, %p269
    %p271 = scmp.ne.s32.totalorder %s259, %s260
    %p272 = scmp.eq.s32.totalorder %s25, 3
    %p273 = por %p271, %p272
    %p275 = scmp.ne.s32.totalorder %s260, %s274
    %p276 = scmp.eq.s32.totalorder %s25, 0
    %p277 = por %p275, %p276
    %s278 = ssub.s32 %s19, %s26
    %p279 = scmp.eq.s32.totalorder %s278, 0
    %s281 = sadd.s32 %s280, 1
    %s282 = scalar_select %p279, %s280, %s281
    %p285 = pneg %p279
    %p286 = scmp.eq.s32.totalorder %s19, 3
    %p287 = por %p285, %p286
    %p288 = scmp.ne.s32.totalorder %s280, %s283
    %p289 = scmp.eq.s32.totalorder %s19, 0
    %p290 = por %p288, %p289
    %p291 = scmp.ne.s32.totalorder %s280, %s283
    %p292 = scmp.eq.s32.totalorder %s24, 3
    %p293 = por %p291, %p292
    %p294 = scmp.ne.s32.totalorder %s283, %s284
    %p295 = scmp.eq.s32.totalorder %s24, 0
    %p296 = por %p294, %p295
    %p297 = scmp.ne.s32.totalorder %s283, %s284
    %p298 = scmp.eq.s32.totalorder %s25, 3
    %p299 = por %p297, %p298
    %p301 = scmp.ne.s32.totalorder %s284, %s300
    %p302 = scmp.eq.s32.totalorder %s25, 0
    %p303 = por %p301, %p302
    %s304 = ssub.s32 %s19, %s26
    %p305 = scmp.eq.s32.totalorder %s304, 0
    %s307 = sadd.s32 %s306, 1
    %s308 = scalar_select %p305, %s306, %s307
    %p311 = pneg %p305
    %p312 = scmp.eq.s32.totalorder %s19, 3
    %p313 = por %p311, %p312
    %p314 = scmp.ne.s32.totalorder %s306, %s309
    %p315 = scmp.eq.s32.totalorder %s19, 0
    %p316 = por %p314, %p315
    %p317 = scmp.ne.s32.totalorder %s306, %s309
    %p318 = scmp.eq.s32.totalorder %s24, 3
    %p319 = por %p317, %p318
    %p320 = scmp.ne.s32.totalorder %s309, %s310
    %p321 = scmp.eq.s32.totalorder %s24, 0
    %p322 = por %p320, %p321
    %p323 = scmp.ne.s32.totalorder %s309, %s310
    %p324 = scmp.eq.s32.totalorder %s25, 3
    %p325 = por %p323, %p324
    %p327 = scmp.ne.s32.totalorder %s310, %s326
    %p328 = scmp.eq.s32.totalorder %s25, 0
    %p329 = por %p327, %p328
    %p330 = scmp.le.s32.totalorder 1, %s19
    %p331 = scmp.lt.s32.totalorder %s19, 5
    %p332 = pnand %p330, %p331
    %p333 = pneg %p332
    // Predicated region
    $region9: #{encoder_forward.7} parent=5 // pred_check
      _
    $region10: #{encoder_forward.7} parent=5 // pred_check_branch
      %335 = sbr.rel (%p332) target = $region12
    $region11: #{encoder_forward.7} parent=5 // pred_region
      %s336 = ssub.s32 %s19, 1
      // Predicated region
      $region13: #{encoder_forward.7} parent=11 // pred_check
        %p337 = pneg %p144
      $region14: #{encoder_forward.7} parent=11 // pred_check_branch
        %339 = sbr.rel (%p337) target = $region16
      $region15: #{encoder_forward.7} parent=11 // pred_region
        _
      $region16: #{encoder_forward.7} parent=11 // pred_fallthru
        _
      // Predicated region
      $region17: #{encoder_forward.7} parent=11 // pred_check
        %p340 = pneg %p165
      $region18: #{encoder_forward.7} parent=11 // pred_check_branch
        %342 = sbr.rel (%p340) target = $region20
      $region19: #{encoder_forward.7} parent=11 // pred_region
        _
      $region20: #{encoder_forward.7} parent=11 // pred_fallthru
        _
      // Predicated region
      $region21: #{encoder_forward.7} parent=11 // pred_check
        %p343 = pneg %p186
      $region22: #{encoder_forward.7} parent=11 // pred_check_branch
        %345 = sbr.rel (%p343) target = $region24
      $region23: #{encoder_forward.7} parent=11 // pred_region
        _
      $region24: #{encoder_forward.7} parent=11 // pred_fallthru
        _
      // Predicated region
      $region25: #{encoder_forward.7} parent=11 // pred_check
        %p346 = pneg %p207
      $region26: #{encoder_forward.7} parent=11 // pred_check_branch
        %348 = sbr.rel (%p346) target = $region28
      $region27: #{encoder_forward.7} parent=11 // pred_region
        _
      $region28: #{encoder_forward.7} parent=11 // pred_fallthru
        _
      // Predicated region
      $region29: #{encoder_forward.7} parent=11 // pred_check
        %p349 = pneg %p228
      $region30: #{encoder_forward.7} parent=11 // pred_check_branch
        %351 = sbr.rel (%p349) target = $region32
      $region31: #{encoder_forward.7} parent=11 // pred_region
        _
      $region32: #{encoder_forward.7} parent=11 // pred_fallthru
        _
      // Predicated region
      $region33: #{encoder_forward.7} parent=11 // pred_check
        %p352 = pneg %p249
      $region34: #{encoder_forward.7} parent=11 // pred_check_branch
        %354 = sbr.rel (%p352) target = $region36
      $region35: #{encoder_forward.7} parent=11 // pred_region
        _
      $region36: #{encoder_forward.7} parent=11 // pred_fallthru
        _
      // Predicated region
      $region37: #{encoder_forward.7} parent=11 // pred_check
        %p355 = pneg %p270
      $region38: #{encoder_forward.7} parent=11 // pred_check_branch
        %357 = sbr.rel (%p355) target = $region40
      $region39: #{encoder_forward.7} parent=11 // pred_region
        _
      $region40: #{encoder_forward.7} parent=11 // pred_fallthru
        _
    $region12: #{encoder_forward.7} parent=5 // pred_fallthru
      _
    %p358 = scmp.lt.s32.totalorder %s19, 4
    // Predicated region
    $region41: #{encoder_forward.7} parent=5 // pred_check
      %p359 = pneg %p358
    $region42: #{encoder_forward.7} parent=5 // pred_check_branch
      %361 = sbr.rel (%p359) target = $region44
    $region43: #{encoder_forward.7} parent=5 // pred_region
      // Predicated region
      $region45: #{encoder_forward.7} parent=43 // pred_check
        %p362 = pneg %p39
      $region46: #{encoder_forward.7} parent=43 // pred_check_branch
        %364 = sbr.rel (%p362) target = $region48
      $region47: #{encoder_forward.7} parent=43 // pred_region
        %s365 = smul.u32 16, %s19
        %p366 = scmp.lt.s32.totalorder %s365, 63
        %s367 = scalar_select %p366, %s365, 63
        %s368 = smul.addr %s367, 4
        %s369 = scalar_lea.vmem %s0, %s368
        %s370 = smul.u32 16, %s19
      $region48: #{encoder_forward.7} parent=43 // pred_fallthru
        _
      // Predicated region
      $region49: #{encoder_forward.7} parent=43 // pred_check
        %p371 = pneg %p65
      $region50: #{encoder_forward.7} parent=43 // pred_check_branch
        %373 = sbr.rel (%p371) target = $region52
      $region51: #{encoder_forward.7} parent=43 // pred_region
        %s374 = smul.u32 16, %s19
        %p375 = scmp.lt.s32.totalorder %s374, 63
        %s376 = scalar_select %p375, %s374, 63
        %s377 = smul.addr %s376, 4
        %s378 = scalar_lea.vmem %s1, %s377
        %s379 = smul.u32 16, %s19
      $region52: #{encoder_forward.7} parent=43 // pred_fallthru
        _
      // Predicated region
      $region53: #{encoder_forward.7} parent=43 // pred_check
        %p380 = pneg %p91
      $region54: #{encoder_forward.7} parent=43 // pred_check_branch
        %382 = sbr.rel (%p380) target = $region56
      $region55: #{encoder_forward.7} parent=43 // pred_region
        %p383 = scmp.lt.s32.totalorder %s19, 3
        %s384 = scalar_select %p383, %s19, 3
        %s385 = smul.addr %s384, 2
        %s386 = smul.addr %s385, 4
        %s387 = scalar_lea.vmem %s2, %s386
      $region56: #{encoder_forward.7} parent=43 // pred_fallthru
        _
      // Predicated region
      $region57: #{encoder_forward.7} parent=43 // pred_check
        %p388 = pneg %p117
      $region58: #{encoder_forward.7} parent=43 // pred_check_branch
        %390 = sbr.rel (%p388) target = $region60
      $region59: #{encoder_forward.7} parent=43 // pred_region
        %p391 = scmp.lt.s32.totalorder %s19, 3
        %s392 = scalar_select %p391, %s19, 3
        %s393 = smul.addr %s392, 2
        %s394 = smul.addr %s393, 4
        %s395 = scalar_lea.vmem %s3, %s394
      $region60: #{encoder_forward.7} parent=43 // pred_fallthru
        _
    $region44: #{encoder_forward.7} parent=5 // pred_fallthru
      _
    %p396 = scmp.le.s32.totalorder 1, %s19
    %p397 = scmp.lt.s32.totalorder %s19, 5
    %p398 = pnand %p396, %p397
    %p399 = pneg %p398
    // Predicated region
    $region61: #{encoder_forward.7} parent=5 // pred_check
      _
    $region62: #{encoder_forward.7} parent=5 // pred_check_branch
      %401 = sbr.rel (%p398) target = $region64
    $region63: #{encoder_forward.7} parent=5 // pred_region
      %s402 = ssub.s32 %s19, 1
      %s403 = smul.u32 16, %s24
      %p404 = scmp.lt.s32.totalorder %s403, 63
      %s405 = scalar_select %p404, %s403, 63
      %s406 = smul.addr %s405, 4
      %s407 = scalar_lea.vmem %s0, %s406
      %p408 = pneg %p45
      %p409 = pneg %p42
      %s410 = smul.u32 16, %s24
      %p411 = scmp.lt.s32.totalorder %s410, 63
      %s412 = scalar_select %p411, %s410, 63
      %s413 = smul.addr %s412, 4
      %s414 = scalar_lea.vmem %s1, %s413
      %p415 = pneg %p71
      %p416 = pneg %p68
      %p417 = scmp.lt.s32.totalorder %s24, 3
      %s418 = scalar_select %p417, %s24, 3
      %s419 = smul.addr %s418, 2
      %s420 = smul.addr %s419, 4
      %s421 = scalar_lea.vmem %s2, %s420
      %p422 = pneg %p97
      %p423 = pneg %p94
      %p424 = scmp.lt.s32.totalorder %s24, 3
      %s425 = scalar_select %p424, %s24, 3
      %s426 = smul.addr %s425, 2
      %s427 = smul.addr %s426, 4
      %s428 = scalar_lea.vmem %s3, %s427
      %p429 = pneg %p123
      %p430 = pneg %p120
      %p431 = pneg %p144
      %p432 = pneg %p141
      %p433 = pneg %p165
      %p434 = pneg %p162
      %p435 = pneg %p186
      %p436 = pneg %p183
      %p437 = pneg %p207
      %p438 = pneg %p204
      %p439 = pneg %p228
      %p440 = pneg %p225
      %p441 = pneg %p249
      %p442 = pneg %p246
      %p443 = pneg %p270
      %p444 = pneg %p267
      %p445 = pneg %p296
      %p446 = pneg %p293
      %s447 = smul.u32 16, %s24
      %p448 = scmp.lt.s32.totalorder %s447, 63
      %s449 = scalar_select %p448, %s447, 63
      %s450 = smul.addr %s449, 4
      %s451 = scalar_lea.vmem %s11, %s450
      %p452 = pneg %p322
      %p453 = pneg %p319
      %p454 = scmp.lt.s32.totalorder %s24, 3
      %s455 = scalar_select %p454, %s24, 3
      %s456 = smul.addr %s455, 2
      %s457 = scalar_lea.vmem %s12, %s456
      %s458 = smul.u32 16, %s24
      %p459 = scmp.lt.s32.totalorder %s458, 63
      %s460 = scalar_select %p459, %s458, 63
      %s461 = smul.addr %s460, 4
      %s462 = scalar_lea.vmem %s0, %s461
      %s463 = smul.u32 16, %s24
      %s464 = smul.u32 16, %s24
      %p465 = scmp.lt.s32.totalorder %s464, 63
      %s466 = scalar_select %p465, %s464, 63
      %s467 = smul.addr %s466, 4
      %s468 = scalar_lea.vmem %s1, %s467
      %s469 = smul.u32 16, %s24
      %p470 = scmp.lt.s32.totalorder %s24, 3
      %s471 = scalar_select %p470, %s24, 3
      %s472 = smul.addr %s471, 2
      %s473 = smul.addr %s472, 4
      %s474 = scalar_lea.vmem %s2, %s473
      %p475 = scmp.lt.s32.totalorder %s24, 3
      %s476 = scalar_select %p475, %s24, 3
      %s477 = smul.addr %s476, 2
      %s478 = smul.addr %s477, 4
      %s479 = scalar_lea.vmem %s3, %s478
      %s480 = smul.u32 16, %s24
      %p481 = scmp.lt.s32.totalorder %s480, 63
      %s482 = scalar_select %p481, %s480, 63
      %s483 = smul.addr %s482, 4
      %s484 = scalar_lea.vmem %s11, %s483
      %s485 = smul.u32 16, %s24
      %p486 = scmp.lt.s32.totalorder %s24, 3
      %s487 = scalar_select %p486, %s24, 3
      %s488 = smul.addr %s487, 2
      %s489 = scalar_lea.vmem %s12, %s488
      %v491 = vld [vmem:[%s468] sm:$0xf]
      %v492 = vld [vmem:[%s468 + $0x4] sm:$0xf]
      %v493 = vld [vmem:[%s468 + $0x8] sm:$0xf]
      %v494 = vld [vmem:[%s468 + $0xc] sm:$0xf]
      %v495 = vld [vmem:[%s468 + $0x10] sm:$0xf]
      %v496 = vld [vmem:[%s468 + $0x14] sm:$0xf]
      %v497 = vld [vmem:[%s468 + $0x18] sm:$0xf]
      %v498 = vld [vmem:[%s468 + $0x1c] sm:$0xf]
      %v499 = vld [vmem:[%s468 + $0x20] sm:$0xf]
      %v500 = vld [vmem:[%s468 + $0x24] sm:$0xf]
      %v501 = vld [vmem:[%s468 + $0x28] sm:$0xf]
      %v502 = vld [vmem:[%s468 + $0x2c] sm:$0xf]
      %v503 = vld [vmem:[%s468 + $0x30] sm:$0xf]
      %v504 = vld [vmem:[%s468 + $0x34] sm:$0xf]
      %v505 = vld [vmem:[%s468 + $0x38] sm:$0xf]
      %v506 = vld [vmem:[%s468 + $0x3c] sm:$0xf]
      %v507 = vunpack.c.l.bf16 %v491
      %v508 = vunpack.c.l.bf16 %v492
      %v509 = vunpack.c.l.bf16 %v493
      %v510 = vunpack.c.l.bf16 %v494
      %v511 = vunpack.c.l.bf16 %v495
      %v512 = vunpack.c.l.bf16 %v496
      %v513 = vunpack.c.l.bf16 %v497
      %v514 = vunpack.c.l.bf16 %v498
      %v515 = vunpack.c.l.bf16 %v499
      %v516 = vunpack.c.l.bf16 %v500
      %v517 = vunpack.c.l.bf16 %v501
      %v518 = vunpack.c.l.bf16 %v502
      %v519 = vunpack.c.l.bf16 %v503
      %v520 = vunpack.c.l.bf16 %v504
      %v521 = vunpack.c.l.bf16 %v505
      %v522 = vunpack.c.l.bf16 %v506
      %v523 = vld [vmem:[%s9] sm:$0x1]
      %v525 = vperm.slane %v523, 0
      %v527 = vmul.f32 %v507, %v525
      %v528 = vmul.f32 %v508, %v525
      %v529 = vmul.f32 %v509, %v525
      %v530 = vmul.f32 %v510, %v525
      %v531 = vmul.f32 %v511, %v525
      %v532 = vmul.f32 %v512, %v525
      %v533 = vmul.f32 %v513, %v525
      %v534 = vmul.f32 %v514, %v525
      %v535 = vmul.f32 %v515, %v525
      %v536 = vmul.f32 %v516, %v525
      %v537 = vmul.f32 %v517, %v525
      %v538 = vmul.f32 %v518, %v525
      %v539 = vmul.f32 %v519, %v525
      %v540 = vmul.f32 %v520, %v525
      %v541 = vmul.f32 %v521, %v525
      %v542 = vmul.f32 %v522, %v525
      %v543 = vld [vmem:[%s10] sm:$0x1]
      %v545 = vperm.slane %v543, 0
      %v547 = vadd.f32 %v527, %v545
      %v548 = vadd.f32 %v528, %v545
      %v549 = vadd.f32 %v529, %v545
      %v550 = vadd.f32 %v530, %v545
      %v551 = vadd.f32 %v531, %v545
      %v552 = vadd.f32 %v532, %v545
      %v553 = vadd.f32 %v533, %v545
      %v554 = vadd.f32 %v534, %v545
      %v555 = vadd.f32 %v535, %v545
      %v556 = vadd.f32 %v536, %v545
      %v557 = vadd.f32 %v537, %v545
      %v558 = vadd.f32 %v538, %v545
      %v559 = vadd.f32 %v539, %v545
      %v560 = vadd.f32 %v540, %v545
      %v561 = vadd.f32 %v541, %v545
      %v562 = vadd.f32 %v542, %v545
      %v563 = vmax.f32 %v547, 0.0
      %v564 = vmax.f32 %v548, 0.0
      %v565 = vmax.f32 %v549, 0.0
      %v566 = vmax.f32 %v550, 0.0
      %v567 = vmax.f32 %v551, 0.0
      %v568 = vmax.f32 %v552, 0.0
      %v569 = vmax.f32 %v553, 0.0
      %v570 = vmax.f32 %v554, 0.0
      %v571 = vmax.f32 %v555, 0.0
      %v572 = vmax.f32 %v556, 0.0
      %v573 = vmax.f32 %v557, 0.0
      %v574 = vmax.f32 %v558, 0.0
      %v575 = vmax.f32 %v559, 0.0
      %v576 = vmax.f32 %v560, 0.0
      %v577 = vmax.f32 %v561, 0.0
      %v578 = vmax.f32 %v562, 0.0
      %v579 = vpack.c.bf16 %v563, %v563
      %v580 = vpack.c.bf16 %v564, %v564
      %v581 = vpack.c.bf16 %v565, %v565
      %v582 = vpack.c.bf16 %v566, %v566
      %v583 = vpack.c.bf16 %v567, %v567
      %v584 = vpack.c.bf16 %v568, %v568
      %v585 = vpack.c.bf16 %v569, %v569
      %v586 = vpack.c.bf16 %v570, %v570
      %v587 = vpack.c.bf16 %v571, %v571
      %v588 = vpack.c.bf16 %v572, %v572
      %v589 = vpack.c.bf16 %v573, %v573
      %v590 = vpack.c.bf16 %v574, %v574
      %v591 = vpack.c.bf16 %v575, %v575
      %v592 = vpack.c.bf16 %v576, %v576
      %v593 = vpack.c.bf16 %v577, %v577
      %v594 = vpack.c.bf16 %v578, %v578
      %vm595 = vcmask 519168
      %596 = vst.msk [vmem:[#allocation2] sm:$0xf] %vm595, 0
      %597 = vst.msk [vmem:[#allocation2 + $0x4] sm:$0xf] %vm595, 0
      %v598 = vld [vmem:[%s474] sm:$0xf]
      %v599 = vld [vmem:[%s474 + $0x4] sm:$0xf]
      %600 = vst.msk [vmem:[#allocation2 + $0x8] sm:$0xf] %vm595, %v598
      %601 = vst.msk [vmem:[#allocation2 + $0xc] sm:$0xf] %vm595, %v599
      %602 = vst.msk [vmem:[#allocation2 + $0x10] sm:$0xf] %vm595, %v579
      %603 = vst.msk [vmem:[#allocation2 + $0x14] sm:$0xf] %vm595, %v580
      %604 = vst.msk [vmem:[#allocation2 + $0x18] sm:$0xf] %vm595, %v581
      %605 = vst.msk [vmem:[#allocation2 + $0x1c] sm:$0xf] %vm595, %v582
      %606 = vst.msk [vmem:[#allocation2 + $0x20] sm:$0xf] %vm595, %v583
      %607 = vst.msk [vmem:[#allocation2 + $0x24] sm:$0xf] %vm595, %v584
      %608 = vst.msk [vmem:[#allocation2 + $0x28] sm:$0xf] %vm595, %v585
      %609 = vst.msk [vmem:[#allocation2 + $0x2c] sm:$0xf] %vm595, %v586
      %610 = vst.msk [vmem:[#allocation2 + $0x30] sm:$0xf] %vm595, %v587
      %611 = vst.msk [vmem:[#allocation2 + $0x34] sm:$0xf] %vm595, %v588
      %612 = vst.msk [vmem:[#allocation2 + $0x38] sm:$0xf] %vm595, %v589
      %613 = vst.msk [vmem:[#allocation2 + $0x3c] sm:$0xf] %vm595, %v590
      %614 = vst.msk [vmem:[#allocation2 + $0x40] sm:$0xf] %vm595, %v591
      %615 = vst.msk [vmem:[#allocation2 + $0x44] sm:$0xf] %vm595, %v592
      %616 = vst.msk [vmem:[#allocation2 + $0x48] sm:$0xf] %vm595, %v593
      %617 = vst.msk [vmem:[#allocation2 + $0x4c] sm:$0xf] %vm595, %v594
      %v618 = vld [vmem:[%s479] sm:$0xf]
      %v619 = vld [vmem:[%s479 + $0x4] sm:$0xf]
      %620 = vst.msk [vmem:[#allocation2 + $0x50] sm:$0xf] %vm595, %v618
      %621 = vst.msk [vmem:[#allocation2 + $0x54] sm:$0xf] %vm595, %v619
      %622 = vst.msk [vmem:[#allocation2 + $0x58] sm:$0xf] %vm595, 0
      %623 = vst.msk [vmem:[#allocation2 + $0x5c] sm:$0xf] %vm595, 0
      %v624 = vld [vmem:[%s462] sm:$0xf]
      %v625 = vld [vmem:[%s462 + $0x4] sm:$0xf]
      %v626 = vld [vmem:[%s462 + $0x8] sm:$0xf]
      %v627 = vld [vmem:[%s462 + $0xc] sm:$0xf]
      %v628 = vld [vmem:[%s462 + $0x10] sm:$0xf]
      %v629 = vld [vmem:[%s462 + $0x14] sm:$0xf]
      %v630 = vld [vmem:[%s462 + $0x18] sm:$0xf]
      %v631 = vld [vmem:[%s462 + $0x1c] sm:$0xf]
      %v632 = vld [vmem:[%s462 + $0x20] sm:$0xf]
      %v633 = vld [vmem:[%s462 + $0x24] sm:$0xf]
      %v634 = vld [vmem:[%s462 + $0x28] sm:$0xf]
      %v635 = vld [vmem:[%s462 + $0x2c] sm:$0xf]
      %v636 = vld [vmem:[%s462 + $0x30] sm:$0xf]
      %v637 = vld [vmem:[%s462 + $0x34] sm:$0xf]
      %v638 = vld [vmem:[%s462 + $0x38] sm:$0xf]
      %v639 = vld [vmem:[%s462 + $0x3c] sm:$0xf]
      %v640 = vld [vmem:[%s6] sm:$0xf]
      %v641 = vld [vmem:[%s6 + $0x4] sm:$0xf]
      %v642 = vld [vmem:[%s6 + $0x8] sm:$0xf]
      %v643 = vld [vmem:[%s6 + $0xc] sm:$0xf]
      %v644 = vld [vmem:[%s6 + $0x10] sm:$0xf]
      %v645 = vld [vmem:[%s6 + $0x14] sm:$0xf]
      %v646 = vld [vmem:[%s6 + $0x18] sm:$0xf]
      %v647 = vld [vmem:[%s6 + $0x1c] sm:$0xf]
      %v648 = vld [vmem:[%s6 + $0x20] sm:$0xf]
      %v649 = vld [vmem:[#allocation2 + $0x4] sm:$0x8]
      %v650 = vld [vmem:[#allocation2 + $0x8] sm:$0xf]
      %v651 = vld [vmem:[#allocation2 + $0xc] sm:$0xf]
      %v652 = vld [vmem:[#allocation2 + $0x10] sm:$0xf]
      %v653 = vld [vmem:[#allocation2 + $0x14] sm:$0xf]
      %v654 = vld [vmem:[#allocation2 + $0x18] sm:$0xf]
      %v655 = vld [vmem:[#allocation2 + $0x1c] sm:$0xf]
      %v656 = vld [vmem:[#allocation2 + $0x20] sm:$0xf]
      %v657 = vld [vmem:[#allocation2 + $0x24] sm:$0xf]
      %v658 = vld [vmem:[#allocation2 + $0x28] sm:$0xf]
      %v659 = vld [vmem:[#allocation2 + $0x2c] sm:$0xf]
      %v660 = vld [vmem:[#allocation2 + $0x30] sm:$0xf]
      %v661 = vld [vmem:[#allocation2 + $0x34] sm:$0xf]
      %v662 = vld [vmem:[#allocation2 + $0x38] sm:$0xf]
      %v663 = vld [vmem:[#allocation2 + $0x3c] sm:$0xf]
      %v664 = vld [vmem:[#allocation2 + $0x40] sm:$0xf]
      %v665 = vld [vmem:[#allocation2 + $0x44] sm:$0xf]
      %v666 = vld [vmem:[%s4 + $0x4] sm:$0x8]
      %v667 = vld [vmem:[%s4 + $0x8] sm:$0xf]
      %v668 = vld [vmem:[%s4 + $0xc] sm:$0xf]
      %v669 = vld [vmem:[%s4 + $0x10] sm:$0xf]
      %v670 = vld [vmem:[%s4 + $0x14] sm:$0xf]
      %v671 = vld [vmem:[%s4 + $0x18] sm:$0xf]
      %v672 = vld [vmem:[%s4 + $0x1c] sm:$0xf]
      %v673 = vld [vmem:[%s4 + $0x20] sm:$0xf]
      %v674 = vld [vmem:[%s4 + $0x24] sm:$0xf]
      %v675 = vld [vmem:[%s4 + $0x28] sm:$0xf]
      %v676 = vld [vmem:[%s4 + $0x2c] sm:$0xf]
      %v677 = vld [vmem:[%s4 + $0x30] sm:$0xf]
      %v678 = vld [vmem:[%s4 + $0x34] sm:$0xf]
      %v679 = vld [vmem:[%s4 + $0x38] sm:$0xf]
      %v680 = vld [vmem:[%s4 + $0x3c] sm:$0xf]
      %v681 = vld [vmem:[%s4 + $0x40] sm:$0xf]
      %v682 = vld [vmem:[%s4 + $0x44] sm:$0xf]
      %684 = vset.pattern.permute.xlu0 0
      %685 = vperm.xlu0 %684, %v666
      %v686 = vpop.permute.xlu0 %685
      %v689 = vunpack.c.l.s4 839922192
      %v690 = vunpack.c.0.s8 %v689
      %v691 = vperm.slane %v686, %v690
      %693 = vset.pattern.permute.xlu0 0
      %694 = vperm.xlu0 %693, %v667
      %v695 = vpop.permute.xlu0 %694
      %v698 = vunpack.c.l.s4 839922192
      %v699 = vunpack.c.0.s8 %v698
      %v700 = vperm.slane %v695, %v699
      %702 = vset.pattern.permute.xlu0 0
      %703 = vperm.xlu0 %702, %v668
      %v704 = vpop.permute.xlu0 %703
      %v707 = vunpack.c.l.s4 839922192
      %v708 = vunpack.c.0.s8 %v707
      %v709 = vperm.slane %v704, %v708
      %711 = vset.pattern.permute.xlu0 0
      %712 = vperm.xlu0 %711, %v669
      %v713 = vpop.permute.xlu0 %712
      %v716 = vunpack.c.l.s4 839922192
      %v717 = vunpack.c.0.s8 %v716
      %v718 = vperm.slane %v713, %v717
      %720 = vset.pattern.permute.xlu0 0
      %721 = vperm.xlu0 %720, %v670
      %v722 = vpop.permute.xlu0 %721
      %v725 = vunpack.c.l.s4 839922192
      %v726 = vunpack.c.0.s8 %v725
      %v727 = vperm.slane %v722, %v726
      %729 = vset.pattern.permute.xlu0 0
      %730 = vperm.xlu0 %729, %v671
      %v731 = vpop.permute.xlu0 %730
      %v734 = vunpack.c.l.s4 839922192
      %v735 = vunpack.c.0.s8 %v734
      %v736 = vperm.slane %v731, %v735
      %738 = vset.pattern.permute.xlu0 0
      %739 = vperm.xlu0 %738, %v672
      %v740 = vpop.permute.xlu0 %739
      %v743 = vunpack.c.l.s4 839922192
      %v744 = vunpack.c.0.s8 %v743
      %v745 = vperm.slane %v740, %v744
      %747 = vset.pattern.permute.xlu0 0
      %748 = vperm.xlu0 %747, %v673
      %v749 = vpop.permute.xlu0 %748
      %v752 = vunpack.c.l.s4 839922192
      %v753 = vunpack.c.0.s8 %v752
      %v754 = vperm.slane %v749, %v753
      %756 = vset.pattern.permute.xlu0 0
      %757 = vperm.xlu0 %756, %v674
      %v758 = vpop.permute.xlu0 %757
      %v761 = vunpack.c.l.s4 839922192
      %v762 = vunpack.c.0.s8 %v761
      %v763 = vperm.slane %v758, %v762
      %765 = vset.pattern.permute.xlu0 0
      %766 = vperm.xlu0 %765, %v675
      %v767 = vpop.permute.xlu0 %766
      %v770 = vunpack.c.l.s4 839922192
      %v771 = vunpack.c.0.s8 %v770
      %v772 = vperm.slane %v767, %v771
      %774 = vset.pattern.permute.xlu0 0
      %775 = vperm.xlu0 %774, %v676
      %v776 = vpop.permute.xlu0 %775
      %v779 = vunpack.c.l.s4 839922192
      %v780 = vunpack.c.0.s8 %v779
      %v781 = vperm.slane %v776, %v780
      %783 = vset.pattern.permute.xlu0 0
      %784 = vperm.xlu0 %783, %v677
      %v785 = vpop.permute.xlu0 %784
      %v788 = vunpack.c.l.s4 839922192
      %v789 = vunpack.c.0.s8 %v788
      %v790 = vperm.slane %v785, %v789
      %792 = vset.pattern.permute.xlu0 0
      %793 = vperm.xlu0 %792, %v678
      %v794 = vpop.permute.xlu0 %793
      %v797 = vunpack.c.l.s4 839922192
      %v798 = vunpack.c.0.s8 %v797
      %v799 = vperm.slane %v794, %v798
      %801 = vset.pattern.permute.xlu0 0
      %802 = vperm.xlu0 %801, %v679
      %v803 = vpop.permute.xlu0 %802
      %v806 = vunpack.c.l.s4 839922192
      %v807 = vunpack.c.0.s8 %v806
      %v808 = vperm.slane %v803, %v807
      %810 = vset.pattern.permute.xlu0 0
      %811 = vperm.xlu0 %810, %v680
      %v812 = vpop.permute.xlu0 %811
      %v815 = vunpack.c.l.s4 839922192
      %v816 = vunpack.c.0.s8 %v815
      %v817 = vperm.slane %v812, %v816
      %819 = vset.pattern.permute.xlu0 0
      %820 = vperm.xlu0 %819, %v681
      %v821 = vpop.permute.xlu0 %820
      %v824 = vunpack.c.l.s4 839922192
      %v825 = vunpack.c.0.s8 %v824
      %v826 = vperm.slane %v821, %v825
      %828 = vset.pattern.permute.xlu0 0
      %829 = vperm.xlu0 %828, %v682
      %v830 = vpop.permute.xlu0 %829
      %v833 = vunpack.c.l.s4 839922192
      %v834 = vunpack.c.0.s8 %v833
      %v835 = vperm.slane %v830, %v834
      %v836 = vunpack.c.l.bf16 %v649
      %v837 = vunpack.c.l.bf16 %v650
      %v838 = vunpack.c.l.bf16 %v651
      %v839 = vunpack.c.l.bf16 %v652
      %v840 = vunpack.c.l.bf16 %v653
      %v841 = vunpack.c.l.bf16 %v654
      %v842 = vunpack.c.l.bf16 %v655
      %v843 = vunpack.c.l.bf16 %v656
      %v844 = vunpack.c.l.bf16 %v657
      %v845 = vunpack.c.l.bf16 %v658
      %v846 = vunpack.c.l.bf16 %v659
      %v847 = vunpack.c.l.bf16 %v660
      %v848 = vunpack.c.l.bf16 %v661
      %v849 = vunpack.c.l.bf16 %v662
      %v850 = vunpack.c.l.bf16 %v663
      %v851 = vunpack.c.l.bf16 %v664
      %v852 = vunpack.c.l.bf16 %v665
      %v853 = vunpack.c.l.bf16 %v691
      %v854 = vunpack.c.l.bf16 %v700
      %v855 = vunpack.c.l.bf16 %v709
      %v856 = vunpack.c.l.bf16 %v718
      %v857 = vunpack.c.l.bf16 %v727
      %v858 = vunpack.c.l.bf16 %v736
      %v859 = vunpack.c.l.bf16 %v745
      %v860 = vunpack.c.l.bf16 %v754
      %v861 = vunpack.c.l.bf16 %v763
      %v862 = vunpack.c.l.bf16 %v772
      %v863 = vunpack.c.l.bf16 %v781
      %v864 = vunpack.c.l.bf16 %v790
      %v865 = vunpack.c.l.bf16 %v799
      %v866 = vunpack.c.l.bf16 %v808
      %v867 = vunpack.c.l.bf16 %v817
      %v868 = vunpack.c.l.bf16 %v826
      %v869 = vunpack.c.l.bf16 %v835
      %v870 = vmul.f32 %v836, %v853
      %v871 = vmul.f32 %v837, %v854
      %v872 = vmul.f32 %v838, %v855
      %v873 = vmul.f32 %v839, %v856
      %v874 = vmul.f32 %v840, %v857
      %v875 = vmul.f32 %v841, %v858
      %v876 = vmul.f32 %v842, %v859
      %v877 = vmul.f32 %v843, %v860
      %v878 = vmul.f32 %v844, %v861
      %v879 = vmul.f32 %v845, %v862
      %v880 = vmul.f32 %v846, %v863
      %v881 = vmul.f32 %v847, %v864
      %v882 = vmul.f32 %v848, %v865
      %v883 = vmul.f32 %v849, %v866
      %v884 = vmul.f32 %v850, %v867
      %v885 = vmul.f32 %v851, %v868
      %v886 = vmul.f32 %v852, %v869
      %v887 = vpack.c.bf16 %v871, %v870
      %v888 = vpack.c.bf16 %v873, %v872
      %v889 = vpack.c.bf16 %v875, %v874
      %v890 = vpack.c.bf16 %v877, %v876
      %v891 = vpack.c.bf16 %v879, %v878
      %v892 = vpack.c.bf16 %v881, %v880
      %v893 = vpack.c.bf16 %v883, %v882
      %v894 = vpack.c.bf16 %v885, %v884
      %v895 = vpack.c.bf16 %v886, %v886
      %v896 = vld [vmem:[%s7] sm:$0xf]
      %v897 = vld [vmem:[%s7 + $0x4] sm:$0xf]
      %v898 = vld [vmem:[%s7 + $0x8] sm:$0xf]
      %v899 = vld [vmem:[%s7 + $0xc] sm:$0xf]
      %v900 = vld [vmem:[%s7 + $0x10] sm:$0xf]
      %v901 = vld [vmem:[%s7 + $0x14] sm:$0xf]
      %v902 = vld [vmem:[%s7 + $0x18] sm:$0xf]
      %v903 = vld [vmem:[%s7 + $0x1c] sm:$0xf]
      %vm904 = vsmask.f32 4352
      %v906 = vshrl.u32 %v887, 16
      %v908 = vrot.slane %v906, 3
      %v909 = vshll.u32 %v887, 16
      %v911 = vrot.slane %v909, 4
      %v912 = vor.u32 %v908, %v911
      %v914 = vshrl.u32 %v888, 16
      %v916 = vrot.slane %v914, 3
      %v917 = vshll.u32 %v888, 16
      %v919 = vrot.slane %v917, 4
      %v920 = vor.u32 %v916, %v919
      %v921 = vsel %vm904, %v912, %v920
      %v923 = vshrl.u32 %v889, 16
      %v925 = vrot.slane %v923, 3
      %v926 = vshll.u32 %v889, 16
      %v928 = vrot.slane %v926, 4
      %v929 = vor.u32 %v925, %v928
      %v930 = vsel %vm904, %v920, %v929
      %v932 = vshrl.u32 %v890, 16
      %v934 = vrot.slane %v932, 3
      %v935 = vshll.u32 %v890, 16
      %v937 = vrot.slane %v935, 4
      %v938 = vor.u32 %v934, %v937
      %v939 = vsel %vm904, %v929, %v938
      %v941 = vshrl.u32 %v891, 16
      %v943 = vrot.slane %v941, 3
      %v944 = vshll.u32 %v891, 16
      %v946 = vrot.slane %v944, 4
      %v947 = vor.u32 %v943, %v946
      %v948 = vsel %vm904, %v938, %v947
      %v950 = vshrl.u32 %v892, 16
      %v952 = vrot.slane %v950, 3
      %v953 = vshll.u32 %v892, 16
      %v955 = vrot.slane %v953, 4
      %v956 = vor.u32 %v952, %v955
      %v957 = vsel %vm904, %v947, %v956
      %v959 = vshrl.u32 %v893, 16
      %v961 = vrot.slane %v959, 3
      %v962 = vshll.u32 %v893, 16
      %v964 = vrot.slane %v962, 4
      %v965 = vor.u32 %v961, %v964
      %v966 = vsel %vm904, %v956, %v965
      %v968 = vshrl.u32 %v894, 16
      %v970 = vrot.slane %v968, 3
      %v971 = vshll.u32 %v894, 16
      %v973 = vrot.slane %v971, 4
      %v974 = vor.u32 %v970, %v973
      %v975 = vsel %vm904, %v965, %v974
      %v977 = vshrl.u32 %v895, 16
      %v979 = vrot.slane %v977, 3
      %v980 = vshll.u32 %v895, 16
      %v982 = vrot.slane %v980, 4
      %v983 = vor.u32 %v979, %v982
      %v984 = vsel %vm904, %v974, %v983
      %v993 = vunpack.c.l.b16 %v896
      %v994 = vunpack.c.l.b16 %v897
      %v995 = vunpack.c.l.b16 %v898
      %v996 = vunpack.c.l.b16 %v899
      %v997 = vunpack.c.l.b16 %v900
      %v998 = vunpack.c.l.b16 %v901
      %v999 = vunpack.c.l.b16 %v902
      %v1000 = vunpack.c.l.b16 %v903
      %v1001 = vpack.c.b16 %v994, %v993
      %v1002 = vpack.c.b16 %v996, %v995
      %v1003 = vpack.c.b16 %v998, %v997
      %v1004 = vpack.c.b16 %v1000, %v999
      %vm1009 = vcmask 523264
      %v1011 = vsel %vm1009, %v921, 0
      %v1014 = vsel %vm1009, %v930, 0
      %v1017 = vsel %vm1009, %v939, 0
      %v1020 = vsel %vm1009, %v948, 0
      %v1023 = vsel %vm1009, %v957, 0
      %v1026 = vsel %vm1009, %v966, 0
      %v1029 = vsel %vm1009, %v975, 0
      %v1032 = vsel %vm1009, %v984, 0
      %1034 = vmatpush.bf16.msra.mxu0 0
      %1035 = vmatpush.bf16.msra.mxu0 0
      %1036 = vmatpush.bf16.msra.mxu0 0
      %1037 = vmatpush.bf16.msra.mxu0 0
      %1038 = vmatpush.bf16.msra.mxu0 %v1004
      %1039 = vmatpush.bf16.msra.mxu0 %v1003
      %1040 = vmatpush.bf16.msra.mxu0 %v1002
      %1041 = vmatpush.bf16.msra.mxu0 %v1001
      %1042 = vmatmul.bf16.gmra.mxu0 %v1011
      %v1043 = vpop.f32.mrf.mxu0
      %v1044 = vadd.f32 0.0, %v1043
      %v1045 = vpop.f32.mrf.mxu0
      %v1046 = vadd.f32 0.0, %v1045
      %1047 = vmatmul.bf16.gmra.mxu0 %v1014
      %v1048 = vpop.f32.mrf.mxu0
      %v1049 = vadd.f32 0.0, %v1048
      %v1050 = vpop.f32.mrf.mxu0
      %v1051 = vadd.f32 0.0, %v1050
      %1052 = vmatmul.bf16.gmra.mxu0 %v1017
      %v1053 = vpop.f32.mrf.mxu0
      %v1054 = vadd.f32 0.0, %v1053
      %v1055 = vpop.f32.mrf.mxu0
      %v1056 = vadd.f32 0.0, %v1055
      %1057 = vmatmul.bf16.gmra.mxu0 %v1020
      %v1058 = vpop.f32.mrf.mxu0
      %v1059 = vadd.f32 0.0, %v1058
      %v1060 = vpop.f32.mrf.mxu0
      %v1061 = vadd.f32 0.0, %v1060
      %1062 = vmatmul.bf16.gmra.mxu0 %v1023
      %v1063 = vpop.f32.mrf.mxu0
      %v1064 = vadd.f32 0.0, %v1063
      %v1065 = vpop.f32.mrf.mxu0
      %v1066 = vadd.f32 0.0, %v1065
      %1067 = vmatmul.bf16.gmra.mxu0 %v1026
      %v1068 = vpop.f32.mrf.mxu0
      %v1069 = vadd.f32 0.0, %v1068
      %v1070 = vpop.f32.mrf.mxu0
      %v1071 = vadd.f32 0.0, %v1070
      %1072 = vmatmul.bf16.gmra.mxu0 %v1029
      %v1073 = vpop.f32.mrf.mxu0
      %v1074 = vadd.f32 0.0, %v1073
      %v1075 = vpop.f32.mrf.mxu0
      %v1076 = vadd.f32 0.0, %v1075
      %1077 = vmatmul.bf16.gmra.mxu0 %v1032
      %v1078 = vpop.f32.mrf.mxu0
      %v1079 = vadd.f32 0.0, %v1078
      %v1080 = vpop.f32.mrf.mxu0
      %v1081 = vadd.f32 0.0, %v1080
      %1082 = vdwg.mxu0
      %v1099 = vunpack.c.l.b16 %v624
      %v1100 = vunpack.c.l.b16 %v625
      %v1101 = vunpack.c.l.b16 %v626
      %v1102 = vunpack.c.l.b16 %v627
      %v1103 = vunpack.c.l.b16 %v628
      %v1104 = vunpack.c.l.b16 %v629
      %v1105 = vunpack.c.l.b16 %v630
      %v1106 = vunpack.c.l.b16 %v631
      %v1107 = vunpack.c.l.b16 %v632
      %v1108 = vunpack.c.l.b16 %v633
      %v1109 = vunpack.c.l.b16 %v634
      %v1110 = vunpack.c.l.b16 %v635
      %v1111 = vunpack.c.l.b16 %v636
      %v1112 = vunpack.c.l.b16 %v637
      %v1113 = vunpack.c.l.b16 %v638
      %v1114 = vunpack.c.l.b16 %v639
      %v1115 = vpack.c.b16 %v1100, %v1099
      %v1116 = vpack.c.b16 %v1102, %v1101
      %v1117 = vpack.c.b16 %v1104, %v1103
      %v1118 = vpack.c.b16 %v1106, %v1105
      %v1119 = vpack.c.b16 %v1108, %v1107
      %v1120 = vpack.c.b16 %v1110, %v1109
      %v1121 = vpack.c.b16 %v1112, %v1111
      %v1122 = vpack.c.b16 %v1114, %v1113
      %v1132 = vunpack.c.l.b16 %v640
      %v1133 = vunpack.c.l.b16 %v641
      %v1134 = vunpack.c.l.b16 %v642
      %v1135 = vunpack.c.l.b16 %v643
      %v1136 = vunpack.c.l.b16 %v644
      %v1137 = vunpack.c.l.b16 %v645
      %v1138 = vunpack.c.l.b16 %v646
      %v1139 = vunpack.c.l.b16 %v647
      %v1140 = vunpack.c.l.b16 %v648
      %v1141 = vpack.c.b16 %v1133, %v1132
      %v1142 = vpack.c.b16 %v1135, %v1134
      %v1143 = vpack.c.b16 %v1137, %v1136
      %v1144 = vpack.c.b16 %v1139, %v1138
      %v1145 = vpack.c.b16 %v1140, %v1140
      %vm1150 = vcmask 588800
      %v1152 = vsel %vm1150, %v1115, 0
      %v1155 = vsel %vm1150, %v1116, 0
      %v1158 = vsel %vm1150, %v1117, 0
      %v1161 = vsel %vm1150, %v1118, 0
      %v1164 = vsel %vm1150, %v1119, 0
      %v1167 = vsel %vm1150, %v1120, 0
      %v1170 = vsel %vm1150, %v1121, 0
      %v1173 = vsel %vm1150, %v1122, 0
      %vm1175 = vcmask 1043456
      %v1177 = vsel %vm1175, %v1145, 0
      %1179 = vmatpush.bf16.msra.mxu0 0
      %1180 = vmatpush.bf16.msra.mxu0 0
      %1181 = vmatpush.bf16.msra.mxu0 0
      %1182 = vmatpush.bf16.msra.mxu0 %v1177
      %1183 = vmatpush.bf16.msra.mxu0 %v1144
      %1184 = vmatpush.bf16.msra.mxu0 %v1143
      %1185 = vmatpush.bf16.msra.mxu0 %v1142
      %1186 = vmatpush.bf16.msra.mxu0 %v1141
      %1187 = vmatmul.bf16.gmra.mxu0 %v1152
      %v1188 = vpop.f32.mrf.mxu0
      %v1189 = vadd.f32 %v1044, %v1188
      %v1190 = vpop.f32.mrf.mxu0
      %v1191 = vadd.f32 %v1046, %v1190
      %1192 = vmatmul.bf16.gmra.mxu0 %v1155
      %v1193 = vpop.f32.mrf.mxu0
      %v1194 = vadd.f32 %v1049, %v1193
      %v1195 = vpop.f32.mrf.mxu0
      %v1196 = vadd.f32 %v1051, %v1195
      %1197 = vmatmul.bf16.gmra.mxu0 %v1158
      %v1198 = vpop.f32.mrf.mxu0
      %v1199 = vadd.f32 %v1054, %v1198
      %v1200 = vpop.f32.mrf.mxu0
      %v1201 = vadd.f32 %v1056, %v1200
      %1202 = vmatmul.bf16.gmra.mxu0 %v1161
      %v1203 = vpop.f32.mrf.mxu0
      %v1204 = vadd.f32 %v1059, %v1203
      %v1205 = vpop.f32.mrf.mxu0
      %v1206 = vadd.f32 %v1061, %v1205
      %1207 = vmatmul.bf16.gmra.mxu0 %v1164
      %v1208 = vpop.f32.mrf.mxu0
      %v1209 = vadd.f32 %v1064, %v1208
      %v1210 = vpop.f32.mrf.mxu0
      %v1211 = vadd.f32 %v1066, %v1210
      %1212 = vmatmul.bf16.gmra.mxu0 %v1167
      %v1213 = vpop.f32.mrf.mxu0
      %v1214 = vadd.f32 %v1069, %v1213
      %v1215 = vpop.f32.mrf.mxu0
      %v1216 = vadd.f32 %v1071, %v1215
      %1217 = vmatmul.bf16.gmra.mxu0 %v1170
      %v1218 = vpop.f32.mrf.mxu0
      %v1219 = vadd.f32 %v1074, %v1218
      %v1220 = vpop.f32.mrf.mxu0
      %v1221 = vadd.f32 %v1076, %v1220
      %1222 = vmatmul.bf16.gmra.mxu0 %v1173
      %v1223 = vpop.f32.mrf.mxu0
      %v1224 = vadd.f32 %v1079, %v1223
      %v1225 = vpop.f32.mrf.mxu0
      %v1226 = vadd.f32 %v1081, %v1225
      %1227 = vdwg.mxu0
      %s1228 = scalar_lea.vmem %s7, 32
      %v1229 = vld [vmem:[%s1228] sm:$0xf]
      %v1230 = vld [vmem:[%s1228 + $0x4] sm:$0xf]
      %v1231 = vld [vmem:[%s1228 + $0x8] sm:$0xf]
      %v1232 = vld [vmem:[%s1228 + $0xc] sm:$0xf]
      %v1233 = vld [vmem:[%s1228 + $0x10] sm:$0xf]
      %v1234 = vld [vmem:[%s1228 + $0x14] sm:$0xf]
      %v1235 = vld [vmem:[%s1228 + $0x18] sm:$0xf]
      %v1236 = vld [vmem:[%s1228 + $0x1c] sm:$0xf]
      %v1253 = vunpack.c.l.b16 %v650
      %v1254 = vunpack.c.l.b16 %v651
      %v1255 = vunpack.c.l.b16 %v652
      %v1256 = vunpack.c.l.b16 %v653
      %v1257 = vunpack.c.l.b16 %v654
      %v1258 = vunpack.c.l.b16 %v655
      %v1259 = vunpack.c.l.b16 %v656
      %v1260 = vunpack.c.l.b16 %v657
      %v1261 = vunpack.c.l.b16 %v658
      %v1262 = vunpack.c.l.b16 %v659
      %v1263 = vunpack.c.l.b16 %v660
      %v1264 = vunpack.c.l.b16 %v661
      %v1265 = vunpack.c.l.b16 %v662
      %v1266 = vunpack.c.l.b16 %v663
      %v1267 = vunpack.c.l.b16 %v664
      %v1268 = vunpack.c.l.b16 %v665
      %v1269 = vpack.c.b16 %v1254, %v1253
      %v1270 = vpack.c.b16 %v1256, %v1255
      %v1271 = vpack.c.b16 %v1258, %v1257
      %v1272 = vpack.c.b16 %v1260, %v1259
      %v1273 = vpack.c.b16 %v1262, %v1261
      %v1274 = vpack.c.b16 %v1264, %v1263
      %v1275 = vpack.c.b16 %v1266, %v1265
      %v1276 = vpack.c.b16 %v1268, %v1267
      %v1285 = vunpack.c.l.b16 %v1229
      %v1286 = vunpack.c.l.b16 %v1230
      %v1287 = vunpack.c.l.b16 %v1231
      %v1288 = vunpack.c.l.b16 %v1232
      %v1289 = vunpack.c.l.b16 %v1233
      %v1290 = vunpack.c.l.b16 %v1234
      %v1291 = vunpack.c.l.b16 %v1235
      %v1292 = vunpack.c.l.b16 %v1236
      %v1293 = vpack.c.b16 %v1286, %v1285
      %v1294 = vpack.c.b16 %v1288, %v1287
      %v1295 = vpack.c.b16 %v1290, %v1289
      %v1296 = vpack.c.b16 %v1292, %v1291
      %v1302 = vsel %vm1009, %v1269, 0
      %v1305 = vsel %vm1009, %v1270, 0
      %v1308 = vsel %vm1009, %v1271, 0
      %v1311 = vsel %vm1009, %v1272, 0
      %v1314 = vsel %vm1009, %v1273, 0
      %v1317 = vsel %vm1009, %v1274, 0
      %v1320 = vsel %vm1009, %v1275, 0
      %v1323 = vsel %vm1009, %v1276, 0
      %1325 = vmatpush.bf16.msra.mxu0 0
      %1326 = vmatpush.bf16.msra.mxu0 0
      %1327 = vmatpush.bf16.msra.mxu0 0
      %1328 = vmatpush.bf16.msra.mxu0 0
      %1329 = vmatpush.bf16.msra.mxu0 %v1296
      %1330 = vmatpush.bf16.msra.mxu0 %v1295
      %1331 = vmatpush.bf16.msra.mxu0 %v1294
      %1332 = vmatpush.bf16.msra.mxu0 %v1293
      %1333 = vmatmul.bf16.gmra.mxu0 %v1302
      %v1334 = vpop.f32.mrf.mxu0
      %v1335 = vadd.f32 0.0, %v1334
      %v1336 = vpop.f32.mrf.mxu0
      %v1337 = vadd.f32 0.0, %v1336
      %1338 = vmatmul.bf16.gmra.mxu0 %v1305
      %v1339 = vpop.f32.mrf.mxu0
      %v1340 = vadd.f32 0.0, %v1339
      %v1341 = vpop.f32.mrf.mxu0
      %v1342 = vadd.f32 0.0, %v1341
      %1343 = vmatmul.bf16.gmra.mxu0 %v1308
      %v1344 = vpop.f32.mrf.mxu0
      %v1345 = vadd.f32 0.0, %v1344
      %v1346 = vpop.f32.mrf.mxu0
      %v1347 = vadd.f32 0.0, %v1346
      %1348 = vmatmul.bf16.gmra.mxu0 %v1311
      %v1349 = vpop.f32.mrf.mxu0
      %v1350 = vadd.f32 0.0, %v1349
      %v1351 = vpop.f32.mrf.mxu0
      %v1352 = vadd.f32 0.0, %v1351
      %1353 = vmatmul.bf16.gmra.mxu0 %v1314
      %v1354 = vpop.f32.mrf.mxu0
      %v1355 = vadd.f32 0.0, %v1354
      %v1356 = vpop.f32.mrf.mxu0
      %v1357 = vadd.f32 0.0, %v1356
      %1358 = vmatmul.bf16.gmra.mxu0 %v1317
      %v1359 = vpop.f32.mrf.mxu0
      %v1360 = vadd.f32 0.0, %v1359
      %v1361 = vpop.f32.mrf.mxu0
      %v1362 = vadd.f32 0.0, %v1361
      %1363 = vmatmul.bf16.gmra.mxu0 %v1320
      %v1364 = vpop.f32.mrf.mxu0
      %v1365 = vadd.f32 0.0, %v1364
      %v1366 = vpop.f32.mrf.mxu0
      %v1367 = vadd.f32 0.0, %v1366
      %1368 = vmatmul.bf16.gmra.mxu0 %v1323
      %v1369 = vpop.f32.mrf.mxu0
      %v1370 = vadd.f32 0.0, %v1369
      %v1371 = vpop.f32.mrf.mxu0
      %v1372 = vadd.f32 0.0, %v1371
      %1373 = vdwg.mxu0
      %v1374 = vadd.f32 %v1189, %v1335
      %v1375 = vadd.f32 %v1191, %v1337
      %v1376 = vadd.f32 %v1194, %v1340
      %v1377 = vadd.f32 %v1196, %v1342
      %v1378 = vadd.f32 %v1199, %v1345
      %v1379 = vadd.f32 %v1201, %v1347
      %v1380 = vadd.f32 %v1204, %v1350
      %v1381 = vadd.f32 %v1206, %v1352
      %v1382 = vadd.f32 %v1209, %v1355
      %v1383 = vadd.f32 %v1211, %v1357
      %v1384 = vadd.f32 %v1214, %v1360
      %v1385 = vadd.f32 %v1216, %v1362
      %v1386 = vadd.f32 %v1219, %v1365
      %v1387 = vadd.f32 %v1221, %v1367
      %v1388 = vadd.f32 %v1224, %v1370
      %v1389 = vadd.f32 %v1226, %v1372
      %v1390 = vld [vmem:[#allocation2 + $0x8] sm:$0xf]
      %v1391 = vld [vmem:[#allocation2 + $0xc] sm:$0xf]
      %v1392 = vld [vmem:[#allocation2 + $0x10] sm:$0xf]
      %v1393 = vld [vmem:[#allocation2 + $0x14] sm:$0xf]
      %v1394 = vld [vmem:[#allocation2 + $0x18] sm:$0xf]
      %v1395 = vld [vmem:[#allocation2 + $0x1c] sm:$0xf]
      %v1396 = vld [vmem:[#allocation2 + $0x20] sm:$0xf]
      %v1397 = vld [vmem:[#allocation2 + $0x24] sm:$0xf]
      %v1398 = vld [vmem:[#allocation2 + $0x28] sm:$0xf]
      %v1399 = vld [vmem:[#allocation2 + $0x2c] sm:$0xf]
      %v1400 = vld [vmem:[#allocation2 + $0x30] sm:$0xf]
      %v1401 = vld [vmem:[#allocation2 + $0x34] sm:$0xf]
      %v1402 = vld [vmem:[#allocation2 + $0x38] sm:$0xf]
      %v1403 = vld [vmem:[#allocation2 + $0x3c] sm:$0xf]
      %v1404 = vld [vmem:[#allocation2 + $0x40] sm:$0xf]
      %v1405 = vld [vmem:[#allocation2 + $0x44] sm:$0xf]
      %v1406 = vld [vmem:[#allocation2 + $0x48] sm:$0x1]
      %v1407 = vld [vmem:[%s5 + $0x8] sm:$0xf]
      %v1408 = vld [vmem:[%s5 + $0xc] sm:$0xf]
      %v1409 = vld [vmem:[%s5 + $0x10] sm:$0xf]
      %v1410 = vld [vmem:[%s5 + $0x14] sm:$0xf]
      %v1411 = vld [vmem:[%s5 + $0x18] sm:$0xf]
      %v1412 = vld [vmem:[%s5 + $0x1c] sm:$0xf]
      %v1413 = vld [vmem:[%s5 + $0x20] sm:$0xf]
      %v1414 = vld [vmem:[%s5 + $0x24] sm:$0xf]
      %v1415 = vld [vmem:[%s5 + $0x28] sm:$0xf]
      %v1416 = vld [vmem:[%s5 + $0x2c] sm:$0xf]
      %v1417 = vld [vmem:[%s5 + $0x30] sm:$0xf]
      %v1418 = vld [vmem:[%s5 + $0x34] sm:$0xf]
      %v1419 = vld [vmem:[%s5 + $0x38] sm:$0xf]
      %v1420 = vld [vmem:[%s5 + $0x3c] sm:$0xf]
      %v1421 = vld [vmem:[%s5 + $0x40] sm:$0xf]
      %v1422 = vld [vmem:[%s5 + $0x44] sm:$0xf]
      %v1423 = vld [vmem:[%s5 + $0x48] sm:$0x1]
      %1425 = vset.pattern.permute.xlu0 0
      %1426 = vperm.xlu0 %1425, %v1407
      %v1427 = vpop.permute.xlu0 %1426
      %v1430 = vunpack.c.l.s4 839922192
      %v1431 = vunpack.c.0.s8 %v1430
      %v1432 = vperm.slane %v1427, %v1431
      %1434 = vset.pattern.permute.xlu0 0
      %1435 = vperm.xlu0 %1434, %v1408
      %v1436 = vpop.permute.xlu0 %1435
      %v1439 = vunpack.c.l.s4 839922192
      %v1440 = vunpack.c.0.s8 %v1439
      %v1441 = vperm.slane %v1436, %v1440
      %1443 = vset.pattern.permute.xlu0 0
      %1444 = vperm.xlu0 %1443, %v1409
      %v1445 = vpop.permute.xlu0 %1444
      %v1448 = vunpack.c.l.s4 839922192
      %v1449 = vunpack.c.0.s8 %v1448
      %v1450 = vperm.slane %v1445, %v1449
      %1452 = vset.pattern.permute.xlu0 0
      %1453 = vperm.xlu0 %1452, %v1410
      %v1454 = vpop.permute.xlu0 %1453
      %v1457 = vunpack.c.l.s4 839922192
      %v1458 = vunpack.c.0.s8 %v1457
      %v1459 = vperm.slane %v1454, %v1458
      %1461 = vset.pattern.permute.xlu0 0
      %1462 = vperm.xlu0 %1461, %v1411
      %v1463 = vpop.permute.xlu0 %1462
      %v1466 = vunpack.c.l.s4 839922192
      %v1467 = vunpack.c.0.s8 %v1466
      %v1468 = vperm.slane %v1463, %v1467
      %1470 = vset.pattern.permute.xlu0 0
      %1471 = vperm.xlu0 %1470, %v1412
      %v1472 = vpop.permute.xlu0 %1471
      %v1475 = vunpack.c.l.s4 839922192
      %v1476 = vunpack.c.0.s8 %v1475
      %v1477 = vperm.slane %v1472, %v1476
      %1479 = vset.pattern.permute.xlu0 0
      %1480 = vperm.xlu0 %1479, %v1413
      %v1481 = vpop.permute.xlu0 %1480
      %v1484 = vunpack.c.l.s4 839922192
      %v1485 = vunpack.c.0.s8 %v1484
      %v1486 = vperm.slane %v1481, %v1485
      %1488 = vset.pattern.permute.xlu0 0
      %1489 = vperm.xlu0 %1488, %v1414
      %v1490 = vpop.permute.xlu0 %1489
      %v1493 = vunpack.c.l.s4 839922192
      %v1494 = vunpack.c.0.s8 %v1493
      %v1495 = vperm.slane %v1490, %v1494
      %1497 = vset.pattern.permute.xlu0 0
      %1498 = vperm.xlu0 %1497, %v1415
      %v1499 = vpop.permute.xlu0 %1498
      %v1502 = vunpack.c.l.s4 839922192
      %v1503 = vunpack.c.0.s8 %v1502
      %v1504 = vperm.slane %v1499, %v1503
      %1506 = vset.pattern.permute.xlu0 0
      %1507 = vperm.xlu0 %1506, %v1416
      %v1508 = vpop.permute.xlu0 %1507
      %v1511 = vunpack.c.l.s4 839922192
      %v1512 = vunpack.c.0.s8 %v1511
      %v1513 = vperm.slane %v1508, %v1512
      %1515 = vset.pattern.permute.xlu0 0
      %1516 = vperm.xlu0 %1515, %v1417
      %v1517 = vpop.permute.xlu0 %1516
      %v1520 = vunpack.c.l.s4 839922192
      %v1521 = vunpack.c.0.s8 %v1520
      %v1522 = vperm.slane %v1517, %v1521
      %1524 = vset.pattern.permute.xlu0 0
      %1525 = vperm.xlu0 %1524, %v1418
      %v1526 = vpop.permute.xlu0 %1525
      %v1529 = vunpack.c.l.s4 839922192
      %v1530 = vunpack.c.0.s8 %v1529
      %v1531 = vperm.slane %v1526, %v1530
      %1533 = vset.pattern.permute.xlu0 0
      %1534 = vperm.xlu0 %1533, %v1419
      %v1535 = vpop.permute.xlu0 %1534
      %v1538 = vunpack.c.l.s4 839922192
      %v1539 = vunpack.c.0.s8 %v1538
      %v1540 = vperm.slane %v1535, %v1539
      %1542 = vset.pattern.permute.xlu0 0
      %1543 = vperm.xlu0 %1542, %v1420
      %v1544 = vpop.permute.xlu0 %1543
      %v1547 = vunpack.c.l.s4 839922192
      %v1548 = vunpack.c.0.s8 %v1547
      %v1549 = vperm.slane %v1544, %v1548
      %1551 = vset.pattern.permute.xlu0 0
      %1552 = vperm.xlu0 %1551, %v1421
      %v1553 = vpop.permute.xlu0 %1552
      %v1556 = vunpack.c.l.s4 839922192
      %v1557 = vunpack.c.0.s8 %v1556
      %v1558 = vperm.slane %v1553, %v1557
      %1560 = vset.pattern.permute.xlu0 0
      %1561 = vperm.xlu0 %1560, %v1422
      %v1562 = vpop.permute.xlu0 %1561
      %v1565 = vunpack.c.l.s4 839922192
      %v1566 = vunpack.c.0.s8 %v1565
      %v1567 = vperm.slane %v1562, %v1566
      %1569 = vset.pattern.permute.xlu0 0
      %1570 = vperm.xlu0 %1569, %v1423
      %v1571 = vpop.permute.xlu0 %1570
      %v1574 = vunpack.c.l.s4 839922192
      %v1575 = vunpack.c.0.s8 %v1574
      %v1576 = vperm.slane %v1571, %v1575
      %v1577 = vunpack.c.l.bf16 %v1390
      %v1578 = vunpack.c.l.bf16 %v1391
      %v1579 = vunpack.c.l.bf16 %v1392
      %v1580 = vunpack.c.l.bf16 %v1393
      %v1581 = vunpack.c.l.bf16 %v1394
      %v1582 = vunpack.c.l.bf16 %v1395
      %v1583 = vunpack.c.l.bf16 %v1396
      %v1584 = vunpack.c.l.bf16 %v1397
      %v1585 = vunpack.c.l.bf16 %v1398
      %v1586 = vunpack.c.l.bf16 %v1399
      %v1587 = vunpack.c.l.bf16 %v1400
      %v1588 = vunpack.c.l.bf16 %v1401
      %v1589 = vunpack.c.l.bf16 %v1402
      %v1590 = vunpack.c.l.bf16 %v1403
      %v1591 = vunpack.c.l.bf16 %v1404
      %v1592 = vunpack.c.l.bf16 %v1405
      %v1593 = vunpack.c.l.bf16 %v1406
      %v1594 = vunpack.c.l.bf16 %v1432
      %v1595 = vunpack.c.l.bf16 %v1441
      %v1596 = vunpack.c.l.bf16 %v1450
      %v1597 = vunpack.c.l.bf16 %v1459
      %v1598 = vunpack.c.l.bf16 %v1468
      %v1599 = vunpack.c.l.bf16 %v1477
      %v1600 = vunpack.c.l.bf16 %v1486
      %v1601 = vunpack.c.l.bf16 %v1495
      %v1602 = vunpack.c.l.bf16 %v1504
      %v1603 = vunpack.c.l.bf16 %v1513
      %v1604 = vunpack.c.l.bf16 %v1522
      %v1605 = vunpack.c.l.bf16 %v1531
      %v1606 = vunpack.c.l.bf16 %v1540
      %v1607 = vunpack.c.l.bf16 %v1549
      %v1608 = vunpack.c.l.bf16 %v1558
      %v1609 = vunpack.c.l.bf16 %v1567
      %v1610 = vunpack.c.l.bf16 %v1576
      %v1611 = vmul.f32 %v1577, %v1594
      %v1612 = vmul.f32 %v1578, %v1595
      %v1613 = vmul.f32 %v1579, %v1596
      %v1614 = vmul.f32 %v1580, %v1597
      %v1615 = vmul.f32 %v1581, %v1598
      %v1616 = vmul.f32 %v1582, %v1599
      %v1617 = vmul.f32 %v1583, %v1600
      %v1618 = vmul.f32 %v1584, %v1601
      %v1619 = vmul.f32 %v1585, %v1602
      %v1620 = vmul.f32 %v1586, %v1603
      %v1621 = vmul.f32 %v1587, %v1604
      %v1622 = vmul.f32 %v1588, %v1605
      %v1623 = vmul.f32 %v1589, %v1606
      %v1624 = vmul.f32 %v1590, %v1607
      %v1625 = vmul.f32 %v1591, %v1608
      %v1626 = vmul.f32 %v1592, %v1609
      %v1627 = vmul.f32 %v1593, %v1610
      %v1628 = vpack.c.bf16 %v1612, %v1611
      %v1629 = vpack.c.bf16 %v1614, %v1613
      %v1630 = vpack.c.bf16 %v1616, %v1615
      %v1631 = vpack.c.bf16 %v1618, %v1617
      %v1632 = vpack.c.bf16 %v1620, %v1619
      %v1633 = vpack.c.bf16 %v1622, %v1621
      %v1634 = vpack.c.bf16 %v1624, %v1623
      %v1635 = vpack.c.bf16 %v1626, %v1625
      %v1636 = vpack.c.bf16 %v1627, %v1627
      %s1637 = scalar_lea.vmem %s7, 64
      %v1638 = vld [vmem:[%s1637] sm:$0xf]
      %v1639 = vld [vmem:[%s1637 + $0x4] sm:$0xf]
      %v1640 = vld [vmem:[%s1637 + $0x8] sm:$0xf]
      %v1641 = vld [vmem:[%s1637 + $0xc] sm:$0xf]
      %v1642 = vld [vmem:[%s1637 + $0x10] sm:$0xf]
      %v1643 = vld [vmem:[%s1637 + $0x14] sm:$0xf]
      %v1644 = vld [vmem:[%s1637 + $0x18] sm:$0xf]
      %v1645 = vld [vmem:[%s1637 + $0x1c] sm:$0xf]
      %vm1646 = vsmask.f32 7424
      %v1648 = vshrl.u32 %v1628, 16
      %v1650 = vshll.u32 %v1628, 16
      %v1652 = vrot.slane %v1650, 1
      %v1653 = vor.u32 %v1648, %v1652
      %v1655 = vshll.u32 %v1629, 16
      %v1657 = vrot.slane %v1655, 1
      %v1658 = vsel %vm1646, %v1653, %v1657
      %v1659 = vshrl.u32 %v1629, 16
      %v1661 = vor.u32 %v1659, %v1657
      %v1663 = vshll.u32 %v1630, 16
      %v1665 = vrot.slane %v1663, 1
      %v1666 = vsel %vm1646, %v1661, %v1665
      %v1667 = vshrl.u32 %v1630, 16
      %v1669 = vor.u32 %v1667, %v1665
      %v1671 = vshll.u32 %v1631, 16
      %v1673 = vrot.slane %v1671, 1
      %v1674 = vsel %vm1646, %v1669, %v1673
      %v1675 = vshrl.u32 %v1631, 16
      %v1677 = vor.u32 %v1675, %v1673
      %v1679 = vshll.u32 %v1632, 16
      %v1681 = vrot.slane %v1679, 1
      %v1682 = vsel %vm1646, %v1677, %v1681
      %v1683 = vshrl.u32 %v1632, 16
      %v1685 = vor.u32 %v1683, %v1681
      %v1687 = vshll.u32 %v1633, 16
      %v1689 = vrot.slane %v1687, 1
      %v1690 = vsel %vm1646, %v1685, %v1689
      %v1691 = vshrl.u32 %v1633, 16
      %v1693 = vor.u32 %v1691, %v1689
      %v1695 = vshll.u32 %v1634, 16
      %v1697 = vrot.slane %v1695, 1
      %v1698 = vsel %vm1646, %v1693, %v1697
      %v1699 = vshrl.u32 %v1634, 16
      %v1701 = vor.u32 %v1699, %v1697
      %v1703 = vshll.u32 %v1635, 16
      %v1705 = vrot.slane %v1703, 1
      %v1706 = vsel %vm1646, %v1701, %v1705
      %v1707 = vshrl.u32 %v1635, 16
      %v1709 = vor.u32 %v1707, %v1705
      %v1711 = vshll.u32 %v1636, 16
      %v1713 = vrot.slane %v1711, 1
      %v1714 = vsel %vm1646, %v1709, %v1713
      %v1723 = vunpack.c.l.b16 %v1638
      %v1724 = vunpack.c.l.b16 %v1639
      %v1725 = vunpack.c.l.b16 %v1640
      %v1726 = vunpack.c.l.b16 %v1641
      %v1727 = vunpack.c.l.b16 %v1642
      %v1728 = vunpack.c.l.b16 %v1643
      %v1729 = vunpack.c.l.b16 %v1644
      %v1730 = vunpack.c.l.b16 %v1645
      %v1731 = vpack.c.b16 %v1724, %v1723
      %v1732 = vpack.c.b16 %v1726, %v1725
      %v1733 = vpack.c.b16 %v1728, %v1727
      %v1734 = vpack.c.b16 %v1730, %v1729
      %v1740 = vsel %vm1009, %v1658, 0
      %v1743 = vsel %vm1009, %v1666, 0
      %v1746 = vsel %vm1009, %v1674, 0
      %v1749 = vsel %vm1009, %v1682, 0
      %v1752 = vsel %vm1009, %v1690, 0
      %v1755 = vsel %vm1009, %v1698, 0
      %v1758 = vsel %vm1009, %v1706, 0
      %v1761 = vsel %vm1009, %v1714, 0
      %1763 = vmatpush.bf16.msra.mxu0 0
      %1764 = vmatpush.bf16.msra.mxu0 0
      %1765 = vmatpush.bf16.msra.mxu0 0
      %1766 = vmatpush.bf16.msra.mxu0 0
      %1767 = vmatpush.bf16.msra.mxu0 %v1734
      %1768 = vmatpush.bf16.msra.mxu0 %v1733
      %1769 = vmatpush.bf16.msra.mxu0 %v1732
      %1770 = vmatpush.bf16.msra.mxu0 %v1731
      %1771 = vmatmul.bf16.gmra.mxu0 %v1740
      %v1772 = vpop.f32.mrf.mxu0
      %v1773 = vadd.f32 0.0, %v1772
      %v1774 = vpop.f32.mrf.mxu0
      %v1775 = vadd.f32 0.0, %v1774
      %1776 = vmatmul.bf16.gmra.mxu0 %v1743
      %v1777 = vpop.f32.mrf.mxu0
      %v1778 = vadd.f32 0.0, %v1777
      %v1779 = vpop.f32.mrf.mxu0
      %v1780 = vadd.f32 0.0, %v1779
      %1781 = vmatmul.bf16.gmra.mxu0 %v1746
      %v1782 = vpop.f32.mrf.mxu0
      %v1783 = vadd.f32 0.0, %v1782
      %v1784 = vpop.f32.mrf.mxu0
      %v1785 = vadd.f32 0.0, %v1784
      %1786 = vmatmul.bf16.gmra.mxu0 %v1749
      %v1787 = vpop.f32.mrf.mxu0
      %v1788 = vadd.f32 0.0, %v1787
      %v1789 = vpop.f32.mrf.mxu0
      %v1790 = vadd.f32 0.0, %v1789
      %1791 = vmatmul.bf16.gmra.mxu0 %v1752
      %v1792 = vpop.f32.mrf.mxu0
      %v1793 = vadd.f32 0.0, %v1792
      %v1794 = vpop.f32.mrf.mxu0
      %v1795 = vadd.f32 0.0, %v1794
      %1796 = vmatmul.bf16.gmra.mxu0 %v1755
      %v1797 = vpop.f32.mrf.mxu0
      %v1798 = vadd.f32 0.0, %v1797
      %v1799 = vpop.f32.mrf.mxu0
      %v1800 = vadd.f32 0.0, %v1799
      %1801 = vmatmul.bf16.gmra.mxu0 %v1758
      %v1802 = vpop.f32.mrf.mxu0
      %v1803 = vadd.f32 0.0, %v1802
      %v1804 = vpop.f32.mrf.mxu0
      %v1805 = vadd.f32 0.0, %v1804
      %1806 = vmatmul.bf16.gmra.mxu0 %v1761
      %v1807 = vpop.f32.mrf.mxu0
      %v1808 = vadd.f32 0.0, %v1807
      %v1809 = vpop.f32.mrf.mxu0
      %v1810 = vadd.f32 0.0, %v1809
      %1811 = vdwg.mxu0
      %v1812 = vadd.f32 %v1374, %v1773
      %v1813 = vadd.f32 %v1375, %v1775
      %v1814 = vadd.f32 %v1376, %v1778
      %v1815 = vadd.f32 %v1377, %v1780
      %v1816 = vadd.f32 %v1378, %v1783
      %v1817 = vadd.f32 %v1379, %v1785
      %v1818 = vadd.f32 %v1380, %v1788
      %v1819 = vadd.f32 %v1381, %v1790
      %v1820 = vadd.f32 %v1382, %v1793
      %v1821 = vadd.f32 %v1383, %v1795
      %v1822 = vadd.f32 %v1384, %v1798
      %v1823 = vadd.f32 %v1385, %v1800
      %v1824 = vadd.f32 %v1386, %v1803
      %v1825 = vadd.f32 %v1387, %v1805
      %v1826 = vadd.f32 %v1388, %v1808
      %v1827 = vadd.f32 %v1389, %v1810
      %v1828 = vld [vmem:[#allocation2 + $0xc] sm:$0x8]
      %v1829 = vld [vmem:[#allocation2 + $0x10] sm:$0xf]
      %v1830 = vld [vmem:[#allocation2 + $0x14] sm:$0xf]
      %v1831 = vld [vmem:[#allocation2 + $0x18] sm:$0xf]
      %v1832 = vld [vmem:[#allocation2 + $0x1c] sm:$0xf]
      %v1833 = vld [vmem:[#allocation2 + $0x20] sm:$0xf]
      %v1834 = vld [vmem:[#allocation2 + $0x24] sm:$0xf]
      %v1835 = vld [vmem:[#allocation2 + $0x28] sm:$0xf]
      %v1836 = vld [vmem:[#allocation2 + $0x2c] sm:$0xf]
      %v1837 = vld [vmem:[#allocation2 + $0x30] sm:$0xf]
      %v1838 = vld [vmem:[#allocation2 + $0x34] sm:$0xf]
      %v1839 = vld [vmem:[#allocation2 + $0x38] sm:$0xf]
      %v1840 = vld [vmem:[#allocation2 + $0x3c] sm:$0xf]
      %v1841 = vld [vmem:[#allocation2 + $0x40] sm:$0xf]
      %v1842 = vld [vmem:[#allocation2 + $0x44] sm:$0xf]
      %v1843 = vld [vmem:[#allocation2 + $0x48] sm:$0xf]
      %v1844 = vld [vmem:[#allocation2 + $0x4c] sm:$0xf]
      %v1845 = vld [vmem:[%s4 + $0xc] sm:$0x8]
      %v1846 = vld [vmem:[%s4 + $0x10] sm:$0xf]
      %v1847 = vld [vmem:[%s4 + $0x14] sm:$0xf]
      %v1848 = vld [vmem:[%s4 + $0x18] sm:$0xf]
      %v1849 = vld [vmem:[%s4 + $0x1c] sm:$0xf]
      %v1850 = vld [vmem:[%s4 + $0x20] sm:$0xf]
      %v1851 = vld [vmem:[%s4 + $0x24] sm:$0xf]
      %v1852 = vld [vmem:[%s4 + $0x28] sm:$0xf]
      %v1853 = vld [vmem:[%s4 + $0x2c] sm:$0xf]
      %v1854 = vld [vmem:[%s4 + $0x30] sm:$0xf]
      %v1855 = vld [vmem:[%s4 + $0x34] sm:$0xf]
      %v1856 = vld [vmem:[%s4 + $0x38] sm:$0xf]
      %v1857 = vld [vmem:[%s4 + $0x3c] sm:$0xf]
      %v1858 = vld [vmem:[%s4 + $0x40] sm:$0xf]
      %v1859 = vld [vmem:[%s4 + $0x44] sm:$0xf]
      %v1860 = vld [vmem:[%s4 + $0x48] sm:$0xf]
      %v1861 = vld [vmem:[%s4 + $0x4c] sm:$0xf]
      %1863 = vset.pattern.permute.xlu0 0
      %1864 = vperm.xlu0 %1863, %v1845
      %v1865 = vpop.permute.xlu0 %1864
      %v1868 = vunpack.c.l.s4 839922192
      %v1869 = vunpack.c.0.s8 %v1868
      %v1870 = vperm.slane %v1865, %v1869
      %1872 = vset.pattern.permute.xlu0 0
      %1873 = vperm.xlu0 %1872, %v1846
      %v1874 = vpop.permute.xlu0 %1873
      %v1877 = vunpack.c.l.s4 839922192
      %v1878 = vunpack.c.0.s8 %v1877
      %v1879 = vperm.slane %v1874, %v1878
      %1881 = vset.pattern.permute.xlu0 0
      %1882 = vperm.xlu0 %1881, %v1847
      %v1883 = vpop.permute.xlu0 %1882
      %v1886 = vunpack.c.l.s4 839922192
      %v1887 = vunpack.c.0.s8 %v1886
      %v1888 = vperm.slane %v1883, %v1887
      %1890 = vset.pattern.permute.xlu0 0
      %1891 = vperm.xlu0 %1890, %v1848
      %v1892 = vpop.permute.xlu0 %1891
      %v1895 = vunpack.c.l.s4 839922192
      %v1896 = vunpack.c.0.s8 %v1895
      %v1897 = vperm.slane %v1892, %v1896
      %1899 = vset.pattern.permute.xlu0 0
      %1900 = vperm.xlu0 %1899, %v1849
      %v1901 = vpop.permute.xlu0 %1900
      %v1904 = vunpack.c.l.s4 839922192
      %v1905 = vunpack.c.0.s8 %v1904
      %v1906 = vperm.slane %v1901, %v1905
      %1908 = vset.pattern.permute.xlu0 0
      %1909 = vperm.xlu0 %1908, %v1850
      %v1910 = vpop.permute.xlu0 %1909
      %v1913 = vunpack.c.l.s4 839922192
      %v1914 = vunpack.c.0.s8 %v1913
      %v1915 = vperm.slane %v1910, %v1914
      %1917 = vset.pattern.permute.xlu0 0
      %1918 = vperm.xlu0 %1917, %v1851
      %v1919 = vpop.permute.xlu0 %1918
      %v1922 = vunpack.c.l.s4 839922192
      %v1923 = vunpack.c.0.s8 %v1922
      %v1924 = vperm.slane %v1919, %v1923
      %1926 = vset.pattern.permute.xlu0 0
      %1927 = vperm.xlu0 %1926, %v1852
      %v1928 = vpop.permute.xlu0 %1927
      %v1931 = vunpack.c.l.s4 839922192
      %v1932 = vunpack.c.0.s8 %v1931
      %v1933 = vperm.slane %v1928, %v1932
      %1935 = vset.pattern.permute.xlu0 0
      %1936 = vperm.xlu0 %1935, %v1853
      %v1937 = vpop.permute.xlu0 %1936
      %v1940 = vunpack.c.l.s4 839922192
      %v1941 = vunpack.c.0.s8 %v1940
      %v1942 = vperm.slane %v1937, %v1941
      %1944 = vset.pattern.permute.xlu0 0
      %1945 = vperm.xlu0 %1944, %v1854
      %v1946 = vpop.permute.xlu0 %1945
      %v1949 = vunpack.c.l.s4 839922192
      %v1950 = vunpack.c.0.s8 %v1949
      %v1951 = vperm.slane %v1946, %v1950
      %1953 = vset.pattern.permute.xlu0 0
      %1954 = vperm.xlu0 %1953, %v1855
      %v1955 = vpop.permute.xlu0 %1954
      %v1958 = vunpack.c.l.s4 839922192
      %v1959 = vunpack.c.0.s8 %v1958
      %v1960 = vperm.slane %v1955, %v1959
      %1962 = vset.pattern.permute.xlu0 0
      %1963 = vperm.xlu0 %1962, %v1856
      %v1964 = vpop.permute.xlu0 %1963
      %v1967 = vunpack.c.l.s4 839922192
      %v1968 = vunpack.c.0.s8 %v1967
      %v1969 = vperm.slane %v1964, %v1968
      %1971 = vset.pattern.permute.xlu0 0
      %1972 = vperm.xlu0 %1971, %v1857
      %v1973 = vpop.permute.xlu0 %1972
      %v1976 = vunpack.c.l.s4 839922192
      %v1977 = vunpack.c.0.s8 %v1976
      %v1978 = vperm.slane %v1973, %v1977
      %1980 = vset.pattern.permute.xlu0 0
      %1981 = vperm.xlu0 %1980, %v1858
      %v1982 = vpop.permute.xlu0 %1981
      %v1985 = vunpack.c.l.s4 839922192
      %v1986 = vunpack.c.0.s8 %v1985
      %v1987 = vperm.slane %v1982, %v1986
      %1989 = vset.pattern.permute.xlu0 0
      %1990 = vperm.xlu0 %1989, %v1859
      %v1991 = vpop.permute.xlu0 %1990
      %v1994 = vunpack.c.l.s4 839922192
      %v1995 = vunpack.c.0.s8 %v1994
      %v1996 = vperm.slane %v1991, %v1995
      %1998 = vset.pattern.permute.xlu0 0
      %1999 = vperm.xlu0 %1998, %v1860
      %v2000 = vpop.permute.xlu0 %1999
      %v2003 = vunpack.c.l.s4 839922192
      %v2004 = vunpack.c.0.s8 %v2003
      %v2005 = vperm.slane %v2000, %v2004
      %2007 = vset.pattern.permute.xlu0 0
      %2008 = vperm.xlu0 %2007, %v1861
      %v2009 = vpop.permute.xlu0 %2008
      %v2012 = vunpack.c.l.s4 839922192
      %v2013 = vunpack.c.0.s8 %v2012
      %v2014 = vperm.slane %v2009, %v2013
      %v2015 = vunpack.c.l.bf16 %v1828
      %v2016 = vunpack.c.l.bf16 %v1829
      %v2017 = vunpack.c.l.bf16 %v1830
      %v2018 = vunpack.c.l.bf16 %v1831
      %v2019 = vunpack.c.l.bf16 %v1832
      %v2020 = vunpack.c.l.bf16 %v1833
      %v2021 = vunpack.c.l.bf16 %v1834
      %v2022 = vunpack.c.l.bf16 %v1835
      %v2023 = vunpack.c.l.bf16 %v1836
      %v2024 = vunpack.c.l.bf16 %v1837
      %v2025 = vunpack.c.l.bf16 %v1838
      %v2026 = vunpack.c.l.bf16 %v1839
      %v2027 = vunpack.c.l.bf16 %v1840
      %v2028 = vunpack.c.l.bf16 %v1841
      %v2029 = vunpack.c.l.bf16 %v1842
      %v2030 = vunpack.c.l.bf16 %v1843
      %v2031 = vunpack.c.l.bf16 %v1844
      %v2032 = vunpack.c.l.bf16 %v1870
      %v2033 = vunpack.c.l.bf16 %v1879
      %v2034 = vunpack.c.l.bf16 %v1888
      %v2035 = vunpack.c.l.bf16 %v1897
      %v2036 = vunpack.c.l.bf16 %v1906
      %v2037 = vunpack.c.l.bf16 %v1915
      %v2038 = vunpack.c.l.bf16 %v1924
      %v2039 = vunpack.c.l.bf16 %v1933
      %v2040 = vunpack.c.l.bf16 %v1942
      %v2041 = vunpack.c.l.bf16 %v1951
      %v2042 = vunpack.c.l.bf16 %v1960
      %v2043 = vunpack.c.l.bf16 %v1969
      %v2044 = vunpack.c.l.bf16 %v1978
      %v2045 = vunpack.c.l.bf16 %v1987
      %v2046 = vunpack.c.l.bf16 %v1996
      %v2047 = vunpack.c.l.bf16 %v2005
      %v2048 = vunpack.c.l.bf16 %v2014
      %v2049 = vmul.f32 %v2015, %v2032
      %v2050 = vmul.f32 %v2016, %v2033
      %v2051 = vmul.f32 %v2017, %v2034
      %v2052 = vmul.f32 %v2018, %v2035
      %v2053 = vmul.f32 %v2019, %v2036
      %v2054 = vmul.f32 %v2020, %v2037
      %v2055 = vmul.f32 %v2021, %v2038
      %v2056 = vmul.f32 %v2022, %v2039
      %v2057 = vmul.f32 %v2023, %v2040
      %v2058 = vmul.f32 %v2024, %v2041
      %v2059 = vmul.f32 %v2025, %v2042
      %v2060 = vmul.f32 %v2026, %v2043
      %v2061 = vmul.f32 %v2027, %v2044
      %v2062 = vmul.f32 %v2028, %v2045
      %v2063 = vmul.f32 %v2029, %v2046
      %v2064 = vmul.f32 %v2030, %v2047
      %v2065 = vmul.f32 %v2031, %v2048
      %v2066 = vpack.c.bf16 %v2050, %v2049
      %v2067 = vpack.c.bf16 %v2052, %v2051
      %v2068 = vpack.c.bf16 %v2054, %v2053
      %v2069 = vpack.c.bf16 %v2056, %v2055
      %v2070 = vpack.c.bf16 %v2058, %v2057
      %v2071 = vpack.c.bf16 %v2060, %v2059
      %v2072 = vpack.c.bf16 %v2062, %v2061
      %v2073 = vpack.c.bf16 %v2064, %v2063
      %v2074 = vpack.c.bf16 %v2065, %v2065
      %s2075 = scalar_lea.vmem %s7, 96
      %v2076 = vld [vmem:[%s2075] sm:$0xf]
      %v2077 = vld [vmem:[%s2075 + $0x4] sm:$0xf]
      %v2078 = vld [vmem:[%s2075 + $0x8] sm:$0xf]
      %v2079 = vld [vmem:[%s2075 + $0xc] sm:$0xf]
      %v2080 = vld [vmem:[%s2075 + $0x10] sm:$0xf]
      %v2081 = vld [vmem:[%s2075 + $0x14] sm:$0xf]
      %v2082 = vld [vmem:[%s2075 + $0x18] sm:$0xf]
      %v2083 = vld [vmem:[%s2075 + $0x1c] sm:$0xf]
      %v2085 = vshrl.u32 %v2066, 16
      %v2087 = vrot.slane %v2085, 3
      %v2088 = vshll.u32 %v2066, 16
      %v2090 = vrot.slane %v2088, 4
      %v2091 = vor.u32 %v2087, %v2090
      %v2093 = vshrl.u32 %v2067, 16
      %v2095 = vrot.slane %v2093, 3
      %v2096 = vshll.u32 %v2067, 16
      %v2098 = vrot.slane %v2096, 4
      %v2099 = vor.u32 %v2095, %v2098
      %v2100 = vsel %vm904, %v2091, %v2099
      %v2102 = vshrl.u32 %v2068, 16
      %v2104 = vrot.slane %v2102, 3
      %v2105 = vshll.u32 %v2068, 16
      %v2107 = vrot.slane %v2105, 4
      %v2108 = vor.u32 %v2104, %v2107
      %v2109 = vsel %vm904, %v2099, %v2108
      %v2111 = vshrl.u32 %v2069, 16
      %v2113 = vrot.slane %v2111, 3
      %v2114 = vshll.u32 %v2069, 16
      %v2116 = vrot.slane %v2114, 4
      %v2117 = vor.u32 %v2113, %v2116
      %v2118 = vsel %vm904, %v2108, %v2117
      %v2120 = vshrl.u32 %v2070, 16
      %v2122 = vrot.slane %v2120, 3
      %v2123 = vshll.u32 %v2070, 16
      %v2125 = vrot.slane %v2123, 4
      %v2126 = vor.u32 %v2122, %v2125
      %v2127 = vsel %vm904, %v2117, %v2126
      %v2129 = vshrl.u32 %v2071, 16
      %v2131 = vrot.slane %v2129, 3
      %v2132 = vshll.u32 %v2071, 16
      %v2134 = vrot.slane %v2132, 4
      %v2135 = vor.u32 %v2131, %v2134
      %v2136 = vsel %vm904, %v2126, %v2135
      %v2138 = vshrl.u32 %v2072, 16
      %v2140 = vrot.slane %v2138, 3
      %v2141 = vshll.u32 %v2072, 16
      %v2143 = vrot.slane %v2141, 4
      %v2144 = vor.u32 %v2140, %v2143
      %v2145 = vsel %vm904, %v2135, %v2144
      %v2147 = vshrl.u32 %v2073, 16
      %v2149 = vrot.slane %v2147, 3
      %v2150 = vshll.u32 %v2073, 16
      %v2152 = vrot.slane %v2150, 4
      %v2153 = vor.u32 %v2149, %v2152
      %v2154 = vsel %vm904, %v2144, %v2153
      %v2156 = vshrl.u32 %v2074, 16
      %v2158 = vrot.slane %v2156, 3
      %v2159 = vshll.u32 %v2074, 16
      %v2161 = vrot.slane %v2159, 4
      %v2162 = vor.u32 %v2158, %v2161
      %v2163 = vsel %vm904, %v2153, %v2162
      %v2172 = vunpack.c.l.b16 %v2076
      %v2173 = vunpack.c.l.b16 %v2077
      %v2174 = vunpack.c.l.b16 %v2078
      %v2175 = vunpack.c.l.b16 %v2079
      %v2176 = vunpack.c.l.b16 %v2080
      %v2177 = vunpack.c.l.b16 %v2081
      %v2178 = vunpack.c.l.b16 %v2082
      %v2179 = vunpack.c.l.b16 %v2083
      %v2180 = vpack.c.b16 %v2173, %v2172
      %v2181 = vpack.c.b16 %v2175, %v2174
      %v2182 = vpack.c.b16 %v2177, %v2176
      %v2183 = vpack.c.b16 %v2179, %v2178
      %v2189 = vsel %vm1009, %v2100, 0
      %v2192 = vsel %vm1009, %v2109, 0
      %v2195 = vsel %vm1009, %v2118, 0
      %v2198 = vsel %vm1009, %v2127, 0
      %v2201 = vsel %vm1009, %v2136, 0
      %v2204 = vsel %vm1009, %v2145, 0
      %v2207 = vsel %vm1009, %v2154, 0
      %v2210 = vsel %vm1009, %v2163, 0
      %2212 = vmatpush.bf16.msra.mxu0 0
      %2213 = vmatpush.bf16.msra.mxu0 0
      %2214 = vmatpush.bf16.msra.mxu0 0
      %2215 = vmatpush.bf16.msra.mxu0 0
      %2216 = vmatpush.bf16.msra.mxu0 %v2183
      %2217 = vmatpush.bf16.msra.mxu0 %v2182
      %2218 = vmatpush.bf16.msra.mxu0 %v2181
      %2219 = vmatpush.bf16.msra.mxu0 %v2180
      %2220 = vmatmul.bf16.gmra.mxu0 %v2189
      %v2221 = vpop.f32.mrf.mxu0
      %v2222 = vadd.f32 0.0, %v2221
      %v2223 = vpop.f32.mrf.mxu0
      %v2224 = vadd.f32 0.0, %v2223
      %2225 = vmatmul.bf16.gmra.mxu0 %v2192
      %v2226 = vpop.f32.mrf.mxu0
      %v2227 = vadd.f32 0.0, %v2226
      %v2228 = vpop.f32.mrf.mxu0
      %v2229 = vadd.f32 0.0, %v2228
      %2230 = vmatmul.bf16.gmra.mxu0 %v2195
      %v2231 = vpop.f32.mrf.mxu0
      %v2232 = vadd.f32 0.0, %v2231
      %v2233 = vpop.f32.mrf.mxu0
      %v2234 = vadd.f32 0.0, %v2233
      %2235 = vmatmul.bf16.gmra.mxu0 %v2198
      %v2236 = vpop.f32.mrf.mxu0
      %v2237 = vadd.f32 0.0, %v2236
      %v2238 = vpop.f32.mrf.mxu0
      %v2239 = vadd.f32 0.0, %v2238
      %2240 = vmatmul.bf16.gmra.mxu0 %v2201
      %v2241 = vpop.f32.mrf.mxu0
      %v2242 = vadd.f32 0.0, %v2241
      %v2243 = vpop.f32.mrf.mxu0
      %v2244 = vadd.f32 0.0, %v2243
      %2245 = vmatmul.bf16.gmra.mxu0 %v2204
      %v2246 = vpop.f32.mrf.mxu0
      %v2247 = vadd.f32 0.0, %v2246
      %v2248 = vpop.f32.mrf.mxu0
      %v2249 = vadd.f32 0.0, %v2248
      %2250 = vmatmul.bf16.gmra.mxu0 %v2207
      %v2251 = vpop.f32.mrf.mxu0
      %v2252 = vadd.f32 0.0, %v2251
      %v2253 = vpop.f32.mrf.mxu0
      %v2254 = vadd.f32 0.0, %v2253
      %2255 = vmatmul.bf16.gmra.mxu0 %v2210
      %v2256 = vpop.f32.mrf.mxu0
      %v2257 = vadd.f32 0.0, %v2256
      %v2258 = vpop.f32.mrf.mxu0
      %v2259 = vadd.f32 0.0, %v2258
      %2260 = vdwg.mxu0
      %v2261 = vadd.f32 %v1812, %v2222
      %v2262 = vadd.f32 %v1813, %v2224
      %v2263 = vadd.f32 %v1814, %v2227
      %v2264 = vadd.f32 %v1815, %v2229
      %v2265 = vadd.f32 %v1816, %v2232
      %v2266 = vadd.f32 %v1817, %v2234
      %v2267 = vadd.f32 %v1818, %v2237
      %v2268 = vadd.f32 %v1819, %v2239
      %v2269 = vadd.f32 %v1820, %v2242
      %v2270 = vadd.f32 %v1821, %v2244
      %v2271 = vadd.f32 %v1822, %v2247
      %v2272 = vadd.f32 %v1823, %v2249
      %v2273 = vadd.f32 %v1824, %v2252
      %v2274 = vadd.f32 %v1825, %v2254
      %v2275 = vadd.f32 %v1826, %v2257
      %v2276 = vadd.f32 %v1827, %v2259
      %s2277 = scalar_lea.vmem %s7, 128
      %v2278 = vld [vmem:[%s2277] sm:$0xf]
      %v2279 = vld [vmem:[%s2277 + $0x4] sm:$0xf]
      %v2280 = vld [vmem:[%s2277 + $0x8] sm:$0xf]
      %v2281 = vld [vmem:[%s2277 + $0xc] sm:$0xf]
      %v2282 = vld [vmem:[%s2277 + $0x10] sm:$0xf]
      %v2283 = vld [vmem:[%s2277 + $0x14] sm:$0xf]
      %v2284 = vld [vmem:[%s2277 + $0x18] sm:$0xf]
      %v2285 = vld [vmem:[%s2277 + $0x1c] sm:$0xf]
      %v2302 = vunpack.c.l.b16 %v1829
      %v2303 = vunpack.c.l.b16 %v1830
      %v2304 = vunpack.c.l.b16 %v1831
      %v2305 = vunpack.c.l.b16 %v1832
      %v2306 = vunpack.c.l.b16 %v1833
      %v2307 = vunpack.c.l.b16 %v1834
      %v2308 = vunpack.c.l.b16 %v1835
      %v2309 = vunpack.c.l.b16 %v1836
      %v2310 = vunpack.c.l.b16 %v1837
      %v2311 = vunpack.c.l.b16 %v1838
      %v2312 = vunpack.c.l.b16 %v1839
      %v2313 = vunpack.c.l.b16 %v1840
      %v2314 = vunpack.c.l.b16 %v1841
      %v2315 = vunpack.c.l.b16 %v1842
      %v2316 = vunpack.c.l.b16 %v1843
      %v2317 = vunpack.c.l.b16 %v1844
      %v2318 = vpack.c.b16 %v2303, %v2302
      %v2319 = vpack.c.b16 %v2305, %v2304
      %v2320 = vpack.c.b16 %v2307, %v2306
      %v2321 = vpack.c.b16 %v2309, %v2308
      %v2322 = vpack.c.b16 %v2311, %v2310
      %v2323 = vpack.c.b16 %v2313, %v2312
      %v2324 = vpack.c.b16 %v2315, %v2314
      %v2325 = vpack.c.b16 %v2317, %v2316
      %v2334 = vunpack.c.l.b16 %v2278
      %v2335 = vunpack.c.l.b16 %v2279
      %v2336 = vunpack.c.l.b16 %v2280
      %v2337 = vunpack.c.l.b16 %v2281
      %v2338 = vunpack.c.l.b16 %v2282
      %v2339 = vunpack.c.l.b16 %v2283
      %v2340 = vunpack.c.l.b16 %v2284
      %v2341 = vunpack.c.l.b16 %v2285
      %v2342 = vpack.c.b16 %v2335, %v2334
      %v2343 = vpack.c.b16 %v2337, %v2336
      %v2344 = vpack.c.b16 %v2339, %v2338
      %v2345 = vpack.c.b16 %v2341, %v2340
      %v2351 = vsel %vm1009, %v2318, 0
      %v2354 = vsel %vm1009, %v2319, 0
      %v2357 = vsel %vm1009, %v2320, 0
      %v2360 = vsel %vm1009, %v2321, 0
      %v2363 = vsel %vm1009, %v2322, 0
      %v2366 = vsel %vm1009, %v2323, 0
      %v2369 = vsel %vm1009, %v2324, 0
      %v2372 = vsel %vm1009, %v2325, 0
      %2374 = vmatpush.bf16.msra.mxu0 0
      %2375 = vmatpush.bf16.msra.mxu0 0
      %2376 = vmatpush.bf16.msra.mxu0 0
      %2377 = vmatpush.bf16.msra.mxu0 0
      %2378 = vmatpush.bf16.msra.mxu0 %v2345
      %2379 = vmatpush.bf16.msra.mxu0 %v2344
      %2380 = vmatpush.bf16.msra.mxu0 %v2343
      %2381 = vmatpush.bf16.msra.mxu0 %v2342
      %2382 = vmatmul.bf16.gmra.mxu0 %v2351
      %v2383 = vpop.f32.mrf.mxu0
      %v2384 = vadd.f32 0.0, %v2383
      %v2385 = vpop.f32.mrf.mxu0
      %v2386 = vadd.f32 0.0, %v2385
      %2387 = vmatmul.bf16.gmra.mxu0 %v2354
      %v2388 = vpop.f32.mrf.mxu0
      %v2389 = vadd.f32 0.0, %v2388
      %v2390 = vpop.f32.mrf.mxu0
      %v2391 = vadd.f32 0.0, %v2390
      %2392 = vmatmul.bf16.gmra.mxu0 %v2357
      %v2393 = vpop.f32.mrf.mxu0
      %v2394 = vadd.f32 0.0, %v2393
      %v2395 = vpop.f32.mrf.mxu0
      %v2396 = vadd.f32 0.0, %v2395
      %2397 = vmatmul.bf16.gmra.mxu0 %v2360
      %v2398 = vpop.f32.mrf.mxu0
      %v2399 = vadd.f32 0.0, %v2398
      %v2400 = vpop.f32.mrf.mxu0
      %v2401 = vadd.f32 0.0, %v2400
      %2402 = vmatmul.bf16.gmra.mxu0 %v2363
      %v2403 = vpop.f32.mrf.mxu0
      %v2404 = vadd.f32 0.0, %v2403
      %v2405 = vpop.f32.mrf.mxu0
      %v2406 = vadd.f32 0.0, %v2405
      %2407 = vmatmul.bf16.gmra.mxu0 %v2366
      %v2408 = vpop.f32.mrf.mxu0
      %v2409 = vadd.f32 0.0, %v2408
      %v2410 = vpop.f32.mrf.mxu0
      %v2411 = vadd.f32 0.0, %v2410
      %2412 = vmatmul.bf16.gmra.mxu0 %v2369
      %v2413 = vpop.f32.mrf.mxu0
      %v2414 = vadd.f32 0.0, %v2413
      %v2415 = vpop.f32.mrf.mxu0
      %v2416 = vadd.f32 0.0, %v2415
      %2417 = vmatmul.bf16.gmra.mxu0 %v2372
      %v2418 = vpop.f32.mrf.mxu0
      %v2419 = vadd.f32 0.0, %v2418
      %v2420 = vpop.f32.mrf.mxu0
      %v2421 = vadd.f32 0.0, %v2420
      %2422 = vdwg.mxu0
      %v2423 = vadd.f32 %v2261, %v2384
      %v2424 = vadd.f32 %v2262, %v2386
      %v2425 = vadd.f32 %v2263, %v2389
      %v2426 = vadd.f32 %v2264, %v2391
      %v2427 = vadd.f32 %v2265, %v2394
      %v2428 = vadd.f32 %v2266, %v2396
      %v2429 = vadd.f32 %v2267, %v2399
      %v2430 = vadd.f32 %v2268, %v2401
      %v2431 = vadd.f32 %v2269, %v2404
      %v2432 = vadd.f32 %v2270, %v2406
      %v2433 = vadd.f32 %v2271, %v2409
      %v2434 = vadd.f32 %v2272, %v2411
      %v2435 = vadd.f32 %v2273, %v2414
      %v2436 = vadd.f32 %v2274, %v2416
      %v2437 = vadd.f32 %v2275, %v2419
      %v2438 = vadd.f32 %v2276, %v2421
      %v2439 = vld [vmem:[#allocation2 + $0x10] sm:$0xf]
      %v2440 = vld [vmem:[#allocation2 + $0x14] sm:$0xf]
      %v2441 = vld [vmem:[#allocation2 + $0x18] sm:$0xf]
      %v2442 = vld [vmem:[#allocation2 + $0x1c] sm:$0xf]
      %v2443 = vld [vmem:[#allocation2 + $0x20] sm:$0xf]
      %v2444 = vld [vmem:[#allocation2 + $0x24] sm:$0xf]
      %v2445 = vld [vmem:[#allocation2 + $0x28] sm:$0xf]
      %v2446 = vld [vmem:[#allocation2 + $0x2c] sm:$0xf]
      %v2447 = vld [vmem:[#allocation2 + $0x30] sm:$0xf]
      %v2448 = vld [vmem:[#allocation2 + $0x34] sm:$0xf]
      %v2449 = vld [vmem:[#allocation2 + $0x38] sm:$0xf]
      %v2450 = vld [vmem:[#allocation2 + $0x3c] sm:$0xf]
      %v2451 = vld [vmem:[#allocation2 + $0x40] sm:$0xf]
      %v2452 = vld [vmem:[#allocation2 + $0x44] sm:$0xf]
      %v2453 = vld [vmem:[#allocation2 + $0x48] sm:$0xf]
      %v2454 = vld [vmem:[#allocation2 + $0x4c] sm:$0xf]
      %v2455 = vld [vmem:[#allocation2 + $0x50] sm:$0x1]
      %v2456 = vld [vmem:[%s5 + $0x10] sm:$0xf]
      %v2457 = vld [vmem:[%s5 + $0x14] sm:$0xf]
      %v2458 = vld [vmem:[%s5 + $0x18] sm:$0xf]
      %v2459 = vld [vmem:[%s5 + $0x1c] sm:$0xf]
      %v2460 = vld [vmem:[%s5 + $0x20] sm:$0xf]
      %v2461 = vld [vmem:[%s5 + $0x24] sm:$0xf]
      %v2462 = vld [vmem:[%s5 + $0x28] sm:$0xf]
      %v2463 = vld [vmem:[%s5 + $0x2c] sm:$0xf]
      %v2464 = vld [vmem:[%s5 + $0x30] sm:$0xf]
      %v2465 = vld [vmem:[%s5 + $0x34] sm:$0xf]
      %v2466 = vld [vmem:[%s5 + $0x38] sm:$0xf]
      %v2467 = vld [vmem:[%s5 + $0x3c] sm:$0xf]
      %v2468 = vld [vmem:[%s5 + $0x40] sm:$0xf]
      %v2469 = vld [vmem:[%s5 + $0x44] sm:$0xf]
      %v2470 = vld [vmem:[%s5 + $0x48] sm:$0xf]
      %v2471 = vld [vmem:[%s5 + $0x4c] sm:$0xf]
      %v2472 = vld [vmem:[%s5 + $0x50] sm:$0x1]
      %2474 = vset.pattern.permute.xlu0 0
      %2475 = vperm.xlu0 %2474, %v2456
      %v2476 = vpop.permute.xlu0 %2475
      %v2479 = vunpack.c.l.s4 839922192
      %v2480 = vunpack.c.0.s8 %v2479
      %v2481 = vperm.slane %v2476, %v2480
      %2483 = vset.pattern.permute.xlu0 0
      %2484 = vperm.xlu0 %2483, %v2457
      %v2485 = vpop.permute.xlu0 %2484
      %v2488 = vunpack.c.l.s4 839922192
      %v2489 = vunpack.c.0.s8 %v2488
      %v2490 = vperm.slane %v2485, %v2489
      %2492 = vset.pattern.permute.xlu0 0
      %2493 = vperm.xlu0 %2492, %v2458
      %v2494 = vpop.permute.xlu0 %2493
      %v2497 = vunpack.c.l.s4 839922192
      %v2498 = vunpack.c.0.s8 %v2497
      %v2499 = vperm.slane %v2494, %v2498
      %2501 = vset.pattern.permute.xlu0 0
      %2502 = vperm.xlu0 %2501, %v2459
      %v2503 = vpop.permute.xlu0 %2502
      %v2506 = vunpack.c.l.s4 839922192
      %v2507 = vunpack.c.0.s8 %v2506
      %v2508 = vperm.slane %v2503, %v2507
      %2510 = vset.pattern.permute.xlu0 0
      %2511 = vperm.xlu0 %2510, %v2460
      %v2512 = vpop.permute.xlu0 %2511
      %v2515 = vunpack.c.l.s4 839922192
      %v2516 = vunpack.c.0.s8 %v2515
      %v2517 = vperm.slane %v2512, %v2516
      %2519 = vset.pattern.permute.xlu0 0
      %2520 = vperm.xlu0 %2519, %v2461
      %v2521 = vpop.permute.xlu0 %2520
      %v2524 = vunpack.c.l.s4 839922192
      %v2525 = vunpack.c.0.s8 %v2524
      %v2526 = vperm.slane %v2521, %v2525
      %2528 = vset.pattern.permute.xlu0 0
      %2529 = vperm.xlu0 %2528, %v2462
      %v2530 = vpop.permute.xlu0 %2529
      %v2533 = vunpack.c.l.s4 839922192
      %v2534 = vunpack.c.0.s8 %v2533
      %v2535 = vperm.slane %v2530, %v2534
      %2537 = vset.pattern.permute.xlu0 0
      %2538 = vperm.xlu0 %2537, %v2463
      %v2539 = vpop.permute.xlu0 %2538
      %v2542 = vunpack.c.l.s4 839922192
      %v2543 = vunpack.c.0.s8 %v2542
      %v2544 = vperm.slane %v2539, %v2543
      %2546 = vset.pattern.permute.xlu0 0
      %2547 = vperm.xlu0 %2546, %v2464
      %v2548 = vpop.permute.xlu0 %2547
      %v2551 = vunpack.c.l.s4 839922192
      %v2552 = vunpack.c.0.s8 %v2551
      %v2553 = vperm.slane %v2548, %v2552
      %2555 = vset.pattern.permute.xlu0 0
      %2556 = vperm.xlu0 %2555, %v2465
      %v2557 = vpop.permute.xlu0 %2556
      %v2560 = vunpack.c.l.s4 839922192
      %v2561 = vunpack.c.0.s8 %v2560
      %v2562 = vperm.slane %v2557, %v2561
      %2564 = vset.pattern.permute.xlu0 0
      %2565 = vperm.xlu0 %2564, %v2466
      %v2566 = vpop.permute.xlu0 %2565
      %v2569 = vunpack.c.l.s4 839922192
      %v2570 = vunpack.c.0.s8 %v2569
      %v2571 = vperm.slane %v2566, %v2570
      %2573 = vset.pattern.permute.xlu0 0
      %2574 = vperm.xlu0 %2573, %v2467
      %v2575 = vpop.permute.xlu0 %2574
      %v2578 = vunpack.c.l.s4 839922192
      %v2579 = vunpack.c.0.s8 %v2578
      %v2580 = vperm.slane %v2575, %v2579
      %2582 = vset.pattern.permute.xlu0 0
      %2583 = vperm.xlu0 %2582, %v2468
      %v2584 = vpop.permute.xlu0 %2583
      %v2587 = vunpack.c.l.s4 839922192
      %v2588 = vunpack.c.0.s8 %v2587
      %v2589 = vperm.slane %v2584, %v2588
      %2591 = vset.pattern.permute.xlu0 0
      %2592 = vperm.xlu0 %2591, %v2469
      %v2593 = vpop.permute.xlu0 %2592
      %v2596 = vunpack.c.l.s4 839922192
      %v2597 = vunpack.c.0.s8 %v2596
      %v2598 = vperm.slane %v2593, %v2597
      %2600 = vset.pattern.permute.xlu0 0
      %2601 = vperm.xlu0 %2600, %v2470
      %v2602 = vpop.permute.xlu0 %2601
      %v2605 = vunpack.c.l.s4 839922192
      %v2606 = vunpack.c.0.s8 %v2605
      %v2607 = vperm.slane %v2602, %v2606
      %2609 = vset.pattern.permute.xlu0 0
      %2610 = vperm.xlu0 %2609, %v2471
      %v2611 = vpop.permute.xlu0 %2610
      %v2614 = vunpack.c.l.s4 839922192
      %v2615 = vunpack.c.0.s8 %v2614
      %v2616 = vperm.slane %v2611, %v2615
      %2618 = vset.pattern.permute.xlu0 0
      %2619 = vperm.xlu0 %2618, %v2472
      %v2620 = vpop.permute.xlu0 %2619
      %v2623 = vunpack.c.l.s4 839922192
      %v2624 = vunpack.c.0.s8 %v2623
      %v2625 = vperm.slane %v2620, %v2624
      %v2626 = vunpack.c.l.bf16 %v2439
      %v2627 = vunpack.c.l.bf16 %v2440
      %v2628 = vunpack.c.l.bf16 %v2441
      %v2629 = vunpack.c.l.bf16 %v2442
      %v2630 = vunpack.c.l.bf16 %v2443
      %v2631 = vunpack.c.l.bf16 %v2444
      %v2632 = vunpack.c.l.bf16 %v2445
      %v2633 = vunpack.c.l.bf16 %v2446
      %v2634 = vunpack.c.l.bf16 %v2447
      %v2635 = vunpack.c.l.bf16 %v2448
      %v2636 = vunpack.c.l.bf16 %v2449
      %v2637 = vunpack.c.l.bf16 %v2450
      %v2638 = vunpack.c.l.bf16 %v2451
      %v2639 = vunpack.c.l.bf16 %v2452
      %v2640 = vunpack.c.l.bf16 %v2453
      %v2641 = vunpack.c.l.bf16 %v2454
      %v2642 = vunpack.c.l.bf16 %v2455
      %v2643 = vunpack.c.l.bf16 %v2481
      %v2644 = vunpack.c.l.bf16 %v2490
      %v2645 = vunpack.c.l.bf16 %v2499
      %v2646 = vunpack.c.l.bf16 %v2508
      %v2647 = vunpack.c.l.bf16 %v2517
      %v2648 = vunpack.c.l.bf16 %v2526
      %v2649 = vunpack.c.l.bf16 %v2535
      %v2650 = vunpack.c.l.bf16 %v2544
      %v2651 = vunpack.c.l.bf16 %v2553
      %v2652 = vunpack.c.l.bf16 %v2562
      %v2653 = vunpack.c.l.bf16 %v2571
      %v2654 = vunpack.c.l.bf16 %v2580
      %v2655 = vunpack.c.l.bf16 %v2589
      %v2656 = vunpack.c.l.bf16 %v2598
      %v2657 = vunpack.c.l.bf16 %v2607
      %v2658 = vunpack.c.l.bf16 %v2616
      %v2659 = vunpack.c.l.bf16 %v2625
      %v2660 = vmul.f32 %v2626, %v2643
      %v2661 = vmul.f32 %v2627, %v2644
      %v2662 = vmul.f32 %v2628, %v2645
      %v2663 = vmul.f32 %v2629, %v2646
      %v2664 = vmul.f32 %v2630, %v2647
      %v2665 = vmul.f32 %v2631, %v2648
      %v2666 = vmul.f32 %v2632, %v2649
      %v2667 = vmul.f32 %v2633, %v2650
      %v2668 = vmul.f32 %v2634, %v2651
      %v2669 = vmul.f32 %v2635, %v2652
      %v2670 = vmul.f32 %v2636, %v2653
      %v2671 = vmul.f32 %v2637, %v2654
      %v2672 = vmul.f32 %v2638, %v2655
      %v2673 = vmul.f32 %v2639, %v2656
      %v2674 = vmul.f32 %v2640, %v2657
      %v2675 = vmul.f32 %v2641, %v2658
      %v2676 = vmul.f32 %v2642, %v2659
      %v2677 = vpack.c.bf16 %v2661, %v2660
      %v2678 = vpack.c.bf16 %v2663, %v2662
      %v2679 = vpack.c.bf16 %v2665, %v2664
      %v2680 = vpack.c.bf16 %v2667, %v2666
      %v2681 = vpack.c.bf16 %v2669, %v2668
      %v2682 = vpack.c.bf16 %v2671, %v2670
      %v2683 = vpack.c.bf16 %v2673, %v2672
      %v2684 = vpack.c.bf16 %v2675, %v2674
      %v2685 = vpack.c.bf16 %v2676, %v2676
      %s2686 = scalar_lea.vmem %s7, 160
      %v2687 = vld [vmem:[%s2686] sm:$0xf]
      %v2688 = vld [vmem:[%s2686 + $0x4] sm:$0xf]
      %v2689 = vld [vmem:[%s2686 + $0x8] sm:$0xf]
      %v2690 = vld [vmem:[%s2686 + $0xc] sm:$0xf]
      %v2691 = vld [vmem:[%s2686 + $0x10] sm:$0xf]
      %v2692 = vld [vmem:[%s2686 + $0x14] sm:$0xf]
      %v2693 = vld [vmem:[%s2686 + $0x18] sm:$0xf]
      %v2694 = vld [vmem:[%s2686 + $0x1c] sm:$0xf]
      %v2696 = vshrl.u32 %v2677, 16
      %v2698 = vshll.u32 %v2677, 16
      %v2700 = vrot.slane %v2698, 1
      %v2701 = vor.u32 %v2696, %v2700
      %v2703 = vshll.u32 %v2678, 16
      %v2705 = vrot.slane %v2703, 1
      %v2706 = vsel %vm1646, %v2701, %v2705
      %v2707 = vshrl.u32 %v2678, 16
      %v2709 = vor.u32 %v2707, %v2705
      %v2711 = vshll.u32 %v2679, 16
      %v2713 = vrot.slane %v2711, 1
      %v2714 = vsel %vm1646, %v2709, %v2713
      %v2715 = vshrl.u32 %v2679, 16
      %v2717 = vor.u32 %v2715, %v2713
      %v2719 = vshll.u32 %v2680, 16
      %v2721 = vrot.slane %v2719, 1
      %v2722 = vsel %vm1646, %v2717, %v2721
      %v2723 = vshrl.u32 %v2680, 16
      %v2725 = vor.u32 %v2723, %v2721
      %v2727 = vshll.u32 %v2681, 16
      %v2729 = vrot.slane %v2727, 1
      %v2730 = vsel %vm1646, %v2725, %v2729
      %v2731 = vshrl.u32 %v2681, 16
      %v2733 = vor.u32 %v2731, %v2729
      %v2735 = vshll.u32 %v2682, 16
      %v2737 = vrot.slane %v2735, 1
      %v2738 = vsel %vm1646, %v2733, %v2737
      %v2739 = vshrl.u32 %v2682, 16
      %v2741 = vor.u32 %v2739, %v2737
      %v2743 = vshll.u32 %v2683, 16
      %v2745 = vrot.slane %v2743, 1
      %v2746 = vsel %vm1646, %v2741, %v2745
      %v2747 = vshrl.u32 %v2683, 16
      %v2749 = vor.u32 %v2747, %v2745
      %v2751 = vshll.u32 %v2684, 16
      %v2753 = vrot.slane %v2751, 1
      %v2754 = vsel %vm1646, %v2749, %v2753
      %v2755 = vshrl.u32 %v2684, 16
      %v2757 = vor.u32 %v2755, %v2753
      %v2759 = vshll.u32 %v2685, 16
      %v2761 = vrot.slane %v2759, 1
      %v2762 = vsel %vm1646, %v2757, %v2761
      %v2771 = vunpack.c.l.b16 %v2687
      %v2772 = vunpack.c.l.b16 %v2688
      %v2773 = vunpack.c.l.b16 %v2689
      %v2774 = vunpack.c.l.b16 %v2690
      %v2775 = vunpack.c.l.b16 %v2691
      %v2776 = vunpack.c.l.b16 %v2692
      %v2777 = vunpack.c.l.b16 %v2693
      %v2778 = vunpack.c.l.b16 %v2694
      %v2779 = vpack.c.b16 %v2772, %v2771
      %v2780 = vpack.c.b16 %v2774, %v2773
      %v2781 = vpack.c.b16 %v2776, %v2775
      %v2782 = vpack.c.b16 %v2778, %v2777
      %v2788 = vsel %vm1009, %v2706, 0
      %v2791 = vsel %vm1009, %v2714, 0
      %v2794 = vsel %vm1009, %v2722, 0
      %v2797 = vsel %vm1009, %v2730, 0
      %v2800 = vsel %vm1009, %v2738, 0
      %v2803 = vsel %vm1009, %v2746, 0
      %v2806 = vsel %vm1009, %v2754, 0
      %v2809 = vsel %vm1009, %v2762, 0
      %2811 = vmatpush.bf16.msra.mxu0 0
      %2812 = vmatpush.bf16.msra.mxu0 0
      %2813 = vmatpush.bf16.msra.mxu0 0
      %2814 = vmatpush.bf16.msra.mxu0 0
      %2815 = vmatpush.bf16.msra.mxu0 %v2782
      %2816 = vmatpush.bf16.msra.mxu0 %v2781
      %2817 = vmatpush.bf16.msra.mxu0 %v2780
      %2818 = vmatpush.bf16.msra.mxu0 %v2779
      %2819 = vmatmul.bf16.gmra.mxu0 %v2788
      %v2820 = vpop.f32.mrf.mxu0
      %v2821 = vadd.f32 0.0, %v2820
      %v2822 = vpop.f32.mrf.mxu0
      %v2823 = vadd.f32 0.0, %v2822
      %2824 = vmatmul.bf16.gmra.mxu0 %v2791
      %v2825 = vpop.f32.mrf.mxu0
      %v2826 = vadd.f32 0.0, %v2825
      %v2827 = vpop.f32.mrf.mxu0
      %v2828 = vadd.f32 0.0, %v2827
      %2829 = vmatmul.bf16.gmra.mxu0 %v2794
      %v2830 = vpop.f32.mrf.mxu0
      %v2831 = vadd.f32 0.0, %v2830
      %v2832 = vpop.f32.mrf.mxu0
      %v2833 = vadd.f32 0.0, %v2832
      %2834 = vmatmul.bf16.gmra.mxu0 %v2797
      %v2835 = vpop.f32.mrf.mxu0
      %v2836 = vadd.f32 0.0, %v2835
      %v2837 = vpop.f32.mrf.mxu0
      %v2838 = vadd.f32 0.0, %v2837
      %2839 = vmatmul.bf16.gmra.mxu0 %v2800
      %v2840 = vpop.f32.mrf.mxu0
      %v2841 = vadd.f32 0.0, %v2840
      %v2842 = vpop.f32.mrf.mxu0
      %v2843 = vadd.f32 0.0, %v2842
      %2844 = vmatmul.bf16.gmra.mxu0 %v2803
      %v2845 = vpop.f32.mrf.mxu0
      %v2846 = vadd.f32 0.0, %v2845
      %v2847 = vpop.f32.mrf.mxu0
      %v2848 = vadd.f32 0.0, %v2847
      %2849 = vmatmul.bf16.gmra.mxu0 %v2806
      %v2850 = vpop.f32.mrf.mxu0
      %v2851 = vadd.f32 0.0, %v2850
      %v2852 = vpop.f32.mrf.mxu0
      %v2853 = vadd.f32 0.0, %v2852
      %2854 = vmatmul.bf16.gmra.mxu0 %v2809
      %v2855 = vpop.f32.mrf.mxu0
      %v2856 = vadd.f32 0.0, %v2855
      %v2857 = vpop.f32.mrf.mxu0
      %v2858 = vadd.f32 0.0, %v2857
      %2859 = vdwg.mxu0
      %v2860 = vadd.f32 %v2423, %v2821
      %v2861 = vadd.f32 %v2424, %v2823
      %v2862 = vadd.f32 %v2425, %v2826
      %v2863 = vadd.f32 %v2426, %v2828
      %v2864 = vadd.f32 %v2427, %v2831
      %v2865 = vadd.f32 %v2428, %v2833
      %v2866 = vadd.f32 %v2429, %v2836
      %v2867 = vadd.f32 %v2430, %v2838
      %v2868 = vadd.f32 %v2431, %v2841
      %v2869 = vadd.f32 %v2432, %v2843
      %v2870 = vadd.f32 %v2433, %v2846
      %v2871 = vadd.f32 %v2434, %v2848
      %v2872 = vadd.f32 %v2435, %v2851
      %v2873 = vadd.f32 %v2436, %v2853
      %v2874 = vadd.f32 %v2437, %v2856
      %v2875 = vadd.f32 %v2438, %v2858
      %v2876 = vld [vmem:[#allocation2 + $0x14] sm:$0x8]
      %v2877 = vld [vmem:[#allocation2 + $0x18] sm:$0xf]
      %v2878 = vld [vmem:[#allocation2 + $0x1c] sm:$0xf]
      %v2879 = vld [vmem:[#allocation2 + $0x20] sm:$0xf]
      %v2880 = vld [vmem:[#allocation2 + $0x24] sm:$0xf]
      %v2881 = vld [vmem:[#allocation2 + $0x28] sm:$0xf]
      %v2882 = vld [vmem:[#allocation2 + $0x2c] sm:$0xf]
      %v2883 = vld [vmem:[#allocation2 + $0x30] sm:$0xf]
      %v2884 = vld [vmem:[#allocation2 + $0x34] sm:$0xf]
      %v2885 = vld [vmem:[#allocation2 + $0x38] sm:$0xf]
      %v2886 = vld [vmem:[#allocation2 + $0x3c] sm:$0xf]
      %v2887 = vld [vmem:[#allocation2 + $0x40] sm:$0xf]
      %v2888 = vld [vmem:[#allocation2 + $0x44] sm:$0xf]
      %v2889 = vld [vmem:[#allocation2 + $0x48] sm:$0xf]
      %v2890 = vld [vmem:[#allocation2 + $0x4c] sm:$0xf]
      %v2891 = vld [vmem:[#allocation2 + $0x50] sm:$0xf]
      %v2892 = vld [vmem:[#allocation2 + $0x54] sm:$0xf]
      %v2893 = vld [vmem:[%s4 + $0x14] sm:$0x8]
      %v2894 = vld [vmem:[%s4 + $0x18] sm:$0xf]
      %v2895 = vld [vmem:[%s4 + $0x1c] sm:$0xf]
      %v2896 = vld [vmem:[%s4 + $0x20] sm:$0xf]
      %v2897 = vld [vmem:[%s4 + $0x24] sm:$0xf]
      %v2898 = vld [vmem:[%s4 + $0x28] sm:$0xf]
      %v2899 = vld [vmem:[%s4 + $0x2c] sm:$0xf]
      %v2900 = vld [vmem:[%s4 + $0x30] sm:$0xf]
      %v2901 = vld [vmem:[%s4 + $0x34] sm:$0xf]
      %v2902 = vld [vmem:[%s4 + $0x38] sm:$0xf]
      %v2903 = vld [vmem:[%s4 + $0x3c] sm:$0xf]
      %v2904 = vld [vmem:[%s4 + $0x40] sm:$0xf]
      %v2905 = vld [vmem:[%s4 + $0x44] sm:$0xf]
      %v2906 = vld [vmem:[%s4 + $0x48] sm:$0xf]
      %v2907 = vld [vmem:[%s4 + $0x4c] sm:$0xf]
      %v2908 = vld [vmem:[%s4 + $0x50] sm:$0xf]
      %v2909 = vld [vmem:[%s4 + $0x54] sm:$0xf]
      %2911 = vset.pattern.permute.xlu0 0
      %2912 = vperm.xlu0 %2911, %v2893
      %v2913 = vpop.permute.xlu0 %2912
      %v2916 = vunpack.c.l.s4 839922192
      %v2917 = vunpack.c.0.s8 %v2916
      %v2918 = vperm.slane %v2913, %v2917
      %2920 = vset.pattern.permute.xlu0 0
      %2921 = vperm.xlu0 %2920, %v2894
      %v2922 = vpop.permute.xlu0 %2921
      %v2925 = vunpack.c.l.s4 839922192
      %v2926 = vunpack.c.0.s8 %v2925
      %v2927 = vperm.slane %v2922, %v2926
      %2929 = vset.pattern.permute.xlu0 0
      %2930 = vperm.xlu0 %2929, %v2895
      %v2931 = vpop.permute.xlu0 %2930
      %v2934 = vunpack.c.l.s4 839922192
      %v2935 = vunpack.c.0.s8 %v2934
      %v2936 = vperm.slane %v2931, %v2935
      %2938 = vset.pattern.permute.xlu0 0
      %2939 = vperm.xlu0 %2938, %v2896
      %v2940 = vpop.permute.xlu0 %2939
      %v2943 = vunpack.c.l.s4 839922192
      %v2944 = vunpack.c.0.s8 %v2943
      %v2945 = vperm.slane %v2940, %v2944
      %2947 = vset.pattern.permute.xlu0 0
      %2948 = vperm.xlu0 %2947, %v2897
      %v2949 = vpop.permute.xlu0 %2948
      %v2952 = vunpack.c.l.s4 839922192
      %v2953 = vunpack.c.0.s8 %v2952
      %v2954 = vperm.slane %v2949, %v2953
      %2956 = vset.pattern.permute.xlu0 0
      %2957 = vperm.xlu0 %2956, %v2898
      %v2958 = vpop.permute.xlu0 %2957
      %v2961 = vunpack.c.l.s4 839922192
      %v2962 = vunpack.c.0.s8 %v2961
      %v2963 = vperm.slane %v2958, %v2962
      %2965 = vset.pattern.permute.xlu0 0
      %2966 = vperm.xlu0 %2965, %v2899
      %v2967 = vpop.permute.xlu0 %2966
      %v2970 = vunpack.c.l.s4 839922192
      %v2971 = vunpack.c.0.s8 %v2970
      %v2972 = vperm.slane %v2967, %v2971
      %2974 = vset.pattern.permute.xlu0 0
      %2975 = vperm.xlu0 %2974, %v2900
      %v2976 = vpop.permute.xlu0 %2975
      %v2979 = vunpack.c.l.s4 839922192
      %v2980 = vunpack.c.0.s8 %v2979
      %v2981 = vperm.slane %v2976, %v2980
      %2983 = vset.pattern.permute.xlu0 0
      %2984 = vperm.xlu0 %2983, %v2901
      %v2985 = vpop.permute.xlu0 %2984
      %v2988 = vunpack.c.l.s4 839922192
      %v2989 = vunpack.c.0.s8 %v2988
      %v2990 = vperm.slane %v2985, %v2989
      %2992 = vset.pattern.permute.xlu0 0
      %2993 = vperm.xlu0 %2992, %v2902
      %v2994 = vpop.permute.xlu0 %2993
      %v2997 = vunpack.c.l.s4 839922192
      %v2998 = vunpack.c.0.s8 %v2997
      %v2999 = vperm.slane %v2994, %v2998
      %3001 = vset.pattern.permute.xlu0 0
      %3002 = vperm.xlu0 %3001, %v2903
      %v3003 = vpop.permute.xlu0 %3002
      %v3006 = vunpack.c.l.s4 839922192
      %v3007 = vunpack.c.0.s8 %v3006
      %v3008 = vperm.slane %v3003, %v3007
      %3010 = vset.pattern.permute.xlu0 0
      %3011 = vperm.xlu0 %3010, %v2904
      %v3012 = vpop.permute.xlu0 %3011
      %v3015 = vunpack.c.l.s4 839922192
      %v3016 = vunpack.c.0.s8 %v3015
      %v3017 = vperm.slane %v3012, %v3016
      %3019 = vset.pattern.permute.xlu0 0
      %3020 = vperm.xlu0 %3019, %v2905
      %v3021 = vpop.permute.xlu0 %3020
      %v3024 = vunpack.c.l.s4 839922192
      %v3025 = vunpack.c.0.s8 %v3024
      %v3026 = vperm.slane %v3021, %v3025
      %3028 = vset.pattern.permute.xlu0 0
      %3029 = vperm.xlu0 %3028, %v2906
      %v3030 = vpop.permute.xlu0 %3029
      %v3033 = vunpack.c.l.s4 839922192
      %v3034 = vunpack.c.0.s8 %v3033
      %v3035 = vperm.slane %v3030, %v3034
      %3037 = vset.pattern.permute.xlu0 0
      %3038 = vperm.xlu0 %3037, %v2907
      %v3039 = vpop.permute.xlu0 %3038
      %v3042 = vunpack.c.l.s4 839922192
      %v3043 = vunpack.c.0.s8 %v3042
      %v3044 = vperm.slane %v3039, %v3043
      %3046 = vset.pattern.permute.xlu0 0
      %3047 = vperm.xlu0 %3046, %v2908
      %v3048 = vpop.permute.xlu0 %3047
      %v3051 = vunpack.c.l.s4 839922192
      %v3052 = vunpack.c.0.s8 %v3051
      %v3053 = vperm.slane %v3048, %v3052
      %3055 = vset.pattern.permute.xlu0 0
      %3056 = vperm.xlu0 %3055, %v2909
      %v3057 = vpop.permute.xlu0 %3056
      %v3060 = vunpack.c.l.s4 839922192
      %v3061 = vunpack.c.0.s8 %v3060
      %v3062 = vperm.slane %v3057, %v3061
      %v3063 = vunpack.c.l.bf16 %v2876
      %v3064 = vunpack.c.l.bf16 %v2877
      %v3065 = vunpack.c.l.bf16 %v2878
      %v3066 = vunpack.c.l.bf16 %v2879
      %v3067 = vunpack.c.l.bf16 %v2880
      %v3068 = vunpack.c.l.bf16 %v2881
      %v3069 = vunpack.c.l.bf16 %v2882
      %v3070 = vunpack.c.l.bf16 %v2883
      %v3071 = vunpack.c.l.bf16 %v2884
      %v3072 = vunpack.c.l.bf16 %v2885
      %v3073 = vunpack.c.l.bf16 %v2886
      %v3074 = vunpack.c.l.bf16 %v2887
      %v3075 = vunpack.c.l.bf16 %v2888
      %v3076 = vunpack.c.l.bf16 %v2889
      %v3077 = vunpack.c.l.bf16 %v2890
      %v3078 = vunpack.c.l.bf16 %v2891
      %v3079 = vunpack.c.l.bf16 %v2892
      %v3080 = vunpack.c.l.bf16 %v2918
      %v3081 = vunpack.c.l.bf16 %v2927
      %v3082 = vunpack.c.l.bf16 %v2936
      %v3083 = vunpack.c.l.bf16 %v2945
      %v3084 = vunpack.c.l.bf16 %v2954
      %v3085 = vunpack.c.l.bf16 %v2963
      %v3086 = vunpack.c.l.bf16 %v2972
      %v3087 = vunpack.c.l.bf16 %v2981
      %v3088 = vunpack.c.l.bf16 %v2990
      %v3089 = vunpack.c.l.bf16 %v2999
      %v3090 = vunpack.c.l.bf16 %v3008
      %v3091 = vunpack.c.l.bf16 %v3017
      %v3092 = vunpack.c.l.bf16 %v3026
      %v3093 = vunpack.c.l.bf16 %v3035
      %v3094 = vunpack.c.l.bf16 %v3044
      %v3095 = vunpack.c.l.bf16 %v3053
      %v3096 = vunpack.c.l.bf16 %v3062
      %v3097 = vmul.f32 %v3063, %v3080
      %v3098 = vmul.f32 %v3064, %v3081
      %v3099 = vmul.f32 %v3065, %v3082
      %v3100 = vmul.f32 %v3066, %v3083
      %v3101 = vmul.f32 %v3067, %v3084
      %v3102 = vmul.f32 %v3068, %v3085
      %v3103 = vmul.f32 %v3069, %v3086
      %v3104 = vmul.f32 %v3070, %v3087
      %v3105 = vmul.f32 %v3071, %v3088
      %v3106 = vmul.f32 %v3072, %v3089
      %v3107 = vmul.f32 %v3073, %v3090
      %v3108 = vmul.f32 %v3074, %v3091
      %v3109 = vmul.f32 %v3075, %v3092
      %v3110 = vmul.f32 %v3076, %v3093
      %v3111 = vmul.f32 %v3077, %v3094
      %v3112 = vmul.f32 %v3078, %v3095
      %v3113 = vmul.f32 %v3079, %v3096
      %v3114 = vpack.c.bf16 %v3098, %v3097
      %v3115 = vpack.c.bf16 %v3100, %v3099
      %v3116 = vpack.c.bf16 %v3102, %v3101
      %v3117 = vpack.c.bf16 %v3104, %v3103
      %v3118 = vpack.c.bf16 %v3106, %v3105
      %v3119 = vpack.c.bf16 %v3108, %v3107
      %v3120 = vpack.c.bf16 %v3110, %v3109
      %v3121 = vpack.c.bf16 %v3112, %v3111
      %v3122 = vpack.c.bf16 %v3113, %v3113
      %s3123 = scalar_lea.vmem %s7, 192
      %v3124 = vld [vmem:[%s3123] sm:$0xf]
      %v3125 = vld [vmem:[%s3123 + $0x4] sm:$0xf]
      %v3126 = vld [vmem:[%s3123 + $0x8] sm:$0xf]
      %v3127 = vld [vmem:[%s3123 + $0xc] sm:$0xf]
      %v3128 = vld [vmem:[%s3123 + $0x10] sm:$0xf]
      %v3129 = vld [vmem:[%s3123 + $0x14] sm:$0xf]
      %v3130 = vld [vmem:[%s3123 + $0x18] sm:$0xf]
      %v3131 = vld [vmem:[%s3123 + $0x1c] sm:$0xf]
      %v3133 = vshrl.u32 %v3114, 16
      %v3135 = vrot.slane %v3133, 3
      %v3136 = vshll.u32 %v3114, 16
      %v3138 = vrot.slane %v3136, 4
      %v3139 = vor.u32 %v3135, %v3138
      %v3141 = vshrl.u32 %v3115, 16
      %v3143 = vrot.slane %v3141, 3
      %v3144 = vshll.u32 %v3115, 16
      %v3146 = vrot.slane %v3144, 4
      %v3147 = vor.u32 %v3143, %v3146
      %v3148 = vsel %vm904, %v3139, %v3147
      %v3150 = vshrl.u32 %v3116, 16
      %v3152 = vrot.slane %v3150, 3
      %v3153 = vshll.u32 %v3116, 16
      %v3155 = vrot.slane %v3153, 4
      %v3156 = vor.u32 %v3152, %v3155
      %v3157 = vsel %vm904, %v3147, %v3156
      %v3159 = vshrl.u32 %v3117, 16
      %v3161 = vrot.slane %v3159, 3
      %v3162 = vshll.u32 %v3117, 16
      %v3164 = vrot.slane %v3162, 4
      %v3165 = vor.u32 %v3161, %v3164
      %v3166 = vsel %vm904, %v3156, %v3165
      %v3168 = vshrl.u32 %v3118, 16
      %v3170 = vrot.slane %v3168, 3
      %v3171 = vshll.u32 %v3118, 16
      %v3173 = vrot.slane %v3171, 4
      %v3174 = vor.u32 %v3170, %v3173
      %v3175 = vsel %vm904, %v3165, %v3174
      %v3177 = vshrl.u32 %v3119, 16
      %v3179 = vrot.slane %v3177, 3
      %v3180 = vshll.u32 %v3119, 16
      %v3182 = vrot.slane %v3180, 4
      %v3183 = vor.u32 %v3179, %v3182
      %v3184 = vsel %vm904, %v3174, %v3183
      %v3186 = vshrl.u32 %v3120, 16
      %v3188 = vrot.slane %v3186, 3
      %v3189 = vshll.u32 %v3120, 16
      %v3191 = vrot.slane %v3189, 4
      %v3192 = vor.u32 %v3188, %v3191
      %v3193 = vsel %vm904, %v3183, %v3192
      %v3195 = vshrl.u32 %v3121, 16
      %v3197 = vrot.slane %v3195, 3
      %v3198 = vshll.u32 %v3121, 16
      %v3200 = vrot.slane %v3198, 4
      %v3201 = vor.u32 %v3197, %v3200
      %v3202 = vsel %vm904, %v3192, %v3201
      %v3204 = vshrl.u32 %v3122, 16
      %v3206 = vrot.slane %v3204, 3
      %v3207 = vshll.u32 %v3122, 16
      %v3209 = vrot.slane %v3207, 4
      %v3210 = vor.u32 %v3206, %v3209
      %v3211 = vsel %vm904, %v3201, %v3210
      %v3220 = vunpack.c.l.b16 %v3124
      %v3221 = vunpack.c.l.b16 %v3125
      %v3222 = vunpack.c.l.b16 %v3126
      %v3223 = vunpack.c.l.b16 %v3127
      %v3224 = vunpack.c.l.b16 %v3128
      %v3225 = vunpack.c.l.b16 %v3129
      %v3226 = vunpack.c.l.b16 %v3130
      %v3227 = vunpack.c.l.b16 %v3131
      %v3228 = vpack.c.b16 %v3221, %v3220
      %v3229 = vpack.c.b16 %v3223, %v3222
      %v3230 = vpack.c.b16 %v3225, %v3224
      %v3231 = vpack.c.b16 %v3227, %v3226
      %v3237 = vsel %vm1009, %v3148, 0
      %v3240 = vsel %vm1009, %v3157, 0
      %v3243 = vsel %vm1009, %v3166, 0
      %v3246 = vsel %vm1009, %v3175, 0
      %v3249 = vsel %vm1009, %v3184, 0
      %v3252 = vsel %vm1009, %v3193, 0
      %v3255 = vsel %vm1009, %v3202, 0
      %v3258 = vsel %vm1009, %v3211, 0
      %3260 = vmatpush.bf16.msra.mxu0 0
      %3261 = vmatpush.bf16.msra.mxu0 0
      %3262 = vmatpush.bf16.msra.mxu0 0
      %3263 = vmatpush.bf16.msra.mxu0 0
      %3264 = vmatpush.bf16.msra.mxu0 %v3231
      %3265 = vmatpush.bf16.msra.mxu0 %v3230
      %3266 = vmatpush.bf16.msra.mxu0 %v3229
      %3267 = vmatpush.bf16.msra.mxu0 %v3228
      %3268 = vmatmul.bf16.gmra.mxu0 %v3237
      %v3269 = vpop.f32.mrf.mxu0
      %v3270 = vadd.f32 0.0, %v3269
      %v3271 = vpop.f32.mrf.mxu0
      %v3272 = vadd.f32 0.0, %v3271
      %3273 = vmatmul.bf16.gmra.mxu0 %v3240
      %v3274 = vpop.f32.mrf.mxu0
      %v3275 = vadd.f32 0.0, %v3274
      %v3276 = vpop.f32.mrf.mxu0
      %v3277 = vadd.f32 0.0, %v3276
      %3278 = vmatmul.bf16.gmra.mxu0 %v3243
      %v3279 = vpop.f32.mrf.mxu0
      %v3280 = vadd.f32 0.0, %v3279
      %v3281 = vpop.f32.mrf.mxu0
      %v3282 = vadd.f32 0.0, %v3281
      %3283 = vmatmul.bf16.gmra.mxu0 %v3246
      %v3284 = vpop.f32.mrf.mxu0
      %v3285 = vadd.f32 0.0, %v3284
      %v3286 = vpop.f32.mrf.mxu0
      %v3287 = vadd.f32 0.0, %v3286
      %3288 = vmatmul.bf16.gmra.mxu0 %v3249
      %v3289 = vpop.f32.mrf.mxu0
      %v3290 = vadd.f32 0.0, %v3289
      %v3291 = vpop.f32.mrf.mxu0
      %v3292 = vadd.f32 0.0, %v3291
      %3293 = vmatmul.bf16.gmra.mxu0 %v3252
      %v3294 = vpop.f32.mrf.mxu0
      %v3295 = vadd.f32 0.0, %v3294
      %v3296 = vpop.f32.mrf.mxu0
      %v3297 = vadd.f32 0.0, %v3296
      %3298 = vmatmul.bf16.gmra.mxu0 %v3255
      %v3299 = vpop.f32.mrf.mxu0
      %v3300 = vadd.f32 0.0, %v3299
      %v3301 = vpop.f32.mrf.mxu0
      %v3302 = vadd.f32 0.0, %v3301
      %3303 = vmatmul.bf16.gmra.mxu0 %v3258
      %v3304 = vpop.f32.mrf.mxu0
      %v3305 = vadd.f32 0.0, %v3304
      %v3306 = vpop.f32.mrf.mxu0
      %v3307 = vadd.f32 0.0, %v3306
      %3308 = vdwg.mxu0
      %v3309 = vadd.f32 %v2860, %v3270
      %v3310 = vadd.f32 %v2861, %v3272
      %v3311 = vadd.f32 %v2862, %v3275
      %v3312 = vadd.f32 %v2863, %v3277
      %v3313 = vadd.f32 %v2864, %v3280
      %v3314 = vadd.f32 %v2865, %v3282
      %v3315 = vadd.f32 %v2866, %v3285
      %v3316 = vadd.f32 %v2867, %v3287
      %v3317 = vadd.f32 %v2868, %v3290
      %v3318 = vadd.f32 %v2869, %v3292
      %v3319 = vadd.f32 %v2870, %v3295
      %v3320 = vadd.f32 %v2871, %v3297
      %v3321 = vadd.f32 %v2872, %v3300
      %v3322 = vadd.f32 %v2873, %v3302
      %v3323 = vadd.f32 %v2874, %v3305
      %v3324 = vadd.f32 %v2875, %v3307
      %s3325 = scalar_lea.vmem %s7, 224
      %v3326 = vld [vmem:[%s3325] sm:$0xf]
      %v3327 = vld [vmem:[%s3325 + $0x4] sm:$0xf]
      %v3328 = vld [vmem:[%s3325 + $0x8] sm:$0xf]
      %v3329 = vld [vmem:[%s3325 + $0xc] sm:$0xf]
      %v3330 = vld [vmem:[%s3325 + $0x10] sm:$0xf]
      %v3331 = vld [vmem:[%s3325 + $0x14] sm:$0xf]
      %v3332 = vld [vmem:[%s3325 + $0x18] sm:$0xf]
      %v3333 = vld [vmem:[%s3325 + $0x1c] sm:$0xf]
      %v3350 = vunpack.c.l.b16 %v2877
      %v3351 = vunpack.c.l.b16 %v2878
      %v3352 = vunpack.c.l.b16 %v2879
      %v3353 = vunpack.c.l.b16 %v2880
      %v3354 = vunpack.c.l.b16 %v2881
      %v3355 = vunpack.c.l.b16 %v2882
      %v3356 = vunpack.c.l.b16 %v2883
      %v3357 = vunpack.c.l.b16 %v2884
      %v3358 = vunpack.c.l.b16 %v2885
      %v3359 = vunpack.c.l.b16 %v2886
      %v3360 = vunpack.c.l.b16 %v2887
      %v3361 = vunpack.c.l.b16 %v2888
      %v3362 = vunpack.c.l.b16 %v2889
      %v3363 = vunpack.c.l.b16 %v2890
      %v3364 = vunpack.c.l.b16 %v2891
      %v3365 = vunpack.c.l.b16 %v2892
      %v3366 = vpack.c.b16 %v3351, %v3350
      %v3367 = vpack.c.b16 %v3353, %v3352
      %v3368 = vpack.c.b16 %v3355, %v3354
      %v3369 = vpack.c.b16 %v3357, %v3356
      %v3370 = vpack.c.b16 %v3359, %v3358
      %v3371 = vpack.c.b16 %v3361, %v3360
      %v3372 = vpack.c.b16 %v3363, %v3362
      %v3373 = vpack.c.b16 %v3365, %v3364
      %v3382 = vunpack.c.l.b16 %v3326
      %v3383 = vunpack.c.l.b16 %v3327
      %v3384 = vunpack.c.l.b16 %v3328
      %v3385 = vunpack.c.l.b16 %v3329
      %v3386 = vunpack.c.l.b16 %v3330
      %v3387 = vunpack.c.l.b16 %v3331
      %v3388 = vunpack.c.l.b16 %v3332
      %v3389 = vunpack.c.l.b16 %v3333
      %v3390 = vpack.c.b16 %v3383, %v3382
      %v3391 = vpack.c.b16 %v3385, %v3384
      %v3392 = vpack.c.b16 %v3387, %v3386
      %v3393 = vpack.c.b16 %v3389, %v3388
      %v3399 = vsel %vm1009, %v3366, 0
      %v3402 = vsel %vm1009, %v3367, 0
      %v3405 = vsel %vm1009, %v3368, 0
      %v3408 = vsel %vm1009, %v3369, 0
      %v3411 = vsel %vm1009, %v3370, 0
      %v3414 = vsel %vm1009, %v3371, 0
      %v3417 = vsel %vm1009, %v3372, 0
      %v3420 = vsel %vm1009, %v3373, 0
      %3422 = vmatpush.bf16.msra.mxu0 0
      %3423 = vmatpush.bf16.msra.mxu0 0
      %3424 = vmatpush.bf16.msra.mxu0 0
      %3425 = vmatpush.bf16.msra.mxu0 0
      %3426 = vmatpush.bf16.msra.mxu0 %v3393
      %3427 = vmatpush.bf16.msra.mxu0 %v3392
      %3428 = vmatpush.bf16.msra.mxu0 %v3391
      %3429 = vmatpush.bf16.msra.mxu0 %v3390
      %3430 = vmatmul.bf16.gmra.mxu0 %v3399
      %v3431 = vpop.f32.mrf.mxu0
      %v3432 = vadd.f32 0.0, %v3431
      %v3433 = vpop.f32.mrf.mxu0
      %v3434 = vadd.f32 0.0, %v3433
      %3435 = vmatmul.bf16.gmra.mxu0 %v3402
      %v3436 = vpop.f32.mrf.mxu0
      %v3437 = vadd.f32 0.0, %v3436
      %v3438 = vpop.f32.mrf.mxu0
      %v3439 = vadd.f32 0.0, %v3438
      %3440 = vmatmul.bf16.gmra.mxu0 %v3405
      %v3441 = vpop.f32.mrf.mxu0
      %v3442 = vadd.f32 0.0, %v3441
      %v3443 = vpop.f32.mrf.mxu0
      %v3444 = vadd.f32 0.0, %v3443
      %3445 = vmatmul.bf16.gmra.mxu0 %v3408
      %v3446 = vpop.f32.mrf.mxu0
      %v3447 = vadd.f32 0.0, %v3446
      %v3448 = vpop.f32.mrf.mxu0
      %v3449 = vadd.f32 0.0, %v3448
      %3450 = vmatmul.bf16.gmra.mxu0 %v3411
      %v3451 = vpop.f32.mrf.mxu0
      %v3452 = vadd.f32 0.0, %v3451
      %v3453 = vpop.f32.mrf.mxu0
      %v3454 = vadd.f32 0.0, %v3453
      %3455 = vmatmul.bf16.gmra.mxu0 %v3414
      %v3456 = vpop.f32.mrf.mxu0
      %v3457 = vadd.f32 0.0, %v3456
      %v3458 = vpop.f32.mrf.mxu0
      %v3459 = vadd.f32 0.0, %v3458
      %3460 = vmatmul.bf16.gmra.mxu0 %v3417
      %v3461 = vpop.f32.mrf.mxu0
      %v3462 = vadd.f32 0.0, %v3461
      %v3463 = vpop.f32.mrf.mxu0
      %v3464 = vadd.f32 0.0, %v3463
      %3465 = vmatmul.bf16.gmra.mxu0 %v3420
      %v3466 = vpop.f32.mrf.mxu0
      %v3467 = vadd.f32 0.0, %v3466
      %v3468 = vpop.f32.mrf.mxu0
      %v3469 = vadd.f32 0.0, %v3468
      %3470 = vdwg.mxu0
      %v3471 = vadd.f32 %v3309, %v3432
      %v3472 = vadd.f32 %v3310, %v3434
      %v3473 = vadd.f32 %v3311, %v3437
      %v3474 = vadd.f32 %v3312, %v3439
      %v3475 = vadd.f32 %v3313, %v3442
      %v3476 = vadd.f32 %v3314, %v3444
      %v3477 = vadd.f32 %v3315, %v3447
      %v3478 = vadd.f32 %v3316, %v3449
      %v3479 = vadd.f32 %v3317, %v3452
      %v3480 = vadd.f32 %v3318, %v3454
      %v3481 = vadd.f32 %v3319, %v3457
      %v3482 = vadd.f32 %v3320, %v3459
      %v3483 = vadd.f32 %v3321, %v3462
      %v3484 = vadd.f32 %v3322, %v3464
      %v3485 = vadd.f32 %v3323, %v3467
      %v3486 = vadd.f32 %v3324, %v3469
      %v3487 = vld [vmem:[#allocation2 + $0x18] sm:$0xf]
      %v3488 = vld [vmem:[#allocation2 + $0x1c] sm:$0xf]
      %v3489 = vld [vmem:[#allocation2 + $0x20] sm:$0xf]
      %v3490 = vld [vmem:[#allocation2 + $0x24] sm:$0xf]
      %v3491 = vld [vmem:[#allocation2 + $0x28] sm:$0xf]
      %v3492 = vld [vmem:[#allocation2 + $0x2c] sm:$0xf]
      %v3493 = vld [vmem:[#allocation2 + $0x30] sm:$0xf]
      %v3494 = vld [vmem:[#allocation2 + $0x34] sm:$0xf]
      %v3495 = vld [vmem:[#allocation2 + $0x38] sm:$0xf]
      %v3496 = vld [vmem:[#allocation2 + $0x3c] sm:$0xf]
      %v3497 = vld [vmem:[#allocation2 + $0x40] sm:$0xf]
      %v3498 = vld [vmem:[#allocation2 + $0x44] sm:$0xf]
      %v3499 = vld [vmem:[#allocation2 + $0x48] sm:$0xf]
      %v3500 = vld [vmem:[#allocation2 + $0x4c] sm:$0xf]
      %v3501 = vld [vmem:[#allocation2 + $0x50] sm:$0xf]
      %v3502 = vld [vmem:[#allocation2 + $0x54] sm:$0xf]
      %v3503 = vld [vmem:[#allocation2 + $0x58] sm:$0x1]
      %v3504 = vld [vmem:[%s5 + $0x18] sm:$0xf]
      %v3505 = vld [vmem:[%s5 + $0x1c] sm:$0xf]
      %v3506 = vld [vmem:[%s5 + $0x20] sm:$0xf]
      %v3507 = vld [vmem:[%s5 + $0x24] sm:$0xf]
      %v3508 = vld [vmem:[%s5 + $0x28] sm:$0xf]
      %v3509 = vld [vmem:[%s5 + $0x2c] sm:$0xf]
      %v3510 = vld [vmem:[%s5 + $0x30] sm:$0xf]
      %v3511 = vld [vmem:[%s5 + $0x34] sm:$0xf]
      %v3512 = vld [vmem:[%s5 + $0x38] sm:$0xf]
      %v3513 = vld [vmem:[%s5 + $0x3c] sm:$0xf]
      %v3514 = vld [vmem:[%s5 + $0x40] sm:$0xf]
      %v3515 = vld [vmem:[%s5 + $0x44] sm:$0xf]
      %v3516 = vld [vmem:[%s5 + $0x48] sm:$0xf]
      %v3517 = vld [vmem:[%s5 + $0x4c] sm:$0xf]
      %v3518 = vld [vmem:[%s5 + $0x50] sm:$0xf]
      %v3519 = vld [vmem:[%s5 + $0x54] sm:$0xf]
      %v3520 = vld [vmem:[%s5 + $0x58] sm:$0x1]
      %3522 = vset.pattern.permute.xlu0 0
      %3523 = vperm.xlu0 %3522, %v3504
      %v3524 = vpop.permute.xlu0 %3523
      %v3527 = vunpack.c.l.s4 839922192
      %v3528 = vunpack.c.0.s8 %v3527
      %v3529 = vperm.slane %v3524, %v3528
      %3531 = vset.pattern.permute.xlu0 0
      %3532 = vperm.xlu0 %3531, %v3505
      %v3533 = vpop.permute.xlu0 %3532
      %v3536 = vunpack.c.l.s4 839922192
      %v3537 = vunpack.c.0.s8 %v3536
      %v3538 = vperm.slane %v3533, %v3537
      %3540 = vset.pattern.permute.xlu0 0
      %3541 = vperm.xlu0 %3540, %v3506
      %v3542 = vpop.permute.xlu0 %3541
      %v3545 = vunpack.c.l.s4 839922192
      %v3546 = vunpack.c.0.s8 %v3545
      %v3547 = vperm.slane %v3542, %v3546
      %3549 = vset.pattern.permute.xlu0 0
      %3550 = vperm.xlu0 %3549, %v3507
      %v3551 = vpop.permute.xlu0 %3550
      %v3554 = vunpack.c.l.s4 839922192
      %v3555 = vunpack.c.0.s8 %v3554
      %v3556 = vperm.slane %v3551, %v3555
      %3558 = vset.pattern.permute.xlu0 0
      %3559 = vperm.xlu0 %3558, %v3508
      %v3560 = vpop.permute.xlu0 %3559
      %v3563 = vunpack.c.l.s4 839922192
      %v3564 = vunpack.c.0.s8 %v3563
      %v3565 = vperm.slane %v3560, %v3564
      %3567 = vset.pattern.permute.xlu0 0
      %3568 = vperm.xlu0 %3567, %v3509
      %v3569 = vpop.permute.xlu0 %3568
      %v3572 = vunpack.c.l.s4 839922192
      %v3573 = vunpack.c.0.s8 %v3572
      %v3574 = vperm.slane %v3569, %v3573
      %3576 = vset.pattern.permute.xlu0 0
      %3577 = vperm.xlu0 %3576, %v3510
      %v3578 = vpop.permute.xlu0 %3577
      %v3581 = vunpack.c.l.s4 839922192
      %v3582 = vunpack.c.0.s8 %v3581
      %v3583 = vperm.slane %v3578, %v3582
      %3585 = vset.pattern.permute.xlu0 0
      %3586 = vperm.xlu0 %3585, %v3511
      %v3587 = vpop.permute.xlu0 %3586
      %v3590 = vunpack.c.l.s4 839922192
      %v3591 = vunpack.c.0.s8 %v3590
      %v3592 = vperm.slane %v3587, %v3591
      %3594 = vset.pattern.permute.xlu0 0
      %3595 = vperm.xlu0 %3594, %v3512
      %v3596 = vpop.permute.xlu0 %3595
      %v3599 = vunpack.c.l.s4 839922192
      %v3600 = vunpack.c.0.s8 %v3599
      %v3601 = vperm.slane %v3596, %v3600
      %3603 = vset.pattern.permute.xlu0 0
      %3604 = vperm.xlu0 %3603, %v3513
      %v3605 = vpop.permute.xlu0 %3604
      %v3608 = vunpack.c.l.s4 839922192
      %v3609 = vunpack.c.0.s8 %v3608
      %v3610 = vperm.slane %v3605, %v3609
      %3612 = vset.pattern.permute.xlu0 0
      %3613 = vperm.xlu0 %3612, %v3514
      %v3614 = vpop.permute.xlu0 %3613
      %v3617 = vunpack.c.l.s4 839922192
      %v3618 = vunpack.c.0.s8 %v3617
      %v3619 = vperm.slane %v3614, %v3618
      %3621 = vset.pattern.permute.xlu0 0
      %3622 = vperm.xlu0 %3621, %v3515
      %v3623 = vpop.permute.xlu0 %3622
      %v3626 = vunpack.c.l.s4 839922192
      %v3627 = vunpack.c.0.s8 %v3626
      %v3628 = vperm.slane %v3623, %v3627
      %3630 = vset.pattern.permute.xlu0 0
      %3631 = vperm.xlu0 %3630, %v3516
      %v3632 = vpop.permute.xlu0 %3631
      %v3635 = vunpack.c.l.s4 839922192
      %v3636 = vunpack.c.0.s8 %v3635
      %v3637 = vperm.slane %v3632, %v3636
      %3639 = vset.pattern.permute.xlu0 0
      %3640 = vperm.xlu0 %3639, %v3517
      %v3641 = vpop.permute.xlu0 %3640
      %v3644 = vunpack.c.l.s4 839922192
      %v3645 = vunpack.c.0.s8 %v3644
      %v3646 = vperm.slane %v3641, %v3645
      %3648 = vset.pattern.permute.xlu0 0
      %3649 = vperm.xlu0 %3648, %v3518
      %v3650 = vpop.permute.xlu0 %3649
      %v3653 = vunpack.c.l.s4 839922192
      %v3654 = vunpack.c.0.s8 %v3653
      %v3655 = vperm.slane %v3650, %v3654
      %3657 = vset.pattern.permute.xlu0 0
      %3658 = vperm.xlu0 %3657, %v3519
      %v3659 = vpop.permute.xlu0 %3658
      %v3662 = vunpack.c.l.s4 839922192
      %v3663 = vunpack.c.0.s8 %v3662
      %v3664 = vperm.slane %v3659, %v3663
      %3666 = vset.pattern.permute.xlu0 0
      %3667 = vperm.xlu0 %3666, %v3520
      %v3668 = vpop.permute.xlu0 %3667
      %v3671 = vunpack.c.l.s4 839922192
      %v3672 = vunpack.c.0.s8 %v3671
      %v3673 = vperm.slane %v3668, %v3672
      %v3674 = vunpack.c.l.bf16 %v3487
      %v3675 = vunpack.c.l.bf16 %v3488
      %v3676 = vunpack.c.l.bf16 %v3489
      %v3677 = vunpack.c.l.bf16 %v3490
      %v3678 = vunpack.c.l.bf16 %v3491
      %v3679 = vunpack.c.l.bf16 %v3492
      %v3680 = vunpack.c.l.bf16 %v3493
      %v3681 = vunpack.c.l.bf16 %v3494
      %v3682 = vunpack.c.l.bf16 %v3495
      %v3683 = vunpack.c.l.bf16 %v3496
      %v3684 = vunpack.c.l.bf16 %v3497
      %v3685 = vunpack.c.l.bf16 %v3498
      %v3686 = vunpack.c.l.bf16 %v3499
      %v3687 = vunpack.c.l.bf16 %v3500
      %v3688 = vunpack.c.l.bf16 %v3501
      %v3689 = vunpack.c.l.bf16 %v3502
      %v3690 = vunpack.c.l.bf16 %v3503
      %v3691 = vunpack.c.l.bf16 %v3529
      %v3692 = vunpack.c.l.bf16 %v3538
      %v3693 = vunpack.c.l.bf16 %v3547
      %v3694 = vunpack.c.l.bf16 %v3556
      %v3695 = vunpack.c.l.bf16 %v3565
      %v3696 = vunpack.c.l.bf16 %v3574
      %v3697 = vunpack.c.l.bf16 %v3583
      %v3698 = vunpack.c.l.bf16 %v3592
      %v3699 = vunpack.c.l.bf16 %v3601
      %v3700 = vunpack.c.l.bf16 %v3610
      %v3701 = vunpack.c.l.bf16 %v3619
      %v3702 = vunpack.c.l.bf16 %v3628
      %v3703 = vunpack.c.l.bf16 %v3637
      %v3704 = vunpack.c.l.bf16 %v3646
      %v3705 = vunpack.c.l.bf16 %v3655
      %v3706 = vunpack.c.l.bf16 %v3664
      %v3707 = vunpack.c.l.bf16 %v3673
      %v3708 = vmul.f32 %v3674, %v3691
      %v3709 = vmul.f32 %v3675, %v3692
      %v3710 = vmul.f32 %v3676, %v3693
      %v3711 = vmul.f32 %v3677, %v3694
      %v3712 = vmul.f32 %v3678, %v3695
      %v3713 = vmul.f32 %v3679, %v3696
      %v3714 = vmul.f32 %v3680, %v3697
      %v3715 = vmul.f32 %v3681, %v3698
      %v3716 = vmul.f32 %v3682, %v3699
      %v3717 = vmul.f32 %v3683, %v3700
      %v3718 = vmul.f32 %v3684, %v3701
      %v3719 = vmul.f32 %v3685, %v3702
      %v3720 = vmul.f32 %v3686, %v3703
      %v3721 = vmul.f32 %v3687, %v3704
      %v3722 = vmul.f32 %v3688, %v3705
      %v3723 = vmul.f32 %v3689, %v3706
      %v3724 = vmul.f32 %v3690, %v3707
      %v3725 = vpack.c.bf16 %v3709, %v3708
      %v3726 = vpack.c.bf16 %v3711, %v3710
      %v3727 = vpack.c.bf16 %v3713, %v3712
      %v3728 = vpack.c.bf16 %v3715, %v3714
      %v3729 = vpack.c.bf16 %v3717, %v3716
      %v3730 = vpack.c.bf16 %v3719, %v3718
      %v3731 = vpack.c.bf16 %v3721, %v3720
      %v3732 = vpack.c.bf16 %v3723, %v3722
      %v3733 = vpack.c.bf16 %v3724, %v3724
      %s3734 = scalar_lea.vmem %s7, 256
      %v3735 = vld [vmem:[%s3734] sm:$0xf]
      %v3736 = vld [vmem:[%s3734 + $0x4] sm:$0xf]
      %v3737 = vld [vmem:[%s3734 + $0x8] sm:$0xf]
      %v3738 = vld [vmem:[%s3734 + $0xc] sm:$0xf]
      %v3739 = vld [vmem:[%s3734 + $0x10] sm:$0xf]
      %v3740 = vld [vmem:[%s3734 + $0x14] sm:$0xf]
      %v3741 = vld [vmem:[%s3734 + $0x18] sm:$0xf]
      %v3742 = vld [vmem:[%s3734 + $0x1c] sm:$0xf]
      %v3744 = vshrl.u32 %v3725, 16
      %v3746 = vshll.u32 %v3725, 16
      %v3748 = vrot.slane %v3746, 1
      %v3749 = vor.u32 %v3744, %v3748
      %v3751 = vshll.u32 %v3726, 16
      %v3753 = vrot.slane %v3751, 1
      %v3754 = vsel %vm1646, %v3749, %v3753
      %v3755 = vshrl.u32 %v3726, 16
      %v3757 = vor.u32 %v3755, %v3753
      %v3759 = vshll.u32 %v3727, 16
      %v3761 = vrot.slane %v3759, 1
      %v3762 = vsel %vm1646, %v3757, %v3761
      %v3763 = vshrl.u32 %v3727, 16
      %v3765 = vor.u32 %v3763, %v3761
      %v3767 = vshll.u32 %v3728, 16
      %v3769 = vrot.slane %v3767, 1
      %v3770 = vsel %vm1646, %v3765, %v3769
      %v3771 = vshrl.u32 %v3728, 16
      %v3773 = vor.u32 %v3771, %v3769
      %v3775 = vshll.u32 %v3729, 16
      %v3777 = vrot.slane %v3775, 1
      %v3778 = vsel %vm1646, %v3773, %v3777
      %v3779 = vshrl.u32 %v3729, 16
      %v3781 = vor.u32 %v3779, %v3777
      %v3783 = vshll.u32 %v3730, 16
      %v3785 = vrot.slane %v3783, 1
      %v3786 = vsel %vm1646, %v3781, %v3785
      %v3787 = vshrl.u32 %v3730, 16
      %v3789 = vor.u32 %v3787, %v3785
      %v3791 = vshll.u32 %v3731, 16
      %v3793 = vrot.slane %v3791, 1
      %v3794 = vsel %vm1646, %v3789, %v3793
      %v3795 = vshrl.u32 %v3731, 16
      %v3797 = vor.u32 %v3795, %v3793
      %v3799 = vshll.u32 %v3732, 16
      %v3801 = vrot.slane %v3799, 1
      %v3802 = vsel %vm1646, %v3797, %v3801
      %v3803 = vshrl.u32 %v3732, 16
      %v3805 = vor.u32 %v3803, %v3801
      %v3807 = vshll.u32 %v3733, 16
      %v3809 = vrot.slane %v3807, 1
      %v3810 = vsel %vm1646, %v3805, %v3809
      %v3819 = vunpack.c.l.b16 %v3735
      %v3820 = vunpack.c.l.b16 %v3736
      %v3821 = vunpack.c.l.b16 %v3737
      %v3822 = vunpack.c.l.b16 %v3738
      %v3823 = vunpack.c.l.b16 %v3739
      %v3824 = vunpack.c.l.b16 %v3740
      %v3825 = vunpack.c.l.b16 %v3741
      %v3826 = vunpack.c.l.b16 %v3742
      %v3827 = vpack.c.b16 %v3820, %v3819
      %v3828 = vpack.c.b16 %v3822, %v3821
      %v3829 = vpack.c.b16 %v3824, %v3823
      %v3830 = vpack.c.b16 %v3826, %v3825
      %v3836 = vsel %vm1009, %v3754, 0
      %v3839 = vsel %vm1009, %v3762, 0
      %v3842 = vsel %vm1009, %v3770, 0
      %v3845 = vsel %vm1009, %v3778, 0
      %v3848 = vsel %vm1009, %v3786, 0
      %v3851 = vsel %vm1009, %v3794, 0
      %v3854 = vsel %vm1009, %v3802, 0
      %v3857 = vsel %vm1009, %v3810, 0
      %3859 = vmatpush.bf16.msra.mxu0 0
      %3860 = vmatpush.bf16.msra.mxu0 0
      %3861 = vmatpush.bf16.msra.mxu0 0
      %3862 = vmatpush.bf16.msra.mxu0 0
      %3863 = vmatpush.bf16.msra.mxu0 %v3830
      %3864 = vmatpush.bf16.msra.mxu0 %v3829
      %3865 = vmatpush.bf16.msra.mxu0 %v3828
      %3866 = vmatpush.bf16.msra.mxu0 %v3827
      %3867 = vmatmul.bf16.gmra.mxu0 %v3836
      %v3868 = vpop.f32.mrf.mxu0
      %v3869 = vadd.f32 0.0, %v3868
      %v3870 = vpop.f32.mrf.mxu0
      %v3871 = vadd.f32 0.0, %v3870
      %3872 = vmatmul.bf16.gmra.mxu0 %v3839
      %v3873 = vpop.f32.mrf.mxu0
      %v3874 = vadd.f32 0.0, %v3873
      %v3875 = vpop.f32.mrf.mxu0
      %v3876 = vadd.f32 0.0, %v3875
      %3877 = vmatmul.bf16.gmra.mxu0 %v3842
      %v3878 = vpop.f32.mrf.mxu0
      %v3879 = vadd.f32 0.0, %v3878
      %v3880 = vpop.f32.mrf.mxu0
      %v3881 = vadd.f32 0.0, %v3880
      %3882 = vmatmul.bf16.gmra.mxu0 %v3845
      %v3883 = vpop.f32.mrf.mxu0
      %v3884 = vadd.f32 0.0, %v3883
      %v3885 = vpop.f32.mrf.mxu0
      %v3886 = vadd.f32 0.0, %v3885
      %3887 = vmatmul.bf16.gmra.mxu0 %v3848
      %v3888 = vpop.f32.mrf.mxu0
      %v3889 = vadd.f32 0.0, %v3888
      %v3890 = vpop.f32.mrf.mxu0
      %v3891 = vadd.f32 0.0, %v3890
      %3892 = vmatmul.bf16.gmra.mxu0 %v3851
      %v3893 = vpop.f32.mrf.mxu0
      %v3894 = vadd.f32 0.0, %v3893
      %v3895 = vpop.f32.mrf.mxu0
      %v3896 = vadd.f32 0.0, %v3895
      %3897 = vmatmul.bf16.gmra.mxu0 %v3854
      %v3898 = vpop.f32.mrf.mxu0
      %v3899 = vadd.f32 0.0, %v3898
      %v3900 = vpop.f32.mrf.mxu0
      %v3901 = vadd.f32 0.0, %v3900
      %3902 = vmatmul.bf16.gmra.mxu0 %v3857
      %v3903 = vpop.f32.mrf.mxu0
      %v3904 = vadd.f32 0.0, %v3903
      %v3905 = vpop.f32.mrf.mxu0
      %v3906 = vadd.f32 0.0, %v3905
      %3907 = vdwg.mxu0
      %v3908 = vadd.f32 %v3471, %v3869
      %v3909 = vadd.f32 %v3472, %v3871
      %v3910 = vadd.f32 %v3473, %v3874
      %v3911 = vadd.f32 %v3474, %v3876
      %v3912 = vadd.f32 %v3475, %v3879
      %v3913 = vadd.f32 %v3476, %v3881
      %v3914 = vadd.f32 %v3477, %v3884
      %v3915 = vadd.f32 %v3478, %v3886
      %v3916 = vadd.f32 %v3479, %v3889
      %v3917 = vadd.f32 %v3480, %v3891
      %v3918 = vadd.f32 %v3481, %v3894
      %v3919 = vadd.f32 %v3482, %v3896
      %v3920 = vadd.f32 %v3483, %v3899
      %v3921 = vadd.f32 %v3484, %v3901
      %v3922 = vadd.f32 %v3485, %v3904
      %v3923 = vadd.f32 %v3486, %v3906
      %v3924 = vld [vmem:[%s8] sm:$0x1]
      %v3926 = vperm.slane %v3924, 0
      %v3928 = vadd.f32 %v3908, %v3926
      %v3929 = vadd.f32 %v3909, %v3926
      %v3930 = vadd.f32 %v3910, %v3926
      %v3931 = vadd.f32 %v3911, %v3926
      %v3932 = vadd.f32 %v3912, %v3926
      %v3933 = vadd.f32 %v3913, %v3926
      %v3934 = vadd.f32 %v3914, %v3926
      %v3935 = vadd.f32 %v3915, %v3926
      %v3936 = vadd.f32 %v3916, %v3926
      %v3937 = vadd.f32 %v3917, %v3926
      %v3938 = vadd.f32 %v3918, %v3926
      %v3939 = vadd.f32 %v3919, %v3926
      %v3940 = vadd.f32 %v3920, %v3926
      %v3941 = vadd.f32 %v3921, %v3926
      %v3942 = vadd.f32 %v3922, %v3926
      %v3943 = vadd.f32 %v3923, %v3926
      %v3944 = vpack.c.bf16 %v3928, %v3928
      %v3945 = vpack.c.bf16 %v3929, %v3929
      %v3946 = vpack.c.bf16 %v3930, %v3930
      %v3947 = vpack.c.bf16 %v3931, %v3931
      %v3948 = vpack.c.bf16 %v3932, %v3932
      %v3949 = vpack.c.bf16 %v3933, %v3933
      %v3950 = vpack.c.bf16 %v3934, %v3934
      %v3951 = vpack.c.bf16 %v3935, %v3935
      %v3952 = vpack.c.bf16 %v3936, %v3936
      %v3953 = vpack.c.bf16 %v3937, %v3937
      %v3954 = vpack.c.bf16 %v3938, %v3938
      %v3955 = vpack.c.bf16 %v3939, %v3939
      %v3956 = vpack.c.bf16 %v3940, %v3940
      %v3957 = vpack.c.bf16 %v3941, %v3941
      %v3958 = vpack.c.bf16 %v3942, %v3942
      %v3959 = vpack.c.bf16 %v3943, %v3943
      %3960 = vst.msk [vmem:[%s484] sm:$0xf] %vm595, %v3944
      %3961 = vst.msk [vmem:[%s484 + $0x4] sm:$0xf] %vm595, %v3945
      %3962 = vst.msk [vmem:[%s484 + $0x8] sm:$0xf] %vm595, %v3946
      %3963 = vst.msk [vmem:[%s484 + $0xc] sm:$0xf] %vm595, %v3947
      %3964 = vst.msk [vmem:[%s484 + $0x10] sm:$0xf] %vm595, %v3948
      %3965 = vst.msk [vmem:[%s484 + $0x14] sm:$0xf] %vm595, %v3949
      %3966 = vst.msk [vmem:[%s484 + $0x18] sm:$0xf] %vm595, %v3950
      %3967 = vst.msk [vmem:[%s484 + $0x1c] sm:$0xf] %vm595, %v3951
      %3968 = vst.msk [vmem:[%s484 + $0x20] sm:$0xf] %vm595, %v3952
      %3969 = vst.msk [vmem:[%s484 + $0x24] sm:$0xf] %vm595, %v3953
      %3970 = vst.msk [vmem:[%s484 + $0x28] sm:$0xf] %vm595, %v3954
      %3971 = vst.msk [vmem:[%s484 + $0x2c] sm:$0xf] %vm595, %v3955
      %3972 = vst.msk [vmem:[%s484 + $0x30] sm:$0xf] %vm595, %v3956
      %3973 = vst.msk [vmem:[%s484 + $0x34] sm:$0xf] %vm595, %v3957
      %3974 = vst.msk [vmem:[%s484 + $0x38] sm:$0xf] %vm595, %v3958
      %3975 = vst.msk [vmem:[%s484 + $0x3c] sm:$0xf] %vm595, %v3959
      %v3976 = vsel %vm1009, %v3928, 0.0
      %v3977 = vsel %vm1009, %v3929, 0.0
      %v3978 = vadd.f32 %v3976, %v3977
      %v3979 = vsel %vm1009, %v3930, 0.0
      %v3980 = vadd.f32 %v3978, %v3979
      %v3981 = vsel %vm1009, %v3931, 0.0
      %v3982 = vadd.f32 %v3980, %v3981
      %v3983 = vsel %vm1009, %v3932, 0.0
      %v3984 = vadd.f32 %v3982, %v3983
      %v3985 = vsel %vm1009, %v3933, 0.0
      %v3986 = vadd.f32 %v3984, %v3985
      %v3987 = vsel %vm1009, %v3934, 0.0
      %v3988 = vadd.f32 %v3986, %v3987
      %v3989 = vsel %vm1009, %v3935, 0.0
      %v3990 = vadd.f32 %v3988, %v3989
      %v3991 = vsel %vm1009, %v3936, 0.0
      %v3992 = vadd.f32 %v3990, %v3991
      %v3993 = vsel %vm1009, %v3937, 0.0
      %v3994 = vadd.f32 %v3992, %v3993
      %v3995 = vsel %vm1009, %v3938, 0.0
      %v3996 = vadd.f32 %v3994, %v3995
      %v3997 = vsel %vm1009, %v3939, 0.0
      %v3998 = vadd.f32 %v3996, %v3997
      %v3999 = vsel %vm1009, %v3940, 0.0
      %v4000 = vadd.f32 %v3998, %v3999
      %v4001 = vsel %vm1009, %v3941, 0.0
      %v4002 = vadd.f32 %v4000, %v4001
      %v4003 = vsel %vm1009, %v3942, 0.0
      %v4004 = vadd.f32 %v4002, %v4003
      %v4005 = vsel %vm1009, %v3943, 0.0
      %v4006 = vadd.f32 %v4004, %v4005
      %v4007 = vrot.slane %v4006, 4
      %v4008 = vadd.f32 %v4006, %v4007
      %v4009 = vrot.slane %v4008, 2
      %v4010 = vadd.f32 %v4008, %v4009
      %v4011 = vrot.slane %v4010, 1
      %v4012 = vadd.f32 %v4010, %v4011
      %vm4013 = vcmask 516096
      %4014 = vst.msk [vmem:[%s489] sm:$0x1] %vm4013, %v4012
      %v4015 = vmul.f32 %v3928, %v3928
      %v4016 = vmul.f32 %v3929, %v3929
      %v4017 = vmul.f32 %v3930, %v3930
      %v4018 = vmul.f32 %v3931, %v3931
      %v4019 = vmul.f32 %v3932, %v3932
      %v4020 = vmul.f32 %v3933, %v3933
      %v4021 = vmul.f32 %v3934, %v3934
      %v4022 = vmul.f32 %v3935, %v3935
      %v4023 = vmul.f32 %v3936, %v3936
      %v4024 = vmul.f32 %v3937, %v3937
      %v4025 = vmul.f32 %v3938, %v3938
      %v4026 = vmul.f32 %v3939, %v3939
      %v4027 = vmul.f32 %v3940, %v3940
      %v4028 = vmul.f32 %v3941, %v3941
      %v4029 = vmul.f32 %v3942, %v3942
      %v4030 = vmul.f32 %v3943, %v3943
      %v4031 = vsel %vm1009, %v4015, 0.0
      %v4032 = vsel %vm1009, %v4016, 0.0
      %v4033 = vadd.f32 %v4031, %v4032
      %v4034 = vsel %vm1009, %v4017, 0.0
      %v4035 = vadd.f32 %v4033, %v4034
      %v4036 = vsel %vm1009, %v4018, 0.0
      %v4037 = vadd.f32 %v4035, %v4036
      %v4038 = vsel %vm1009, %v4019, 0.0
      %v4039 = vadd.f32 %v4037, %v4038
      %v4040 = vsel %vm1009, %v4020, 0.0
      %v4041 = vadd.f32 %v4039, %v4040
      %v4042 = vsel %vm1009, %v4021, 0.0
      %v4043 = vadd.f32 %v4041, %v4042
      %v4044 = vsel %vm1009, %v4022, 0.0
      %v4045 = vadd.f32 %v4043, %v4044
      %v4046 = vsel %vm1009, %v4023, 0.0
      %v4047 = vadd.f32 %v4045, %v4046
      %v4048 = vsel %vm1009, %v4024, 0.0
      %v4049 = vadd.f32 %v4047, %v4048
      %v4050 = vsel %vm1009, %v4025, 0.0
      %v4051 = vadd.f32 %v4049, %v4050
      %v4052 = vsel %vm1009, %v4026, 0.0
      %v4053 = vadd.f32 %v4051, %v4052
      %v4054 = vsel %vm1009, %v4027, 0.0
      %v4055 = vadd.f32 %v4053, %v4054
      %v4056 = vsel %vm1009, %v4028, 0.0
      %v4057 = vadd.f32 %v4055, %v4056
      %v4058 = vsel %vm1009, %v4029, 0.0
      %v4059 = vadd.f32 %v4057, %v4058
      %v4060 = vsel %vm1009, %v4030, 0.0
      %v4061 = vadd.f32 %v4059, %v4060
      %v4062 = vrot.slane %v4061, 4
      %v4063 = vadd.f32 %v4061, %v4062
      %v4064 = vrot.slane %v4063, 2
      %v4065 = vadd.f32 %v4063, %v4064
      %v4066 = vrot.slane %v4065, 1
      %v4067 = vadd.f32 %v4065, %v4066
      %4068 = vst.msk [vmem:[%s489 + $0x1] sm:$0x1] %vm4013, %v4067
      %s4069 = smul.u32 16, %s24
      %p4070 = scmp.lt.s32.totalorder %s4069, 63
      %s4071 = scalar_select %p4070, %s4069, 63
      %s4072 = smul.addr %s4071, 4
      %s4073 = scalar_lea.vmem %s11, %s4072
      %p4074 = scmp.lt.s32.totalorder %s24, 3
      %s4075 = scalar_select %p4074, %s24, 3
      %s4076 = smul.addr %s4075, 2
      %s4077 = scalar_lea.vmem %s12, %s4076
      // Predicated region
      $region65: #{encoder_forward.7} parent=63 // pred_check
        %p4078 = pneg %p293
      $region66: #{encoder_forward.7} parent=63 // pred_check_branch
        %4080 = sbr.rel (%p4078) target = $region68
      $region67: #{encoder_forward.7} parent=63 // pred_region
        %s4081 = smul.u32 16, %s24
      $region68: #{encoder_forward.7} parent=63 // pred_fallthru
        _
      // Predicated region
      $region69: #{encoder_forward.7} parent=63 // pred_check
        %p4082 = pneg %p319
      $region70: #{encoder_forward.7} parent=63 // pred_check_branch
        %4084 = sbr.rel (%p4082) target = $region72
      $region71: #{encoder_forward.7} parent=63 // pred_region
        _
      $region72: #{encoder_forward.7} parent=63 // pred_fallthru
        _
    $region64: #{encoder_forward.7} parent=5 // pred_fallthru
      _
    %p4085 = scmp.le.s32.totalorder 2, %s19
    // Predicated region
    $region73: #{encoder_forward.7} parent=5 // pred_check
      %p4086 = pneg %p4085
    $region74: #{encoder_forward.7} parent=5 // pred_check_branch
      %4088 = sbr.rel (%p4086) target = $region76
    $region75: #{encoder_forward.7} parent=5 // pred_region
      %s4089 = ssub.s32 %s19, 2
      // Predicated region
      $region77: #{encoder_forward.7} parent=75 // pred_check
        %p4090 = pneg %p299
      $region78: #{encoder_forward.7} parent=75 // pred_check_branch
        %4092 = sbr.rel (%p4090) target = $region80
      $region79: #{encoder_forward.7} parent=75 // pred_region
        %s4093 = smul.u32 16, %s25
        %p4094 = scmp.lt.s32.totalorder %s4093, 63
        %s4095 = scalar_select %p4094, %s4093, 63
        %s4096 = smul.addr %s4095, 4
        %s4097 = scalar_lea.vmem %s11, %s4096
      $region80: #{encoder_forward.7} parent=75 // pred_fallthru
        _
      // Predicated region
      $region81: #{encoder_forward.7} parent=75 // pred_check
        %p4098 = pneg %p325
      $region82: #{encoder_forward.7} parent=75 // pred_check_branch
        %4100 = sbr.rel (%p4098) target = $region84
      $region83: #{encoder_forward.7} parent=75 // pred_region
        %p4101 = scmp.lt.s32.totalorder %s25, 3
        %s4102 = scalar_select %p4101, %s25, 3
        %s4103 = smul.addr %s4102, 2
        %s4104 = scalar_lea.vmem %s12, %s4103
      $region84: #{encoder_forward.7} parent=75 // pred_fallthru
        _
    $region76: #{encoder_forward.7} parent=5 // pred_fallthru
      _
  $region6: #{encoder_forward.7} parent=0 // loop_footer
    %s23 = sadd.s32 1, %s19
  $region7: #{encoder_forward.7} parent=0 // loop_footer_branch
    %18 = sbr.rel target = $region3
  $region8: #{encoder_forward.7} parent=0 // loop_exit
    _

// kernel: encoder_forward.6
$region0: #{encoder_forward.6}
  #allocation0 [shape = 'u32[]', space=smem, size = 0x4, offset = 0x4, fixed_abs, tag = 'smem constant byte address 0x4 - core index']
  #allocation1 [shape = 'u32[72,128]{1,0:T(1,128)}', space=vmem, size = 0x9000, scoped, tag = 'internal scratch']
  #allocation2 [shape = 'bf16[192,64]{1,0:T(8,128)(2,1)}', space=vmem, size = 0xc000, scoped, tag = 'scratch operand']
  %s0 = inlined_call_operand.vmem [shape: bf16[512,72], index: 0, kind: input, shape index: {}]
  %s1 = inlined_call_operand.vmem [shape: bf16[512,64], index: 1, kind: input, shape index: {}]
  %s2 = inlined_call_operand.vmem [shape: bf16[4,16,64], index: 2, kind: input, shape index: {}]
  %s3 = inlined_call_operand.vmem [shape: bf16[4,16,64], index: 3, kind: input, shape index: {}]
  %s4 = inlined_call_operand.vmem [shape: bf16[192,1], index: 4, kind: input, shape index: {}]
  %s5 = inlined_call_operand.vmem [shape: bf16[192,1], index: 5, kind: input, shape index: {}]
  %s6 = inlined_call_operand.vmem [shape: bf16[72,64], index: 6, kind: input, shape index: {}]
  %s7 = inlined_call_operand.vmem [shape: bf16[9,64,64], index: 7, kind: input, shape index: {}]
  %s8 = inlined_call_operand.vmem [shape: f32[1,64], index: 8, kind: input, shape index: {}]
  %s9 = inlined_call_operand.vmem [shape: f32[1,64], index: 9, kind: input, shape index: {}]
  %s10 = inlined_call_operand.vmem [shape: f32[1,64], index: 10, kind: input, shape index: {}]
  %s11 = inlined_call_operand.vmem [shape: bf16[512,64], index: 11, kind: output, shape index: {0}]
  %s12 = inlined_call_operand.vmem [shape: f32[4,2,64], index: 12, kind: output, shape index: {1}]
  %13 = xla_tuple %s11, %s12
  %s14 = sld [smem:[#allocation0]]
  $region85: #{encoder_forward.6} parent=0
    _
  %s16 = ssub.s32 1, %s14
  %s17 = scalar_select 0, %s16, %s14
  loop: start=0, step=1, limit=6
  $region2: #{encoder_forward.6} parent=0 // loop_pre_header
    _
  $region3: #{encoder_forward.6} parent=0 // loop_header
    %s19 = sphi 0, %s23
    %p20 = scmp.ge.s32.totalorder %s19, 6
    %s29 = sphi 0, %s31
    %s32 = sphi 0, %s29
    %s33 = sphi 0, %s32
    %s49 = sphi 0, %s33
    %s55 = sphi 0, %s57
    %s58 = sphi 0, %s55
    %s59 = sphi 0, %s58
    %s75 = sphi 0, %s59
    %s81 = sphi 0, %s83
    %s84 = sphi 0, %s81
    %s85 = sphi 0, %s84
    %s101 = sphi 0, %s85
    %s107 = sphi 0, %s109
    %s110 = sphi 0, %s107
    %s111 = sphi 0, %s110
    %s127 = sphi 0, %s111
    %s131 = sphi 0, %s131
    %s133 = sphi 0, %s131
    %s134 = sphi 0, %s133
    %s148 = sphi 0, %s134
    %s152 = sphi 0, %s152
    %s154 = sphi 0, %s152
    %s155 = sphi 0, %s154
    %s169 = sphi 0, %s155
    %s173 = sphi 0, %s173
    %s175 = sphi 0, %s173
    %s176 = sphi 0, %s175
    %s190 = sphi 0, %s176
    %s194 = sphi 0, %s194
    %s196 = sphi 0, %s194
    %s197 = sphi 0, %s196
    %s211 = sphi 0, %s197
    %s215 = sphi 0, %s215
    %s217 = sphi 0, %s215
    %s218 = sphi 0, %s217
    %s232 = sphi 0, %s218
    %s236 = sphi 0, %s236
    %s238 = sphi 0, %s236
    %s239 = sphi 0, %s238
    %s253 = sphi 0, %s239
    %s257 = sphi 0, %s257
    %s259 = sphi 0, %s257
    %s260 = sphi 0, %s259
    %s274 = sphi 0, %s260
    %s280 = sphi 0, %s282
    %s283 = sphi 0, %s280
    %s284 = sphi 0, %s283
    %s300 = sphi 0, %s284
    %s306 = sphi 0, %s308
    %s309 = sphi 0, %s306
    %s310 = sphi 0, %s309
    %s326 = sphi 0, %s310
  $region4: #{encoder_forward.6} parent=0 // loop_header_branch
    %22 = sbr.rel (%p20) target = $region8
  $region5: #{encoder_forward.6} parent=0 // loop_body
    %s24 = ssub.s32 %s19, 1
    %s25 = ssub.s32 %s19, 2
    %s26 = sadd.s32 %s19, 1
    %s27 = ssub.s32 %s19, %s26
    %p28 = scmp.eq.s32.totalorder %s27, 0
    %s30 = sadd.s32 %s29, 1
    %s31 = scalar_select %p28, %s29, %s30
    %p34 = pneg %p28
    %p35 = scmp.eq.s32.totalorder %s19, 3
    %p36 = por %p34, %p35
    %p37 = scmp.ne.s32.totalorder %s29, %s32
    %p38 = scmp.eq.s32.totalorder %s19, 0
    %p39 = por %p37, %p38
    %p40 = scmp.ne.s32.totalorder %s29, %s32
    %p41 = scmp.eq.s32.totalorder %s24, 3
    %p42 = por %p40, %p41
    %p43 = scmp.ne.s32.totalorder %s32, %s33
    %p44 = scmp.eq.s32.totalorder %s24, 0
    %p45 = por %p43, %p44
    %p46 = scmp.ne.s32.totalorder %s32, %s33
    %p47 = scmp.eq.s32.totalorder %s25, 3
    %p48 = por %p46, %p47
    %p50 = scmp.ne.s32.totalorder %s33, %s49
    %p51 = scmp.eq.s32.totalorder %s25, 0
    %p52 = por %p50, %p51
    %s53 = ssub.s32 %s19, %s26
    %p54 = scmp.eq.s32.totalorder %s53, 0
    %s56 = sadd.s32 %s55, 1
    %s57 = scalar_select %p54, %s55, %s56
    %p60 = pneg %p54
    %p61 = scmp.eq.s32.totalorder %s19, 3
    %p62 = por %p60, %p61
    %p63 = scmp.ne.s32.totalorder %s55, %s58
    %p64 = scmp.eq.s32.totalorder %s19, 0
    %p65 = por %p63, %p64
    %p66 = scmp.ne.s32.totalorder %s55, %s58
    %p67 = scmp.eq.s32.totalorder %s24, 3
    %p68 = por %p66, %p67
    %p69 = scmp.ne.s32.totalorder %s58, %s59
    %p70 = scmp.eq.s32.totalorder %s24, 0
    %p71 = por %p69, %p70
    %p72 = scmp.ne.s32.totalorder %s58, %s59
    %p73 = scmp.eq.s32.totalorder %s25, 3
    %p74 = por %p72, %p73
    %p76 = scmp.ne.s32.totalorder %s59, %s75
    %p77 = scmp.eq.s32.totalorder %s25, 0
    %p78 = por %p76, %p77
    %s79 = ssub.s32 %s19, %s26
    %p80 = scmp.eq.s32.totalorder %s79, 0
    %s82 = sadd.s32 %s81, 1
    %s83 = scalar_select %p80, %s81, %s82
    %p86 = pneg %p80
    %p87 = scmp.eq.s32.totalorder %s19, 3
    %p88 = por %p86, %p87
    %p89 = scmp.ne.s32.totalorder %s81, %s84
    %p90 = scmp.eq.s32.totalorder %s19, 0
    %p91 = por %p89, %p90
    %p92 = scmp.ne.s32.totalorder %s81, %s84
    %p93 = scmp.eq.s32.totalorder %s24, 3
    %p94 = por %p92, %p93
    %p95 = scmp.ne.s32.totalorder %s84, %s85
    %p96 = scmp.eq.s32.totalorder %s24, 0
    %p97 = por %p95, %p96
    %p98 = scmp.ne.s32.totalorder %s84, %s85
    %p99 = scmp.eq.s32.totalorder %s25, 3
    %p100 = por %p98, %p99
    %p102 = scmp.ne.s32.totalorder %s85, %s101
    %p103 = scmp.eq.s32.totalorder %s25, 0
    %p104 = por %p102, %p103
    %s105 = ssub.s32 %s19, %s26
    %p106 = scmp.eq.s32.totalorder %s105, 0
    %s108 = sadd.s32 %s107, 1
    %s109 = scalar_select %p106, %s107, %s108
    %p112 = pneg %p106
    %p113 = scmp.eq.s32.totalorder %s19, 3
    %p114 = por %p112, %p113
    %p115 = scmp.ne.s32.totalorder %s107, %s110
    %p116 = scmp.eq.s32.totalorder %s19, 0
    %p117 = por %p115, %p116
    %p118 = scmp.ne.s32.totalorder %s107, %s110
    %p119 = scmp.eq.s32.totalorder %s24, 3
    %p120 = por %p118, %p119
    %p121 = scmp.ne.s32.totalorder %s110, %s111
    %p122 = scmp.eq.s32.totalorder %s24, 0
    %p123 = por %p121, %p122
    %p124 = scmp.ne.s32.totalorder %s110, %s111
    %p125 = scmp.eq.s32.totalorder %s25, 3
    %p126 = por %p124, %p125
    %p128 = scmp.ne.s32.totalorder %s111, %s127
    %p129 = scmp.eq.s32.totalorder %s25, 0
    %p130 = por %p128, %p129
    %s132 = sadd.s32 %s131, 1
    %p135 = scmp.eq.s32.totalorder %s19, 3
    %p136 = scmp.ne.s32.totalorder %s131, %s133
    %p137 = scmp.eq.s32.totalorder %s19, 0
    %p138 = por %p136, %p137
    %p139 = scmp.ne.s32.totalorder %s131, %s133
    %p140 = scmp.eq.s32.totalorder %s24, 3
    %p141 = por %p139, %p140
    %p142 = scmp.ne.s32.totalorder %s133, %s134
    %p143 = scmp.eq.s32.totalorder %s24, 0
    %p144 = por %p142, %p143
    %p145 = scmp.ne.s32.totalorder %s133, %s134
    %p146 = scmp.eq.s32.totalorder %s25, 3
    %p147 = por %p145, %p146
    %p149 = scmp.ne.s32.totalorder %s134, %s148
    %p150 = scmp.eq.s32.totalorder %s25, 0
    %p151 = por %p149, %p150
    %s153 = sadd.s32 %s152, 1
    %p156 = scmp.eq.s32.totalorder %s19, 3
    %p157 = scmp.ne.s32.totalorder %s152, %s154
    %p158 = scmp.eq.s32.totalorder %s19, 0
    %p159 = por %p157, %p158
    %p160 = scmp.ne.s32.totalorder %s152, %s154
    %p161 = scmp.eq.s32.totalorder %s24, 3
    %p162 = por %p160, %p161
    %p163 = scmp.ne.s32.totalorder %s154, %s155
    %p164 = scmp.eq.s32.totalorder %s24, 0
    %p165 = por %p163, %p164
    %p166 = scmp.ne.s32.totalorder %s154, %s155
    %p167 = scmp.eq.s32.totalorder %s25, 3
    %p168 = por %p166, %p167
    %p170 = scmp.ne.s32.totalorder %s155, %s169
    %p171 = scmp.eq.s32.totalorder %s25, 0
    %p172 = por %p170, %p171
    %s174 = sadd.s32 %s173, 1
    %p177 = scmp.eq.s32.totalorder %s19, 3
    %p178 = scmp.ne.s32.totalorder %s173, %s175
    %p179 = scmp.eq.s32.totalorder %s19, 0
    %p180 = por %p178, %p179
    %p181 = scmp.ne.s32.totalorder %s173, %s175
    %p182 = scmp.eq.s32.totalorder %s24, 3
    %p183 = por %p181, %p182
    %p184 = scmp.ne.s32.totalorder %s175, %s176
    %p185 = scmp.eq.s32.totalorder %s24, 0
    %p186 = por %p184, %p185
    %p187 = scmp.ne.s32.totalorder %s175, %s176
    %p188 = scmp.eq.s32.totalorder %s25, 3
    %p189 = por %p187, %p188
    %p191 = scmp.ne.s32.totalorder %s176, %s190
    %p192 = scmp.eq.s32.totalorder %s25, 0
    %p193 = por %p191, %p192
    %s195 = sadd.s32 %s194, 1
    %p198 = scmp.eq.s32.totalorder %s19, 3
    %p199 = scmp.ne.s32.totalorder %s194, %s196
    %p200 = scmp.eq.s32.totalorder %s19, 0
    %p201 = por %p199, %p200
    %p202 = scmp.ne.s32.totalorder %s194, %s196
    %p203 = scmp.eq.s32.totalorder %s24, 3
    %p204 = por %p202, %p203
    %p205 = scmp.ne.s32.totalorder %s196, %s197
    %p206 = scmp.eq.s32.totalorder %s24, 0
    %p207 = por %p205, %p206
    %p208 = scmp.ne.s32.totalorder %s196, %s197
    %p209 = scmp.eq.s32.totalorder %s25, 3
    %p210 = por %p208, %p209
    %p212 = scmp.ne.s32.totalorder %s197, %s211
    %p213 = scmp.eq.s32.totalorder %s25, 0
    %p214 = por %p212, %p213
    %s216 = sadd.s32 %s215, 1
    %p219 = scmp.eq.s32.totalorder %s19, 3
    %p220 = scmp.ne.s32.totalorder %s215, %s217
    %p221 = scmp.eq.s32.totalorder %s19, 0
    %p222 = por %p220, %p221
    %p223 = scmp.ne.s32.totalorder %s215, %s217
    %p224 = scmp.eq.s32.totalorder %s24, 3
    %p225 = por %p223, %p224
    %p226 = scmp.ne.s32.totalorder %s217, %s218
    %p227 = scmp.eq.s32.totalorder %s24, 0
    %p228 = por %p226, %p227
    %p229 = scmp.ne.s32.totalorder %s217, %s218
    %p230 = scmp.eq.s32.totalorder %s25, 3
    %p231 = por %p229, %p230
    %p233 = scmp.ne.s32.totalorder %s218, %s232
    %p234 = scmp.eq.s32.totalorder %s25, 0
    %p235 = por %p233, %p234
    %s237 = sadd.s32 %s236, 1
    %p240 = scmp.eq.s32.totalorder %s19, 3
    %p241 = scmp.ne.s32.totalorder %s236, %s238
    %p242 = scmp.eq.s32.totalorder %s19, 0
    %p243 = por %p241, %p242
    %p244 = scmp.ne.s32.totalorder %s236, %s238
    %p245 = scmp.eq.s32.totalorder %s24, 3
    %p246 = por %p244, %p245
    %p247 = scmp.ne.s32.totalorder %s238, %s239
    %p248 = scmp.eq.s32.totalorder %s24, 0
    %p249 = por %p247, %p248
    %p250 = scmp.ne.s32.totalorder %s238, %s239
    %p251 = scmp.eq.s32.totalorder %s25, 3
    %p252 = por %p250, %p251
    %p254 = scmp.ne.s32.totalorder %s239, %s253
    %p255 = scmp.eq.s32.totalorder %s25, 0
    %p256 = por %p254, %p255
    %s258 = sadd.s32 %s257, 1
    %p261 = scmp.eq.s32.totalorder %s19, 3
    %p262 = scmp.ne.s32.totalorder %s257, %s259
    %p263 = scmp.eq.s32.totalorder %s19, 0
    %p264 = por %p262, %p263
    %p265 = scmp.ne.s32.totalorder %s257, %s259
    %p266 = scmp.eq.s32.totalorder %s24, 3
    %p267 = por %p265, %p266
    %p268 = scmp.ne.s32.totalorder %s259, %s260
    %p269 = scmp.eq.s32.totalorder %s24, 0
    %p270 = por %p268, %p269
    %p271 = scmp.ne.s32.totalorder %s259, %s260
    %p272 = scmp.eq.s32.totalorder %s25, 3
    %p273 = por %p271, %p272
    %p275 = scmp.ne.s32.totalorder %s260, %s274
    %p276 = scmp.eq.s32.totalorder %s25, 0
    %p277 = por %p275, %p276
    %s278 = ssub.s32 %s19, %s26
    %p279 = scmp.eq.s32.totalorder %s278, 0
    %s281 = sadd.s32 %s280, 1
    %s282 = scalar_select %p279, %s280, %s281
    %p285 = pneg %p279
    %p286 = scmp.eq.s32.totalorder %s19, 3
    %p287 = por %p285, %p286
    %p288 = scmp.ne.s32.totalorder %s280, %s283
    %p289 = scmp.eq.s32.totalorder %s19, 0
    %p290 = por %p288, %p289
    %p291 = scmp.ne.s32.totalorder %s280, %s283
    %p292 = scmp.eq.s32.totalorder %s24, 3
    %p293 = por %p291, %p292
    %p294 = scmp.ne.s32.totalorder %s283, %s284
    %p295 = scmp.eq.s32.totalorder %s24, 0
    %p296 = por %p294, %p295
    %p297 = scmp.ne.s32.totalorder %s283, %s284
    %p298 = scmp.eq.s32.totalorder %s25, 3
    %p299 = por %p297, %p298
    %p301 = scmp.ne.s32.totalorder %s284, %s300
    %p302 = scmp.eq.s32.totalorder %s25, 0
    %p303 = por %p301, %p302
    %s304 = ssub.s32 %s19, %s26
    %p305 = scmp.eq.s32.totalorder %s304, 0
    %s307 = sadd.s32 %s306, 1
    %s308 = scalar_select %p305, %s306, %s307
    %p311 = pneg %p305
    %p312 = scmp.eq.s32.totalorder %s19, 3
    %p313 = por %p311, %p312
    %p314 = scmp.ne.s32.totalorder %s306, %s309
    %p315 = scmp.eq.s32.totalorder %s19, 0
    %p316 = por %p314, %p315
    %p317 = scmp.ne.s32.totalorder %s306, %s309
    %p318 = scmp.eq.s32.totalorder %s24, 3
    %p319 = por %p317, %p318
    %p320 = scmp.ne.s32.totalorder %s309, %s310
    %p321 = scmp.eq.s32.totalorder %s24, 0
    %p322 = por %p320, %p321
    %p323 = scmp.ne.s32.totalorder %s309, %s310
    %p324 = scmp.eq.s32.totalorder %s25, 3
    %p325 = por %p323, %p324
    %p327 = scmp.ne.s32.totalorder %s310, %s326
    %p328 = scmp.eq.s32.totalorder %s25, 0
    %p329 = por %p327, %p328
    %p330 = scmp.le.s32.totalorder 1, %s19
    %p331 = scmp.lt.s32.totalorder %s19, 5
    %p332 = pnand %p330, %p331
    %p333 = pneg %p332
    // Predicated region
    $region9: #{encoder_forward.6} parent=5 // pred_check
      _
    $region10: #{encoder_forward.6} parent=5 // pred_check_branch
      %335 = sbr.rel (%p332) target = $region12
    $region11: #{encoder_forward.6} parent=5 // pred_region
      %s336 = ssub.s32 %s19, 1
      // Predicated region
      $region13: #{encoder_forward.6} parent=11 // pred_check
        %p337 = pneg %p144
      $region14: #{encoder_forward.6} parent=11 // pred_check_branch
        %339 = sbr.rel (%p337) target = $region16
      $region15: #{encoder_forward.6} parent=11 // pred_region
        _
      $region16: #{encoder_forward.6} parent=11 // pred_fallthru
        _
      // Predicated region
      $region17: #{encoder_forward.6} parent=11 // pred_check
        %p340 = pneg %p165
      $region18: #{encoder_forward.6} parent=11 // pred_check_branch
        %342 = sbr.rel (%p340) target = $region20
      $region19: #{encoder_forward.6} parent=11 // pred_region
        _
      $region20: #{encoder_forward.6} parent=11 // pred_fallthru
        _
      // Predicated region
      $region21: #{encoder_forward.6} parent=11 // pred_check
        %p343 = pneg %p186
      $region22: #{encoder_forward.6} parent=11 // pred_check_branch
        %345 = sbr.rel (%p343) target = $region24
      $region23: #{encoder_forward.6} parent=11 // pred_region
        _
      $region24: #{encoder_forward.6} parent=11 // pred_fallthru
        _
      // Predicated region
      $region25: #{encoder_forward.6} parent=11 // pred_check
        %p346 = pneg %p207
      $region26: #{encoder_forward.6} parent=11 // pred_check_branch
        %348 = sbr.rel (%p346) target = $region28
      $region27: #{encoder_forward.6} parent=11 // pred_region
        _
      $region28: #{encoder_forward.6} parent=11 // pred_fallthru
        _
      // Predicated region
      $region29: #{encoder_forward.6} parent=11 // pred_check
        %p349 = pneg %p228
      $region30: #{encoder_forward.6} parent=11 // pred_check_branch
        %351 = sbr.rel (%p349) target = $region32
      $region31: #{encoder_forward.6} parent=11 // pred_region
        _
      $region32: #{encoder_forward.6} parent=11 // pred_fallthru
        _
      // Predicated region
      $region33: #{encoder_forward.6} parent=11 // pred_check
        %p352 = pneg %p249
      $region34: #{encoder_forward.6} parent=11 // pred_check_branch
        %354 = sbr.rel (%p352) target = $region36
      $region35: #{encoder_forward.6} parent=11 // pred_region
        _
      $region36: #{encoder_forward.6} parent=11 // pred_fallthru
        _
      // Predicated region
      $region37: #{encoder_forward.6} parent=11 // pred_check
        %p355 = pneg %p270
      $region38: #{encoder_forward.6} parent=11 // pred_check_branch
        %357 = sbr.rel (%p355) target = $region40
      $region39: #{encoder_forward.6} parent=11 // pred_region
        _
      $region40: #{encoder_forward.6} parent=11 // pred_fallthru
        _
    $region12: #{encoder_forward.6} parent=5 // pred_fallthru
      _
    %p358 = scmp.lt.s32.totalorder %s19, 4
    // Predicated region
    $region41: #{encoder_forward.6} parent=5 // pred_check
      %p359 = pneg %p358
    $region42: #{encoder_forward.6} parent=5 // pred_check_branch
      %361 = sbr.rel (%p359) target = $region44
    $region43: #{encoder_forward.6} parent=5 // pred_region
      // Predicated region
      $region45: #{encoder_forward.6} parent=43 // pred_check
        %p362 = pneg %p39
      $region46: #{encoder_forward.6} parent=43 // pred_check_branch
        %364 = sbr.rel (%p362) target = $region48
      $region47: #{encoder_forward.6} parent=43 // pred_region
        %s365 = smul.u32 16, %s19
        %p366 = scmp.lt.s32.totalorder %s365, 63
        %s367 = scalar_select %p366, %s365, 63
        %s368 = smul.addr %s367, 4
        %s369 = scalar_lea.vmem %s0, %s368
        %s370 = smul.u32 16, %s19
      $region48: #{encoder_forward.6} parent=43 // pred_fallthru
        _
      // Predicated region
      $region49: #{encoder_forward.6} parent=43 // pred_check
        %p371 = pneg %p65
      $region50: #{encoder_forward.6} parent=43 // pred_check_branch
        %373 = sbr.rel (%p371) target = $region52
      $region51: #{encoder_forward.6} parent=43 // pred_region
        %s374 = smul.u32 16, %s19
        %p375 = scmp.lt.s32.totalorder %s374, 63
        %s376 = scalar_select %p375, %s374, 63
        %s377 = smul.addr %s376, 4
        %s378 = scalar_lea.vmem %s1, %s377
        %s379 = smul.u32 16, %s19
      $region52: #{encoder_forward.6} parent=43 // pred_fallthru
        _
      // Predicated region
      $region53: #{encoder_forward.6} parent=43 // pred_check
        %p380 = pneg %p91
      $region54: #{encoder_forward.6} parent=43 // pred_check_branch
        %382 = sbr.rel (%p380) target = $region56
      $region55: #{encoder_forward.6} parent=43 // pred_region
        %p383 = scmp.lt.s32.totalorder %s19, 3
        %s384 = scalar_select %p383, %s19, 3
        %s385 = smul.addr %s384, 2
        %s386 = smul.addr %s385, 4
        %s387 = scalar_lea.vmem %s2, %s386
      $region56: #{encoder_forward.6} parent=43 // pred_fallthru
        _
      // Predicated region
      $region57: #{encoder_forward.6} parent=43 // pred_check
        %p388 = pneg %p117
      $region58: #{encoder_forward.6} parent=43 // pred_check_branch
        %390 = sbr.rel (%p388) target = $region60
      $region59: #{encoder_forward.6} parent=43 // pred_region
        %p391 = scmp.lt.s32.totalorder %s19, 3
        %s392 = scalar_select %p391, %s19, 3
        %s393 = smul.addr %s392, 2
        %s394 = smul.addr %s393, 4
        %s395 = scalar_lea.vmem %s3, %s394
      $region60: #{encoder_forward.6} parent=43 // pred_fallthru
        _
    $region44: #{encoder_forward.6} parent=5 // pred_fallthru
      _
    %p396 = scmp.le.s32.totalorder 1, %s19
    %p397 = scmp.lt.s32.totalorder %s19, 5
    %p398 = pnand %p396, %p397
    %p399 = pneg %p398
    // Predicated region
    $region61: #{encoder_forward.6} parent=5 // pred_check
      _
    $region62: #{encoder_forward.6} parent=5 // pred_check_branch
      %401 = sbr.rel (%p398) target = $region64
    $region63: #{encoder_forward.6} parent=5 // pred_region
      %s402 = ssub.s32 %s19, 1
      %s403 = smul.u32 16, %s24
      %p404 = scmp.lt.s32.totalorder %s403, 63
      %s405 = scalar_select %p404, %s403, 63
      %s406 = smul.addr %s405, 4
      %s407 = scalar_lea.vmem %s0, %s406
      %p408 = pneg %p45
      %p409 = pneg %p42
      %s410 = smul.u32 16, %s24
      %p411 = scmp.lt.s32.totalorder %s410, 63
      %s412 = scalar_select %p411, %s410, 63
      %s413 = smul.addr %s412, 4
      %s414 = scalar_lea.vmem %s1, %s413
      %p415 = pneg %p71
      %p416 = pneg %p68
      %p417 = scmp.lt.s32.totalorder %s24, 3
      %s418 = scalar_select %p417, %s24, 3
      %s419 = smul.addr %s418, 2
      %s420 = smul.addr %s419, 4
      %s421 = scalar_lea.vmem %s2, %s420
      %p422 = pneg %p97
      %p423 = pneg %p94
      %p424 = scmp.lt.s32.totalorder %s24, 3
      %s425 = scalar_select %p424, %s24, 3
      %s426 = smul.addr %s425, 2
      %s427 = smul.addr %s426, 4
      %s428 = scalar_lea.vmem %s3, %s427
      %p429 = pneg %p123
      %p430 = pneg %p120
      %p431 = pneg %p144
      %p432 = pneg %p141
      %p433 = pneg %p165
      %p434 = pneg %p162
      %p435 = pneg %p186
      %p436 = pneg %p183
      %p437 = pneg %p207
      %p438 = pneg %p204
      %p439 = pneg %p228
      %p440 = pneg %p225
      %p441 = pneg %p249
      %p442 = pneg %p246
      %p443 = pneg %p270
      %p444 = pneg %p267
      %p445 = pneg %p296
      %p446 = pneg %p293
      %s447 = smul.u32 16, %s24
      %p448 = scmp.lt.s32.totalorder %s447, 63
      %s449 = scalar_select %p448, %s447, 63
      %s450 = smul.addr %s449, 4
      %s451 = scalar_lea.vmem %s11, %s450
      %p452 = pneg %p322
      %p453 = pneg %p319
      %p454 = scmp.lt.s32.totalorder %s24, 3
      %s455 = scalar_select %p454, %s24, 3
      %s456 = smul.addr %s455, 2
      %s457 = scalar_lea.vmem %s12, %s456
      %s458 = smul.u32 16, %s24
      %p459 = scmp.lt.s32.totalorder %s458, 63
      %s460 = scalar_select %p459, %s458, 63
      %s461 = smul.addr %s460, 4
      %s462 = scalar_lea.vmem %s0, %s461
      %s463 = smul.u32 16, %s24
      %s464 = smul.u32 16, %s24
      %p465 = scmp.lt.s32.totalorder %s464, 63
      %s466 = scalar_select %p465, %s464, 63
      %s467 = smul.addr %s466, 4
      %s468 = scalar_lea.vmem %s1, %s467
      %s469 = smul.u32 16, %s24
      %p470 = scmp.lt.s32.totalorder %s24, 3
      %s471 = scalar_select %p470, %s24, 3
      %s472 = smul.addr %s471, 2
      %s473 = smul.addr %s472, 4
      %s474 = scalar_lea.vmem %s2, %s473
      %p475 = scmp.lt.s32.totalorder %s24, 3
      %s476 = scalar_select %p475, %s24, 3
      %s477 = smul.addr %s476, 2
      %s478 = smul.addr %s477, 4
      %s479 = scalar_lea.vmem %s3, %s478
      %s480 = smul.u32 16, %s24
      %p481 = scmp.lt.s32.totalorder %s480, 63
      %s482 = scalar_select %p481, %s480, 63
      %s483 = smul.addr %s482, 4
      %s484 = scalar_lea.vmem %s11, %s483
      %s485 = smul.u32 16, %s24
      %p486 = scmp.lt.s32.totalorder %s24, 3
      %s487 = scalar_select %p486, %s24, 3
      %s488 = smul.addr %s487, 2
      %s489 = scalar_lea.vmem %s12, %s488
      %v491 = vld [vmem:[%s468] sm:$0xf]
      %v492 = vld [vmem:[%s468 + $0x4] sm:$0xf]
      %v493 = vld [vmem:[%s468 + $0x8] sm:$0xf]
      %v494 = vld [vmem:[%s468 + $0xc] sm:$0xf]
      %v495 = vld [vmem:[%s468 + $0x10] sm:$0xf]
      %v496 = vld [vmem:[%s468 + $0x14] sm:$0xf]
      %v497 = vld [vmem:[%s468 + $0x18] sm:$0xf]
      %v498 = vld [vmem:[%s468 + $0x1c] sm:$0xf]
      %v499 = vld [vmem:[%s468 + $0x20] sm:$0xf]
      %v500 = vld [vmem:[%s468 + $0x24] sm:$0xf]
      %v501 = vld [vmem:[%s468 + $0x28] sm:$0xf]
      %v502 = vld [vmem:[%s468 + $0x2c] sm:$0xf]
      %v503 = vld [vmem:[%s468 + $0x30] sm:$0xf]
      %v504 = vld [vmem:[%s468 + $0x34] sm:$0xf]
      %v505 = vld [vmem:[%s468 + $0x38] sm:$0xf]
      %v506 = vld [vmem:[%s468 + $0x3c] sm:$0xf]
      %v507 = vunpack.c.l.bf16 %v491
      %v508 = vunpack.c.l.bf16 %v492
      %v509 = vunpack.c.l.bf16 %v493
      %v510 = vunpack.c.l.bf16 %v494
      %v511 = vunpack.c.l.bf16 %v495
      %v512 = vunpack.c.l.bf16 %v496
      %v513 = vunpack.c.l.bf16 %v497
      %v514 = vunpack.c.l.bf16 %v498
      %v515 = vunpack.c.l.bf16 %v499
      %v516 = vunpack.c.l.bf16 %v500
      %v517 = vunpack.c.l.bf16 %v501
      %v518 = vunpack.c.l.bf16 %v502
      %v519 = vunpack.c.l.bf16 %v503
      %v520 = vunpack.c.l.bf16 %v504
      %v521 = vunpack.c.l.bf16 %v505
      %v522 = vunpack.c.l.bf16 %v506
      %v523 = vld [vmem:[%s9] sm:$0x1]
      %v525 = vperm.slane %v523, 0
      %v527 = vmul.f32 %v507, %v525
      %v528 = vmul.f32 %v508, %v525
      %v529 = vmul.f32 %v509, %v525
      %v530 = vmul.f32 %v510, %v525
      %v531 = vmul.f32 %v511, %v525
      %v532 = vmul.f32 %v512, %v525
      %v533 = vmul.f32 %v513, %v525
      %v534 = vmul.f32 %v514, %v525
      %v535 = vmul.f32 %v515, %v525
      %v536 = vmul.f32 %v516, %v525
      %v537 = vmul.f32 %v517, %v525
      %v538 = vmul.f32 %v518, %v525
      %v539 = vmul.f32 %v519, %v525
      %v540 = vmul.f32 %v520, %v525
      %v541 = vmul.f32 %v521, %v525
      %v542 = vmul.f32 %v522, %v525
      %v543 = vld [vmem:[%s10] sm:$0x1]
      %v545 = vperm.slane %v543, 0
      %v547 = vadd.f32 %v527, %v545
      %v548 = vadd.f32 %v528, %v545
      %v549 = vadd.f32 %v529, %v545
      %v550 = vadd.f32 %v530, %v545
      %v551 = vadd.f32 %v531, %v545
      %v552 = vadd.f32 %v532, %v545
      %v553 = vadd.f32 %v533, %v545
      %v554 = vadd.f32 %v534, %v545
      %v555 = vadd.f32 %v535, %v545
      %v556 = vadd.f32 %v536, %v545
      %v557 = vadd.f32 %v537, %v545
      %v558 = vadd.f32 %v538, %v545
      %v559 = vadd.f32 %v539, %v545
      %v560 = vadd.f32 %v540, %v545
      %v561 = vadd.f32 %v541, %v545
      %v562 = vadd.f32 %v542, %v545
      %v563 = vpack.c.bf16 %v547, %v547
      %v564 = vpack.c.bf16 %v548, %v548
      %v565 = vpack.c.bf16 %v549, %v549
      %v566 = vpack.c.bf16 %v550, %v550
      %v567 = vpack.c.bf16 %v551, %v551
      %v568 = vpack.c.bf16 %v552, %v552
      %v569 = vpack.c.bf16 %v553, %v553
      %v570 = vpack.c.bf16 %v554, %v554
      %v571 = vpack.c.bf16 %v555, %v555
      %v572 = vpack.c.bf16 %v556, %v556
      %v573 = vpack.c.bf16 %v557, %v557
      %v574 = vpack.c.bf16 %v558, %v558
      %v575 = vpack.c.bf16 %v559, %v559
      %v576 = vpack.c.bf16 %v560, %v560
      %v577 = vpack.c.bf16 %v561, %v561
      %v578 = vpack.c.bf16 %v562, %v562
      %vm579 = vcmask 519168
      %580 = vst.msk [vmem:[#allocation2] sm:$0xf] %vm579, 0
      %581 = vst.msk [vmem:[#allocation2 + $0x4] sm:$0xf] %vm579, 0
      %v582 = vld [vmem:[%s474] sm:$0xf]
      %v583 = vld [vmem:[%s474 + $0x4] sm:$0xf]
      %584 = vst.msk [vmem:[#allocation2 + $0x8] sm:$0xf] %vm579, %v582
      %585 = vst.msk [vmem:[#allocation2 + $0xc] sm:$0xf] %vm579, %v583
      %586 = vst.msk [vmem:[#allocation2 + $0x10] sm:$0xf] %vm579, %v563
      %587 = vst.msk [vmem:[#allocation2 + $0x14] sm:$0xf] %vm579, %v564
      %588 = vst.msk [vmem:[#allocation2 + $0x18] sm:$0xf] %vm579, %v565
      %589 = vst.msk [vmem:[#allocation2 + $0x1c] sm:$0xf] %vm579, %v566
      %590 = vst.msk [vmem:[#allocation2 + $0x20] sm:$0xf] %vm579, %v567
      %591 = vst.msk [vmem:[#allocation2 + $0x24] sm:$0xf] %vm579, %v568
      %592 = vst.msk [vmem:[#allocation2 + $0x28] sm:$0xf] %vm579, %v569
      %593 = vst.msk [vmem:[#allocation2 + $0x2c] sm:$0xf] %vm579, %v570
      %594 = vst.msk [vmem:[#allocation2 + $0x30] sm:$0xf] %vm579, %v571
      %595 = vst.msk [vmem:[#allocation2 + $0x34] sm:$0xf] %vm579, %v572
      %596 = vst.msk [vmem:[#allocation2 + $0x38] sm:$0xf] %vm579, %v573
      %597 = vst.msk [vmem:[#allocation2 + $0x3c] sm:$0xf] %vm579, %v574
      %598 = vst.msk [vmem:[#allocation2 + $0x40] sm:$0xf] %vm579, %v575
      %599 = vst.msk [vmem:[#allocation2 + $0x44] sm:$0xf] %vm579, %v576
      %600 = vst.msk [vmem:[#allocation2 + $0x48] sm:$0xf] %vm579, %v577
      %601 = vst.msk [vmem:[#allocation2 + $0x4c] sm:$0xf] %vm579, %v578
      %v602 = vld [vmem:[%s479] sm:$0xf]
      %v603 = vld [vmem:[%s479 + $0x4] sm:$0xf]
      %604 = vst.msk [vmem:[#allocation2 + $0x50] sm:$0xf] %vm579, %v602
      %605 = vst.msk [vmem:[#allocation2 + $0x54] sm:$0xf] %vm579, %v603
      %606 = vst.msk [vmem:[#allocation2 + $0x58] sm:$0xf] %vm579, 0
      %607 = vst.msk [vmem:[#allocation2 + $0x5c] sm:$0xf] %vm579, 0
      %v608 = vld [vmem:[%s462] sm:$0xf]
      %v609 = vld [vmem:[%s462 + $0x4] sm:$0xf]
      %v610 = vld [vmem:[%s462 + $0x8] sm:$0xf]
      %v611 = vld [vmem:[%s462 + $0xc] sm:$0xf]
      %v612 = vld [vmem:[%s462 + $0x10] sm:$0xf]
      %v613 = vld [vmem:[%s462 + $0x14] sm:$0xf]
      %v614 = vld [vmem:[%s462 + $0x18] sm:$0xf]
      %v615 = vld [vmem:[%s462 + $0x1c] sm:$0xf]
      %v616 = vld [vmem:[%s462 + $0x20] sm:$0xf]
      %v617 = vld [vmem:[%s462 + $0x24] sm:$0xf]
      %v618 = vld [vmem:[%s462 + $0x28] sm:$0xf]
      %v619 = vld [vmem:[%s462 + $0x2c] sm:$0xf]
      %v620 = vld [vmem:[%s462 + $0x30] sm:$0xf]
      %v621 = vld [vmem:[%s462 + $0x34] sm:$0xf]
      %v622 = vld [vmem:[%s462 + $0x38] sm:$0xf]
      %v623 = vld [vmem:[%s462 + $0x3c] sm:$0xf]
      %v624 = vld [vmem:[%s6] sm:$0xf]
      %v625 = vld [vmem:[%s6 + $0x4] sm:$0xf]
      %v626 = vld [vmem:[%s6 + $0x8] sm:$0xf]
      %v627 = vld [vmem:[%s6 + $0xc] sm:$0xf]
      %v628 = vld [vmem:[%s6 + $0x10] sm:$0xf]
      %v629 = vld [vmem:[%s6 + $0x14] sm:$0xf]
      %v630 = vld [vmem:[%s6 + $0x18] sm:$0xf]
      %v631 = vld [vmem:[%s6 + $0x1c] sm:$0xf]
      %v632 = vld [vmem:[%s6 + $0x20] sm:$0xf]
      %v633 = vld [vmem:[#allocation2 + $0x4] sm:$0x8]
      %v634 = vld [vmem:[#allocation2 + $0x8] sm:$0xf]
      %v635 = vld [vmem:[#allocation2 + $0xc] sm:$0xf]
      %v636 = vld [vmem:[#allocation2 + $0x10] sm:$0xf]
      %v637 = vld [vmem:[#allocation2 + $0x14] sm:$0xf]
      %v638 = vld [vmem:[#allocation2 + $0x18] sm:$0xf]
      %v639 = vld [vmem:[#allocation2 + $0x1c] sm:$0xf]
      %v640 = vld [vmem:[#allocation2 + $0x20] sm:$0xf]
      %v641 = vld [vmem:[#allocation2 + $0x24] sm:$0xf]
      %v642 = vld [vmem:[#allocation2 + $0x28] sm:$0xf]
      %v643 = vld [vmem:[#allocation2 + $0x2c] sm:$0xf]
      %v644 = vld [vmem:[#allocation2 + $0x30] sm:$0xf]
      %v645 = vld [vmem:[#allocation2 + $0x34] sm:$0xf]
      %v646 = vld [vmem:[#allocation2 + $0x38] sm:$0xf]
      %v647 = vld [vmem:[#allocation2 + $0x3c] sm:$0xf]
      %v648 = vld [vmem:[#allocation2 + $0x40] sm:$0xf]
      %v649 = vld [vmem:[#allocation2 + $0x44] sm:$0xf]
      %v650 = vld [vmem:[%s4 + $0x4] sm:$0x8]
      %v651 = vld [vmem:[%s4 + $0x8] sm:$0xf]
      %v652 = vld [vmem:[%s4 + $0xc] sm:$0xf]
      %v653 = vld [vmem:[%s4 + $0x10] sm:$0xf]
      %v654 = vld [vmem:[%s4 + $0x14] sm:$0xf]
      %v655 = vld [vmem:[%s4 + $0x18] sm:$0xf]
      %v656 = vld [vmem:[%s4 + $0x1c] sm:$0xf]
      %v657 = vld [vmem:[%s4 + $0x20] sm:$0xf]
      %v658 = vld [vmem:[%s4 + $0x24] sm:$0xf]
      %v659 = vld [vmem:[%s4 + $0x28] sm:$0xf]
      %v660 = vld [vmem:[%s4 + $0x2c] sm:$0xf]
      %v661 = vld [vmem:[%s4 + $0x30] sm:$0xf]
      %v662 = vld [vmem:[%s4 + $0x34] sm:$0xf]
      %v663 = vld [vmem:[%s4 + $0x38] sm:$0xf]
      %v664 = vld [vmem:[%s4 + $0x3c] sm:$0xf]
      %v665 = vld [vmem:[%s4 + $0x40] sm:$0xf]
      %v666 = vld [vmem:[%s4 + $0x44] sm:$0xf]
      %668 = vset.pattern.permute.xlu0 0
      %669 = vperm.xlu0 %668, %v650
      %v670 = vpop.permute.xlu0 %669
      %v673 = vunpack.c.l.s4 839922192
      %v674 = vunpack.c.0.s8 %v673
      %v675 = vperm.slane %v670, %v674
      %677 = vset.pattern.permute.xlu0 0
      %678 = vperm.xlu0 %677, %v651
      %v679 = vpop.permute.xlu0 %678
      %v682 = vunpack.c.l.s4 839922192
      %v683 = vunpack.c.0.s8 %v682
      %v684 = vperm.slane %v679, %v683
      %686 = vset.pattern.permute.xlu0 0
      %687 = vperm.xlu0 %686, %v652
      %v688 = vpop.permute.xlu0 %687
      %v691 = vunpack.c.l.s4 839922192
      %v692 = vunpack.c.0.s8 %v691
      %v693 = vperm.slane %v688, %v692
      %695 = vset.pattern.permute.xlu0 0
      %696 = vperm.xlu0 %695, %v653
      %v697 = vpop.permute.xlu0 %696
      %v700 = vunpack.c.l.s4 839922192
      %v701 = vunpack.c.0.s8 %v700
      %v702 = vperm.slane %v697, %v701
      %704 = vset.pattern.permute.xlu0 0
      %705 = vperm.xlu0 %704, %v654
      %v706 = vpop.permute.xlu0 %705
      %v709 = vunpack.c.l.s4 839922192
      %v710 = vunpack.c.0.s8 %v709
      %v711 = vperm.slane %v706, %v710
      %713 = vset.pattern.permute.xlu0 0
      %714 = vperm.xlu0 %713, %v655
      %v715 = vpop.permute.xlu0 %714
      %v718 = vunpack.c.l.s4 839922192
      %v719 = vunpack.c.0.s8 %v718
      %v720 = vperm.slane %v715, %v719
      %722 = vset.pattern.permute.xlu0 0
      %723 = vperm.xlu0 %722, %v656
      %v724 = vpop.permute.xlu0 %723
      %v727 = vunpack.c.l.s4 839922192
      %v728 = vunpack.c.0.s8 %v727
      %v729 = vperm.slane %v724, %v728
      %731 = vset.pattern.permute.xlu0 0
      %732 = vperm.xlu0 %731, %v657
      %v733 = vpop.permute.xlu0 %732
      %v736 = vunpack.c.l.s4 839922192
      %v737 = vunpack.c.0.s8 %v736
      %v738 = vperm.slane %v733, %v737
      %740 = vset.pattern.permute.xlu0 0
      %741 = vperm.xlu0 %740, %v658
      %v742 = vpop.permute.xlu0 %741
      %v745 = vunpack.c.l.s4 839922192
      %v746 = vunpack.c.0.s8 %v745
      %v747 = vperm.slane %v742, %v746
      %749 = vset.pattern.permute.xlu0 0
      %750 = vperm.xlu0 %749, %v659
      %v751 = vpop.permute.xlu0 %750
      %v754 = vunpack.c.l.s4 839922192
      %v755 = vunpack.c.0.s8 %v754
      %v756 = vperm.slane %v751, %v755
      %758 = vset.pattern.permute.xlu0 0
      %759 = vperm.xlu0 %758, %v660
      %v760 = vpop.permute.xlu0 %759
      %v763 = vunpack.c.l.s4 839922192
      %v764 = vunpack.c.0.s8 %v763
      %v765 = vperm.slane %v760, %v764
      %767 = vset.pattern.permute.xlu0 0
      %768 = vperm.xlu0 %767, %v661
      %v769 = vpop.permute.xlu0 %768
      %v772 = vunpack.c.l.s4 839922192
      %v773 = vunpack.c.0.s8 %v772
      %v774 = vperm.slane %v769, %v773
      %776 = vset.pattern.permute.xlu0 0
      %777 = vperm.xlu0 %776, %v662
      %v778 = vpop.permute.xlu0 %777
      %v781 = vunpack.c.l.s4 839922192
      %v782 = vunpack.c.0.s8 %v781
      %v783 = vperm.slane %v778, %v782
      %785 = vset.pattern.permute.xlu0 0
      %786 = vperm.xlu0 %785, %v663
      %v787 = vpop.permute.xlu0 %786
      %v790 = vunpack.c.l.s4 839922192
      %v791 = vunpack.c.0.s8 %v790
      %v792 = vperm.slane %v787, %v791
      %794 = vset.pattern.permute.xlu0 0
      %795 = vperm.xlu0 %794, %v664
      %v796 = vpop.permute.xlu0 %795
      %v799 = vunpack.c.l.s4 839922192
      %v800 = vunpack.c.0.s8 %v799
      %v801 = vperm.slane %v796, %v800
      %803 = vset.pattern.permute.xlu0 0
      %804 = vperm.xlu0 %803, %v665
      %v805 = vpop.permute.xlu0 %804
      %v808 = vunpack.c.l.s4 839922192
      %v809 = vunpack.c.0.s8 %v808
      %v810 = vperm.slane %v805, %v809
      %812 = vset.pattern.permute.xlu0 0
      %813 = vperm.xlu0 %812, %v666
      %v814 = vpop.permute.xlu0 %813
      %v817 = vunpack.c.l.s4 839922192
      %v818 = vunpack.c.0.s8 %v817
      %v819 = vperm.slane %v814, %v818
      %v820 = vunpack.c.l.bf16 %v633
      %v821 = vunpack.c.l.bf16 %v634
      %v822 = vunpack.c.l.bf16 %v635
      %v823 = vunpack.c.l.bf16 %v636
      %v824 = vunpack.c.l.bf16 %v637
      %v825 = vunpack.c.l.bf16 %v638
      %v826 = vunpack.c.l.bf16 %v639
      %v827 = vunpack.c.l.bf16 %v640
      %v828 = vunpack.c.l.bf16 %v641
      %v829 = vunpack.c.l.bf16 %v642
      %v830 = vunpack.c.l.bf16 %v643
      %v831 = vunpack.c.l.bf16 %v644
      %v832 = vunpack.c.l.bf16 %v645
      %v833 = vunpack.c.l.bf16 %v646
      %v834 = vunpack.c.l.bf16 %v647
      %v835 = vunpack.c.l.bf16 %v648
      %v836 = vunpack.c.l.bf16 %v649
      %v837 = vunpack.c.l.bf16 %v675
      %v838 = vunpack.c.l.bf16 %v684
      %v839 = vunpack.c.l.bf16 %v693
      %v840 = vunpack.c.l.bf16 %v702
      %v841 = vunpack.c.l.bf16 %v711
      %v842 = vunpack.c.l.bf16 %v720
      %v843 = vunpack.c.l.bf16 %v729
      %v844 = vunpack.c.l.bf16 %v738
      %v845 = vunpack.c.l.bf16 %v747
      %v846 = vunpack.c.l.bf16 %v756
      %v847 = vunpack.c.l.bf16 %v765
      %v848 = vunpack.c.l.bf16 %v774
      %v849 = vunpack.c.l.bf16 %v783
      %v850 = vunpack.c.l.bf16 %v792
      %v851 = vunpack.c.l.bf16 %v801
      %v852 = vunpack.c.l.bf16 %v810
      %v853 = vunpack.c.l.bf16 %v819
      %v854 = vmul.f32 %v820, %v837
      %v855 = vmul.f32 %v821, %v838
      %v856 = vmul.f32 %v822, %v839
      %v857 = vmul.f32 %v823, %v840
      %v858 = vmul.f32 %v824, %v841
      %v859 = vmul.f32 %v825, %v842
      %v860 = vmul.f32 %v826, %v843
      %v861 = vmul.f32 %v827, %v844
      %v862 = vmul.f32 %v828, %v845
      %v863 = vmul.f32 %v829, %v846
      %v864 = vmul.f32 %v830, %v847
      %v865 = vmul.f32 %v831, %v848
      %v866 = vmul.f32 %v832, %v849
      %v867 = vmul.f32 %v833, %v850
      %v868 = vmul.f32 %v834, %v851
      %v869 = vmul.f32 %v835, %v852
      %v870 = vmul.f32 %v836, %v853
      %v871 = vpack.c.bf16 %v855, %v854
      %v872 = vpack.c.bf16 %v857, %v856
      %v873 = vpack.c.bf16 %v859, %v858
      %v874 = vpack.c.bf16 %v861, %v860
      %v875 = vpack.c.bf16 %v863, %v862
      %v876 = vpack.c.bf16 %v865, %v864
      %v877 = vpack.c.bf16 %v867, %v866
      %v878 = vpack.c.bf16 %v869, %v868
      %v879 = vpack.c.bf16 %v870, %v870
      %v880 = vld [vmem:[%s7] sm:$0xf]
      %v881 = vld [vmem:[%s7 + $0x4] sm:$0xf]
      %v882 = vld [vmem:[%s7 + $0x8] sm:$0xf]
      %v883 = vld [vmem:[%s7 + $0xc] sm:$0xf]
      %v884 = vld [vmem:[%s7 + $0x10] sm:$0xf]
      %v885 = vld [vmem:[%s7 + $0x14] sm:$0xf]
      %v886 = vld [vmem:[%s7 + $0x18] sm:$0xf]
      %v887 = vld [vmem:[%s7 + $0x1c] sm:$0xf]
      %vm888 = vsmask.f32 4352
      %v890 = vshrl.u32 %v871, 16
      %v892 = vrot.slane %v890, 3
      %v893 = vshll.u32 %v871, 16
      %v895 = vrot.slane %v893, 4
      %v896 = vor.u32 %v892, %v895
      %v898 = vshrl.u32 %v872, 16
      %v900 = vrot.slane %v898, 3
      %v901 = vshll.u32 %v872, 16
      %v903 = vrot.slane %v901, 4
      %v904 = vor.u32 %v900, %v903
      %v905 = vsel %vm888, %v896, %v904
      %v907 = vshrl.u32 %v873, 16
      %v909 = vrot.slane %v907, 3
      %v910 = vshll.u32 %v873, 16
      %v912 = vrot.slane %v910, 4
      %v913 = vor.u32 %v909, %v912
      %v914 = vsel %vm888, %v904, %v913
      %v916 = vshrl.u32 %v874, 16
      %v918 = vrot.slane %v916, 3
      %v919 = vshll.u32 %v874, 16
      %v921 = vrot.slane %v919, 4
      %v922 = vor.u32 %v918, %v921
      %v923 = vsel %vm888, %v913, %v922
      %v925 = vshrl.u32 %v875, 16
      %v927 = vrot.slane %v925, 3
      %v928 = vshll.u32 %v875, 16
      %v930 = vrot.slane %v928, 4
      %v931 = vor.u32 %v927, %v930
      %v932 = vsel %vm888, %v922, %v931
      %v934 = vshrl.u32 %v876, 16
      %v936 = vrot.slane %v934, 3
      %v937 = vshll.u32 %v876, 16
      %v939 = vrot.slane %v937, 4
      %v940 = vor.u32 %v936, %v939
      %v941 = vsel %vm888, %v931, %v940
      %v943 = vshrl.u32 %v877, 16
      %v945 = vrot.slane %v943, 3
      %v946 = vshll.u32 %v877, 16
      %v948 = vrot.slane %v946, 4
      %v949 = vor.u32 %v945, %v948
      %v950 = vsel %vm888, %v940, %v949
      %v952 = vshrl.u32 %v878, 16
      %v954 = vrot.slane %v952, 3
      %v955 = vshll.u32 %v878, 16
      %v957 = vrot.slane %v955, 4
      %v958 = vor.u32 %v954, %v957
      %v959 = vsel %vm888, %v949, %v958
      %v961 = vshrl.u32 %v879, 16
      %v963 = vrot.slane %v961, 3
      %v964 = vshll.u32 %v879, 16
      %v966 = vrot.slane %v964, 4
      %v967 = vor.u32 %v963, %v966
      %v968 = vsel %vm888, %v958, %v967
      %v977 = vunpack.c.l.b16 %v880
      %v978 = vunpack.c.l.b16 %v881
      %v979 = vunpack.c.l.b16 %v882
      %v980 = vunpack.c.l.b16 %v883
      %v981 = vunpack.c.l.b16 %v884
      %v982 = vunpack.c.l.b16 %v885
      %v983 = vunpack.c.l.b16 %v886
      %v984 = vunpack.c.l.b16 %v887
      %v985 = vpack.c.b16 %v978, %v977
      %v986 = vpack.c.b16 %v980, %v979
      %v987 = vpack.c.b16 %v982, %v981
      %v988 = vpack.c.b16 %v984, %v983
      %vm993 = vcmask 523264
      %v995 = vsel %vm993, %v905, 0
      %v998 = vsel %vm993, %v914, 0
      %v1001 = vsel %vm993, %v923, 0
      %v1004 = vsel %vm993, %v932, 0
      %v1007 = vsel %vm993, %v941, 0
      %v1010 = vsel %vm993, %v950, 0
      %v1013 = vsel %vm993, %v959, 0
      %v1016 = vsel %vm993, %v968, 0
      %1018 = vmatpush.bf16.msra.mxu0 0
      %1019 = vmatpush.bf16.msra.mxu0 0
      %1020 = vmatpush.bf16.msra.mxu0 0
      %1021 = vmatpush.bf16.msra.mxu0 0
      %1022 = vmatpush.bf16.msra.mxu0 %v988
      %1023 = vmatpush.bf16.msra.mxu0 %v987
      %1024 = vmatpush.bf16.msra.mxu0 %v986
      %1025 = vmatpush.bf16.msra.mxu0 %v985
      %1026 = vmatmul.bf16.gmra.mxu0 %v995
      %v1027 = vpop.f32.mrf.mxu0
      %v1028 = vadd.f32 0.0, %v1027
      %v1029 = vpop.f32.mrf.mxu0
      %v1030 = vadd.f32 0.0, %v1029
      %1031 = vmatmul.bf16.gmra.mxu0 %v998
      %v1032 = vpop.f32.mrf.mxu0
      %v1033 = vadd.f32 0.0, %v1032
      %v1034 = vpop.f32.mrf.mxu0
      %v1035 = vadd.f32 0.0, %v1034
      %1036 = vmatmul.bf16.gmra.mxu0 %v1001
      %v1037 = vpop.f32.mrf.mxu0
      %v1038 = vadd.f32 0.0, %v1037
      %v1039 = vpop.f32.mrf.mxu0
      %v1040 = vadd.f32 0.0, %v1039
      %1041 = vmatmul.bf16.gmra.mxu0 %v1004
      %v1042 = vpop.f32.mrf.mxu0
      %v1043 = vadd.f32 0.0, %v1042
      %v1044 = vpop.f32.mrf.mxu0
      %v1045 = vadd.f32 0.0, %v1044
      %1046 = vmatmul.bf16.gmra.mxu0 %v1007
      %v1047 = vpop.f32.mrf.mxu0
      %v1048 = vadd.f32 0.0, %v1047
      %v1049 = vpop.f32.mrf.mxu0
      %v1050 = vadd.f32 0.0, %v1049
      %1051 = vmatmul.bf16.gmra.mxu0 %v1010
      %v1052 = vpop.f32.mrf.mxu0
      %v1053 = vadd.f32 0.0, %v1052
      %v1054 = vpop.f32.mrf.mxu0
      %v1055 = vadd.f32 0.0, %v1054
      %1056 = vmatmul.bf16.gmra.mxu0 %v1013
      %v1057 = vpop.f32.mrf.mxu0
      %v1058 = vadd.f32 0.0, %v1057
      %v1059 = vpop.f32.mrf.mxu0
      %v1060 = vadd.f32 0.0, %v1059
      %1061 = vmatmul.bf16.gmra.mxu0 %v1016
      %v1062 = vpop.f32.mrf.mxu0
      %v1063 = vadd.f32 0.0, %v1062
      %v1064 = vpop.f32.mrf.mxu0
      %v1065 = vadd.f32 0.0, %v1064
      %1066 = vdwg.mxu0
      %v1083 = vunpack.c.l.b16 %v608
      %v1084 = vunpack.c.l.b16 %v609
      %v1085 = vunpack.c.l.b16 %v610
      %v1086 = vunpack.c.l.b16 %v611
      %v1087 = vunpack.c.l.b16 %v612
      %v1088 = vunpack.c.l.b16 %v613
      %v1089 = vunpack.c.l.b16 %v614
      %v1090 = vunpack.c.l.b16 %v615
      %v1091 = vunpack.c.l.b16 %v616
      %v1092 = vunpack.c.l.b16 %v617
      %v1093 = vunpack.c.l.b16 %v618
      %v1094 = vunpack.c.l.b16 %v619
      %v1095 = vunpack.c.l.b16 %v620
      %v1096 = vunpack.c.l.b16 %v621
      %v1097 = vunpack.c.l.b16 %v622
      %v1098 = vunpack.c.l.b16 %v623
      %v1099 = vpack.c.b16 %v1084, %v1083
      %v1100 = vpack.c.b16 %v1086, %v1085
      %v1101 = vpack.c.b16 %v1088, %v1087
      %v1102 = vpack.c.b16 %v1090, %v1089
      %v1103 = vpack.c.b16 %v1092, %v1091
      %v1104 = vpack.c.b16 %v1094, %v1093
      %v1105 = vpack.c.b16 %v1096, %v1095
      %v1106 = vpack.c.b16 %v1098, %v1097
      %v1116 = vunpack.c.l.b16 %v624
      %v1117 = vunpack.c.l.b16 %v625
      %v1118 = vunpack.c.l.b16 %v626
      %v1119 = vunpack.c.l.b16 %v627
      %v1120 = vunpack.c.l.b16 %v628
      %v1121 = vunpack.c.l.b16 %v629
      %v1122 = vunpack.c.l.b16 %v630
      %v1123 = vunpack.c.l.b16 %v631
      %v1124 = vunpack.c.l.b16 %v632
      %v1125 = vpack.c.b16 %v1117, %v1116
      %v1126 = vpack.c.b16 %v1119, %v1118
      %v1127 = vpack.c.b16 %v1121, %v1120
      %v1128 = vpack.c.b16 %v1123, %v1122
      %v1129 = vpack.c.b16 %v1124, %v1124
      %vm1134 = vcmask 588800
      %v1136 = vsel %vm1134, %v1099, 0
      %v1139 = vsel %vm1134, %v1100, 0
      %v1142 = vsel %vm1134, %v1101, 0
      %v1145 = vsel %vm1134, %v1102, 0
      %v1148 = vsel %vm1134, %v1103, 0
      %v1151 = vsel %vm1134, %v1104, 0
      %v1154 = vsel %vm1134, %v1105, 0
      %v1157 = vsel %vm1134, %v1106, 0
      %vm1159 = vcmask 1043456
      %v1161 = vsel %vm1159, %v1129, 0
      %1163 = vmatpush.bf16.msra.mxu0 0
      %1164 = vmatpush.bf16.msra.mxu0 0
      %1165 = vmatpush.bf16.msra.mxu0 0
      %1166 = vmatpush.bf16.msra.mxu0 %v1161
      %1167 = vmatpush.bf16.msra.mxu0 %v1128
      %1168 = vmatpush.bf16.msra.mxu0 %v1127
      %1169 = vmatpush.bf16.msra.mxu0 %v1126
      %1170 = vmatpush.bf16.msra.mxu0 %v1125
      %1171 = vmatmul.bf16.gmra.mxu0 %v1136
      %v1172 = vpop.f32.mrf.mxu0
      %v1173 = vadd.f32 %v1028, %v1172
      %v1174 = vpop.f32.mrf.mxu0
      %v1175 = vadd.f32 %v1030, %v1174
      %1176 = vmatmul.bf16.gmra.mxu0 %v1139
      %v1177 = vpop.f32.mrf.mxu0
      %v1178 = vadd.f32 %v1033, %v1177
      %v1179 = vpop.f32.mrf.mxu0
      %v1180 = vadd.f32 %v1035, %v1179
      %1181 = vmatmul.bf16.gmra.mxu0 %v1142
      %v1182 = vpop.f32.mrf.mxu0
      %v1183 = vadd.f32 %v1038, %v1182
      %v1184 = vpop.f32.mrf.mxu0
      %v1185 = vadd.f32 %v1040, %v1184
      %1186 = vmatmul.bf16.gmra.mxu0 %v1145
      %v1187 = vpop.f32.mrf.mxu0
      %v1188 = vadd.f32 %v1043, %v1187
      %v1189 = vpop.f32.mrf.mxu0
      %v1190 = vadd.f32 %v1045, %v1189
      %1191 = vmatmul.bf16.gmra.mxu0 %v1148
      %v1192 = vpop.f32.mrf.mxu0
      %v1193 = vadd.f32 %v1048, %v1192
      %v1194 = vpop.f32.mrf.mxu0
      %v1195 = vadd.f32 %v1050, %v1194
      %1196 = vmatmul.bf16.gmra.mxu0 %v1151
      %v1197 = vpop.f32.mrf.mxu0
      %v1198 = vadd.f32 %v1053, %v1197
      %v1199 = vpop.f32.mrf.mxu0
      %v1200 = vadd.f32 %v1055, %v1199
      %1201 = vmatmul.bf16.gmra.mxu0 %v1154
      %v1202 = vpop.f32.mrf.mxu0
      %v1203 = vadd.f32 %v1058, %v1202
      %v1204 = vpop.f32.mrf.mxu0
      %v1205 = vadd.f32 %v1060, %v1204
      %1206 = vmatmul.bf16.gmra.mxu0 %v1157
      %v1207 = vpop.f32.mrf.mxu0
      %v1208 = vadd.f32 %v1063, %v1207
      %v1209 = vpop.f32.mrf.mxu0
      %v1210 = vadd.f32 %v1065, %v1209
      %1211 = vdwg.mxu0
      %s1212 = scalar_lea.vmem %s7, 32
      %v1213 = vld [vmem:[%s1212] sm:$0xf]
      %v1214 = vld [vmem:[%s1212 + $0x4] sm:$0xf]
      %v1215 = vld [vmem:[%s1212 + $0x8] sm:$0xf]
      %v1216 = vld [vmem:[%s1212 + $0xc] sm:$0xf]
      %v1217 = vld [vmem:[%s1212 + $0x10] sm:$0xf]
      %v1218 = vld [vmem:[%s1212 + $0x14] sm:$0xf]
      %v1219 = vld [vmem:[%s1212 + $0x18] sm:$0xf]
      %v1220 = vld [vmem:[%s1212 + $0x1c] sm:$0xf]
      %v1237 = vunpack.c.l.b16 %v634
      %v1238 = vunpack.c.l.b16 %v635
      %v1239 = vunpack.c.l.b16 %v636
      %v1240 = vunpack.c.l.b16 %v637
      %v1241 = vunpack.c.l.b16 %v638
      %v1242 = vunpack.c.l.b16 %v639
      %v1243 = vunpack.c.l.b16 %v640
      %v1244 = vunpack.c.l.b16 %v641
      %v1245 = vunpack.c.l.b16 %v642
      %v1246 = vunpack.c.l.b16 %v643
      %v1247 = vunpack.c.l.b16 %v644
      %v1248 = vunpack.c.l.b16 %v645
      %v1249 = vunpack.c.l.b16 %v646
      %v1250 = vunpack.c.l.b16 %v647
      %v1251 = vunpack.c.l.b16 %v648
      %v1252 = vunpack.c.l.b16 %v649
      %v1253 = vpack.c.b16 %v1238, %v1237
      %v1254 = vpack.c.b16 %v1240, %v1239
      %v1255 = vpack.c.b16 %v1242, %v1241
      %v1256 = vpack.c.b16 %v1244, %v1243
      %v1257 = vpack.c.b16 %v1246, %v1245
      %v1258 = vpack.c.b16 %v1248, %v1247
      %v1259 = vpack.c.b16 %v1250, %v1249
      %v1260 = vpack.c.b16 %v1252, %v1251
      %v1269 = vunpack.c.l.b16 %v1213
      %v1270 = vunpack.c.l.b16 %v1214
      %v1271 = vunpack.c.l.b16 %v1215
      %v1272 = vunpack.c.l.b16 %v1216
      %v1273 = vunpack.c.l.b16 %v1217
      %v1274 = vunpack.c.l.b16 %v1218
      %v1275 = vunpack.c.l.b16 %v1219
      %v1276 = vunpack.c.l.b16 %v1220
      %v1277 = vpack.c.b16 %v1270, %v1269
      %v1278 = vpack.c.b16 %v1272, %v1271
      %v1279 = vpack.c.b16 %v1274, %v1273
      %v1280 = vpack.c.b16 %v1276, %v1275
      %v1286 = vsel %vm993, %v1253, 0
      %v1289 = vsel %vm993, %v1254, 0
      %v1292 = vsel %vm993, %v1255, 0
      %v1295 = vsel %vm993, %v1256, 0
      %v1298 = vsel %vm993, %v1257, 0
      %v1301 = vsel %vm993, %v1258, 0
      %v1304 = vsel %vm993, %v1259, 0
      %v1307 = vsel %vm993, %v1260, 0
      %1309 = vmatpush.bf16.msra.mxu0 0
      %1310 = vmatpush.bf16.msra.mxu0 0
      %1311 = vmatpush.bf16.msra.mxu0 0
      %1312 = vmatpush.bf16.msra.mxu0 0
      %1313 = vmatpush.bf16.msra.mxu0 %v1280
      %1314 = vmatpush.bf16.msra.mxu0 %v1279
      %1315 = vmatpush.bf16.msra.mxu0 %v1278
      %1316 = vmatpush.bf16.msra.mxu0 %v1277
      %1317 = vmatmul.bf16.gmra.mxu0 %v1286
      %v1318 = vpop.f32.mrf.mxu0
      %v1319 = vadd.f32 0.0, %v1318
      %v1320 = vpop.f32.mrf.mxu0
      %v1321 = vadd.f32 0.0, %v1320
      %1322 = vmatmul.bf16.gmra.mxu0 %v1289
      %v1323 = vpop.f32.mrf.mxu0
      %v1324 = vadd.f32 0.0, %v1323
      %v1325 = vpop.f32.mrf.mxu0
      %v1326 = vadd.f32 0.0, %v1325
      %1327 = vmatmul.bf16.gmra.mxu0 %v1292
      %v1328 = vpop.f32.mrf.mxu0
      %v1329 = vadd.f32 0.0, %v1328
      %v1330 = vpop.f32.mrf.mxu0
      %v1331 = vadd.f32 0.0, %v1330
      %1332 = vmatmul.bf16.gmra.mxu0 %v1295
      %v1333 = vpop.f32.mrf.mxu0
      %v1334 = vadd.f32 0.0, %v1333
      %v1335 = vpop.f32.mrf.mxu0
      %v1336 = vadd.f32 0.0, %v1335
      %1337 = vmatmul.bf16.gmra.mxu0 %v1298
      %v1338 = vpop.f32.mrf.mxu0
      %v1339 = vadd.f32 0.0, %v1338
      %v1340 = vpop.f32.mrf.mxu0
      %v1341 = vadd.f32 0.0, %v1340
      %1342 = vmatmul.bf16.gmra.mxu0 %v1301
      %v1343 = vpop.f32.mrf.mxu0
      %v1344 = vadd.f32 0.0, %v1343
      %v1345 = vpop.f32.mrf.mxu0
      %v1346 = vadd.f32 0.0, %v1345
      %1347 = vmatmul.bf16.gmra.mxu0 %v1304
      %v1348 = vpop.f32.mrf.mxu0
      %v1349 = vadd.f32 0.0, %v1348
      %v1350 = vpop.f32.mrf.mxu0
      %v1351 = vadd.f32 0.0, %v1350
      %1352 = vmatmul.bf16.gmra.mxu0 %v1307
      %v1353 = vpop.f32.mrf.mxu0
      %v1354 = vadd.f32 0.0, %v1353
      %v1355 = vpop.f32.mrf.mxu0
      %v1356 = vadd.f32 0.0, %v1355
      %1357 = vdwg.mxu0
      %v1358 = vadd.f32 %v1173, %v1319
      %v1359 = vadd.f32 %v1175, %v1321
      %v1360 = vadd.f32 %v1178, %v1324
      %v1361 = vadd.f32 %v1180, %v1326
      %v1362 = vadd.f32 %v1183, %v1329
      %v1363 = vadd.f32 %v1185, %v1331
      %v1364 = vadd.f32 %v1188, %v1334
      %v1365 = vadd.f32 %v1190, %v1336
      %v1366 = vadd.f32 %v1193, %v1339
      %v1367 = vadd.f32 %v1195, %v1341
      %v1368 = vadd.f32 %v1198, %v1344
      %v1369 = vadd.f32 %v1200, %v1346
      %v1370 = vadd.f32 %v1203, %v1349
      %v1371 = vadd.f32 %v1205, %v1351
      %v1372 = vadd.f32 %v1208, %v1354
      %v1373 = vadd.f32 %v1210, %v1356
      %v1374 = vld [vmem:[#allocation2 + $0x8] sm:$0xf]
      %v1375 = vld [vmem:[#allocation2 + $0xc] sm:$0xf]
      %v1376 = vld [vmem:[#allocation2 + $0x10] sm:$0xf]
      %v1377 = vld [vmem:[#allocation2 + $0x14] sm:$0xf]
      %v1378 = vld [vmem:[#allocation2 + $0x18] sm:$0xf]
      %v1379 = vld [vmem:[#allocation2 + $0x1c] sm:$0xf]
      %v1380 = vld [vmem:[#allocation2 + $0x20] sm:$0xf]
      %v1381 = vld [vmem:[#allocation2 + $0x24] sm:$0xf]
      %v1382 = vld [vmem:[#allocation2 + $0x28] sm:$0xf]
      %v1383 = vld [vmem:[#allocation2 + $0x2c] sm:$0xf]
      %v1384 = vld [vmem:[#allocation2 + $0x30] sm:$0xf]
      %v1385 = vld [vmem:[#allocation2 + $0x34] sm:$0xf]
      %v1386 = vld [vmem:[#allocation2 + $0x38] sm:$0xf]
      %v1387 = vld [vmem:[#allocation2 + $0x3c] sm:$0xf]
      %v1388 = vld [vmem:[#allocation2 + $0x40] sm:$0xf]
      %v1389 = vld [vmem:[#allocation2 + $0x44] sm:$0xf]
      %v1390 = vld [vmem:[#allocation2 + $0x48] sm:$0x1]
      %v1391 = vld [vmem:[%s5 + $0x8] sm:$0xf]
      %v1392 = vld [vmem:[%s5 + $0xc] sm:$0xf]
      %v1393 = vld [vmem:[%s5 + $0x10] sm:$0xf]
      %v1394 = vld [vmem:[%s5 + $0x14] sm:$0xf]
      %v1395 = vld [vmem:[%s5 + $0x18] sm:$0xf]
      %v1396 = vld [vmem:[%s5 + $0x1c] sm:$0xf]
      %v1397 = vld [vmem:[%s5 + $0x20] sm:$0xf]
      %v1398 = vld [vmem:[%s5 + $0x24] sm:$0xf]
      %v1399 = vld [vmem:[%s5 + $0x28] sm:$0xf]
      %v1400 = vld [vmem:[%s5 + $0x2c] sm:$0xf]
      %v1401 = vld [vmem:[%s5 + $0x30] sm:$0xf]
      %v1402 = vld [vmem:[%s5 + $0x34] sm:$0xf]
      %v1403 = vld [vmem:[%s5 + $0x38] sm:$0xf]
      %v1404 = vld [vmem:[%s5 + $0x3c] sm:$0xf]
      %v1405 = vld [vmem:[%s5 + $0x40] sm:$0xf]
      %v1406 = vld [vmem:[%s5 + $0x44] sm:$0xf]
      %v1407 = vld [vmem:[%s5 + $0x48] sm:$0x1]
      %1409 = vset.pattern.permute.xlu0 0
      %1410 = vperm.xlu0 %1409, %v1391
      %v1411 = vpop.permute.xlu0 %1410
      %v1414 = vunpack.c.l.s4 839922192
      %v1415 = vunpack.c.0.s8 %v1414
      %v1416 = vperm.slane %v1411, %v1415
      %1418 = vset.pattern.permute.xlu0 0
      %1419 = vperm.xlu0 %1418, %v1392
      %v1420 = vpop.permute.xlu0 %1419
      %v1423 = vunpack.c.l.s4 839922192
      %v1424 = vunpack.c.0.s8 %v1423
      %v1425 = vperm.slane %v1420, %v1424
      %1427 = vset.pattern.permute.xlu0 0
      %1428 = vperm.xlu0 %1427, %v1393
      %v1429 = vpop.permute.xlu0 %1428
      %v1432 = vunpack.c.l.s4 839922192
      %v1433 = vunpack.c.0.s8 %v1432
      %v1434 = vperm.slane %v1429, %v1433
      %1436 = vset.pattern.permute.xlu0 0
      %1437 = vperm.xlu0 %1436, %v1394
      %v1438 = vpop.permute.xlu0 %1437
      %v1441 = vunpack.c.l.s4 839922192
      %v1442 = vunpack.c.0.s8 %v1441
      %v1443 = vperm.slane %v1438, %v1442
      %1445 = vset.pattern.permute.xlu0 0
      %1446 = vperm.xlu0 %1445, %v1395
      %v1447 = vpop.permute.xlu0 %1446
      %v1450 = vunpack.c.l.s4 839922192
      %v1451 = vunpack.c.0.s8 %v1450
      %v1452 = vperm.slane %v1447, %v1451
      %1454 = vset.pattern.permute.xlu0 0
      %1455 = vperm.xlu0 %1454, %v1396
      %v1456 = vpop.permute.xlu0 %1455
      %v1459 = vunpack.c.l.s4 839922192
      %v1460 = vunpack.c.0.s8 %v1459
      %v1461 = vperm.slane %v1456, %v1460
      %1463 = vset.pattern.permute.xlu0 0
      %1464 = vperm.xlu0 %1463, %v1397
      %v1465 = vpop.permute.xlu0 %1464
      %v1468 = vunpack.c.l.s4 839922192
      %v1469 = vunpack.c.0.s8 %v1468
      %v1470 = vperm.slane %v1465, %v1469
      %1472 = vset.pattern.permute.xlu0 0
      %1473 = vperm.xlu0 %1472, %v1398
      %v1474 = vpop.permute.xlu0 %1473
      %v1477 = vunpack.c.l.s4 839922192
      %v1478 = vunpack.c.0.s8 %v1477
      %v1479 = vperm.slane %v1474, %v1478
      %1481 = vset.pattern.permute.xlu0 0
      %1482 = vperm.xlu0 %1481, %v1399
      %v1483 = vpop.permute.xlu0 %1482
      %v1486 = vunpack.c.l.s4 839922192
      %v1487 = vunpack.c.0.s8 %v1486
      %v1488 = vperm.slane %v1483, %v1487
      %1490 = vset.pattern.permute.xlu0 0
      %1491 = vperm.xlu0 %1490, %v1400
      %v1492 = vpop.permute.xlu0 %1491
      %v1495 = vunpack.c.l.s4 839922192
      %v1496 = vunpack.c.0.s8 %v1495
      %v1497 = vperm.slane %v1492, %v1496
      %1499 = vset.pattern.permute.xlu0 0
      %1500 = vperm.xlu0 %1499, %v1401
      %v1501 = vpop.permute.xlu0 %1500
      %v1504 = vunpack.c.l.s4 839922192
      %v1505 = vunpack.c.0.s8 %v1504
      %v1506 = vperm.slane %v1501, %v1505
      %1508 = vset.pattern.permute.xlu0 0
      %1509 = vperm.xlu0 %1508, %v1402
      %v1510 = vpop.permute.xlu0 %1509
      %v1513 = vunpack.c.l.s4 839922192
      %v1514 = vunpack.c.0.s8 %v1513
      %v1515 = vperm.slane %v1510, %v1514
      %1517 = vset.pattern.permute.xlu0 0
      %1518 = vperm.xlu0 %1517, %v1403
      %v1519 = vpop.permute.xlu0 %1518
      %v1522 = vunpack.c.l.s4 839922192
      %v1523 = vunpack.c.0.s8 %v1522
      %v1524 = vperm.slane %v1519, %v1523
      %1526 = vset.pattern.permute.xlu0 0
      %1527 = vperm.xlu0 %1526, %v1404
      %v1528 = vpop.permute.xlu0 %1527
      %v1531 = vunpack.c.l.s4 839922192
      %v1532 = vunpack.c.0.s8 %v1531
      %v1533 = vperm.slane %v1528, %v1532
      %1535 = vset.pattern.permute.xlu0 0
      %1536 = vperm.xlu0 %1535, %v1405
      %v1537 = vpop.permute.xlu0 %1536
      %v1540 = vunpack.c.l.s4 839922192
      %v1541 = vunpack.c.0.s8 %v1540
      %v1542 = vperm.slane %v1537, %v1541
      %1544 = vset.pattern.permute.xlu0 0
      %1545 = vperm.xlu0 %1544, %v1406
      %v1546 = vpop.permute.xlu0 %1545
      %v1549 = vunpack.c.l.s4 839922192
      %v1550 = vunpack.c.0.s8 %v1549
      %v1551 = vperm.slane %v1546, %v1550
      %1553 = vset.pattern.permute.xlu0 0
      %1554 = vperm.xlu0 %1553, %v1407
      %v1555 = vpop.permute.xlu0 %1554
      %v1558 = vunpack.c.l.s4 839922192
      %v1559 = vunpack.c.0.s8 %v1558
      %v1560 = vperm.slane %v1555, %v1559
      %v1561 = vunpack.c.l.bf16 %v1374
      %v1562 = vunpack.c.l.bf16 %v1375
      %v1563 = vunpack.c.l.bf16 %v1376
      %v1564 = vunpack.c.l.bf16 %v1377
      %v1565 = vunpack.c.l.bf16 %v1378
      %v1566 = vunpack.c.l.bf16 %v1379
      %v1567 = vunpack.c.l.bf16 %v1380
      %v1568 = vunpack.c.l.bf16 %v1381
      %v1569 = vunpack.c.l.bf16 %v1382
      %v1570 = vunpack.c.l.bf16 %v1383
      %v1571 = vunpack.c.l.bf16 %v1384
      %v1572 = vunpack.c.l.bf16 %v1385
      %v1573 = vunpack.c.l.bf16 %v1386
      %v1574 = vunpack.c.l.bf16 %v1387
      %v1575 = vunpack.c.l.bf16 %v1388
      %v1576 = vunpack.c.l.bf16 %v1389
      %v1577 = vunpack.c.l.bf16 %v1390
      %v1578 = vunpack.c.l.bf16 %v1416
      %v1579 = vunpack.c.l.bf16 %v1425
      %v1580 = vunpack.c.l.bf16 %v1434
      %v1581 = vunpack.c.l.bf16 %v1443
      %v1582 = vunpack.c.l.bf16 %v1452
      %v1583 = vunpack.c.l.bf16 %v1461
      %v1584 = vunpack.c.l.bf16 %v1470
      %v1585 = vunpack.c.l.bf16 %v1479
      %v1586 = vunpack.c.l.bf16 %v1488
      %v1587 = vunpack.c.l.bf16 %v1497
      %v1588 = vunpack.c.l.bf16 %v1506
      %v1589 = vunpack.c.l.bf16 %v1515
      %v1590 = vunpack.c.l.bf16 %v1524
      %v1591 = vunpack.c.l.bf16 %v1533
      %v1592 = vunpack.c.l.bf16 %v1542
      %v1593 = vunpack.c.l.bf16 %v1551
      %v1594 = vunpack.c.l.bf16 %v1560
      %v1595 = vmul.f32 %v1561, %v1578
      %v1596 = vmul.f32 %v1562, %v1579
      %v1597 = vmul.f32 %v1563, %v1580
      %v1598 = vmul.f32 %v1564, %v1581
      %v1599 = vmul.f32 %v1565, %v1582
      %v1600 = vmul.f32 %v1566, %v1583
      %v1601 = vmul.f32 %v1567, %v1584
      %v1602 = vmul.f32 %v1568, %v1585
      %v1603 = vmul.f32 %v1569, %v1586
      %v1604 = vmul.f32 %v1570, %v1587
      %v1605 = vmul.f32 %v1571, %v1588
      %v1606 = vmul.f32 %v1572, %v1589
      %v1607 = vmul.f32 %v1573, %v1590
      %v1608 = vmul.f32 %v1574, %v1591
      %v1609 = vmul.f32 %v1575, %v1592
      %v1610 = vmul.f32 %v1576, %v1593
      %v1611 = vmul.f32 %v1577, %v1594
      %v1612 = vpack.c.bf16 %v1596, %v1595
      %v1613 = vpack.c.bf16 %v1598, %v1597
      %v1614 = vpack.c.bf16 %v1600, %v1599
      %v1615 = vpack.c.bf16 %v1602, %v1601
      %v1616 = vpack.c.bf16 %v1604, %v1603
      %v1617 = vpack.c.bf16 %v1606, %v1605
      %v1618 = vpack.c.bf16 %v1608, %v1607
      %v1619 = vpack.c.bf16 %v1610, %v1609
      %v1620 = vpack.c.bf16 %v1611, %v1611
      %s1621 = scalar_lea.vmem %s7, 64
      %v1622 = vld [vmem:[%s1621] sm:$0xf]
      %v1623 = vld [vmem:[%s1621 + $0x4] sm:$0xf]
      %v1624 = vld [vmem:[%s1621 + $0x8] sm:$0xf]
      %v1625 = vld [vmem:[%s1621 + $0xc] sm:$0xf]
      %v1626 = vld [vmem:[%s1621 + $0x10] sm:$0xf]
      %v1627 = vld [vmem:[%s1621 + $0x14] sm:$0xf]
      %v1628 = vld [vmem:[%s1621 + $0x18] sm:$0xf]
      %v1629 = vld [vmem:[%s1621 + $0x1c] sm:$0xf]
      %vm1630 = vsmask.f32 7424
      %v1632 = vshrl.u32 %v1612, 16
      %v1634 = vshll.u32 %v1612, 16
      %v1636 = vrot.slane %v1634, 1
      %v1637 = vor.u32 %v1632, %v1636
      %v1639 = vshll.u32 %v1613, 16
      %v1641 = vrot.slane %v1639, 1
      %v1642 = vsel %vm1630, %v1637, %v1641
      %v1643 = vshrl.u32 %v1613, 16
      %v1645 = vor.u32 %v1643, %v1641
      %v1647 = vshll.u32 %v1614, 16
      %v1649 = vrot.slane %v1647, 1
      %v1650 = vsel %vm1630, %v1645, %v1649
      %v1651 = vshrl.u32 %v1614, 16
      %v1653 = vor.u32 %v1651, %v1649
      %v1655 = vshll.u32 %v1615, 16
      %v1657 = vrot.slane %v1655, 1
      %v1658 = vsel %vm1630, %v1653, %v1657
      %v1659 = vshrl.u32 %v1615, 16
      %v1661 = vor.u32 %v1659, %v1657
      %v1663 = vshll.u32 %v1616, 16
      %v1665 = vrot.slane %v1663, 1
      %v1666 = vsel %vm1630, %v1661, %v1665
      %v1667 = vshrl.u32 %v1616, 16
      %v1669 = vor.u32 %v1667, %v1665
      %v1671 = vshll.u32 %v1617, 16
      %v1673 = vrot.slane %v1671, 1
      %v1674 = vsel %vm1630, %v1669, %v1673
      %v1675 = vshrl.u32 %v1617, 16
      %v1677 = vor.u32 %v1675, %v1673
      %v1679 = vshll.u32 %v1618, 16
      %v1681 = vrot.slane %v1679, 1
      %v1682 = vsel %vm1630, %v1677, %v1681
      %v1683 = vshrl.u32 %v1618, 16
      %v1685 = vor.u32 %v1683, %v1681
      %v1687 = vshll.u32 %v1619, 16
      %v1689 = vrot.slane %v1687, 1
      %v1690 = vsel %vm1630, %v1685, %v1689
      %v1691 = vshrl.u32 %v1619, 16
      %v1693 = vor.u32 %v1691, %v1689
      %v1695 = vshll.u32 %v1620, 16
      %v1697 = vrot.slane %v1695, 1
      %v1698 = vsel %vm1630, %v1693, %v1697
      %v1707 = vunpack.c.l.b16 %v1622
      %v1708 = vunpack.c.l.b16 %v1623
      %v1709 = vunpack.c.l.b16 %v1624
      %v1710 = vunpack.c.l.b16 %v1625
      %v1711 = vunpack.c.l.b16 %v1626
      %v1712 = vunpack.c.l.b16 %v1627
      %v1713 = vunpack.c.l.b16 %v1628
      %v1714 = vunpack.c.l.b16 %v1629
      %v1715 = vpack.c.b16 %v1708, %v1707
      %v1716 = vpack.c.b16 %v1710, %v1709
      %v1717 = vpack.c.b16 %v1712, %v1711
      %v1718 = vpack.c.b16 %v1714, %v1713
      %v1724 = vsel %vm993, %v1642, 0
      %v1727 = vsel %vm993, %v1650, 0
      %v1730 = vsel %vm993, %v1658, 0
      %v1733 = vsel %vm993, %v1666, 0
      %v1736 = vsel %vm993, %v1674, 0
      %v1739 = vsel %vm993, %v1682, 0
      %v1742 = vsel %vm993, %v1690, 0
      %v1745 = vsel %vm993, %v1698, 0
      %1747 = vmatpush.bf16.msra.mxu0 0
      %1748 = vmatpush.bf16.msra.mxu0 0
      %1749 = vmatpush.bf16.msra.mxu0 0
      %1750 = vmatpush.bf16.msra.mxu0 0
      %1751 = vmatpush.bf16.msra.mxu0 %v1718
      %1752 = vmatpush.bf16.msra.mxu0 %v1717
      %1753 = vmatpush.bf16.msra.mxu0 %v1716
      %1754 = vmatpush.bf16.msra.mxu0 %v1715
      %1755 = vmatmul.bf16.gmra.mxu0 %v1724
      %v1756 = vpop.f32.mrf.mxu0
      %v1757 = vadd.f32 0.0, %v1756
      %v1758 = vpop.f32.mrf.mxu0
      %v1759 = vadd.f32 0.0, %v1758
      %1760 = vmatmul.bf16.gmra.mxu0 %v1727
      %v1761 = vpop.f32.mrf.mxu0
      %v1762 = vadd.f32 0.0, %v1761
      %v1763 = vpop.f32.mrf.mxu0
      %v1764 = vadd.f32 0.0, %v1763
      %1765 = vmatmul.bf16.gmra.mxu0 %v1730
      %v1766 = vpop.f32.mrf.mxu0
      %v1767 = vadd.f32 0.0, %v1766
      %v1768 = vpop.f32.mrf.mxu0
      %v1769 = vadd.f32 0.0, %v1768
      %1770 = vmatmul.bf16.gmra.mxu0 %v1733
      %v1771 = vpop.f32.mrf.mxu0
      %v1772 = vadd.f32 0.0, %v1771
      %v1773 = vpop.f32.mrf.mxu0
      %v1774 = vadd.f32 0.0, %v1773
      %1775 = vmatmul.bf16.gmra.mxu0 %v1736
      %v1776 = vpop.f32.mrf.mxu0
      %v1777 = vadd.f32 0.0, %v1776
      %v1778 = vpop.f32.mrf.mxu0
      %v1779 = vadd.f32 0.0, %v1778
      %1780 = vmatmul.bf16.gmra.mxu0 %v1739
      %v1781 = vpop.f32.mrf.mxu0
      %v1782 = vadd.f32 0.0, %v1781
      %v1783 = vpop.f32.mrf.mxu0
      %v1784 = vadd.f32 0.0, %v1783
      %1785 = vmatmul.bf16.gmra.mxu0 %v1742
      %v1786 = vpop.f32.mrf.mxu0
      %v1787 = vadd.f32 0.0, %v1786
      %v1788 = vpop.f32.mrf.mxu0
      %v1789 = vadd.f32 0.0, %v1788
      %1790 = vmatmul.bf16.gmra.mxu0 %v1745
      %v1791 = vpop.f32.mrf.mxu0
      %v1792 = vadd.f32 0.0, %v1791
      %v1793 = vpop.f32.mrf.mxu0
      %v1794 = vadd.f32 0.0, %v1793
      %1795 = vdwg.mxu0
      %v1796 = vadd.f32 %v1358, %v1757
      %v1797 = vadd.f32 %v1359, %v1759
      %v1798 = vadd.f32 %v1360, %v1762
      %v1799 = vadd.f32 %v1361, %v1764
      %v1800 = vadd.f32 %v1362, %v1767
      %v1801 = vadd.f32 %v1363, %v1769
      %v1802 = vadd.f32 %v1364, %v1772
      %v1803 = vadd.f32 %v1365, %v1774
      %v1804 = vadd.f32 %v1366, %v1777
      %v1805 = vadd.f32 %v1367, %v1779
      %v1806 = vadd.f32 %v1368, %v1782
      %v1807 = vadd.f32 %v1369, %v1784
      %v1808 = vadd.f32 %v1370, %v1787
      %v1809 = vadd.f32 %v1371, %v1789
      %v1810 = vadd.f32 %v1372, %v1792
      %v1811 = vadd.f32 %v1373, %v1794
      %v1812 = vld [vmem:[#allocation2 + $0xc] sm:$0x8]
      %v1813 = vld [vmem:[#allocation2 + $0x10] sm:$0xf]
      %v1814 = vld [vmem:[#allocation2 + $0x14] sm:$0xf]
      %v1815 = vld [vmem:[#allocation2 + $0x18] sm:$0xf]
      %v1816 = vld [vmem:[#allocation2 + $0x1c] sm:$0xf]
      %v1817 = vld [vmem:[#allocation2 + $0x20] sm:$0xf]
      %v1818 = vld [vmem:[#allocation2 + $0x24] sm:$0xf]
      %v1819 = vld [vmem:[#allocation2 + $0x28] sm:$0xf]
      %v1820 = vld [vmem:[#allocation2 + $0x2c] sm:$0xf]
      %v1821 = vld [vmem:[#allocation2 + $0x30] sm:$0xf]
      %v1822 = vld [vmem:[#allocation2 + $0x34] sm:$0xf]
      %v1823 = vld [vmem:[#allocation2 + $0x38] sm:$0xf]
      %v1824 = vld [vmem:[#allocation2 + $0x3c] sm:$0xf]
      %v1825 = vld [vmem:[#allocation2 + $0x40] sm:$0xf]
      %v1826 = vld [vmem:[#allocation2 + $0x44] sm:$0xf]
      %v1827 = vld [vmem:[#allocation2 + $0x48] sm:$0xf]
      %v1828 = vld [vmem:[#allocation2 + $0x4c] sm:$0xf]
      %v1829 = vld [vmem:[%s4 + $0xc] sm:$0x8]
      %v1830 = vld [vmem:[%s4 + $0x10] sm:$0xf]
      %v1831 = vld [vmem:[%s4 + $0x14] sm:$0xf]
      %v1832 = vld [vmem:[%s4 + $0x18] sm:$0xf]
      %v1833 = vld [vmem:[%s4 + $0x1c] sm:$0xf]
      %v1834 = vld [vmem:[%s4 + $0x20] sm:$0xf]
      %v1835 = vld [vmem:[%s4 + $0x24] sm:$0xf]
      %v1836 = vld [vmem:[%s4 + $0x28] sm:$0xf]
      %v1837 = vld [vmem:[%s4 + $0x2c] sm:$0xf]
      %v1838 = vld [vmem:[%s4 + $0x30] sm:$0xf]
      %v1839 = vld [vmem:[%s4 + $0x34] sm:$0xf]
      %v1840 = vld [vmem:[%s4 + $0x38] sm:$0xf]
      %v1841 = vld [vmem:[%s4 + $0x3c] sm:$0xf]
      %v1842 = vld [vmem:[%s4 + $0x40] sm:$0xf]
      %v1843 = vld [vmem:[%s4 + $0x44] sm:$0xf]
      %v1844 = vld [vmem:[%s4 + $0x48] sm:$0xf]
      %v1845 = vld [vmem:[%s4 + $0x4c] sm:$0xf]
      %1847 = vset.pattern.permute.xlu0 0
      %1848 = vperm.xlu0 %1847, %v1829
      %v1849 = vpop.permute.xlu0 %1848
      %v1852 = vunpack.c.l.s4 839922192
      %v1853 = vunpack.c.0.s8 %v1852
      %v1854 = vperm.slane %v1849, %v1853
      %1856 = vset.pattern.permute.xlu0 0
      %1857 = vperm.xlu0 %1856, %v1830
      %v1858 = vpop.permute.xlu0 %1857
      %v1861 = vunpack.c.l.s4 839922192
      %v1862 = vunpack.c.0.s8 %v1861
      %v1863 = vperm.slane %v1858, %v1862
      %1865 = vset.pattern.permute.xlu0 0
      %1866 = vperm.xlu0 %1865, %v1831
      %v1867 = vpop.permute.xlu0 %1866
      %v1870 = vunpack.c.l.s4 839922192
      %v1871 = vunpack.c.0.s8 %v1870
      %v1872 = vperm.slane %v1867, %v1871
      %1874 = vset.pattern.permute.xlu0 0
      %1875 = vperm.xlu0 %1874, %v1832
      %v1876 = vpop.permute.xlu0 %1875
      %v1879 = vunpack.c.l.s4 839922192
      %v1880 = vunpack.c.0.s8 %v1879
      %v1881 = vperm.slane %v1876, %v1880
      %1883 = vset.pattern.permute.xlu0 0
      %1884 = vperm.xlu0 %1883, %v1833
      %v1885 = vpop.permute.xlu0 %1884
      %v1888 = vunpack.c.l.s4 839922192
      %v1889 = vunpack.c.0.s8 %v1888
      %v1890 = vperm.slane %v1885, %v1889
      %1892 = vset.pattern.permute.xlu0 0
      %1893 = vperm.xlu0 %1892, %v1834
      %v1894 = vpop.permute.xlu0 %1893
      %v1897 = vunpack.c.l.s4 839922192
      %v1898 = vunpack.c.0.s8 %v1897
      %v1899 = vperm.slane %v1894, %v1898
      %1901 = vset.pattern.permute.xlu0 0
      %1902 = vperm.xlu0 %1901, %v1835
      %v1903 = vpop.permute.xlu0 %1902
      %v1906 = vunpack.c.l.s4 839922192
      %v1907 = vunpack.c.0.s8 %v1906
      %v1908 = vperm.slane %v1903, %v1907
      %1910 = vset.pattern.permute.xlu0 0
      %1911 = vperm.xlu0 %1910, %v1836
      %v1912 = vpop.permute.xlu0 %1911
      %v1915 = vunpack.c.l.s4 839922192
      %v1916 = vunpack.c.0.s8 %v1915
      %v1917 = vperm.slane %v1912, %v1916
      %1919 = vset.pattern.permute.xlu0 0
      %1920 = vperm.xlu0 %1919, %v1837
      %v1921 = vpop.permute.xlu0 %1920
      %v1924 = vunpack.c.l.s4 839922192
      %v1925 = vunpack.c.0.s8 %v1924
      %v1926 = vperm.slane %v1921, %v1925
      %1928 = vset.pattern.permute.xlu0 0
      %1929 = vperm.xlu0 %1928, %v1838
      %v1930 = vpop.permute.xlu0 %1929
      %v1933 = vunpack.c.l.s4 839922192
      %v1934 = vunpack.c.0.s8 %v1933
      %v1935 = vperm.slane %v1930, %v1934
      %1937 = vset.pattern.permute.xlu0 0
      %1938 = vperm.xlu0 %1937, %v1839
      %v1939 = vpop.permute.xlu0 %1938
      %v1942 = vunpack.c.l.s4 839922192
      %v1943 = vunpack.c.0.s8 %v1942
      %v1944 = vperm.slane %v1939, %v1943
      %1946 = vset.pattern.permute.xlu0 0
      %1947 = vperm.xlu0 %1946, %v1840
      %v1948 = vpop.permute.xlu0 %1947
      %v1951 = vunpack.c.l.s4 839922192
      %v1952 = vunpack.c.0.s8 %v1951
      %v1953 = vperm.slane %v1948, %v1952
      %1955 = vset.pattern.permute.xlu0 0
      %1956 = vperm.xlu0 %1955, %v1841
      %v1957 = vpop.permute.xlu0 %1956
      %v1960 = vunpack.c.l.s4 839922192
      %v1961 = vunpack.c.0.s8 %v1960
      %v1962 = vperm.slane %v1957, %v1961
      %1964 = vset.pattern.permute.xlu0 0
      %1965 = vperm.xlu0 %1964, %v1842
      %v1966 = vpop.permute.xlu0 %1965
      %v1969 = vunpack.c.l.s4 839922192
      %v1970 = vunpack.c.0.s8 %v1969
      %v1971 = vperm.slane %v1966, %v1970
      %1973 = vset.pattern.permute.xlu0 0
      %1974 = vperm.xlu0 %1973, %v1843
      %v1975 = vpop.permute.xlu0 %1974
      %v1978 = vunpack.c.l.s4 839922192
      %v1979 = vunpack.c.0.s8 %v1978
      %v1980 = vperm.slane %v1975, %v1979
      %1982 = vset.pattern.permute.xlu0 0
      %1983 = vperm.xlu0 %1982, %v1844
      %v1984 = vpop.permute.xlu0 %1983
      %v1987 = vunpack.c.l.s4 839922192
      %v1988 = vunpack.c.0.s8 %v1987
      %v1989 = vperm.slane %v1984, %v1988
      %1991 = vset.pattern.permute.xlu0 0
      %1992 = vperm.xlu0 %1991, %v1845
      %v1993 = vpop.permute.xlu0 %1992
      %v1996 = vunpack.c.l.s4 839922192
      %v1997 = vunpack.c.0.s8 %v1996
      %v1998 = vperm.slane %v1993, %v1997
      %v1999 = vunpack.c.l.bf16 %v1812
      %v2000 = vunpack.c.l.bf16 %v1813
      %v2001 = vunpack.c.l.bf16 %v1814
      %v2002 = vunpack.c.l.bf16 %v1815
      %v2003 = vunpack.c.l.bf16 %v1816
      %v2004 = vunpack.c.l.bf16 %v1817
      %v2005 = vunpack.c.l.bf16 %v1818
      %v2006 = vunpack.c.l.bf16 %v1819
      %v2007 = vunpack.c.l.bf16 %v1820
      %v2008 = vunpack.c.l.bf16 %v1821
      %v2009 = vunpack.c.l.bf16 %v1822
      %v2010 = vunpack.c.l.bf16 %v1823
      %v2011 = vunpack.c.l.bf16 %v1824
      %v2012 = vunpack.c.l.bf16 %v1825
      %v2013 = vunpack.c.l.bf16 %v1826
      %v2014 = vunpack.c.l.bf16 %v1827
      %v2015 = vunpack.c.l.bf16 %v1828
      %v2016 = vunpack.c.l.bf16 %v1854
      %v2017 = vunpack.c.l.bf16 %v1863
      %v2018 = vunpack.c.l.bf16 %v1872
      %v2019 = vunpack.c.l.bf16 %v1881
      %v2020 = vunpack.c.l.bf16 %v1890
      %v2021 = vunpack.c.l.bf16 %v1899
      %v2022 = vunpack.c.l.bf16 %v1908
      %v2023 = vunpack.c.l.bf16 %v1917
      %v2024 = vunpack.c.l.bf16 %v1926
      %v2025 = vunpack.c.l.bf16 %v1935
      %v2026 = vunpack.c.l.bf16 %v1944
      %v2027 = vunpack.c.l.bf16 %v1953
      %v2028 = vunpack.c.l.bf16 %v1962
      %v2029 = vunpack.c.l.bf16 %v1971
      %v2030 = vunpack.c.l.bf16 %v1980
      %v2031 = vunpack.c.l.bf16 %v1989
      %v2032 = vunpack.c.l.bf16 %v1998
      %v2033 = vmul.f32 %v1999, %v2016
      %v2034 = vmul.f32 %v2000, %v2017
      %v2035 = vmul.f32 %v2001, %v2018
      %v2036 = vmul.f32 %v2002, %v2019
      %v2037 = vmul.f32 %v2003, %v2020
      %v2038 = vmul.f32 %v2004, %v2021
      %v2039 = vmul.f32 %v2005, %v2022
      %v2040 = vmul.f32 %v2006, %v2023
      %v2041 = vmul.f32 %v2007, %v2024
      %v2042 = vmul.f32 %v2008, %v2025
      %v2043 = vmul.f32 %v2009, %v2026
      %v2044 = vmul.f32 %v2010, %v2027
      %v2045 = vmul.f32 %v2011, %v2028
      %v2046 = vmul.f32 %v2012, %v2029
      %v2047 = vmul.f32 %v2013, %v2030
      %v2048 = vmul.f32 %v2014, %v2031
      %v2049 = vmul.f32 %v2015, %v2032
      %v2050 = vpack.c.bf16 %v2034, %v2033
      %v2051 = vpack.c.bf16 %v2036, %v2035
      %v2052 = vpack.c.bf16 %v2038, %v2037
      %v2053 = vpack.c.bf16 %v2040, %v2039
      %v2054 = vpack.c.bf16 %v2042, %v2041
      %v2055 = vpack.c.bf16 %v2044, %v2043
      %v2056 = vpack.c.bf16 %v2046, %v2045
      %v2057 = vpack.c.bf16 %v2048, %v2047
      %v2058 = vpack.c.bf16 %v2049, %v2049
      %s2059 = scalar_lea.vmem %s7, 96
      %v2060 = vld [vmem:[%s2059] sm:$0xf]
      %v2061 = vld [vmem:[%s2059 + $0x4] sm:$0xf]
      %v2062 = vld [vmem:[%s2059 + $0x8] sm:$0xf]
      %v2063 = vld [vmem:[%s2059 + $0xc] sm:$0xf]
      %v2064 = vld [vmem:[%s2059 + $0x10] sm:$0xf]
      %v2065 = vld [vmem:[%s2059 + $0x14] sm:$0xf]
      %v2066 = vld [vmem:[%s2059 + $0x18] sm:$0xf]
      %v2067 = vld [vmem:[%s2059 + $0x1c] sm:$0xf]
      %v2069 = vshrl.u32 %v2050, 16
      %v2071 = vrot.slane %v2069, 3
      %v2072 = vshll.u32 %v2050, 16
      %v2074 = vrot.slane %v2072, 4
      %v2075 = vor.u32 %v2071, %v2074
      %v2077 = vshrl.u32 %v2051, 16
      %v2079 = vrot.slane %v2077, 3
      %v2080 = vshll.u32 %v2051, 16
      %v2082 = vrot.slane %v2080, 4
      %v2083 = vor.u32 %v2079, %v2082
      %v2084 = vsel %vm888, %v2075, %v2083
      %v2086 = vshrl.u32 %v2052, 16
      %v2088 = vrot.slane %v2086, 3
      %v2089 = vshll.u32 %v2052, 16
      %v2091 = vrot.slane %v2089, 4
      %v2092 = vor.u32 %v2088, %v2091
      %v2093 = vsel %vm888, %v2083, %v2092
      %v2095 = vshrl.u32 %v2053, 16
      %v2097 = vrot.slane %v2095, 3
      %v2098 = vshll.u32 %v2053, 16
      %v2100 = vrot.slane %v2098, 4
      %v2101 = vor.u32 %v2097, %v2100
      %v2102 = vsel %vm888, %v2092, %v2101
      %v2104 = vshrl.u32 %v2054, 16
      %v2106 = vrot.slane %v2104, 3
      %v2107 = vshll.u32 %v2054, 16
      %v2109 = vrot.slane %v2107, 4
      %v2110 = vor.u32 %v2106, %v2109
      %v2111 = vsel %vm888, %v2101, %v2110
      %v2113 = vshrl.u32 %v2055, 16
      %v2115 = vrot.slane %v2113, 3
      %v2116 = vshll.u32 %v2055, 16
      %v2118 = vrot.slane %v2116, 4
      %v2119 = vor.u32 %v2115, %v2118
      %v2120 = vsel %vm888, %v2110, %v2119
      %v2122 = vshrl.u32 %v2056, 16
      %v2124 = vrot.slane %v2122, 3
      %v2125 = vshll.u32 %v2056, 16
      %v2127 = vrot.slane %v2125, 4
      %v2128 = vor.u32 %v2124, %v2127
      %v2129 = vsel %vm888, %v2119, %v2128
      %v2131 = vshrl.u32 %v2057, 16
      %v2133 = vrot.slane %v2131, 3
      %v2134 = vshll.u32 %v2057, 16
      %v2136 = vrot.slane %v2134, 4
      %v2137 = vor.u32 %v2133, %v2136
      %v2138 = vsel %vm888, %v2128, %v2137
      %v2140 = vshrl.u32 %v2058, 16
      %v2142 = vrot.slane %v2140, 3
      %v2143 = vshll.u32 %v2058, 16
      %v2145 = vrot.slane %v2143, 4
      %v2146 = vor.u32 %v2142, %v2145
      %v2147 = vsel %vm888, %v2137, %v2146
      %v2156 = vunpack.c.l.b16 %v2060
      %v2157 = vunpack.c.l.b16 %v2061
      %v2158 = vunpack.c.l.b16 %v2062
      %v2159 = vunpack.c.l.b16 %v2063
      %v2160 = vunpack.c.l.b16 %v2064
      %v2161 = vunpack.c.l.b16 %v2065
      %v2162 = vunpack.c.l.b16 %v2066
      %v2163 = vunpack.c.l.b16 %v2067
      %v2164 = vpack.c.b16 %v2157, %v2156
      %v2165 = vpack.c.b16 %v2159, %v2158
      %v2166 = vpack.c.b16 %v2161, %v2160
      %v2167 = vpack.c.b16 %v2163, %v2162
      %v2173 = vsel %vm993, %v2084, 0
      %v2176 = vsel %vm993, %v2093, 0
      %v2179 = vsel %vm993, %v2102, 0
      %v2182 = vsel %vm993, %v2111, 0
      %v2185 = vsel %vm993, %v2120, 0
      %v2188 = vsel %vm993, %v2129, 0
      %v2191 = vsel %vm993, %v2138, 0
      %v2194 = vsel %vm993, %v2147, 0
      %2196 = vmatpush.bf16.msra.mxu0 0
      %2197 = vmatpush.bf16.msra.mxu0 0
      %2198 = vmatpush.bf16.msra.mxu0 0
      %2199 = vmatpush.bf16.msra.mxu0 0
      %2200 = vmatpush.bf16.msra.mxu0 %v2167
      %2201 = vmatpush.bf16.msra.mxu0 %v2166
      %2202 = vmatpush.bf16.msra.mxu0 %v2165
      %2203 = vmatpush.bf16.msra.mxu0 %v2164
      %2204 = vmatmul.bf16.gmra.mxu0 %v2173
      %v2205 = vpop.f32.mrf.mxu0
      %v2206 = vadd.f32 0.0, %v2205
      %v2207 = vpop.f32.mrf.mxu0
      %v2208 = vadd.f32 0.0, %v2207
      %2209 = vmatmul.bf16.gmra.mxu0 %v2176
      %v2210 = vpop.f32.mrf.mxu0
      %v2211 = vadd.f32 0.0, %v2210
      %v2212 = vpop.f32.mrf.mxu0
      %v2213 = vadd.f32 0.0, %v2212
      %2214 = vmatmul.bf16.gmra.mxu0 %v2179
      %v2215 = vpop.f32.mrf.mxu0
      %v2216 = vadd.f32 0.0, %v2215
      %v2217 = vpop.f32.mrf.mxu0
      %v2218 = vadd.f32 0.0, %v2217
      %2219 = vmatmul.bf16.gmra.mxu0 %v2182
      %v2220 = vpop.f32.mrf.mxu0
      %v2221 = vadd.f32 0.0, %v2220
      %v2222 = vpop.f32.mrf.mxu0
      %v2223 = vadd.f32 0.0, %v2222
      %2224 = vmatmul.bf16.gmra.mxu0 %v2185
      %v2225 = vpop.f32.mrf.mxu0
      %v2226 = vadd.f32 0.0, %v2225
      %v2227 = vpop.f32.mrf.mxu0
      %v2228 = vadd.f32 0.0, %v2227
      %2229 = vmatmul.bf16.gmra.mxu0 %v2188
      %v2230 = vpop.f32.mrf.mxu0
      %v2231 = vadd.f32 0.0, %v2230
      %v2232 = vpop.f32.mrf.mxu0
      %v2233 = vadd.f32 0.0, %v2232
      %2234 = vmatmul.bf16.gmra.mxu0 %v2191
      %v2235 = vpop.f32.mrf.mxu0
      %v2236 = vadd.f32 0.0, %v2235
      %v2237 = vpop.f32.mrf.mxu0
      %v2238 = vadd.f32 0.0, %v2237
      %2239 = vmatmul.bf16.gmra.mxu0 %v2194
      %v2240 = vpop.f32.mrf.mxu0
      %v2241 = vadd.f32 0.0, %v2240
      %v2242 = vpop.f32.mrf.mxu0
      %v2243 = vadd.f32 0.0, %v2242
      %2244 = vdwg.mxu0
      %v2245 = vadd.f32 %v1796, %v2206
      %v2246 = vadd.f32 %v1797, %v2208
      %v2247 = vadd.f32 %v1798, %v2211
      %v2248 = vadd.f32 %v1799, %v2213
      %v2249 = vadd.f32 %v1800, %v2216
      %v2250 = vadd.f32 %v1801, %v2218
      %v2251 = vadd.f32 %v1802, %v2221
      %v2252 = vadd.f32 %v1803, %v2223
      %v2253 = vadd.f32 %v1804, %v2226
      %v2254 = vadd.f32 %v1805, %v2228
      %v2255 = vadd.f32 %v1806, %v2231
      %v2256 = vadd.f32 %v1807, %v2233
      %v2257 = vadd.f32 %v1808, %v2236
      %v2258 = vadd.f32 %v1809, %v2238
      %v2259 = vadd.f32 %v1810, %v2241
      %v2260 = vadd.f32 %v1811, %v2243
      %s2261 = scalar_lea.vmem %s7, 128
      %v2262 = vld [vmem:[%s2261] sm:$0xf]
      %v2263 = vld [vmem:[%s2261 + $0x4] sm:$0xf]
      %v2264 = vld [vmem:[%s2261 + $0x8] sm:$0xf]
      %v2265 = vld [vmem:[%s2261 + $0xc] sm:$0xf]
      %v2266 = vld [vmem:[%s2261 + $0x10] sm:$0xf]
      %v2267 = vld [vmem:[%s2261 + $0x14] sm:$0xf]
      %v2268 = vld [vmem:[%s2261 + $0x18] sm:$0xf]
      %v2269 = vld [vmem:[%s2261 + $0x1c] sm:$0xf]
      %v2286 = vunpack.c.l.b16 %v1813
      %v2287 = vunpack.c.l.b16 %v1814
      %v2288 = vunpack.c.l.b16 %v1815
      %v2289 = vunpack.c.l.b16 %v1816
      %v2290 = vunpack.c.l.b16 %v1817
      %v2291 = vunpack.c.l.b16 %v1818
      %v2292 = vunpack.c.l.b16 %v1819
      %v2293 = vunpack.c.l.b16 %v1820
      %v2294 = vunpack.c.l.b16 %v1821
      %v2295 = vunpack.c.l.b16 %v1822
      %v2296 = vunpack.c.l.b16 %v1823
      %v2297 = vunpack.c.l.b16 %v1824
      %v2298 = vunpack.c.l.b16 %v1825
      %v2299 = vunpack.c.l.b16 %v1826
      %v2300 = vunpack.c.l.b16 %v1827
      %v2301 = vunpack.c.l.b16 %v1828
      %v2302 = vpack.c.b16 %v2287, %v2286
      %v2303 = vpack.c.b16 %v2289, %v2288
      %v2304 = vpack.c.b16 %v2291, %v2290
      %v2305 = vpack.c.b16 %v2293, %v2292
      %v2306 = vpack.c.b16 %v2295, %v2294
      %v2307 = vpack.c.b16 %v2297, %v2296
      %v2308 = vpack.c.b16 %v2299, %v2298
      %v2309 = vpack.c.b16 %v2301, %v2300
      %v2318 = vunpack.c.l.b16 %v2262
      %v2319 = vunpack.c.l.b16 %v2263
      %v2320 = vunpack.c.l.b16 %v2264
      %v2321 = vunpack.c.l.b16 %v2265
      %v2322 = vunpack.c.l.b16 %v2266
      %v2323 = vunpack.c.l.b16 %v2267
      %v2324 = vunpack.c.l.b16 %v2268
      %v2325 = vunpack.c.l.b16 %v2269
      %v2326 = vpack.c.b16 %v2319, %v2318
      %v2327 = vpack.c.b16 %v2321, %v2320
      %v2328 = vpack.c.b16 %v2323, %v2322
      %v2329 = vpack.c.b16 %v2325, %v2324
      %v2335 = vsel %vm993, %v2302, 0
      %v2338 = vsel %vm993, %v2303, 0
      %v2341 = vsel %vm993, %v2304, 0
      %v2344 = vsel %vm993, %v2305, 0
      %v2347 = vsel %vm993, %v2306, 0
      %v2350 = vsel %vm993, %v2307, 0
      %v2353 = vsel %vm993, %v2308, 0
      %v2356 = vsel %vm993, %v2309, 0
      %2358 = vmatpush.bf16.msra.mxu0 0
      %2359 = vmatpush.bf16.msra.mxu0 0
      %2360 = vmatpush.bf16.msra.mxu0 0
      %2361 = vmatpush.bf16.msra.mxu0 0
      %2362 = vmatpush.bf16.msra.mxu0 %v2329
      %2363 = vmatpush.bf16.msra.mxu0 %v2328
      %2364 = vmatpush.bf16.msra.mxu0 %v2327
      %2365 = vmatpush.bf16.msra.mxu0 %v2326
      %2366 = vmatmul.bf16.gmra.mxu0 %v2335
      %v2367 = vpop.f32.mrf.mxu0
      %v2368 = vadd.f32 0.0, %v2367
      %v2369 = vpop.f32.mrf.mxu0
      %v2370 = vadd.f32 0.0, %v2369
      %2371 = vmatmul.bf16.gmra.mxu0 %v2338
      %v2372 = vpop.f32.mrf.mxu0
      %v2373 = vadd.f32 0.0, %v2372
      %v2374 = vpop.f32.mrf.mxu0
      %v2375 = vadd.f32 0.0, %v2374
      %2376 = vmatmul.bf16.gmra.mxu0 %v2341
      %v2377 = vpop.f32.mrf.mxu0
      %v2378 = vadd.f32 0.0, %v2377
      %v2379 = vpop.f32.mrf.mxu0
      %v2380 = vadd.f32 0.0, %v2379
      %2381 = vmatmul.bf16.gmra.mxu0 %v2344
      %v2382 = vpop.f32.mrf.mxu0
      %v2383 = vadd.f32 0.0, %v2382
      %v2384 = vpop.f32.mrf.mxu0
      %v2385 = vadd.f32 0.0, %v2384
      %2386 = vmatmul.bf16.gmra.mxu0 %v2347
      %v2387 = vpop.f32.mrf.mxu0
      %v2388 = vadd.f32 0.0, %v2387
      %v2389 = vpop.f32.mrf.mxu0
      %v2390 = vadd.f32 0.0, %v2389
      %2391 = vmatmul.bf16.gmra.mxu0 %v2350
      %v2392 = vpop.f32.mrf.mxu0
      %v2393 = vadd.f32 0.0, %v2392
      %v2394 = vpop.f32.mrf.mxu0
      %v2395 = vadd.f32 0.0, %v2394
      %2396 = vmatmul.bf16.gmra.mxu0 %v2353
      %v2397 = vpop.f32.mrf.mxu0
      %v2398 = vadd.f32 0.0, %v2397
      %v2399 = vpop.f32.mrf.mxu0
      %v2400 = vadd.f32 0.0, %v2399
      %2401 = vmatmul.bf16.gmra.mxu0 %v2356
      %v2402 = vpop.f32.mrf.mxu0
      %v2403 = vadd.f32 0.0, %v2402
      %v2404 = vpop.f32.mrf.mxu0
      %v2405 = vadd.f32 0.0, %v2404
      %2406 = vdwg.mxu0
      %v2407 = vadd.f32 %v2245, %v2368
      %v2408 = vadd.f32 %v2246, %v2370
      %v2409 = vadd.f32 %v2247, %v2373
      %v2410 = vadd.f32 %v2248, %v2375
      %v2411 = vadd.f32 %v2249, %v2378
      %v2412 = vadd.f32 %v2250, %v2380
      %v2413 = vadd.f32 %v2251, %v2383
      %v2414 = vadd.f32 %v2252, %v2385
      %v2415 = vadd.f32 %v2253, %v2388
      %v2416 = vadd.f32 %v2254, %v2390
      %v2417 = vadd.f32 %v2255, %v2393
      %v2418 = vadd.f32 %v2256, %v2395
      %v2419 = vadd.f32 %v2257, %v2398
      %v2420 = vadd.f32 %v2258, %v2400
      %v2421 = vadd.f32 %v2259, %v2403
      %v2422 = vadd.f32 %v2260, %v2405
      %v2423 = vld [vmem:[#allocation2 + $0x10] sm:$0xf]
      %v2424 = vld [vmem:[#allocation2 + $0x14] sm:$0xf]
      %v2425 = vld [vmem:[#allocation2 + $0x18] sm:$0xf]
      %v2426 = vld [vmem:[#allocation2 + $0x1c] sm:$0xf]
      %v2427 = vld [vmem:[#allocation2 + $0x20] sm:$0xf]
      %v2428 = vld [vmem:[#allocation2 + $0x24] sm:$0xf]
      %v2429 = vld [vmem:[#allocation2 + $0x28] sm:$0xf]
      %v2430 = vld [vmem:[#allocation2 + $0x2c] sm:$0xf]
      %v2431 = vld [vmem:[#allocation2 + $0x30] sm:$0xf]
      %v2432 = vld [vmem:[#allocation2 + $0x34] sm:$0xf]
      %v2433 = vld [vmem:[#allocation2 + $0x38] sm:$0xf]
      %v2434 = vld [vmem:[#allocation2 + $0x3c] sm:$0xf]
      %v2435 = vld [vmem:[#allocation2 + $0x40] sm:$0xf]
      %v2436 = vld [vmem:[#allocation2 + $0x44] sm:$0xf]
      %v2437 = vld [vmem:[#allocation2 + $0x48] sm:$0xf]
      %v2438 = vld [vmem:[#allocation2 + $0x4c] sm:$0xf]
      %v2439 = vld [vmem:[#allocation2 + $0x50] sm:$0x1]
      %v2440 = vld [vmem:[%s5 + $0x10] sm:$0xf]
      %v2441 = vld [vmem:[%s5 + $0x14] sm:$0xf]
      %v2442 = vld [vmem:[%s5 + $0x18] sm:$0xf]
      %v2443 = vld [vmem:[%s5 + $0x1c] sm:$0xf]
      %v2444 = vld [vmem:[%s5 + $0x20] sm:$0xf]
      %v2445 = vld [vmem:[%s5 + $0x24] sm:$0xf]
      %v2446 = vld [vmem:[%s5 + $0x28] sm:$0xf]
      %v2447 = vld [vmem:[%s5 + $0x2c] sm:$0xf]
      %v2448 = vld [vmem:[%s5 + $0x30] sm:$0xf]
      %v2449 = vld [vmem:[%s5 + $0x34] sm:$0xf]
      %v2450 = vld [vmem:[%s5 + $0x38] sm:$0xf]
      %v2451 = vld [vmem:[%s5 + $0x3c] sm:$0xf]
      %v2452 = vld [vmem:[%s5 + $0x40] sm:$0xf]
      %v2453 = vld [vmem:[%s5 + $0x44] sm:$0xf]
      %v2454 = vld [vmem:[%s5 + $0x48] sm:$0xf]
      %v2455 = vld [vmem:[%s5 + $0x4c] sm:$0xf]
      %v2456 = vld [vmem:[%s5 + $0x50] sm:$0x1]
      %2458 = vset.pattern.permute.xlu0 0
      %2459 = vperm.xlu0 %2458, %v2440
      %v2460 = vpop.permute.xlu0 %2459
      %v2463 = vunpack.c.l.s4 839922192
      %v2464 = vunpack.c.0.s8 %v2463
      %v2465 = vperm.slane %v2460, %v2464
      %2467 = vset.pattern.permute.xlu0 0
      %2468 = vperm.xlu0 %2467, %v2441
      %v2469 = vpop.permute.xlu0 %2468
      %v2472 = vunpack.c.l.s4 839922192
      %v2473 = vunpack.c.0.s8 %v2472
      %v2474 = vperm.slane %v2469, %v2473
      %2476 = vset.pattern.permute.xlu0 0
      %2477 = vperm.xlu0 %2476, %v2442
      %v2478 = vpop.permute.xlu0 %2477
      %v2481 = vunpack.c.l.s4 839922192
      %v2482 = vunpack.c.0.s8 %v2481
      %v2483 = vperm.slane %v2478, %v2482
      %2485 = vset.pattern.permute.xlu0 0
      %2486 = vperm.xlu0 %2485, %v2443
      %v2487 = vpop.permute.xlu0 %2486
      %v2490 = vunpack.c.l.s4 839922192
      %v2491 = vunpack.c.0.s8 %v2490
      %v2492 = vperm.slane %v2487, %v2491
      %2494 = vset.pattern.permute.xlu0 0
      %2495 = vperm.xlu0 %2494, %v2444
      %v2496 = vpop.permute.xlu0 %2495
      %v2499 = vunpack.c.l.s4 839922192
      %v2500 = vunpack.c.0.s8 %v2499
      %v2501 = vperm.slane %v2496, %v2500
      %2503 = vset.pattern.permute.xlu0 0
      %2504 = vperm.xlu0 %2503, %v2445
      %v2505 = vpop.permute.xlu0 %2504
      %v2508 = vunpack.c.l.s4 839922192
      %v2509 = vunpack.c.0.s8 %v2508
      %v2510 = vperm.slane %v2505, %v2509
      %2512 = vset.pattern.permute.xlu0 0
      %2513 = vperm.xlu0 %2512, %v2446
      %v2514 = vpop.permute.xlu0 %2513
      %v2517 = vunpack.c.l.s4 839922192
      %v2518 = vunpack.c.0.s8 %v2517
      %v2519 = vperm.slane %v2514, %v2518
      %2521 = vset.pattern.permute.xlu0 0
      %2522 = vperm.xlu0 %2521, %v2447
      %v2523 = vpop.permute.xlu0 %2522
      %v2526 = vunpack.c.l.s4 839922192
      %v2527 = vunpack.c.0.s8 %v2526
      %v2528 = vperm.slane %v2523, %v2527
      %2530 = vset.pattern.permute.xlu0 0
      %2531 = vperm.xlu0 %2530, %v2448
      %v2532 = vpop.permute.xlu0 %2531
      %v2535 = vunpack.c.l.s4 839922192
      %v2536 = vunpack.c.0.s8 %v2535
      %v2537 = vperm.slane %v2532, %v2536
      %2539 = vset.pattern.permute.xlu0 0
      %2540 = vperm.xlu0 %2539, %v2449
      %v2541 = vpop.permute.xlu0 %2540
      %v2544 = vunpack.c.l.s4 839922192
      %v2545 = vunpack.c.0.s8 %v2544
      %v2546 = vperm.slane %v2541, %v2545
      %2548 = vset.pattern.permute.xlu0 0
      %2549 = vperm.xlu0 %2548, %v2450
      %v2550 = vpop.permute.xlu0 %2549
      %v2553 = vunpack.c.l.s4 839922192
      %v2554 = vunpack.c.0.s8 %v2553
      %v2555 = vperm.slane %v2550, %v2554
      %2557 = vset.pattern.permute.xlu0 0
      %2558 = vperm.xlu0 %2557, %v2451
      %v2559 = vpop.permute.xlu0 %2558
      %v2562 = vunpack.c.l.s4 839922192
      %v2563 = vunpack.c.0.s8 %v2562
      %v2564 = vperm.slane %v2559, %v2563
      %2566 = vset.pattern.permute.xlu0 0
      %2567 = vperm.xlu0 %2566, %v2452
      %v2568 = vpop.permute.xlu0 %2567
      %v2571 = vunpack.c.l.s4 839922192
      %v2572 = vunpack.c.0.s8 %v2571
      %v2573 = vperm.slane %v2568, %v2572
      %2575 = vset.pattern.permute.xlu0 0
      %2576 = vperm.xlu0 %2575, %v2453
      %v2577 = vpop.permute.xlu0 %2576
      %v2580 = vunpack.c.l.s4 839922192
      %v2581 = vunpack.c.0.s8 %v2580
      %v2582 = vperm.slane %v2577, %v2581
      %2584 = vset.pattern.permute.xlu0 0
      %2585 = vperm.xlu0 %2584, %v2454
      %v2586 = vpop.permute.xlu0 %2585
      %v2589 = vunpack.c.l.s4 839922192
      %v2590 = vunpack.c.0.s8 %v2589
      %v2591 = vperm.slane %v2586, %v2590
      %2593 = vset.pattern.permute.xlu0 0
      %2594 = vperm.xlu0 %2593, %v2455
      %v2595 = vpop.permute.xlu0 %2594
      %v2598 = vunpack.c.l.s4 839922192
      %v2599 = vunpack.c.0.s8 %v2598
      %v2600 = vperm.slane %v2595, %v2599
      %2602 = vset.pattern.permute.xlu0 0
      %2603 = vperm.xlu0 %2602, %v2456
      %v2604 = vpop.permute.xlu0 %2603
      %v2607 = vunpack.c.l.s4 839922192
      %v2608 = vunpack.c.0.s8 %v2607
      %v2609 = vperm.slane %v2604, %v2608
      %v2610 = vunpack.c.l.bf16 %v2423
      %v2611 = vunpack.c.l.bf16 %v2424
      %v2612 = vunpack.c.l.bf16 %v2425
      %v2613 = vunpack.c.l.bf16 %v2426
      %v2614 = vunpack.c.l.bf16 %v2427
      %v2615 = vunpack.c.l.bf16 %v2428
      %v2616 = vunpack.c.l.bf16 %v2429
      %v2617 = vunpack.c.l.bf16 %v2430
      %v2618 = vunpack.c.l.bf16 %v2431
      %v2619 = vunpack.c.l.bf16 %v2432
      %v2620 = vunpack.c.l.bf16 %v2433
      %v2621 = vunpack.c.l.bf16 %v2434
      %v2622 = vunpack.c.l.bf16 %v2435
      %v2623 = vunpack.c.l.bf16 %v2436
      %v2624 = vunpack.c.l.bf16 %v2437
      %v2625 = vunpack.c.l.bf16 %v2438
      %v2626 = vunpack.c.l.bf16 %v2439
      %v2627 = vunpack.c.l.bf16 %v2465
      %v2628 = vunpack.c.l.bf16 %v2474
      %v2629 = vunpack.c.l.bf16 %v2483
      %v2630 = vunpack.c.l.bf16 %v2492
      %v2631 = vunpack.c.l.bf16 %v2501
      %v2632 = vunpack.c.l.bf16 %v2510
      %v2633 = vunpack.c.l.bf16 %v2519
      %v2634 = vunpack.c.l.bf16 %v2528
      %v2635 = vunpack.c.l.bf16 %v2537
      %v2636 = vunpack.c.l.bf16 %v2546
      %v2637 = vunpack.c.l.bf16 %v2555
      %v2638 = vunpack.c.l.bf16 %v2564
      %v2639 = vunpack.c.l.bf16 %v2573
      %v2640 = vunpack.c.l.bf16 %v2582
      %v2641 = vunpack.c.l.bf16 %v2591
      %v2642 = vunpack.c.l.bf16 %v2600
      %v2643 = vunpack.c.l.bf16 %v2609
      %v2644 = vmul.f32 %v2610, %v2627
      %v2645 = vmul.f32 %v2611, %v2628
      %v2646 = vmul.f32 %v2612, %v2629
      %v2647 = vmul.f32 %v2613, %v2630
      %v2648 = vmul.f32 %v2614, %v2631
      %v2649 = vmul.f32 %v2615, %v2632
      %v2650 = vmul.f32 %v2616, %v2633
      %v2651 = vmul.f32 %v2617, %v2634
      %v2652 = vmul.f32 %v2618, %v2635
      %v2653 = vmul.f32 %v2619, %v2636
      %v2654 = vmul.f32 %v2620, %v2637
      %v2655 = vmul.f32 %v2621, %v2638
      %v2656 = vmul.f32 %v2622, %v2639
      %v2657 = vmul.f32 %v2623, %v2640
      %v2658 = vmul.f32 %v2624, %v2641
      %v2659 = vmul.f32 %v2625, %v2642
      %v2660 = vmul.f32 %v2626, %v2643
      %v2661 = vpack.c.bf16 %v2645, %v2644
      %v2662 = vpack.c.bf16 %v2647, %v2646
      %v2663 = vpack.c.bf16 %v2649, %v2648
      %v2664 = vpack.c.bf16 %v2651, %v2650
      %v2665 = vpack.c.bf16 %v2653, %v2652
      %v2666 = vpack.c.bf16 %v2655, %v2654
      %v2667 = vpack.c.bf16 %v2657, %v2656
      %v2668 = vpack.c.bf16 %v2659, %v2658
      %v2669 = vpack.c.bf16 %v2660, %v2660
      %s2670 = scalar_lea.vmem %s7, 160
      %v2671 = vld [vmem:[%s2670] sm:$0xf]
      %v2672 = vld [vmem:[%s2670 + $0x4] sm:$0xf]
      %v2673 = vld [vmem:[%s2670 + $0x8] sm:$0xf]
      %v2674 = vld [vmem:[%s2670 + $0xc] sm:$0xf]
      %v2675 = vld [vmem:[%s2670 + $0x10] sm:$0xf]
      %v2676 = vld [vmem:[%s2670 + $0x14] sm:$0xf]
      %v2677 = vld [vmem:[%s2670 + $0x18] sm:$0xf]
      %v2678 = vld [vmem:[%s2670 + $0x1c] sm:$0xf]
      %v2680 = vshrl.u32 %v2661, 16
      %v2682 = vshll.u32 %v2661, 16
      %v2684 = vrot.slane %v2682, 1
      %v2685 = vor.u32 %v2680, %v2684
      %v2687 = vshll.u32 %v2662, 16
      %v2689 = vrot.slane %v2687, 1
      %v2690 = vsel %vm1630, %v2685, %v2689
      %v2691 = vshrl.u32 %v2662, 16
      %v2693 = vor.u32 %v2691, %v2689
      %v2695 = vshll.u32 %v2663, 16
      %v2697 = vrot.slane %v2695, 1
      %v2698 = vsel %vm1630, %v2693, %v2697
      %v2699 = vshrl.u32 %v2663, 16
      %v2701 = vor.u32 %v2699, %v2697
      %v2703 = vshll.u32 %v2664, 16
      %v2705 = vrot.slane %v2703, 1
      %v2706 = vsel %vm1630, %v2701, %v2705
      %v2707 = vshrl.u32 %v2664, 16
      %v2709 = vor.u32 %v2707, %v2705
      %v2711 = vshll.u32 %v2665, 16
      %v2713 = vrot.slane %v2711, 1
      %v2714 = vsel %vm1630, %v2709, %v2713
      %v2715 = vshrl.u32 %v2665, 16
      %v2717 = vor.u32 %v2715, %v2713
      %v2719 = vshll.u32 %v2666, 16
      %v2721 = vrot.slane %v2719, 1
      %v2722 = vsel %vm1630, %v2717, %v2721
      %v2723 = vshrl.u32 %v2666, 16
      %v2725 = vor.u32 %v2723, %v2721
      %v2727 = vshll.u32 %v2667, 16
      %v2729 = vrot.slane %v2727, 1
      %v2730 = vsel %vm1630, %v2725, %v2729
      %v2731 = vshrl.u32 %v2667, 16
      %v2733 = vor.u32 %v2731, %v2729
      %v2735 = vshll.u32 %v2668, 16
      %v2737 = vrot.slane %v2735, 1
      %v2738 = vsel %vm1630, %v2733, %v2737
      %v2739 = vshrl.u32 %v2668, 16
      %v2741 = vor.u32 %v2739, %v2737
      %v2743 = vshll.u32 %v2669, 16
      %v2745 = vrot.slane %v2743, 1
      %v2746 = vsel %vm1630, %v2741, %v2745
      %v2755 = vunpack.c.l.b16 %v2671
      %v2756 = vunpack.c.l.b16 %v2672
      %v2757 = vunpack.c.l.b16 %v2673
      %v2758 = vunpack.c.l.b16 %v2674
      %v2759 = vunpack.c.l.b16 %v2675
      %v2760 = vunpack.c.l.b16 %v2676
      %v2761 = vunpack.c.l.b16 %v2677
      %v2762 = vunpack.c.l.b16 %v2678
      %v2763 = vpack.c.b16 %v2756, %v2755
      %v2764 = vpack.c.b16 %v2758, %v2757
      %v2765 = vpack.c.b16 %v2760, %v2759
      %v2766 = vpack.c.b16 %v2762, %v2761
      %v2772 = vsel %vm993, %v2690, 0
      %v2775 = vsel %vm993, %v2698, 0
      %v2778 = vsel %vm993, %v2706, 0
      %v2781 = vsel %vm993, %v2714, 0
      %v2784 = vsel %vm993, %v2722, 0
      %v2787 = vsel %vm993, %v2730, 0
      %v2790 = vsel %vm993, %v2738, 0
      %v2793 = vsel %vm993, %v2746, 0
      %2795 = vmatpush.bf16.msra.mxu0 0
      %2796 = vmatpush.bf16.msra.mxu0 0
      %2797 = vmatpush.bf16.msra.mxu0 0
      %2798 = vmatpush.bf16.msra.mxu0 0
      %2799 = vmatpush.bf16.msra.mxu0 %v2766
      %2800 = vmatpush.bf16.msra.mxu0 %v2765
      %2801 = vmatpush.bf16.msra.mxu0 %v2764
      %2802 = vmatpush.bf16.msra.mxu0 %v2763
      %2803 = vmatmul.bf16.gmra.mxu0 %v2772
      %v2804 = vpop.f32.mrf.mxu0
      %v2805 = vadd.f32 0.0, %v2804
      %v2806 = vpop.f32.mrf.mxu0
      %v2807 = vadd.f32 0.0, %v2806
      %2808 = vmatmul.bf16.gmra.mxu0 %v2775
      %v2809 = vpop.f32.mrf.mxu0
      %v2810 = vadd.f32 0.0, %v2809
      %v2811 = vpop.f32.mrf.mxu0
      %v2812 = vadd.f32 0.0, %v2811
      %2813 = vmatmul.bf16.gmra.mxu0 %v2778
      %v2814 = vpop.f32.mrf.mxu0
      %v2815 = vadd.f32 0.0, %v2814
      %v2816 = vpop.f32.mrf.mxu0
      %v2817 = vadd.f32 0.0, %v2816
      %2818 = vmatmul.bf16.gmra.mxu0 %v2781
      %v2819 = vpop.f32.mrf.mxu0
      %v2820 = vadd.f32 0.0, %v2819
      %v2821 = vpop.f32.mrf.mxu0
      %v2822 = vadd.f32 0.0, %v2821
      %2823 = vmatmul.bf16.gmra.mxu0 %v2784
      %v2824 = vpop.f32.mrf.mxu0
      %v2825 = vadd.f32 0.0, %v2824
      %v2826 = vpop.f32.mrf.mxu0
      %v2827 = vadd.f32 0.0, %v2826
      %2828 = vmatmul.bf16.gmra.mxu0 %v2787
      %v2829 = vpop.f32.mrf.mxu0
      %v2830 = vadd.f32 0.0, %v2829
      %v2831 = vpop.f32.mrf.mxu0
      %v2832 = vadd.f32 0.0, %v2831
      %2833 = vmatmul.bf16.gmra.mxu0 %v2790
      %v2834 = vpop.f32.mrf.mxu0
      %v2835 = vadd.f32 0.0, %v2834
      %v2836 = vpop.f32.mrf.mxu0
      %v2837 = vadd.f32 0.0, %v2836
      %2838 = vmatmul.bf16.gmra.mxu0 %v2793
      %v2839 = vpop.f32.mrf.mxu0
      %v2840 = vadd.f32 0.0, %v2839
      %v2841 = vpop.f32.mrf.mxu0
      %v2842 = vadd.f32 0.0, %v2841
      %2843 = vdwg.mxu0
      %v2844 = vadd.f32 %v2407, %v2805
      %v2845 = vadd.f32 %v2408, %v2807
      %v2846 = vadd.f32 %v2409, %v2810
      %v2847 = vadd.f32 %v2410, %v2812
      %v2848 = vadd.f32 %v2411, %v2815
      %v2849 = vadd.f32 %v2412, %v2817
      %v2850 = vadd.f32 %v2413, %v2820
      %v2851 = vadd.f32 %v2414, %v2822
      %v2852 = vadd.f32 %v2415, %v2825
      %v2853 = vadd.f32 %v2416, %v2827
      %v2854 = vadd.f32 %v2417, %v2830
      %v2855 = vadd.f32 %v2418, %v2832
      %v2856 = vadd.f32 %v2419, %v2835
      %v2857 = vadd.f32 %v2420, %v2837
      %v2858 = vadd.f32 %v2421, %v2840
      %v2859 = vadd.f32 %v2422, %v2842
      %v2860 = vld [vmem:[#allocation2 + $0x14] sm:$0x8]
      %v2861 = vld [vmem:[#allocation2 + $0x18] sm:$0xf]
      %v2862 = vld [vmem:[#allocation2 + $0x1c] sm:$0xf]
      %v2863 = vld [vmem:[#allocation2 + $0x20] sm:$0xf]
      %v2864 = vld [vmem:[#allocation2 + $0x24] sm:$0xf]
      %v2865 = vld [vmem:[#allocation2 + $0x28] sm:$0xf]
      %v2866 = vld [vmem:[#allocation2 + $0x2c] sm:$0xf]
      %v2867 = vld [vmem:[#allocation2 + $0x30] sm:$0xf]
      %v2868 = vld [vmem:[#allocation2 + $0x34] sm:$0xf]
      %v2869 = vld [vmem:[#allocation2 + $0x38] sm:$0xf]
      %v2870 = vld [vmem:[#allocation2 + $0x3c] sm:$0xf]
      %v2871 = vld [vmem:[#allocation2 + $0x40] sm:$0xf]
      %v2872 = vld [vmem:[#allocation2 + $0x44] sm:$0xf]
      %v2873 = vld [vmem:[#allocation2 + $0x48] sm:$0xf]
      %v2874 = vld [vmem:[#allocation2 + $0x4c] sm:$0xf]
      %v2875 = vld [vmem:[#allocation2 + $0x50] sm:$0xf]
      %v2876 = vld [vmem:[#allocation2 + $0x54] sm:$0xf]
      %v2877 = vld [vmem:[%s4 + $0x14] sm:$0x8]
      %v2878 = vld [vmem:[%s4 + $0x18] sm:$0xf]
      %v2879 = vld [vmem:[%s4 + $0x1c] sm:$0xf]
      %v2880 = vld [vmem:[%s4 + $0x20] sm:$0xf]
      %v2881 = vld [vmem:[%s4 + $0x24] sm:$0xf]
      %v2882 = vld [vmem:[%s4 + $0x28] sm:$0xf]
      %v2883 = vld [vmem:[%s4 + $0x2c] sm:$0xf]
      %v2884 = vld [vmem:[%s4 + $0x30] sm:$0xf]
      %v2885 = vld [vmem:[%s4 + $0x34] sm:$0xf]
      %v2886 = vld [vmem:[%s4 + $0x38] sm:$0xf]
      %v2887 = vld [vmem:[%s4 + $0x3c] sm:$0xf]
      %v2888 = vld [vmem:[%s4 + $0x40] sm:$0xf]
      %v2889 = vld [vmem:[%s4 + $0x44] sm:$0xf]
      %v2890 = vld [vmem:[%s4 + $0x48] sm:$0xf]
      %v2891 = vld [vmem:[%s4 + $0x4c] sm:$0xf]
      %v2892 = vld [vmem:[%s4 + $0x50] sm:$0xf]
      %v2893 = vld [vmem:[%s4 + $0x54] sm:$0xf]
      %2895 = vset.pattern.permute.xlu0 0
      %2896 = vperm.xlu0 %2895, %v2877
      %v2897 = vpop.permute.xlu0 %2896
      %v2900 = vunpack.c.l.s4 839922192
      %v2901 = vunpack.c.0.s8 %v2900
      %v2902 = vperm.slane %v2897, %v2901
      %2904 = vset.pattern.permute.xlu0 0
      %2905 = vperm.xlu0 %2904, %v2878
      %v2906 = vpop.permute.xlu0 %2905
      %v2909 = vunpack.c.l.s4 839922192
      %v2910 = vunpack.c.0.s8 %v2909
      %v2911 = vperm.slane %v2906, %v2910
      %2913 = vset.pattern.permute.xlu0 0
      %2914 = vperm.xlu0 %2913, %v2879
      %v2915 = vpop.permute.xlu0 %2914
      %v2918 = vunpack.c.l.s4 839922192
      %v2919 = vunpack.c.0.s8 %v2918
      %v2920 = vperm.slane %v2915, %v2919
      %2922 = vset.pattern.permute.xlu0 0
      %2923 = vperm.xlu0 %2922, %v2880
      %v2924 = vpop.permute.xlu0 %2923
      %v2927 = vunpack.c.l.s4 839922192
      %v2928 = vunpack.c.0.s8 %v2927
      %v2929 = vperm.slane %v2924, %v2928
      %2931 = vset.pattern.permute.xlu0 0
      %2932 = vperm.xlu0 %2931, %v2881
      %v2933 = vpop.permute.xlu0 %2932
      %v2936 = vunpack.c.l.s4 839922192
      %v2937 = vunpack.c.0.s8 %v2936
      %v2938 = vperm.slane %v2933, %v2937
      %2940 = vset.pattern.permute.xlu0 0
      %2941 = vperm.xlu0 %2940, %v2882
      %v2942 = vpop.permute.xlu0 %2941
      %v2945 = vunpack.c.l.s4 839922192
      %v2946 = vunpack.c.0.s8 %v2945
      %v2947 = vperm.slane %v2942, %v2946
      %2949 = vset.pattern.permute.xlu0 0
      %2950 = vperm.xlu0 %2949, %v2883
      %v2951 = vpop.permute.xlu0 %2950
      %v2954 = vunpack.c.l.s4 839922192
      %v2955 = vunpack.c.0.s8 %v2954
      %v2956 = vperm.slane %v2951, %v2955
      %2958 = vset.pattern.permute.xlu0 0
      %2959 = vperm.xlu0 %2958, %v2884
      %v2960 = vpop.permute.xlu0 %2959
      %v2963 = vunpack.c.l.s4 839922192
      %v2964 = vunpack.c.0.s8 %v2963
      %v2965 = vperm.slane %v2960, %v2964
      %2967 = vset.pattern.permute.xlu0 0
      %2968 = vperm.xlu0 %2967, %v2885
      %v2969 = vpop.permute.xlu0 %2968
      %v2972 = vunpack.c.l.s4 839922192
      %v2973 = vunpack.c.0.s8 %v2972
      %v2974 = vperm.slane %v2969, %v2973
      %2976 = vset.pattern.permute.xlu0 0
      %2977 = vperm.xlu0 %2976, %v2886
      %v2978 = vpop.permute.xlu0 %2977
      %v2981 = vunpack.c.l.s4 839922192
      %v2982 = vunpack.c.0.s8 %v2981
      %v2983 = vperm.slane %v2978, %v2982
      %2985 = vset.pattern.permute.xlu0 0
      %2986 = vperm.xlu0 %2985, %v2887
      %v2987 = vpop.permute.xlu0 %2986
      %v2990 = vunpack.c.l.s4 839922192
      %v2991 = vunpack.c.0.s8 %v2990
      %v2992 = vperm.slane %v2987, %v2991
      %2994 = vset.pattern.permute.xlu0 0
      %2995 = vperm.xlu0 %2994, %v2888
      %v2996 = vpop.permute.xlu0 %2995
      %v2999 = vunpack.c.l.s4 839922192
      %v3000 = vunpack.c.0.s8 %v2999
      %v3001 = vperm.slane %v2996, %v3000
      %3003 = vset.pattern.permute.xlu0 0
      %3004 = vperm.xlu0 %3003, %v2889
      %v3005 = vpop.permute.xlu0 %3004
      %v3008 = vunpack.c.l.s4 839922192
      %v3009 = vunpack.c.0.s8 %v3008
      %v3010 = vperm.slane %v3005, %v3009
      %3012 = vset.pattern.permute.xlu0 0
      %3013 = vperm.xlu0 %3012, %v2890
      %v3014 = vpop.permute.xlu0 %3013
      %v3017 = vunpack.c.l.s4 839922192
      %v3018 = vunpack.c.0.s8 %v3017
      %v3019 = vperm.slane %v3014, %v3018
      %3021 = vset.pattern.permute.xlu0 0
      %3022 = vperm.xlu0 %3021, %v2891
      %v3023 = vpop.permute.xlu0 %3022
      %v3026 = vunpack.c.l.s4 839922192
      %v3027 = vunpack.c.0.s8 %v3026
      %v3028 = vperm.slane %v3023, %v3027
      %3030 = vset.pattern.permute.xlu0 0
      %3031 = vperm.xlu0 %3030, %v2892
      %v3032 = vpop.permute.xlu0 %3031
      %v3035 = vunpack.c.l.s4 839922192
      %v3036 = vunpack.c.0.s8 %v3035
      %v3037 = vperm.slane %v3032, %v3036
      %3039 = vset.pattern.permute.xlu0 0
      %3040 = vperm.xlu0 %3039, %v2893
      %v3041 = vpop.permute.xlu0 %3040
      %v3044 = vunpack.c.l.s4 839922192
      %v3045 = vunpack.c.0.s8 %v3044
      %v3046 = vperm.slane %v3041, %v3045
      %v3047 = vunpack.c.l.bf16 %v2860
      %v3048 = vunpack.c.l.bf16 %v2861
      %v3049 = vunpack.c.l.bf16 %v2862
      %v3050 = vunpack.c.l.bf16 %v2863
      %v3051 = vunpack.c.l.bf16 %v2864
      %v3052 = vunpack.c.l.bf16 %v2865
      %v3053 = vunpack.c.l.bf16 %v2866
      %v3054 = vunpack.c.l.bf16 %v2867
      %v3055 = vunpack.c.l.bf16 %v2868
      %v3056 = vunpack.c.l.bf16 %v2869
      %v3057 = vunpack.c.l.bf16 %v2870
      %v3058 = vunpack.c.l.bf16 %v2871
      %v3059 = vunpack.c.l.bf16 %v2872
      %v3060 = vunpack.c.l.bf16 %v2873
      %v3061 = vunpack.c.l.bf16 %v2874
      %v3062 = vunpack.c.l.bf16 %v2875
      %v3063 = vunpack.c.l.bf16 %v2876
      %v3064 = vunpack.c.l.bf16 %v2902
      %v3065 = vunpack.c.l.bf16 %v2911
      %v3066 = vunpack.c.l.bf16 %v2920
      %v3067 = vunpack.c.l.bf16 %v2929
      %v3068 = vunpack.c.l.bf16 %v2938
      %v3069 = vunpack.c.l.bf16 %v2947
      %v3070 = vunpack.c.l.bf16 %v2956
      %v3071 = vunpack.c.l.bf16 %v2965
      %v3072 = vunpack.c.l.bf16 %v2974
      %v3073 = vunpack.c.l.bf16 %v2983
      %v3074 = vunpack.c.l.bf16 %v2992
      %v3075 = vunpack.c.l.bf16 %v3001
      %v3076 = vunpack.c.l.bf16 %v3010
      %v3077 = vunpack.c.l.bf16 %v3019
      %v3078 = vunpack.c.l.bf16 %v3028
      %v3079 = vunpack.c.l.bf16 %v3037
      %v3080 = vunpack.c.l.bf16 %v3046
      %v3081 = vmul.f32 %v3047, %v3064
      %v3082 = vmul.f32 %v3048, %v3065
      %v3083 = vmul.f32 %v3049, %v3066
      %v3084 = vmul.f32 %v3050, %v3067
      %v3085 = vmul.f32 %v3051, %v3068
      %v3086 = vmul.f32 %v3052, %v3069
      %v3087 = vmul.f32 %v3053, %v3070
      %v3088 = vmul.f32 %v3054, %v3071
      %v3089 = vmul.f32 %v3055, %v3072
      %v3090 = vmul.f32 %v3056, %v3073
      %v3091 = vmul.f32 %v3057, %v3074
      %v3092 = vmul.f32 %v3058, %v3075
      %v3093 = vmul.f32 %v3059, %v3076
      %v3094 = vmul.f32 %v3060, %v3077
      %v3095 = vmul.f32 %v3061, %v3078
      %v3096 = vmul.f32 %v3062, %v3079
      %v3097 = vmul.f32 %v3063, %v3080
      %v3098 = vpack.c.bf16 %v3082, %v3081
      %v3099 = vpack.c.bf16 %v3084, %v3083
      %v3100 = vpack.c.bf16 %v3086, %v3085
      %v3101 = vpack.c.bf16 %v3088, %v3087
      %v3102 = vpack.c.bf16 %v3090, %v3089
      %v3103 = vpack.c.bf16 %v3092, %v3091
      %v3104 = vpack.c.bf16 %v3094, %v3093
      %v3105 = vpack.c.bf16 %v3096, %v3095
      %v3106 = vpack.c.bf16 %v3097, %v3097
      %s3107 = scalar_lea.vmem %s7, 192
      %v3108 = vld [vmem:[%s3107] sm:$0xf]
      %v3109 = vld [vmem:[%s3107 + $0x4] sm:$0xf]
      %v3110 = vld [vmem:[%s3107 + $0x8] sm:$0xf]
      %v3111 = vld [vmem:[%s3107 + $0xc] sm:$0xf]
      %v3112 = vld [vmem:[%s3107 + $0x10] sm:$0xf]
      %v3113 = vld [vmem:[%s3107 + $0x14] sm:$0xf]
      %v3114 = vld [vmem:[%s3107 + $0x18] sm:$0xf]
      %v3115 = vld [vmem:[%s3107 + $0x1c] sm:$0xf]
      %v3117 = vshrl.u32 %v3098, 16
      %v3119 = vrot.slane %v3117, 3
      %v3120 = vshll.u32 %v3098, 16
      %v3122 = vrot.slane %v3120, 4
      %v3123 = vor.u32 %v3119, %v3122
      %v3125 = vshrl.u32 %v3099, 16
      %v3127 = vrot.slane %v3125, 3
      %v3128 = vshll.u32 %v3099, 16
      %v3130 = vrot.slane %v3128, 4
      %v3131 = vor.u32 %v3127, %v3130
      %v3132 = vsel %vm888, %v3123, %v3131
      %v3134 = vshrl.u32 %v3100, 16
      %v3136 = vrot.slane %v3134, 3
      %v3137 = vshll.u32 %v3100, 16
      %v3139 = vrot.slane %v3137, 4
      %v3140 = vor.u32 %v3136, %v3139
      %v3141 = vsel %vm888, %v3131, %v3140
      %v3143 = vshrl.u32 %v3101, 16
      %v3145 = vrot.slane %v3143, 3
      %v3146 = vshll.u32 %v3101, 16
      %v3148 = vrot.slane %v3146, 4
      %v3149 = vor.u32 %v3145, %v3148
      %v3150 = vsel %vm888, %v3140, %v3149
      %v3152 = vshrl.u32 %v3102, 16
      %v3154 = vrot.slane %v3152, 3
      %v3155 = vshll.u32 %v3102, 16
      %v3157 = vrot.slane %v3155, 4
      %v3158 = vor.u32 %v3154, %v3157
      %v3159 = vsel %vm888, %v3149, %v3158
      %v3161 = vshrl.u32 %v3103, 16
      %v3163 = vrot.slane %v3161, 3
      %v3164 = vshll.u32 %v3103, 16
      %v3166 = vrot.slane %v3164, 4
      %v3167 = vor.u32 %v3163, %v3166
      %v3168 = vsel %vm888, %v3158, %v3167
      %v3170 = vshrl.u32 %v3104, 16
      %v3172 = vrot.slane %v3170, 3
      %v3173 = vshll.u32 %v3104, 16
      %v3175 = vrot.slane %v3173, 4
      %v3176 = vor.u32 %v3172, %v3175
      %v3177 = vsel %vm888, %v3167, %v3176
      %v3179 = vshrl.u32 %v3105, 16
      %v3181 = vrot.slane %v3179, 3
      %v3182 = vshll.u32 %v3105, 16
      %v3184 = vrot.slane %v3182, 4
      %v3185 = vor.u32 %v3181, %v3184
      %v3186 = vsel %vm888, %v3176, %v3185
      %v3188 = vshrl.u32 %v3106, 16
      %v3190 = vrot.slane %v3188, 3
      %v3191 = vshll.u32 %v3106, 16
      %v3193 = vrot.slane %v3191, 4
      %v3194 = vor.u32 %v3190, %v3193
      %v3195 = vsel %vm888, %v3185, %v3194
      %v3204 = vunpack.c.l.b16 %v3108
      %v3205 = vunpack.c.l.b16 %v3109
      %v3206 = vunpack.c.l.b16 %v3110
      %v3207 = vunpack.c.l.b16 %v3111
      %v3208 = vunpack.c.l.b16 %v3112
      %v3209 = vunpack.c.l.b16 %v3113
      %v3210 = vunpack.c.l.b16 %v3114
      %v3211 = vunpack.c.l.b16 %v3115
      %v3212 = vpack.c.b16 %v3205, %v3204
      %v3213 = vpack.c.b16 %v3207, %v3206
      %v3214 = vpack.c.b16 %v3209, %v3208
      %v3215 = vpack.c.b16 %v3211, %v3210
      %v3221 = vsel %vm993, %v3132, 0
      %v3224 = vsel %vm993, %v3141, 0
      %v3227 = vsel %vm993, %v3150, 0
      %v3230 = vsel %vm993, %v3159, 0
      %v3233 = vsel %vm993, %v3168, 0
      %v3236 = vsel %vm993, %v3177, 0
      %v3239 = vsel %vm993, %v3186, 0
      %v3242 = vsel %vm993, %v3195, 0
      %3244 = vmatpush.bf16.msra.mxu0 0
      %3245 = vmatpush.bf16.msra.mxu0 0
      %3246 = vmatpush.bf16.msra.mxu0 0
      %3247 = vmatpush.bf16.msra.mxu0 0
      %3248 = vmatpush.bf16.msra.mxu0 %v3215
      %3249 = vmatpush.bf16.msra.mxu0 %v3214
      %3250 = vmatpush.bf16.msra.mxu0 %v3213
      %3251 = vmatpush.bf16.msra.mxu0 %v3212
      %3252 = vmatmul.bf16.gmra.mxu0 %v3221
      %v3253 = vpop.f32.mrf.mxu0
      %v3254 = vadd.f32 0.0, %v3253
      %v3255 = vpop.f32.mrf.mxu0
      %v3256 = vadd.f32 0.0, %v3255
      %3257 = vmatmul.bf16.gmra.mxu0 %v3224
      %v3258 = vpop.f32.mrf.mxu0
      %v3259 = vadd.f32 0.0, %v3258
      %v3260 = vpop.f32.mrf.mxu0
      %v3261 = vadd.f32 0.0, %v3260
      %3262 = vmatmul.bf16.gmra.mxu0 %v3227
      %v3263 = vpop.f32.mrf.mxu0
      %v3264 = vadd.f32 0.0, %v3263
      %v3265 = vpop.f32.mrf.mxu0
      %v3266 = vadd.f32 0.0, %v3265
      %3267 = vmatmul.bf16.gmra.mxu0 %v3230
      %v3268 = vpop.f32.mrf.mxu0
      %v3269 = vadd.f32 0.0, %v3268
      %v3270 = vpop.f32.mrf.mxu0
      %v3271 = vadd.f32 0.0, %v3270
      %3272 = vmatmul.bf16.gmra.mxu0 %v3233
      %v3273 = vpop.f32.mrf.mxu0
      %v3274 = vadd.f32 0.0, %v3273
      %v3275 = vpop.f32.mrf.mxu0
      %v3276 = vadd.f32 0.0, %v3275
      %3277 = vmatmul.bf16.gmra.mxu0 %v3236
      %v3278 = vpop.f32.mrf.mxu0
      %v3279 = vadd.f32 0.0, %v3278
      %v3280 = vpop.f32.mrf.mxu0
      %v3281 = vadd.f32 0.0, %v3280
      %3282 = vmatmul.bf16.gmra.mxu0 %v3239
      %v3283 = vpop.f32.mrf.mxu0
      %v3284 = vadd.f32 0.0, %v3283
      %v3285 = vpop.f32.mrf.mxu0
      %v3286 = vadd.f32 0.0, %v3285
      %3287 = vmatmul.bf16.gmra.mxu0 %v3242
      %v3288 = vpop.f32.mrf.mxu0
      %v3289 = vadd.f32 0.0, %v3288
      %v3290 = vpop.f32.mrf.mxu0
      %v3291 = vadd.f32 0.0, %v3290
      %3292 = vdwg.mxu0
      %v3293 = vadd.f32 %v2844, %v3254
      %v3294 = vadd.f32 %v2845, %v3256
      %v3295 = vadd.f32 %v2846, %v3259
      %v3296 = vadd.f32 %v2847, %v3261
      %v3297 = vadd.f32 %v2848, %v3264
      %v3298 = vadd.f32 %v2849, %v3266
      %v3299 = vadd.f32 %v2850, %v3269
      %v3300 = vadd.f32 %v2851, %v3271
      %v3301 = vadd.f32 %v2852, %v3274
      %v3302 = vadd.f32 %v2853, %v3276
      %v3303 = vadd.f32 %v2854, %v3279
      %v3304 = vadd.f32 %v2855, %v3281
      %v3305 = vadd.f32 %v2856, %v3284
      %v3306 = vadd.f32 %v2857, %v3286
      %v3307 = vadd.f32 %v2858, %v3289
      %v3308 = vadd.f32 %v2859, %v3291
      %s3309 = scalar_lea.vmem %s7, 224
      %v3310 = vld [vmem:[%s3309] sm:$0xf]
      %v3311 = vld [vmem:[%s3309 + $0x4] sm:$0xf]
      %v3312 = vld [vmem:[%s3309 + $0x8] sm:$0xf]
      %v3313 = vld [vmem:[%s3309 + $0xc] sm:$0xf]
      %v3314 = vld [vmem:[%s3309 + $0x10] sm:$0xf]
      %v3315 = vld [vmem:[%s3309 + $0x14] sm:$0xf]
      %v3316 = vld [vmem:[%s3309 + $0x18] sm:$0xf]
      %v3317 = vld [vmem:[%s3309 + $0x1c] sm:$0xf]
      %v3334 = vunpack.c.l.b16 %v2861
      %v3335 = vunpack.c.l.b16 %v2862
      %v3336 = vunpack.c.l.b16 %v2863
      %v3337 = vunpack.c.l.b16 %v2864
      %v3338 = vunpack.c.l.b16 %v2865
      %v3339 = vunpack.c.l.b16 %v2866
      %v3340 = vunpack.c.l.b16 %v2867
      %v3341 = vunpack.c.l.b16 %v2868
      %v3342 = vunpack.c.l.b16 %v2869
      %v3343 = vunpack.c.l.b16 %v2870
      %v3344 = vunpack.c.l.b16 %v2871
      %v3345 = vunpack.c.l.b16 %v2872
      %v3346 = vunpack.c.l.b16 %v2873
      %v3347 = vunpack.c.l.b16 %v2874
      %v3348 = vunpack.c.l.b16 %v2875
      %v3349 = vunpack.c.l.b16 %v2876
      %v3350 = vpack.c.b16 %v3335, %v3334
      %v3351 = vpack.c.b16 %v3337, %v3336
      %v3352 = vpack.c.b16 %v3339, %v3338
      %v3353 = vpack.c.b16 %v3341, %v3340
      %v3354 = vpack.c.b16 %v3343, %v3342
      %v3355 = vpack.c.b16 %v3345, %v3344
      %v3356 = vpack.c.b16 %v3347, %v3346
      %v3357 = vpack.c.b16 %v3349, %v3348
      %v3366 = vunpack.c.l.b16 %v3310
      %v3367 = vunpack.c.l.b16 %v3311
      %v3368 = vunpack.c.l.b16 %v3312
      %v3369 = vunpack.c.l.b16 %v3313
      %v3370 = vunpack.c.l.b16 %v3314
      %v3371 = vunpack.c.l.b16 %v3315
      %v3372 = vunpack.c.l.b16 %v3316
      %v3373 = vunpack.c.l.b16 %v3317
      %v3374 = vpack.c.b16 %v3367, %v3366
      %v3375 = vpack.c.b16 %v3369, %v3368
      %v3376 = vpack.c.b16 %v3371, %v3370
      %v3377 = vpack.c.b16 %v3373, %v3372
      %v3383 = vsel %vm993, %v3350, 0
      %v3386 = vsel %vm993, %v3351, 0
      %v3389 = vsel %vm993, %v3352, 0
      %v3392 = vsel %vm993, %v3353, 0
      %v3395 = vsel %vm993, %v3354, 0
      %v3398 = vsel %vm993, %v3355, 0
      %v3401 = vsel %vm993, %v3356, 0
      %v3404 = vsel %vm993, %v3357, 0
      %3406 = vmatpush.bf16.msra.mxu0 0
      %3407 = vmatpush.bf16.msra.mxu0 0
      %3408 = vmatpush.bf16.msra.mxu0 0
      %3409 = vmatpush.bf16.msra.mxu0 0
      %3410 = vmatpush.bf16.msra.mxu0 %v3377
      %3411 = vmatpush.bf16.msra.mxu0 %v3376
      %3412 = vmatpush.bf16.msra.mxu0 %v3375
      %3413 = vmatpush.bf16.msra.mxu0 %v3374
      %3414 = vmatmul.bf16.gmra.mxu0 %v3383
      %v3415 = vpop.f32.mrf.mxu0
      %v3416 = vadd.f32 0.0, %v3415
      %v3417 = vpop.f32.mrf.mxu0
      %v3418 = vadd.f32 0.0, %v3417
      %3419 = vmatmul.bf16.gmra.mxu0 %v3386
      %v3420 = vpop.f32.mrf.mxu0
      %v3421 = vadd.f32 0.0, %v3420
      %v3422 = vpop.f32.mrf.mxu0
      %v3423 = vadd.f32 0.0, %v3422
      %3424 = vmatmul.bf16.gmra.mxu0 %v3389
      %v3425 = vpop.f32.mrf.mxu0
      %v3426 = vadd.f32 0.0, %v3425
      %v3427 = vpop.f32.mrf.mxu0
      %v3428 = vadd.f32 0.0, %v3427
      %3429 = vmatmul.bf16.gmra.mxu0 %v3392
      %v3430 = vpop.f32.mrf.mxu0
      %v3431 = vadd.f32 0.0, %v3430
      %v3432 = vpop.f32.mrf.mxu0
      %v3433 = vadd.f32 0.0, %v3432
      %3434 = vmatmul.bf16.gmra.mxu0 %v3395
      %v3435 = vpop.f32.mrf.mxu0
      %v3436 = vadd.f32 0.0, %v3435
      %v3437 = vpop.f32.mrf.mxu0
      %v3438 = vadd.f32 0.0, %v3437
      %3439 = vmatmul.bf16.gmra.mxu0 %v3398
      %v3440 = vpop.f32.mrf.mxu0
      %v3441 = vadd.f32 0.0, %v3440
      %v3442 = vpop.f32.mrf.mxu0
      %v3443 = vadd.f32 0.0, %v3442
      %3444 = vmatmul.bf16.gmra.mxu0 %v3401
      %v3445 = vpop.f32.mrf.mxu0
      %v3446 = vadd.f32 0.0, %v3445
      %v3447 = vpop.f32.mrf.mxu0
      %v3448 = vadd.f32 0.0, %v3447
      %3449 = vmatmul.bf16.gmra.mxu0 %v3404
      %v3450 = vpop.f32.mrf.mxu0
      %v3451 = vadd.f32 0.0, %v3450
      %v3452 = vpop.f32.mrf.mxu0
      %v3453 = vadd.f32 0.0, %v3452
      %3454 = vdwg.mxu0
      %v3455 = vadd.f32 %v3293, %v3416
      %v3456 = vadd.f32 %v3294, %v3418
      %v3457 = vadd.f32 %v3295, %v3421
      %v3458 = vadd.f32 %v3296, %v3423
      %v3459 = vadd.f32 %v3297, %v3426
      %v3460 = vadd.f32 %v3298, %v3428
      %v3461 = vadd.f32 %v3299, %v3431
      %v3462 = vadd.f32 %v3300, %v3433
      %v3463 = vadd.f32 %v3301, %v3436
      %v3464 = vadd.f32 %v3302, %v3438
      %v3465 = vadd.f32 %v3303, %v3441
      %v3466 = vadd.f32 %v3304, %v3443
      %v3467 = vadd.f32 %v3305, %v3446
      %v3468 = vadd.f32 %v3306, %v3448
      %v3469 = vadd.f32 %v3307, %v3451
      %v3470 = vadd.f32 %v3308, %v3453
      %v3471 = vld [vmem:[#allocation2 + $0x18] sm:$0xf]
      %v3472 = vld [vmem:[#allocation2 + $0x1c] sm:$0xf]
      %v3473 = vld [vmem:[#allocation2 + $0x20] sm:$0xf]
      %v3474 = vld [vmem:[#allocation2 + $0x24] sm:$0xf]
      %v3475 = vld [vmem:[#allocation2 + $0x28] sm:$0xf]
      %v3476 = vld [vmem:[#allocation2 + $0x2c] sm:$0xf]
      %v3477 = vld [vmem:[#allocation2 + $0x30] sm:$0xf]
      %v3478 = vld [vmem:[#allocation2 + $0x34] sm:$0xf]
      %v3479 = vld [vmem:[#allocation2 + $0x38] sm:$0xf]
      %v3480 = vld [vmem:[#allocation2 + $0x3c] sm:$0xf]
      %v3481 = vld [vmem:[#allocation2 + $0x40] sm:$0xf]
      %v3482 = vld [vmem:[#allocation2 + $0x44] sm:$0xf]
      %v3483 = vld [vmem:[#allocation2 + $0x48] sm:$0xf]
      %v3484 = vld [vmem:[#allocation2 + $0x4c] sm:$0xf]
      %v3485 = vld [vmem:[#allocation2 + $0x50] sm:$0xf]
      %v3486 = vld [vmem:[#allocation2 + $0x54] sm:$0xf]
      %v3487 = vld [vmem:[#allocation2 + $0x58] sm:$0x1]
      %v3488 = vld [vmem:[%s5 + $0x18] sm:$0xf]
      %v3489 = vld [vmem:[%s5 + $0x1c] sm:$0xf]
      %v3490 = vld [vmem:[%s5 + $0x20] sm:$0xf]
      %v3491 = vld [vmem:[%s5 + $0x24] sm:$0xf]
      %v3492 = vld [vmem:[%s5 + $0x28] sm:$0xf]
      %v3493 = vld [vmem:[%s5 + $0x2c] sm:$0xf]
      %v3494 = vld [vmem:[%s5 + $0x30] sm:$0xf]
      %v3495 = vld [vmem:[%s5 + $0x34] sm:$0xf]
      %v3496 = vld [vmem:[%s5 + $0x38] sm:$0xf]
      %v3497 = vld [vmem:[%s5 + $0x3c] sm:$0xf]
      %v3498 = vld [vmem:[%s5 + $0x40] sm:$0xf]
      %v3499 = vld [vmem:[%s5 + $0x44] sm:$0xf]
      %v3500 = vld [vmem:[%s5 + $0x48] sm:$0xf]
      %v3501 = vld [vmem:[%s5 + $0x4c] sm:$0xf]
      %v3502 = vld [vmem:[%s5 + $0x50] sm:$0xf]
      %v3503 = vld [vmem:[%s5 + $0x54] sm:$0xf]
      %v3504 = vld [vmem:[%s5 + $0x58] sm:$0x1]
      %3506 = vset.pattern.permute.xlu0 0
      %3507 = vperm.xlu0 %3506, %v3488
      %v3508 = vpop.permute.xlu0 %3507
      %v3511 = vunpack.c.l.s4 839922192
      %v3512 = vunpack.c.0.s8 %v3511
      %v3513 = vperm.slane %v3508, %v3512
      %3515 = vset.pattern.permute.xlu0 0
      %3516 = vperm.xlu0 %3515, %v3489
      %v3517 = vpop.permute.xlu0 %3516
      %v3520 = vunpack.c.l.s4 839922192
      %v3521 = vunpack.c.0.s8 %v3520
      %v3522 = vperm.slane %v3517, %v3521
      %3524 = vset.pattern.permute.xlu0 0
      %3525 = vperm.xlu0 %3524, %v3490
      %v3526 = vpop.permute.xlu0 %3525
      %v3529 = vunpack.c.l.s4 839922192
      %v3530 = vunpack.c.0.s8 %v3529
      %v3531 = vperm.slane %v3526, %v3530
      %3533 = vset.pattern.permute.xlu0 0
      %3534 = vperm.xlu0 %3533, %v3491
      %v3535 = vpop.permute.xlu0 %3534
      %v3538 = vunpack.c.l.s4 839922192
      %v3539 = vunpack.c.0.s8 %v3538
      %v3540 = vperm.slane %v3535, %v3539
      %3542 = vset.pattern.permute.xlu0 0
      %3543 = vperm.xlu0 %3542, %v3492
      %v3544 = vpop.permute.xlu0 %3543
      %v3547 = vunpack.c.l.s4 839922192
      %v3548 = vunpack.c.0.s8 %v3547
      %v3549 = vperm.slane %v3544, %v3548
      %3551 = vset.pattern.permute.xlu0 0
      %3552 = vperm.xlu0 %3551, %v3493
      %v3553 = vpop.permute.xlu0 %3552
      %v3556 = vunpack.c.l.s4 839922192
      %v3557 = vunpack.c.0.s8 %v3556
      %v3558 = vperm.slane %v3553, %v3557
      %3560 = vset.pattern.permute.xlu0 0
      %3561 = vperm.xlu0 %3560, %v3494
      %v3562 = vpop.permute.xlu0 %3561
      %v3565 = vunpack.c.l.s4 839922192
      %v3566 = vunpack.c.0.s8 %v3565
      %v3567 = vperm.slane %v3562, %v3566
      %3569 = vset.pattern.permute.xlu0 0
      %3570 = vperm.xlu0 %3569, %v3495
      %v3571 = vpop.permute.xlu0 %3570
      %v3574 = vunpack.c.l.s4 839922192
      %v3575 = vunpack.c.0.s8 %v3574
      %v3576 = vperm.slane %v3571, %v3575
      %3578 = vset.pattern.permute.xlu0 0
      %3579 = vperm.xlu0 %3578, %v3496
      %v3580 = vpop.permute.xlu0 %3579
      %v3583 = vunpack.c.l.s4 839922192
      %v3584 = vunpack.c.0.s8 %v3583
      %v3585 = vperm.slane %v3580, %v3584
      %3587 = vset.pattern.permute.xlu0 0
      %3588 = vperm.xlu0 %3587, %v3497
      %v3589 = vpop.permute.xlu0 %3588
      %v3592 = vunpack.c.l.s4 839922192
      %v3593 = vunpack.c.0.s8 %v3592
      %v3594 = vperm.slane %v3589, %v3593
      %3596 = vset.pattern.permute.xlu0 0
      %3597 = vperm.xlu0 %3596, %v3498
      %v3598 = vpop.permute.xlu0 %3597
      %v3601 = vunpack.c.l.s4 839922192
      %v3602 = vunpack.c.0.s8 %v3601
      %v3603 = vperm.slane %v3598, %v3602
      %3605 = vset.pattern.permute.xlu0 0
      %3606 = vperm.xlu0 %3605, %v3499
      %v3607 = vpop.permute.xlu0 %3606
      %v3610 = vunpack.c.l.s4 839922192
      %v3611 = vunpack.c.0.s8 %v3610
      %v3612 = vperm.slane %v3607, %v3611
      %3614 = vset.pattern.permute.xlu0 0
      %3615 = vperm.xlu0 %3614, %v3500
      %v3616 = vpop.permute.xlu0 %3615
      %v3619 = vunpack.c.l.s4 839922192
      %v3620 = vunpack.c.0.s8 %v3619
      %v3621 = vperm.slane %v3616, %v3620
      %3623 = vset.pattern.permute.xlu0 0
      %3624 = vperm.xlu0 %3623, %v3501
      %v3625 = vpop.permute.xlu0 %3624
      %v3628 = vunpack.c.l.s4 839922192
      %v3629 = vunpack.c.0.s8 %v3628
      %v3630 = vperm.slane %v3625, %v3629
      %3632 = vset.pattern.permute.xlu0 0
      %3633 = vperm.xlu0 %3632, %v3502
      %v3634 = vpop.permute.xlu0 %3633
      %v3637 = vunpack.c.l.s4 839922192
      %v3638 = vunpack.c.0.s8 %v3637
      %v3639 = vperm.slane %v3634, %v3638
      %3641 = vset.pattern.permute.xlu0 0
      %3642 = vperm.xlu0 %3641, %v3503
      %v3643 = vpop.permute.xlu0 %3642
      %v3646 = vunpack.c.l.s4 839922192
      %v3647 = vunpack.c.0.s8 %v3646
      %v3648 = vperm.slane %v3643, %v3647
      %3650 = vset.pattern.permute.xlu0 0
      %3651 = vperm.xlu0 %3650, %v3504
      %v3652 = vpop.permute.xlu0 %3651
      %v3655 = vunpack.c.l.s4 839922192
      %v3656 = vunpack.c.0.s8 %v3655
      %v3657 = vperm.slane %v3652, %v3656
      %v3658 = vunpack.c.l.bf16 %v3471
      %v3659 = vunpack.c.l.bf16 %v3472
      %v3660 = vunpack.c.l.bf16 %v3473
      %v3661 = vunpack.c.l.bf16 %v3474
      %v3662 = vunpack.c.l.bf16 %v3475
      %v3663 = vunpack.c.l.bf16 %v3476
      %v3664 = vunpack.c.l.bf16 %v3477
      %v3665 = vunpack.c.l.bf16 %v3478
      %v3666 = vunpack.c.l.bf16 %v3479
      %v3667 = vunpack.c.l.bf16 %v3480
      %v3668 = vunpack.c.l.bf16 %v3481
      %v3669 = vunpack.c.l.bf16 %v3482
      %v3670 = vunpack.c.l.bf16 %v3483
      %v3671 = vunpack.c.l.bf16 %v3484
      %v3672 = vunpack.c.l.bf16 %v3485
      %v3673 = vunpack.c.l.bf16 %v3486
      %v3674 = vunpack.c.l.bf16 %v3487
      %v3675 = vunpack.c.l.bf16 %v3513
      %v3676 = vunpack.c.l.bf16 %v3522
      %v3677 = vunpack.c.l.bf16 %v3531
      %v3678 = vunpack.c.l.bf16 %v3540
      %v3679 = vunpack.c.l.bf16 %v3549
      %v3680 = vunpack.c.l.bf16 %v3558
      %v3681 = vunpack.c.l.bf16 %v3567
      %v3682 = vunpack.c.l.bf16 %v3576
      %v3683 = vunpack.c.l.bf16 %v3585
      %v3684 = vunpack.c.l.bf16 %v3594
      %v3685 = vunpack.c.l.bf16 %v3603
      %v3686 = vunpack.c.l.bf16 %v3612
      %v3687 = vunpack.c.l.bf16 %v3621
      %v3688 = vunpack.c.l.bf16 %v3630
      %v3689 = vunpack.c.l.bf16 %v3639
      %v3690 = vunpack.c.l.bf16 %v3648
      %v3691 = vunpack.c.l.bf16 %v3657
      %v3692 = vmul.f32 %v3658, %v3675
      %v3693 = vmul.f32 %v3659, %v3676
      %v3694 = vmul.f32 %v3660, %v3677
      %v3695 = vmul.f32 %v3661, %v3678
      %v3696 = vmul.f32 %v3662, %v3679
      %v3697 = vmul.f32 %v3663, %v3680
      %v3698 = vmul.f32 %v3664, %v3681
      %v3699 = vmul.f32 %v3665, %v3682
      %v3700 = vmul.f32 %v3666, %v3683
      %v3701 = vmul.f32 %v3667, %v3684
      %v3702 = vmul.f32 %v3668, %v3685
      %v3703 = vmul.f32 %v3669, %v3686
      %v3704 = vmul.f32 %v3670, %v3687
      %v3705 = vmul.f32 %v3671, %v3688
      %v3706 = vmul.f32 %v3672, %v3689
      %v3707 = vmul.f32 %v3673, %v3690
      %v3708 = vmul.f32 %v3674, %v3691
      %v3709 = vpack.c.bf16 %v3693, %v3692
      %v3710 = vpack.c.bf16 %v3695, %v3694
      %v3711 = vpack.c.bf16 %v3697, %v3696
      %v3712 = vpack.c.bf16 %v3699, %v3698
      %v3713 = vpack.c.bf16 %v3701, %v3700
      %v3714 = vpack.c.bf16 %v3703, %v3702
      %v3715 = vpack.c.bf16 %v3705, %v3704
      %v3716 = vpack.c.bf16 %v3707, %v3706
      %v3717 = vpack.c.bf16 %v3708, %v3708
      %s3718 = scalar_lea.vmem %s7, 256
      %v3719 = vld [vmem:[%s3718] sm:$0xf]
      %v3720 = vld [vmem:[%s3718 + $0x4] sm:$0xf]
      %v3721 = vld [vmem:[%s3718 + $0x8] sm:$0xf]
      %v3722 = vld [vmem:[%s3718 + $0xc] sm:$0xf]
      %v3723 = vld [vmem:[%s3718 + $0x10] sm:$0xf]
      %v3724 = vld [vmem:[%s3718 + $0x14] sm:$0xf]
      %v3725 = vld [vmem:[%s3718 + $0x18] sm:$0xf]
      %v3726 = vld [vmem:[%s3718 + $0x1c] sm:$0xf]
      %v3728 = vshrl.u32 %v3709, 16
      %v3730 = vshll.u32 %v3709, 16
      %v3732 = vrot.slane %v3730, 1
      %v3733 = vor.u32 %v3728, %v3732
      %v3735 = vshll.u32 %v3710, 16
      %v3737 = vrot.slane %v3735, 1
      %v3738 = vsel %vm1630, %v3733, %v3737
      %v3739 = vshrl.u32 %v3710, 16
      %v3741 = vor.u32 %v3739, %v3737
      %v3743 = vshll.u32 %v3711, 16
      %v3745 = vrot.slane %v3743, 1
      %v3746 = vsel %vm1630, %v3741, %v3745
      %v3747 = vshrl.u32 %v3711, 16
      %v3749 = vor.u32 %v3747, %v3745
      %v3751 = vshll.u32 %v3712, 16
      %v3753 = vrot.slane %v3751, 1
      %v3754 = vsel %vm1630, %v3749, %v3753
      %v3755 = vshrl.u32 %v3712, 16
      %v3757 = vor.u32 %v3755, %v3753
      %v3759 = vshll.u32 %v3713, 16
      %v3761 = vrot.slane %v3759, 1
      %v3762 = vsel %vm1630, %v3757, %v3761
      %v3763 = vshrl.u32 %v3713, 16
      %v3765 = vor.u32 %v3763, %v3761
      %v3767 = vshll.u32 %v3714, 16
      %v3769 = vrot.slane %v3767, 1
      %v3770 = vsel %vm1630, %v3765, %v3769
      %v3771 = vshrl.u32 %v3714, 16
      %v3773 = vor.u32 %v3771, %v3769
      %v3775 = vshll.u32 %v3715, 16
      %v3777 = vrot.slane %v3775, 1
      %v3778 = vsel %vm1630, %v3773, %v3777
      %v3779 = vshrl.u32 %v3715, 16
      %v3781 = vor.u32 %v3779, %v3777
      %v3783 = vshll.u32 %v3716, 16
      %v3785 = vrot.slane %v3783, 1
      %v3786 = vsel %vm1630, %v3781, %v3785
      %v3787 = vshrl.u32 %v3716, 16
      %v3789 = vor.u32 %v3787, %v3785
      %v3791 = vshll.u32 %v3717, 16
      %v3793 = vrot.slane %v3791, 1
      %v3794 = vsel %vm1630, %v3789, %v3793
      %v3803 = vunpack.c.l.b16 %v3719
      %v3804 = vunpack.c.l.b16 %v3720
      %v3805 = vunpack.c.l.b16 %v3721
      %v3806 = vunpack.c.l.b16 %v3722
      %v3807 = vunpack.c.l.b16 %v3723
      %v3808 = vunpack.c.l.b16 %v3724
      %v3809 = vunpack.c.l.b16 %v3725
      %v3810 = vunpack.c.l.b16 %v3726
      %v3811 = vpack.c.b16 %v3804, %v3803
      %v3812 = vpack.c.b16 %v3806, %v3805
      %v3813 = vpack.c.b16 %v3808, %v3807
      %v3814 = vpack.c.b16 %v3810, %v3809
      %v3820 = vsel %vm993, %v3738, 0
      %v3823 = vsel %vm993, %v3746, 0
      %v3826 = vsel %vm993, %v3754, 0
      %v3829 = vsel %vm993, %v3762, 0
      %v3832 = vsel %vm993, %v3770, 0
      %v3835 = vsel %vm993, %v3778, 0
      %v3838 = vsel %vm993, %v3786, 0
      %v3841 = vsel %vm993, %v3794, 0
      %3843 = vmatpush.bf16.msra.mxu0 0
      %3844 = vmatpush.bf16.msra.mxu0 0
      %3845 = vmatpush.bf16.msra.mxu0 0
      %3846 = vmatpush.bf16.msra.mxu0 0
      %3847 = vmatpush.bf16.msra.mxu0 %v3814
      %3848 = vmatpush.bf16.msra.mxu0 %v3813
      %3849 = vmatpush.bf16.msra.mxu0 %v3812
      %3850 = vmatpush.bf16.msra.mxu0 %v3811
      %3851 = vmatmul.bf16.gmra.mxu0 %v3820
      %v3852 = vpop.f32.mrf.mxu0
      %v3853 = vadd.f32 0.0, %v3852
      %v3854 = vpop.f32.mrf.mxu0
      %v3855 = vadd.f32 0.0, %v3854
      %3856 = vmatmul.bf16.gmra.mxu0 %v3823
      %v3857 = vpop.f32.mrf.mxu0
      %v3858 = vadd.f32 0.0, %v3857
      %v3859 = vpop.f32.mrf.mxu0
      %v3860 = vadd.f32 0.0, %v3859
      %3861 = vmatmul.bf16.gmra.mxu0 %v3826
      %v3862 = vpop.f32.mrf.mxu0
      %v3863 = vadd.f32 0.0, %v3862
      %v3864 = vpop.f32.mrf.mxu0
      %v3865 = vadd.f32 0.0, %v3864
      %3866 = vmatmul.bf16.gmra.mxu0 %v3829
      %v3867 = vpop.f32.mrf.mxu0
      %v3868 = vadd.f32 0.0, %v3867
      %v3869 = vpop.f32.mrf.mxu0
      %v3870 = vadd.f32 0.0, %v3869
      %3871 = vmatmul.bf16.gmra.mxu0 %v3832
      %v3872 = vpop.f32.mrf.mxu0
      %v3873 = vadd.f32 0.0, %v3872
      %v3874 = vpop.f32.mrf.mxu0
      %v3875 = vadd.f32 0.0, %v3874
      %3876 = vmatmul.bf16.gmra.mxu0 %v3835
      %v3877 = vpop.f32.mrf.mxu0
      %v3878 = vadd.f32 0.0, %v3877
      %v3879 = vpop.f32.mrf.mxu0
      %v3880 = vadd.f32 0.0, %v3879
      %3881 = vmatmul.bf16.gmra.mxu0 %v3838
      %v3882 = vpop.f32.mrf.mxu0
      %v3883 = vadd.f32 0.0, %v3882
      %v3884 = vpop.f32.mrf.mxu0
      %v3885 = vadd.f32 0.0, %v3884
      %3886 = vmatmul.bf16.gmra.mxu0 %v3841
      %v3887 = vpop.f32.mrf.mxu0
      %v3888 = vadd.f32 0.0, %v3887
      %v3889 = vpop.f32.mrf.mxu0
      %v3890 = vadd.f32 0.0, %v3889
      %3891 = vdwg.mxu0
      %v3892 = vadd.f32 %v3455, %v3853
      %v3893 = vadd.f32 %v3456, %v3855
      %v3894 = vadd.f32 %v3457, %v3858
      %v3895 = vadd.f32 %v3458, %v3860
      %v3896 = vadd.f32 %v3459, %v3863
      %v3897 = vadd.f32 %v3460, %v3865
      %v3898 = vadd.f32 %v3461, %v3868
      %v3899 = vadd.f32 %v3462, %v3870
      %v3900 = vadd.f32 %v3463, %v3873
      %v3901 = vadd.f32 %v3464, %v3875
      %v3902 = vadd.f32 %v3465, %v3878
      %v3903 = vadd.f32 %v3466, %v3880
      %v3904 = vadd.f32 %v3467, %v3883
      %v3905 = vadd.f32 %v3468, %v3885
      %v3906 = vadd.f32 %v3469, %v3888
      %v3907 = vadd.f32 %v3470, %v3890
      %v3908 = vld [vmem:[%s8] sm:$0x1]
      %v3910 = vperm.slane %v3908, 0
      %v3912 = vadd.f32 %v3892, %v3910
      %v3913 = vadd.f32 %v3893, %v3910
      %v3914 = vadd.f32 %v3894, %v3910
      %v3915 = vadd.f32 %v3895, %v3910
      %v3916 = vadd.f32 %v3896, %v3910
      %v3917 = vadd.f32 %v3897, %v3910
      %v3918 = vadd.f32 %v3898, %v3910
      %v3919 = vadd.f32 %v3899, %v3910
      %v3920 = vadd.f32 %v3900, %v3910
      %v3921 = vadd.f32 %v3901, %v3910
      %v3922 = vadd.f32 %v3902, %v3910
      %v3923 = vadd.f32 %v3903, %v3910
      %v3924 = vadd.f32 %v3904, %v3910
      %v3925 = vadd.f32 %v3905, %v3910
      %v3926 = vadd.f32 %v3906, %v3910
      %v3927 = vadd.f32 %v3907, %v3910
      %v3928 = vpack.c.bf16 %v3912, %v3912
      %v3929 = vpack.c.bf16 %v3913, %v3913
      %v3930 = vpack.c.bf16 %v3914, %v3914
      %v3931 = vpack.c.bf16 %v3915, %v3915
      %v3932 = vpack.c.bf16 %v3916, %v3916
      %v3933 = vpack.c.bf16 %v3917, %v3917
      %v3934 = vpack.c.bf16 %v3918, %v3918
      %v3935 = vpack.c.bf16 %v3919, %v3919
      %v3936 = vpack.c.bf16 %v3920, %v3920
      %v3937 = vpack.c.bf16 %v3921, %v3921
      %v3938 = vpack.c.bf16 %v3922, %v3922
      %v3939 = vpack.c.bf16 %v3923, %v3923
      %v3940 = vpack.c.bf16 %v3924, %v3924
      %v3941 = vpack.c.bf16 %v3925, %v3925
      %v3942 = vpack.c.bf16 %v3926, %v3926
      %v3943 = vpack.c.bf16 %v3927, %v3927
      %3944 = vst.msk [vmem:[%s484] sm:$0xf] %vm579, %v3928
      %3945 = vst.msk [vmem:[%s484 + $0x4] sm:$0xf] %vm579, %v3929
      %3946 = vst.msk [vmem:[%s484 + $0x8] sm:$0xf] %vm579, %v3930
      %3947 = vst.msk [vmem:[%s484 + $0xc] sm:$0xf] %vm579, %v3931
      %3948 = vst.msk [vmem:[%s484 + $0x10] sm:$0xf] %vm579, %v3932
      %3949 = vst.msk [vmem:[%s484 + $0x14] sm:$0xf] %vm579, %v3933
      %3950 = vst.msk [vmem:[%s484 + $0x18] sm:$0xf] %vm579, %v3934
      %3951 = vst.msk [vmem:[%s484 + $0x1c] sm:$0xf] %vm579, %v3935
      %3952 = vst.msk [vmem:[%s484 + $0x20] sm:$0xf] %vm579, %v3936
      %3953 = vst.msk [vmem:[%s484 + $0x24] sm:$0xf] %vm579, %v3937
      %3954 = vst.msk [vmem:[%s484 + $0x28] sm:$0xf] %vm579, %v3938
      %3955 = vst.msk [vmem:[%s484 + $0x2c] sm:$0xf] %vm579, %v3939
      %3956 = vst.msk [vmem:[%s484 + $0x30] sm:$0xf] %vm579, %v3940
      %3957 = vst.msk [vmem:[%s484 + $0x34] sm:$0xf] %vm579, %v3941
      %3958 = vst.msk [vmem:[%s484 + $0x38] sm:$0xf] %vm579, %v3942
      %3959 = vst.msk [vmem:[%s484 + $0x3c] sm:$0xf] %vm579, %v3943
      %v3960 = vsel %vm993, %v3912, 0.0
      %v3961 = vsel %vm993, %v3913, 0.0
      %v3962 = vadd.f32 %v3960, %v3961
      %v3963 = vsel %vm993, %v3914, 0.0
      %v3964 = vadd.f32 %v3962, %v3963
      %v3965 = vsel %vm993, %v3915, 0.0
      %v3966 = vadd.f32 %v3964, %v3965
      %v3967 = vsel %vm993, %v3916, 0.0
      %v3968 = vadd.f32 %v3966, %v3967
      %v3969 = vsel %vm993, %v3917, 0.0
      %v3970 = vadd.f32 %v3968, %v3969
      %v3971 = vsel %vm993, %v3918, 0.0
      %v3972 = vadd.f32 %v3970, %v3971
      %v3973 = vsel %vm993, %v3919, 0.0
      %v3974 = vadd.f32 %v3972, %v3973
      %v3975 = vsel %vm993, %v3920, 0.0
      %v3976 = vadd.f32 %v3974, %v3975
      %v3977 = vsel %vm993, %v3921, 0.0
      %v3978 = vadd.f32 %v3976, %v3977
      %v3979 = vsel %vm993, %v3922, 0.0
      %v3980 = vadd.f32 %v3978, %v3979
      %v3981 = vsel %vm993, %v3923, 0.0
      %v3982 = vadd.f32 %v3980, %v3981
      %v3983 = vsel %vm993, %v3924, 0.0
      %v3984 = vadd.f32 %v3982, %v3983
      %v3985 = vsel %vm993, %v3925, 0.0
      %v3986 = vadd.f32 %v3984, %v3985
      %v3987 = vsel %vm993, %v3926, 0.0
      %v3988 = vadd.f32 %v3986, %v3987
      %v3989 = vsel %vm993, %v3927, 0.0
      %v3990 = vadd.f32 %v3988, %v3989
      %v3991 = vrot.slane %v3990, 4
      %v3992 = vadd.f32 %v3990, %v3991
      %v3993 = vrot.slane %v3992, 2
      %v3994 = vadd.f32 %v3992, %v3993
      %v3995 = vrot.slane %v3994, 1
      %v3996 = vadd.f32 %v3994, %v3995
      %vm3997 = vcmask 516096
      %3998 = vst.msk [vmem:[%s489] sm:$0x1] %vm3997, %v3996
      %v3999 = vmul.f32 %v3912, %v3912
      %v4000 = vmul.f32 %v3913, %v3913
      %v4001 = vmul.f32 %v3914, %v3914
      %v4002 = vmul.f32 %v3915, %v3915
      %v4003 = vmul.f32 %v3916, %v3916
      %v4004 = vmul.f32 %v3917, %v3917
      %v4005 = vmul.f32 %v3918, %v3918
      %v4006 = vmul.f32 %v3919, %v3919
      %v4007 = vmul.f32 %v3920, %v3920
      %v4008 = vmul.f32 %v3921, %v3921
      %v4009 = vmul.f32 %v3922, %v3922
      %v4010 = vmul.f32 %v3923, %v3923
      %v4011 = vmul.f32 %v3924, %v3924
      %v4012 = vmul.f32 %v3925, %v3925
      %v4013 = vmul.f32 %v3926, %v3926
      %v4014 = vmul.f32 %v3927, %v3927
      %v4015 = vsel %vm993, %v3999, 0.0
      %v4016 = vsel %vm993, %v4000, 0.0
      %v4017 = vadd.f32 %v4015, %v4016
      %v4018 = vsel %vm993, %v4001, 0.0
      %v4019 = vadd.f32 %v4017, %v4018
      %v4020 = vsel %vm993, %v4002, 0.0
      %v4021 = vadd.f32 %v4019, %v4020
      %v4022 = vsel %vm993, %v4003, 0.0
      %v4023 = vadd.f32 %v4021, %v4022
      %v4024 = vsel %vm993, %v4004, 0.0
      %v4025 = vadd.f32 %v4023, %v4024
      %v4026 = vsel %vm993, %v4005, 0.0
      %v4027 = vadd.f32 %v4025, %v4026
      %v4028 = vsel %vm993, %v4006, 0.0
      %v4029 = vadd.f32 %v4027, %v4028
      %v4030 = vsel %vm993, %v4007, 0.0
      %v4031 = vadd.f32 %v4029, %v4030
      %v4032 = vsel %vm993, %v4008, 0.0
      %v4033 = vadd.f32 %v4031, %v4032
      %v4034 = vsel %vm993, %v4009, 0.0
      %v4035 = vadd.f32 %v4033, %v4034
      %v4036 = vsel %vm993, %v4010, 0.0
      %v4037 = vadd.f32 %v4035, %v4036
      %v4038 = vsel %vm993, %v4011, 0.0
      %v4039 = vadd.f32 %v4037, %v4038
      %v4040 = vsel %vm993, %v4012, 0.0
      %v4041 = vadd.f32 %v4039, %v4040
      %v4042 = vsel %vm993, %v4013, 0.0
      %v4043 = vadd.f32 %v4041, %v4042
      %v4044 = vsel %vm993, %v4014, 0.0
      %v4045 = vadd.f32 %v4043, %v4044
      %v4046 = vrot.slane %v4045, 4
      %v4047 = vadd.f32 %v4045, %v4046
      %v4048 = vrot.slane %v4047, 2
      %v4049 = vadd.f32 %v4047, %v4048
      %v4050 = vrot.slane %v4049, 1
      %v4051 = vadd.f32 %v4049, %v4050
      %4052 = vst.msk [vmem:[%s489 + $0x1] sm:$0x1] %vm3997, %v4051
      %s4053 = smul.u32 16, %s24
      %p4054 = scmp.lt.s32.totalorder %s4053, 63
      %s4055 = scalar_select %p4054, %s4053, 63
      %s4056 = smul.addr %s4055, 4
      %s4057 = scalar_lea.vmem %s11, %s4056
      %p4058 = scmp.lt.s32.totalorder %s24, 3
      %s4059 = scalar_select %p4058, %s24, 3
      %s4060 = smul.addr %s4059, 2
      %s4061 = scalar_lea.vmem %s12, %s4060
      // Predicated region
      $region65: #{encoder_forward.6} parent=63 // pred_check
        %p4062 = pneg %p293
      $region66: #{encoder_forward.6} parent=63 // pred_check_branch
        %4064 = sbr.rel (%p4062) target = $region68
      $region67: #{encoder_forward.6} parent=63 // pred_region
        %s4065 = smul.u32 16, %s24
      $region68: #{encoder_forward.6} parent=63 // pred_fallthru
        _
      // Predicated region
      $region69: #{encoder_forward.6} parent=63 // pred_check
        %p4066 = pneg %p319
      $region70: #{encoder_forward.6} parent=63 // pred_check_branch
        %4068 = sbr.rel (%p4066) target = $region72
      $region71: #{encoder_forward.6} parent=63 // pred_region
        _
      $region72: #{encoder_forward.6} parent=63 // pred_fallthru
        _
    $region64: #{encoder_forward.6} parent=5 // pred_fallthru
      _
    %p4069 = scmp.le.s32.totalorder 2, %s19
    // Predicated region
    $region73: #{encoder_forward.6} parent=5 // pred_check
      %p4070 = pneg %p4069
    $region74: #{encoder_forward.6} parent=5 // pred_check_branch
      %4072 = sbr.rel (%p4070) target = $region76
    $region75: #{encoder_forward.6} parent=5 // pred_region
      %s4073 = ssub.s32 %s19, 2
      // Predicated region
      $region77: #{encoder_forward.6} parent=75 // pred_check
        %p4074 = pneg %p299
      $region78: #{encoder_forward.6} parent=75 // pred_check_branch
        %4076 = sbr.rel (%p4074) target = $region80
      $region79: #{encoder_forward.6} parent=75 // pred_region
        %s4077 = smul.u32 16, %s25
        %p4078 = scmp.lt.s32.totalorder %s4077, 63
        %s4079 = scalar_select %p4078, %s4077, 63
        %s4080 = smul.addr %s4079, 4
        %s4081 = scalar_lea.vmem %s11, %s4080
      $region80: #{encoder_forward.6} parent=75 // pred_fallthru
        _
      // Predicated region
      $region81: #{encoder_forward.6} parent=75 // pred_check
        %p4082 = pneg %p325
      $region82: #{encoder_forward.6} parent=75 // pred_check_branch
        %4084 = sbr.rel (%p4082) target = $region84
      $region83: #{encoder_forward.6} parent=75 // pred_region
        %p4085 = scmp.lt.s32.totalorder %s25, 3
        %s4086 = scalar_select %p4085, %s25, 3
        %s4087 = smul.addr %s4086, 2
        %s4088 = scalar_lea.vmem %s12, %s4087
      $region84: #{encoder_forward.6} parent=75 // pred_fallthru
        _
    $region76: #{encoder_forward.6} parent=5 // pred_fallthru
      _
  $region6: #{encoder_forward.6} parent=0 // loop_footer
    %s23 = sadd.s32 1, %s19
  $region7: #{encoder_forward.6} parent=0 // loop_footer_branch
    %18 = sbr.rel target = $region3
  $region8: #{encoder_forward.6} parent=0 // loop_exit
    _

</llo_original>
